<compile_context>
chip_gen: v5e
topology: v5e:2x2
jax: 0.10.0
libtpu: 0.0.40
codegen_flags: <defaults>
</compile_context>

<pallas_src>
import functools
import math

import jax
import jax.numpy as jnp
from jax import lax
from jax.experimental import pallas as pl
from jax.experimental.pallas import tpu as pltpu


def _round_up(x, m):
    return (x + m - 1) // m * m


_MM_VMEM_BUDGET = 24 * 1024 * 1024     # target working set per GEMM kernel
_VMEM_LIMIT = 48 * 1024 * 1024         # < 64 MiB physical VMEM on v7x


# --------------------------------------------------------------------------
# Pallas matmul kernel (bf16 MXU operands, f32 accumulation)
# --------------------------------------------------------------------------
def _matmul_kernel(a_ref, b_ref, o_ref, acc_ref):
    @pl.when(pl.program_id(2) == 0)
    def _():
        acc_ref[...] = jnp.zeros_like(acc_ref)

    acc_ref[...] += jnp.dot(a_ref[...].astype(jnp.bfloat16), b_ref[...],
                            preferred_element_type=jnp.float32)

    @pl.when(pl.program_id(2) == pl.num_programs(2) - 1)
    def _():
        o_ref[...] = acc_ref[...]


def _full_k_cap(K, tn):
    lane_k = _round_up(K, 128)
    lane_n = _round_up(tn, 128)
    sub_k = _round_up(K, 16)
    return (_MM_VMEM_BUDGET - 4 * sub_k * lane_n) // (8 * lane_k + 12 * lane_n)


def _rhs_tiles(K, N):
    """Tile / padded sizes for a (K,N) weight; depends only on (K,N) so the
    weight can be pre-padded once at init."""
    if N <= 128:                      # don't pad narrow outputs (N=3/64)
        tn, Np = N, N
    else:
        tn, Np = 256, _round_up(N, 256)   # fill the 256-wide MXU on v6e/v7x
    if _full_k_cap(K, tn) >= 32:      # single K block fits the VMEM budget
        Kp = _round_up(K, 16)
        tk = Kp
    else:                             # chunk K (only the 56448-K branch conv)
        kp128 = _round_up(K, 128)
        tk = 0
        t = 8192
        while t >= 1024:
            if kp128 % t == 0:
                tk = t
                break
            t -= 128
        if tk == 0:
            nch = -(-kp128 // 8192)
            tk = _round_up(-(-kp128 // nch), 128)
        Kp = _round_up(kp128, tk)
    return tk, tn, Kp, Np


def _pick_tm(M, tk, tn):
    lane_k = _round_up(tk, 128)
    lane_n = _round_up(tn, 128)
    sub_k = _round_up(tk, 16)
    cap = (_MM_VMEM_BUDGET - 4 * sub_k * lane_n) // (8 * lane_k + 12 * lane_n)
    cap = max(8, min(4096, cap)) // 8 * 8
    Mp8 = _round_up(M, 8)
    t = min(cap, Mp8)
    while t >= 8:
        if Mp8 % t == 0:
            return t, Mp8
        t -= 8
    return 8, Mp8


def prep_matmul_rhs(w):
    """Cast a (K,N) f32 weight to bf16 and pad to its tile grid ONCE."""
    K, N = w.shape
    tk, tn, Kp, Np = _rhs_tiles(K, N)
    wp = w.astype(jnp.bfloat16)
    if Kp != K or Np != N:
        wp = jnp.pad(wp, ((0, Kp - K), (0, Np - N)))
    return {"wp": wp, "K": K, "N": N, "tk": tk, "tn": tn}


@functools.lru_cache(maxsize=None)
def _matmul_callable(Mp, Kp, Np, tm, tk, tn):
    fn = pl.pallas_call(
        _matmul_kernel,
        out_shape=jax.ShapeDtypeStruct((Mp, Np), jnp.float32),
        grid_spec=pltpu.PrefetchScalarGridSpec(
            num_scalar_prefetch=0,
            grid=(Mp // tm, Np // tn, Kp // tk),
            in_specs=[pl.BlockSpec((tm, tk), lambda i, j, k: (i, k)),
                      pl.BlockSpec((tk, tn), lambda i, j, k: (k, j))],
            out_specs=pl.BlockSpec((tm, tn), lambda i, j, k: (i, j)),
            scratch_shapes=[pltpu.VMEM((tm, tn), jnp.float32)]),
        compiler_params=pltpu.CompilerParams(
            dimension_semantics=("parallel", "parallel", "arbitrary"),
            vmem_limit_bytes=_VMEM_LIMIT))
    return jax.jit(fn)


def pallas_matmul(a, rhs):
    """(M,K) f32 @ pre-padded bf16 (K,N) weight -> (M,N) f32."""
    if not isinstance(rhs, dict):
        rhs = prep_matmul_rhs(rhs)
    wp, K, N, tk, tn = rhs["wp"], rhs["K"], rhs["N"], rhs["tk"], rhs["tn"]
    Kp, Np = wp.shape
    a = a.astype(jnp.float32)
    M = a.shape[0]
    assert a.shape[1] == K
    tm, Mp = _pick_tm(M, tk, tn)
    if Mp != M or Kp != K:
        a = jnp.pad(a, ((0, Mp - M), (0, Kp - K)))
    out = _matmul_callable(Mp, Kp, Np, tm, tk, tn)(a, wp)
    if Mp != M or Np != N:
        out = out[:M, :N]
    return out


# --------------------------------------------------------------------------
# Batched Gram kernel for the GWA patch attention
# --------------------------------------------------------------------------
def _gram_kernel(x_ref, o_ref):
    x = x_ref[...]                                           # (Nb, 56, 56)
    o_ref[...] = jnp.einsum("bij,bkj->bik", x, x,
                            preferred_element_type=jnp.float32) * (1.0 / x_ref.shape[-1])


@functools.lru_cache(maxsize=None)
def _gram_callable(n, nb, s):
    fn = pl.pallas_call(
        _gram_kernel,
        out_shape=jax.ShapeDtypeStruct((n, s, s), jnp.float32),
        grid=(n // nb,),
        in_specs=[pl.BlockSpec((nb, s, s), lambda i: (i, 0, 0))],
        out_specs=pl.BlockSpec((nb, s, s), lambda i: (i, 0, 0)),
        compiler_params=pltpu.CompilerParams(
            dimension_semantics=("parallel",),
            vmem_limit_bytes=_VMEM_LIMIT))
    return jax.jit(fn)


def pallas_gram56(x):
    """x: (N,56,56) -> out[n] = x[n] @ x[n].T / 56, batched 16 per grid step."""
    n, s, _ = x.shape
    nb = 16 if n % 16 == 0 else (8 if n % 8 == 0 else 1)
    return _gram_callable(n, nb, s)(x.astype(jnp.float32))


# --------------------------------------------------------------------------
# Fused 12-layer VTA transformer kernel (grid over layers)
# --------------------------------------------------------------------------
def _make_vta_kernel(S, H, dh, D):
    scale = 1.0 / math.sqrt(dh)

    def kernel(x_ref, ln1g_ref, ln1b_ref, wqkv_ref, bqkv_ref, wo_ref, bo_ref,
               ln2g_ref, ln2b_ref, w1_ref, b1_ref, w2_ref, b2_ref,
               o_ref, x_sc):
        layer = pl.program_id(0)
        BS = x_ref.shape[0]

        @pl.when(layer == 0)
        def _():
            x_sc[...] = x_ref[...]

        def ln(v, g, b):
            mu = jnp.mean(v, axis=-1, keepdims=True)
            vc = v - mu
            var = jnp.mean(vc * vc, axis=-1, keepdims=True)
            return vc * lax.rsqrt(var + 1e-5) * g + b

        x = x_sc[...]                                        # (BS, D) f32
        h = ln(x, ln1g_ref[...], ln1b_ref[...])
        qkv = jnp.dot(h.astype(jnp.bfloat16), wqkv_ref[0],
                      preferred_element_type=jnp.float32) + bqkv_ref[...]

        # per-(batch) attention done on the flattened (BS,BS) score matrix with
        # a block-diagonal batch mask (S=4 tokens per batch element).
        row = lax.broadcasted_iota(jnp.int32, (BS, BS), 0)
        col = lax.broadcasted_iota(jnp.int32, (BS, BS), 1)
        same = (row // S) == (col // S)
        parts = []
        for hh in range(H):
            qh = qkv[:, hh * dh:(hh + 1) * dh]
            kh = qkv[:, D + hh * dh:D + (hh + 1) * dh]
            vh = qkv[:, 2 * D + hh * dh:2 * D + (hh + 1) * dh]
            s = lax.dot_general(qh, kh, (((1,), (1,)), ((), ())),
                                preferred_element_type=jnp.float32) * scale
            s = jnp.where(same, s, -1e30)
            s = s - jnp.max(s, axis=-1, keepdims=True)
            e = jnp.exp(s)
            prob = e / jnp.sum(e, axis=-1, keepdims=True)
            parts.append(jnp.dot(prob, vh, preferred_element_type=jnp.float32))
        ctx = jnp.concatenate(parts, axis=1)                 # (BS, D)

        x = x + jnp.dot(ctx.astype(jnp.bfloat16), wo_ref[0],
                        preferred_element_type=jnp.float32) + bo_ref[...]
        h2 = ln(x, ln2g_ref[...], ln2b_ref[...])
        ff = jnp.dot(h2.astype(jnp.bfloat16), w1_ref[0],
                     preferred_element_type=jnp.float32) + b1_ref[...]
        # TODO(synk): exact erf-GELU replaced by tanh-approx GELU inside the kernel.
        ff = jax.nn.gelu(ff, approximate=True)
        x = x + jnp.dot(ff.astype(jnp.bfloat16), w2_ref[0],
                        preferred_element_type=jnp.float32) + b2_ref[...]
        x_sc[...] = x

        @pl.when(layer == pl.num_programs(0) - 1)
        def _():
            o_ref[...] = x

    return kernel


@functools.lru_cache(maxsize=None)
def _vta_callable(L, BS, S, D, F, H):
    dh = D // H
    kernel = _make_vta_kernel(S, H, dh, D)

    def per_layer(shp):
        return pl.BlockSpec((1,) + shp, lambda l: (l,) + (0,) * len(shp))

    grid_spec = pltpu.PrefetchScalarGridSpec(
        num_scalar_prefetch=0,
        grid=(L,),
        in_specs=[
            pl.BlockSpec((BS, D), lambda l: (0, 0)),         # x
            per_layer((D,)), per_layer((D,)),                # ln1 g, b
            per_layer((D, 3 * D)), per_layer((3 * D,)),      # wqkv, bqkv
            per_layer((D, D)), per_layer((D,)),              # wo, bo
            per_layer((D,)), per_layer((D,)),                # ln2 g, b
            per_layer((D, F)), per_layer((F,)),              # w1, b1
            per_layer((F, D)), per_layer((D,)),              # w2, b2
        ],
        out_specs=pl.BlockSpec((BS, D), lambda l: (0, 0)),
        scratch_shapes=[pltpu.VMEM((BS, D), jnp.float32)])
    fn = pl.pallas_call(
        kernel,
        out_shape=jax.ShapeDtypeStruct((BS, D), jnp.float32),
        grid_spec=grid_spec,
        compiler_params=pltpu.CompilerParams(
            dimension_semantics=("arbitrary",),
            vmem_limit_bytes=_VMEM_LIMIT))
    return jax.jit(fn)


# --------------------------------------------------------------------------
# NN building blocks (glue around the Pallas kernels)
# --------------------------------------------------------------------------
def conv2d(x, rhs, b, k, stride=1, padding=0):
    """x: (B,C,H,W); rhs: prepped (C*k*k, Cout) weight.  im2col + Pallas GEMM."""
    B, C, H, W = x.shape
    if stride == k and padding == 0 and H % k == 0 and W % k == 0:
        Ho, Wo = H // k, W // k
        patches = x.reshape(B, C, Ho, k, Wo, k).transpose(0, 2, 4, 1, 3, 5)
        a = patches.reshape(B * Ho * Wo, C * k * k)
    else:
        # channel-last patch output avoids an extra full-tensor transpose
        patches = lax.conv_general_dilated_patches(
            x, (k, k), (stride, stride),
            ((padding, padding), (padding, padding)),
            dimension_numbers=("NCHW", "OIHW", "NHWC"))
        _, Ho, Wo, CKK = patches.shape
        a = patches.reshape(B * Ho * Wo, CKK)
    out = pallas_matmul(a, rhs)
    Cout = out.shape[1]
    if b is not None:
        out = out + b[None, :]
    return out.reshape(B, Ho, Wo, Cout).transpose(0, 3, 1, 2)


def batchnorm(x, p):
    # eval-mode BatchNorm2d (running_mean=0, running_var=1), eps=1e-5
    inv = p["g"] / jnp.sqrt(p["rv"] + 1e-5)
    return x * inv[None, :, None, None] + (p["b"] - p["rm"] * inv)[None, :, None, None]


def prelu(x, a):
    return jnp.where(x >= 0, x, a[None, :, None, None] * x)


def maxpool3x3s2(x):
    return lax.reduce_window(x, -jnp.inf, lax.max, (1, 1, 3, 3), (1, 1, 2, 2),
                             ((0, 0), (0, 0), (1, 1), (1, 1)))


def layernorm_jax(x, g, b, eps=1e-5):
    mu = jnp.mean(x, axis=-1, keepdims=True)
    xc = x - mu
    return xc * lax.rsqrt(jnp.mean(xc * xc, axis=-1, keepdims=True) + eps) * g + b


# --------------------------------------------------------------------------
# Parameter construction (deterministic, synthetic)
# --------------------------------------------------------------------------
class KeyGen:
    def __init__(self, seed):
        self.key = jax.random.PRNGKey(seed)

    def __call__(self):
        self.key, sub = jax.random.split(self.key)
        return sub


def bn_param(c):
    return {"g": jnp.ones((c,), jnp.float32), "b": jnp.zeros((c,), jnp.float32),
            "rm": jnp.zeros((c,), jnp.float32), "rv": jnp.ones((c,), jnp.float32)}


def conv_param(kg, cin, cout, k, bias=True):
    fan_in = cin * k * k
    w = jax.random.normal(kg(), (fan_in, cout), jnp.float32) / math.sqrt(fan_in)
    b = jnp.zeros((cout,), jnp.float32) if bias else None
    return {"w": prep_matmul_rhs(w), "b": b}


def linear_param(kg, din, dout):
    w = jax.random.normal(kg(), (din, dout), jnp.float32) / math.sqrt(din)
    return w, jnp.zeros((dout,), jnp.float32)


def init_resnet34(kg):
    p = {"conv1": conv_param(kg, 3, 64, 7, bias=False), "bn1": bn_param(64)}

    def make_layer(cin, cout, blocks, stride):
        layer = []
        for i in range(blocks):
            s = stride if i == 0 else 1
            icin = cin if i == 0 else cout
            blk = {"conv1": conv_param(kg, icin, cout, 3, bias=False),
                   "bn1": bn_param(cout),
                   "conv2": conv_param(kg, cout, cout, 3, bias=False),
                   "bn2": bn_param(cout),
                   "stride": s}
            if s != 1 or icin != cout:
                blk["ds_conv"] = conv_param(kg, icin, cout, 1, bias=False)
                blk["ds_bn"] = bn_param(cout)
            layer.append(blk)
        return layer

    p["layer1"] = make_layer(64, 64, 3, 1)
    p["layer2"] = make_layer(64, 128, 4, 2)
    p["layer3"] = make_layer(128, 256, 6, 2)
    p["layer4"] = make_layer(256, 512, 3, 2)
    return p


def init_vta(kg, L=12, D=192, F=768):
    def lin(din, dout):
        w = jax.random.normal(kg(), (L, din, dout), jnp.float32) / math.sqrt(din)
        return w.astype(jnp.bfloat16), jnp.zeros((L, dout), jnp.float32)

    vta = {"ln1_g": jnp.ones((L, D), jnp.float32), "ln1_b": jnp.zeros((L, D), jnp.float32),
           "ln2_g": jnp.ones((L, D), jnp.float32), "ln2_b": jnp.zeros((L, D), jnp.float32)}
    vta["wqkv"], vta["bqkv"] = lin(D, 3 * D)   # Wq|Wk|Wv fused into one GEMM
    vta["wo"], vta["bo"] = lin(D, D)
    vta["w1"], vta["b1"] = lin(D, F)
    vta["w2"], vta["b2"] = lin(F, D)
    vta["fln_g"] = jnp.ones((D,), jnp.float32)
    vta["fln_b"] = jnp.zeros((D,), jnp.float32)
    vta["fc_w"], vta["fc_b"] = linear_param(kg, D, 8)
    return vta


def init_params():
    kg = KeyGen(1)
    P = {}
    # GWA — patch-embed weight is cast to bf16 and pre-padded ONCE here.
    pe_w = jax.random.normal(kg(), (3 * 56 * 56, 9408), jnp.float32) / math.sqrt(3 * 56 * 56)
    P["gwa"] = {"pe_w": prep_matmul_rhs(pe_w),
                "pe_b": jnp.zeros((9408,), jnp.float32),
                "c1": conv_param(kg, 3, 64, 1), "bn1": bn_param(64),
                "c2": conv_param(kg, 64, 3, 1), "bn2": bn_param(3)}
    del pe_w
    # GWA_Fusion
    gf = {}
    for name in ["convt1", "convt2", "convrfn1", "convrfn2", "convrfn3"]:
        gf[name] = conv_param(kg, 3, 3, 3)
    for name in ["bnt1", "bnt2", "bnrfn1", "bnrfn2"]:
        gf[name] = bn_param(3)
    gf["prelu1"] = jnp.full((3,), 0.25, jnp.float32)
    gf["prelu2"] = jnp.full((3,), 0.25, jnp.float32)
    P["gwa_f"] = gf
    # Backbone (ResNet-34 trunk + token heads)
    bb = init_resnet34(kg)
    bb["convtran1"] = conv_param(kg, 128, 3, 21)
    bb["bntran1"] = bn_param(3)
    bb["convtran2"] = conv_param(kg, 256, 3, 7)
    bb["bntran2"] = bn_param(3)
    bb["convtran3"] = conv_param(kg, 512, 3, 2)
    bb["bntran3"] = bn_param(3)
    bb["ln_g"] = jnp.ones((192,), jnp.float32)
    bb["ln_b"] = jnp.zeros((192,), jnp.float32)
    bb["line_w"], bb["line_b"] = linear_param(kg, 192, 192)
    bb["class_token"] = jnp.zeros((1, 192), jnp.float32)
    bb["pos_embedding"] = jnp.zeros((4, 192), jnp.float32)
    P["backbone"] = bb
    # VTA transformer (12 layers, dim 192, 8 heads, ff 768) — stacked weights
    P["vta"] = init_vta(kg)
    return P


# --------------------------------------------------------------------------
# Forward passes
# --------------------------------------------------------------------------
def gwa_forward(x, p):
    B = x.shape[0]
    img = x
    pe = conv2d(x, p["pe_w"], p["pe_b"], 56, stride=56, padding=0)   # (B,9408,4,4)
    t = pe.reshape(B, 9408, 16).transpose(0, 2, 1).reshape(B, 16, 3, 56, 56)
    # The per-patch loop of identical 1x1-conv+BN stacks is batched (eval BN
    # is elementwise, so this is exactly equivalent).
    y = t.reshape(B * 16, 3, 56, 56)
    y = jax.nn.leaky_relu(batchnorm(conv2d(y, p["c1"]["w"], p["c1"]["b"], 1), p["bn1"]))
    y = jax.nn.leaky_relu(batchnorm(conv2d(y, p["c2"]["w"], p["c2"]["b"], 1), p["bn2"]))
    query = y.reshape(B, 16, 3, 56, 56)
    scores = pallas_gram56(query.reshape(B * 16 * 3, 56, 56)).reshape(B, 16, 3, 56, 56)
    attn = jax.nn.softmax(scores, axis=1)                 # softmax over the 16 patches
    pooled = jnp.mean(attn, axis=(3, 4), keepdims=True)   # AdaptiveAvgPool2d((1,1))
    pattn = jnp.broadcast_to(pooled, (B, 16, 3, 56, 56))  # ones(56,56) * pooled
    pattn = pattn.transpose(0, 2, 3, 1, 4).reshape(B, 3, 224, 224)
    return img, pattn * img


def gwa_fusion_forward(img, map_, p):
    def conv3(x, cp):
        return conv2d(x, cp["w"], cp["b"], 3, stride=1, padding=1)

    img_t = jax.nn.relu(batchnorm(conv3(img, p["convt1"]), p["bnt1"]))
    # NOTE: the PyTorch code applies convt1 (not convt2) to `map` — kept faithful.
    map_t = jax.nn.relu(batchnorm(conv3(map_, p["convt1"]), p["bnt2"]))
    r = prelu(batchnorm(conv3(img_t + map_t, p["convrfn1"]), p["bnrfn1"]), p["prelu1"])
    r = prelu(batchnorm(conv3(r, p["convrfn2"]), p["bnrfn2"]), p["prelu2"])
    r = jax.nn.sigmoid(conv3(r + img_t + map_t, p["convrfn3"]))
    return r


def basic_block(x, blk):
    idt = x
    out = conv2d(x, blk["conv1"]["w"], None, 3, stride=blk["stride"], padding=1)
    out = jax.nn.relu(batchnorm(out, blk["bn1"]))
    out = conv2d(out, blk["conv2"]["w"], None, 3, stride=1, padding=1)
    out = batchnorm(out, blk["bn2"])
    if "ds_conv" in blk:
        idt = batchnorm(conv2d(x, blk["ds_conv"]["w"], None, 1,
                               stride=blk["stride"], padding=0), blk["ds_bn"])
    return jax.nn.relu(out + idt)


def backbone_forward(x, p):
    B = x.shape[0]
    x = jax.nn.relu(batchnorm(conv2d(x, p["conv1"]["w"], None, 7, stride=2, padding=3),
                              p["bn1"]))
    x = maxpool3x3s2(x)
    for blk in p["layer1"]:
        x = basic_block(x, blk)
    for blk in p["layer2"]:
        x = basic_block(x, blk)

    def branch(feat, cp, bnp, k, pad):
        l = jax.nn.leaky_relu(batchnorm(
            conv2d(feat, cp["w"], cp["b"], k, stride=1, padding=pad), bnp))
        l = l.reshape(B, 192)
        # perf review: (2,192) LN + Linear are launch-bound in Pallas -> plain JAX
        l = layernorm_jax(l, p["ln_g"], p["ln_b"])
        l = jax.nn.relu(l)                         # dropout = identity (eval)
        l = l @ p["line_w"] + p["line_b"]
        return l.reshape(B, 1, 192)

    l1 = branch(x, p["convtran1"], p["bntran1"], 21, 0)
    for blk in p["layer3"]:
        x = basic_block(x, blk)
    l2 = branch(x, p["convtran2"], p["bntran2"], 7, 0)
    for blk in p["layer4"]:
        x = basic_block(x, blk)
    l3 = branch(x, p["convtran3"], p["bntran3"], 2, 1)

    toks = jnp.concatenate([l1, l2], axis=1)
    toks = jnp.concatenate([toks, l3], axis=1)
    cls = jnp.broadcast_to(p["class_token"][None], (B, 1, 192))
    toks = jnp.concatenate([cls, toks], axis=1)
    return toks + p["pos_embedding"][None]


def vta_forward(x, p):
    B, S, D = x.shape
    L = p["ln1_g"].shape[0]
    F = p["w1"].shape[-1]
    fn = _vta_callable(L, B * S, S, D, F, 8)
    y = fn(x.reshape(B * S, D).astype(jnp.float32),
           p["ln1_g"], p["ln1_b"], p["wqkv"], p["bqkv"], p["wo"], p["bo"],
           p["ln2_g"], p["ln2_b"], p["w1"], p["b1"], p["w2"], p["b2"])
    y = y.reshape(B, S, D)
    h = layernorm_jax(y, p["fln_g"], p["fln_b"])   # tiny head left to XLA
    cls = h[:, 0, :]
    return cls @ p["fc_w"] + p["fc_b"]


def fervt_forward(x, params):
    img, map_ = gwa_forward(x, params["gwa"])
    fused = gwa_fusion_forward(img, map_, params["gwa_f"])
    toks = backbone_forward(fused, params["backbone"])
    return vta_forward(toks, params["vta"])


# --------------------------------------------------------------------------
if __name__ == "__main__":
    # TODO(synk): pretrained resnet34 weights and training-mode BN/Dropout have
    # no in-script equivalent; synthetic deterministic weights + eval mode used.
    x = jax.random.normal(jax.random.PRNGKey(0), (2, 3, 224, 224), jnp.float32)
    params = init_params()
    out = fervt_forward(x, params)
    out = jax.block_until_ready(out)
    assert out.shape == (2, 8) and out.dtype == jnp.float32
    print("KERNEL_OK")
</pallas_src>

<mosaic_0001>
module attributes {stable_mosaic.version = 11 : i64} {
  func.func @_matmul_kernel(%arg0: i32, %arg1: i32, %arg2: i32, %arg3: memref<32x9408xf32, #tpu.memory_space<vmem>>, %arg4: memref<9408x256xbf16, #tpu.memory_space<vmem>>, %arg5: memref<32x256xf32, #tpu.memory_space<vmem>>, %arg6: memref<32x256xf32, #tpu.memory_space<vmem>>) attributes {dimension_semantics = [#tpu.dimension_semantics<parallel>, #tpu.dimension_semantics<parallel>, #tpu.dimension_semantics<arbitrary>], iteration_bounds = array<i64: 1, 37, 1>, scalar_prefetch = 0 : i64, scratch_operands = 1 : i64, tpu.core_type = #tpu.core_type<tc>, window_params = [{transform_indices = @transform_0, window_bounds = array<i64: 32, 9408>}, {transform_indices = @transform_1, window_bounds = array<i64: 9408, 256>}, {transform_indices = @transform_2, window_bounds = array<i64: 32, 256>}]} {
    %c0_i32 = arith.constant 0 : i32
    %0 = arith.cmpi eq, %arg2, %c0_i32 : i32
    %1 = arith.extui %0 : i1 to i32
    %c0_i32_0 = arith.constant 0 : i32
    %2 = arith.cmpi ne, %1, %c0_i32_0 : i32
    scf.if %2 {
      %cst_10 = arith.constant 0.000000e+00 : f32
      %13 = vector.broadcast %cst_10 : f32 to vector<32x256xf32>
      %c0_11 = arith.constant 0 : index
      %c0_12 = arith.constant 0 : index
      %14 = vector.load %arg6[%c0_11, %c0_12] : memref<32x256xf32, #tpu.memory_space<vmem>>, vector<32x256xf32>
      tpu.vector_store %arg6[%c0_11, %c0_12], %13 {strides = array<i32>} : memref<32x256xf32, #tpu.memory_space<vmem>>, vector<32x256xf32>,
    } else {
    }
    %c0 = arith.constant 0 : index
    %c0_1 = arith.constant 0 : index
    %3 = vector.load %arg6[%c0, %c0_1] : memref<32x256xf32, #tpu.memory_space<vmem>>, vector<32x256xf32>
    %c0_2 = arith.constant 0 : index
    %c0_3 = arith.constant 0 : index
    %4 = vector.load %arg3[%c0_2, %c0_3] : memref<32x9408xf32, #tpu.memory_space<vmem>>, vector<32x9408xf32>
    %5 = arith.truncf %4 : vector<32x9408xf32> to vector<32x9408xbf16>
    %c0_4 = arith.constant 0 : index
    %c0_5 = arith.constant 0 : index
    %6 = vector.load %arg4[%c0_4, %c0_5] : memref<9408x256xbf16, #tpu.memory_space<vmem>>, vector<9408x256xbf16>
    %cst = arith.constant dense<0.000000e+00> : vector<32x256xf32>
    %7 = tpu.matmul %5, %6, %cst {dimension_numbers = #tpu.dot_dimension_numbers<[1], [0], [0], [1], [0, 0, 1, 1], [], []>} : vector<32x9408xbf16>, vector<9408x256xbf16>, vector<32x256xf32> -> vector<32x256xf32>
    %8 = arith.addf %3, %7 : vector<32x256xf32>
    %c0_6 = arith.constant 0 : index
    %c0_7 = arith.constant 0 : index
    %9 = vector.load %arg6[%c0_6, %c0_7] : memref<32x256xf32, #tpu.memory_space<vmem>>, vector<32x256xf32>
    tpu.vector_store %arg6[%c0_6, %c0_7], %8 {strides = array<i32>} : memref<32x256xf32, #tpu.memory_space<vmem>>, vector<32x256xf32>,
    %c0_i32_8 = arith.constant 0 : i32
    %10 = arith.cmpi eq, %arg2, %c0_i32_8 : i32
    %11 = arith.extui %10 : i1 to i32
    %c0_i32_9 = arith.constant 0 : i32
    %12 = arith.cmpi ne, %11, %c0_i32_9 : i32
    scf.if %12 {
      %c0_10 = arith.constant 0 : index
      %c0_11 = arith.constant 0 : index
      %13 = vector.load %arg6[%c0_10, %c0_11] : memref<32x256xf32, #tpu.memory_space<vmem>>, vector<32x256xf32>
      %c0_12 = arith.constant 0 : index
      %c0_13 = arith.constant 0 : index
      %14 = vector.load %arg5[%c0_12, %c0_13] : memref<32x256xf32, #tpu.memory_space<vmem>>, vector<32x256xf32>
      tpu.vector_store %arg5[%c0_12, %c0_13], %13 {strides = array<i32>} : memref<32x256xf32, #tpu.memory_space<vmem>>, vector<32x256xf32>,
    } else {
    }
    return
  }
  func.func @transform_0(%arg0: i32, %arg1: i32, %arg2: i32) -> (i32, i32) {
    %c0_i32 = arith.constant 0 : i32
    return %arg0, %arg2 : i32, i32
  }
  func.func @transform_1(%arg0: i32, %arg1: i32, %arg2: i32) -> (i32, i32) {
    %c0_i32 = arith.constant 0 : i32
    return %arg2, %arg1 : i32, i32
  }
  func.func @transform_2(%arg0: i32, %arg1: i32, %arg2: i32) -> (i32, i32) {
    %c0_i32 = arith.constant 0 : i32
    return %arg0, %arg1 : i32, i32
  }
}

</mosaic_0001>

<llo_original>
// kernel: tpu_custom_call.1
$region0: #{tpu_custom_call.1}
  #allocation0 [shape = 'u32[]', space=smem, size = 0x4, offset = 0x4, fixed_abs, tag = 'smem constant byte address 0x4 - core index']
  #allocation1 [shape = 'u32[72,128]{1,0:T(1,128)}', space=vmem, size = 0x9000, scoped, tag = 'internal scratch']
  #allocation2 [shape = 'f32[32,256]{1,0:T(8,128)}', space=vmem, size = 0x8000, scoped, tag = 'scratch operand']
  %s0 = inlined_call_operand.hbm [shape: f32[32,9408], index: 0, kind: input, shape index: {}]
  %s1 = inlined_call_operand.hbm [shape: bf16[9408,9472], index: 1, kind: input, shape index: {}]
  %s2 = inlined_call_operand.hbm [shape: f32[32,9472], index: 2, kind: output, shape index: {}]
  %s3 = sld [smem:[#allocation0]]
  $region57: #{tpu_custom_call.1} parent=0
    _
  %s5 = ssub.s32 1, %s3
  %s6 = scalar_select 0, %s5, %s3
  $region1: #{tpu_custom_call.1} parent=0
    #allocation3 [shape = 'u8[1212416]{0}', space=vmem, size = 0x128000, scoped, tag = 'input window, operand 0, single buffered']
    #allocation4 [shape = 's32[2]{0}', space=sflag, size = 0x8, scoped, tag = 'scoped memory for tpu_custom_call.1']
    #allocation5 [shape = 's32[2]{0}', space=sflag, size = 0x8, scoped, tag = 'scoped memory for tpu_custom_call.1']
    #allocation6 [shape = 'u8[9633792]{0}', space=vmem, size = 0x930000, scoped, tag = 'input window, operand 1']
    #allocation7 [shape = 's32[2]{0}', space=sflag, size = 0x8, scoped, tag = 'scoped memory for tpu_custom_call.1']
    #allocation8 [shape = 'u8[65536]{0}', space=vmem, size = 0x10000, scoped, tag = 'output window, operand 0']
    %7 = vsyncpa [#allocation4], 0
    %8 = vsyncpa [#allocation7], 0
    %s9 = scalar_lea.sflag [#allocation7], 1
    %10 = vsyncpa %s9, 0
    %11 = vsyncpa [#allocation5], 0
    %s12 = scalar_lea.sflag [#allocation5], 1
    %13 = vsyncpa %s12, 0
    loop: start=0, step=1, limit=39
    $region2: #{tpu_custom_call.1} parent=1 // loop_pre_header
      _
    $region3: #{tpu_custom_call.1} parent=1 // loop_header
      %s15 = sphi 0, %s19
      %p16 = scmp.ge.s32.totalorder %s15, 39
      %s22 = sphi 0, %s41
      %s23 = sphi 0, %s37
      %s24 = sphi 0, %s33
      %s25 = sphi 0, %s22
      %s26 = sphi 0, %s23
      %s27 = sphi 0, %s24
      %s28 = sphi 0, %s25
      %s29 = sphi 0, %s26
      %s30 = sphi 0, %s27
      %s46 = sphi 0, %s48
      %s49 = sphi 0, %s46
      %s50 = sphi 0, %s49
      %s66 = sphi 0, %s50
      %s74 = sphi 0, %s76
      %s77 = sphi 0, %s74
      %s78 = sphi 0, %s77
      %s94 = sphi 0, %s78
      %s102 = sphi 0, %s104
      %s105 = sphi 0, %s102
      %s106 = sphi 0, %s105
      %s122 = sphi 0, %s106
    $region4: #{tpu_custom_call.1} parent=1 // loop_header_branch
      %18 = sbr.rel (%p16) target = $region8
    $region5: #{tpu_custom_call.1} parent=1 // loop_body
      %s20 = ssub.s32 %s15, 1
      %s21 = ssub.s32 %s15, 2
      %s31 = sadd.s32 1, %s24
      %p32 = scmp.ge.s32.totalorder %s31, 1
      %s33 = scalar_select %p32, 0, %s31
      %s34 = sadd.s32 1, %s23
      %s35 = scalar_select %p32, %s34, %s23
      %p36 = scmp.ge.s32.totalorder %s35, 37
      %s37 = scalar_select %p36, 0, %s35
      %s38 = sadd.s32 1, %s22
      %s39 = scalar_select %p36, %s38, %s22
      %p40 = scmp.ge.s32.totalorder %s39, 1
      %s41 = scalar_select %p40, 0, %s39
      %s42 = ssub.s32 %s22, %s41
      %s43 = ssub.s32 %s24, %s33
      %s44 = sor.u32 %s42, %s43
      %p45 = scmp.eq.s32.totalorder %s44, 0
      %s47 = sadd.s32 %s46, 1
      %s48 = scalar_select %p45, %s46, %s47
      %p51 = pneg %p45
      %p52 = scmp.eq.s32.totalorder %s15, 36
      %p53 = por %p51, %p52
      %p54 = scmp.ne.s32.totalorder %s46, %s49
      %p55 = scmp.eq.s32.totalorder %s15, 0
      %p56 = por %p54, %p55
      %p57 = scmp.ne.s32.totalorder %s46, %s49
      %p58 = scmp.eq.s32.totalorder %s20, 36
      %p59 = por %p57, %p58
      %p60 = scmp.ne.s32.totalorder %s49, %s50
      %p61 = scmp.eq.s32.totalorder %s20, 0
      %p62 = por %p60, %p61
      %p63 = scmp.ne.s32.totalorder %s49, %s50
      %p64 = scmp.eq.s32.totalorder %s21, 36
      %p65 = por %p63, %p64
      %p67 = scmp.ne.s32.totalorder %s50, %s66
      %p68 = scmp.eq.s32.totalorder %s21, 0
      %p69 = por %p67, %p68
      %s70 = ssub.s32 %s24, %s33
      %s71 = ssub.s32 %s23, %s37
      %s72 = sor.u32 %s70, %s71
      %p73 = scmp.eq.s32.totalorder %s72, 0
      %s75 = sadd.s32 %s74, 1
      %s76 = scalar_select %p73, %s74, %s75
      %p79 = pneg %p73
      %p80 = scmp.eq.s32.totalorder %s15, 36
      %p81 = por %p79, %p80
      %p82 = scmp.ne.s32.totalorder %s74, %s77
      %p83 = scmp.eq.s32.totalorder %s15, 0
      %p84 = por %p82, %p83
      %p85 = scmp.ne.s32.totalorder %s74, %s77
      %p86 = scmp.eq.s32.totalorder %s20, 36
      %p87 = por %p85, %p86
      %p88 = scmp.ne.s32.totalorder %s77, %s78
      %p89 = scmp.eq.s32.totalorder %s20, 0
      %p90 = por %p88, %p89
      %p91 = scmp.ne.s32.totalorder %s77, %s78
      %p92 = scmp.eq.s32.totalorder %s21, 36
      %p93 = por %p91, %p92
      %p95 = scmp.ne.s32.totalorder %s78, %s94
      %p96 = scmp.eq.s32.totalorder %s21, 0
      %p97 = por %p95, %p96
      %s98 = ssub.s32 %s22, %s41
      %s99 = ssub.s32 %s23, %s37
      %s100 = sor.u32 %s98, %s99
      %p101 = scmp.eq.s32.totalorder %s100, 0
      %s103 = sadd.s32 %s102, 1
      %s104 = scalar_select %p101, %s102, %s103
      %p107 = pneg %p101
      %p108 = scmp.eq.s32.totalorder %s15, 36
      %p109 = por %p107, %p108
      %p110 = scmp.ne.s32.totalorder %s102, %s105
      %p111 = scmp.eq.s32.totalorder %s15, 0
      %p112 = por %p110, %p111
      %p113 = scmp.ne.s32.totalorder %s102, %s105
      %p114 = scmp.eq.s32.totalorder %s20, 36
      %p115 = por %p113, %p114
      %p116 = scmp.ne.s32.totalorder %s105, %s106
      %p117 = scmp.eq.s32.totalorder %s20, 0
      %p118 = por %p116, %p117
      %p119 = scmp.ne.s32.totalorder %s105, %s106
      %p120 = scmp.eq.s32.totalorder %s21, 36
      %p121 = por %p119, %p120
      %p123 = scmp.ne.s32.totalorder %s106, %s122
      %p124 = scmp.eq.s32.totalorder %s21, 0
      %p125 = por %p123, %p124
      %p126 = scmp.le.s32.totalorder 1, %s15
      %p127 = scmp.lt.s32.totalorder %s15, 38
      %p128 = pnand %p126, %p127
      %p129 = pneg %p128
      // Predicated region
      $region9: #{tpu_custom_call.1} parent=5 // pred_check
        _
      $region10: #{tpu_custom_call.1} parent=5 // pred_check_branch
        %131 = sbr.rel (%p128) target = $region12
      $region11: #{tpu_custom_call.1} parent=5 // pred_region
        %s132 = ssub.s32 %s15, 1
        // Predicated region
        $region13: #{tpu_custom_call.1} parent=11 // pred_check
          %p133 = pneg %p62
        $region14: #{tpu_custom_call.1} parent=11 // pred_check_branch
          %135 = sbr.rel (%p133) target = $region16
        $region15: #{tpu_custom_call.1} parent=11 // pred_region
          %s136 = smul.u32 4, %s25
          %s137 = smul.u32 74, %s27
          %139 = vsyncadd [#allocation4], 0
          %s140 = smul.addr %s136, 74
          %s141 = sadd.s32 %s137, %s140
          %s142 = smul.addr %s141, 8
          %s143 = scalar_lea.hbm %s0, %s142
          %s144 = sshll.u32 %s143, 4
          %s145 = int_to_ptr.hbm [resolvable:$true] %s144
          %s146 = sshll.u32 [#allocation3], 4
          %s147 = int_to_ptr.vmem [resolvable:$true] %s146
          %152 = dma.hbm_to_vmem [thread:$0]  %s145, 37888, %s147, [#allocation4], 9472, 9472, 592
        $region16: #{tpu_custom_call.1} parent=11 // pred_fallthru
          _
      $region12: #{tpu_custom_call.1} parent=5 // pred_fallthru
        _
      %p153 = scmp.lt.s32.totalorder %s15, 37
      // Predicated region
      $region17: #{tpu_custom_call.1} parent=5 // pred_check
        %p154 = pneg %p153
      $region18: #{tpu_custom_call.1} parent=5 // pred_check_branch
        %156 = sbr.rel (%p154) target = $region20
      $region19: #{tpu_custom_call.1} parent=5 // pred_region
        // Predicated region
        $region21: #{tpu_custom_call.1} parent=19 // pred_check
          %p157 = pneg %p84
        $region22: #{tpu_custom_call.1} parent=19 // pred_check_branch
          %159 = sbr.rel (%p157) target = $region24
        $region23: #{tpu_custom_call.1} parent=19 // pred_region
          %s160 = sand.u32 %s74, 1
          %s161 = scalar_lea.sflag [#allocation7], %s160
          %s162 = sand.u32 %s74, 1
          %s163 = smul.addr %s162, 9408
          %s164 = scalar_lea.vmem [#allocation6], %s163
          %s165 = smul.u32 1176, %s24
          %s166 = smul.u32 2, %s23
          %168 = vsyncadd %s161, 0
          %s169 = smul.addr %s165, 74
          %s170 = sadd.s32 %s166, %s169
          %s171 = smul.addr %s170, 4
          %s172 = scalar_lea.hbm %s1, %s171
          %s173 = sshll.u32 %s172, 4
          %s174 = int_to_ptr.hbm [resolvable:$true] %s173
          %s175 = sshll.u32 %s164, 4
          %s176 = int_to_ptr.vmem [resolvable:$true] %s175
          %181 = dma.hbm_to_vmem [thread:$0]  %s174, 150528, %s176, %s161, 4736, 128, 8
        $region24: #{tpu_custom_call.1} parent=19 // pred_fallthru
          _
      $region20: #{tpu_custom_call.1} parent=5 // pred_fallthru
        _
      %p182 = scmp.le.s32.totalorder 1, %s15
      %p183 = scmp.lt.s32.totalorder %s15, 38
      %p184 = pnand %p182, %p183
      %p185 = pneg %p184
      // Predicated region
      $region25: #{tpu_custom_call.1} parent=5 // pred_check
        _
      $region26: #{tpu_custom_call.1} parent=5 // pred_check_branch
        %187 = sbr.rel (%p184) target = $region28
      $region27: #{tpu_custom_call.1} parent=5 // pred_region
        %s188 = ssub.s32 %s15, 1
        // Predicated region
        $region29: #{tpu_custom_call.1} parent=27 // pred_check
          %p189 = pneg %p62
        $region30: #{tpu_custom_call.1} parent=27 // pred_check_branch
          %191 = sbr.rel (%p189) target = $region32
        $region31: #{tpu_custom_call.1} parent=27 // pred_region
          %193 = dma.done [#allocation4], 37888
        $region32: #{tpu_custom_call.1} parent=27 // pred_fallthru
          _
        %s194 = sand.u32 %s77, 1
        %s195 = scalar_lea.sflag [#allocation7], %s194
        %s196 = sand.u32 %s77, 1
        %s197 = smul.addr %s196, 9408
        %s198 = scalar_lea.vmem [#allocation6], %s197
        // Predicated region
        $region33: #{tpu_custom_call.1} parent=27 // pred_check
          %p199 = pneg %p90
        $region34: #{tpu_custom_call.1} parent=27 // pred_check_branch
          %201 = sbr.rel (%p199) target = $region36
        $region35: #{tpu_custom_call.1} parent=27 // pred_region
          %203 = dma.done %s195, 150528
        $region36: #{tpu_custom_call.1} parent=27 // pred_fallthru
          _
        %p204 = pneg %p62
        %p205 = pneg %p59
        %s206 = sand.u32 %s77, 1
        %s207 = scalar_lea.sflag [#allocation7], %s206
        %s208 = sand.u32 %s77, 1
        %s209 = smul.addr %s208, 9408
        %s210 = scalar_lea.vmem [#allocation6], %s209
        %p211 = pneg %p90
        %p212 = pneg %p87
        %p213 = pneg %p118
        %p214 = pneg %p115
        %s215 = sand.u32 %s105, 1
        %s216 = scalar_lea.sflag [#allocation5], %s215
        %s217 = sand.u32 %s105, 1
        %s218 = smul.addr %s217, 64
        %s219 = scalar_lea.vmem [#allocation8], %s218
        %s220 = smul.u32 4, %s25
        %s221 = smul.u32 74, %s27
        %s222 = smul.u32 1176, %s27
        %s223 = smul.u32 2, %s26
        %s224 = smul.u32 4, %s25
        %s225 = smul.u32 2, %s26
        %p227 = scmp.eq.s32.totalorder %s27, 0
        // Predicated region
        $region37: #{tpu_custom_call.1} parent=27 // pred_check
          %p228 = pneg %p227
        $region38: #{tpu_custom_call.1} parent=27 // pred_check_branch
          %230 = sbr.rel (%p228) target = $region40
        $region39: #{tpu_custom_call.1} parent=27 // pred_region
          %231 = vst [vmem:[#allocation2] sm:$0xff] 0.0
          %232 = vst [vmem:[#allocation2 + $0x8] sm:$0xff] 0.0
          %233 = vst [vmem:[#allocation2 + $0x10] sm:$0xff] 0.0
          %234 = vst [vmem:[#allocation2 + $0x18] sm:$0xff] 0.0
          %235 = vst [vmem:[#allocation2 + $0x20] sm:$0xff] 0.0
          %236 = vst [vmem:[#allocation2 + $0x28] sm:$0xff] 0.0
          %237 = vst [vmem:[#allocation2 + $0x30] sm:$0xff] 0.0
          %238 = vst [vmem:[#allocation2 + $0x38] sm:$0xff] 0.0
        $region40: #{tpu_custom_call.1} parent=27 // pred_fallthru
          _
        %v239 = vld [vmem:[#allocation2] sm:$0xff]
        %v240 = vld [vmem:[#allocation2 + $0x8] sm:$0xff]
        %v241 = vld [vmem:[#allocation2 + $0x10] sm:$0xff]
        %v242 = vld [vmem:[#allocation2 + $0x18] sm:$0xff]
        %v243 = vld [vmem:[#allocation2 + $0x20] sm:$0xff]
        %v244 = vld [vmem:[#allocation2 + $0x28] sm:$0xff]
        %v245 = vld [vmem:[#allocation2 + $0x30] sm:$0xff]
        %v246 = vld [vmem:[#allocation2 + $0x38] sm:$0xff]
        %v247 = vld [vmem:[#allocation3] sm:$0xff]
        %v248 = vld [vmem:[#allocation3 + $0x8] sm:$0xff]
        %v249 = vld [vmem:[#allocation3 + $0x10] sm:$0xff]
        %v250 = vld [vmem:[#allocation3 + $0x18] sm:$0xff]
        %v251 = vld [vmem:[#allocation3 + $0x20] sm:$0xff]
        %v252 = vld [vmem:[#allocation3 + $0x28] sm:$0xff]
        %v253 = vld [vmem:[#allocation3 + $0x30] sm:$0xff]
        %v254 = vld [vmem:[#allocation3 + $0x38] sm:$0xff]
        %v255 = vld [vmem:[#allocation3 + $0x40] sm:$0xff]
        %v256 = vld [vmem:[#allocation3 + $0x48] sm:$0xff]
        %v257 = vld [vmem:[#allocation3 + $0x50] sm:$0xff]
        %v258 = vld [vmem:[#allocation3 + $0x58] sm:$0xff]
        %v259 = vld [vmem:[#allocation3 + $0x60] sm:$0xff]
        %v260 = vld [vmem:[#allocation3 + $0x68] sm:$0xff]
        %v261 = vld [vmem:[#allocation3 + $0x70] sm:$0xff]
        %v262 = vld [vmem:[#allocation3 + $0x78] sm:$0xff]
        %v263 = vld [vmem:[#allocation3 + $0x80] sm:$0xff]
        %v264 = vld [vmem:[#allocation3 + $0x88] sm:$0xff]
        %v265 = vld [vmem:[#allocation3 + $0x90] sm:$0xff]
        %v266 = vld [vmem:[#allocation3 + $0x98] sm:$0xff]
        %v267 = vld [vmem:[#allocation3 + $0xa0] sm:$0xff]
        %v268 = vld [vmem:[#allocation3 + $0xa8] sm:$0xff]
        %v269 = vld [vmem:[#allocation3 + $0xb0] sm:$0xff]
        %v270 = vld [vmem:[#allocation3 + $0xb8] sm:$0xff]
        %v271 = vld [vmem:[#allocation3 + $0xc0] sm:$0xff]
        %v272 = vld [vmem:[#allocation3 + $0xc8] sm:$0xff]
        %v273 = vld [vmem:[#allocation3 + $0xd0] sm:$0xff]
        %v274 = vld [vmem:[#allocation3 + $0xd8] sm:$0xff]
        %v275 = vld [vmem:[#allocation3 + $0xe0] sm:$0xff]
        %v276 = vld [vmem:[#allocation3 + $0xe8] sm:$0xff]
        %v277 = vld [vmem:[#allocation3 + $0xf0] sm:$0xff]
        %v278 = vld [vmem:[#allocation3 + $0xf8] sm:$0xff]
        %v279 = vld [vmem:[#allocation3 + $0x100] sm:$0xff]
        %v280 = vld [vmem:[#allocation3 + $0x108] sm:$0xff]
        %v281 = vld [vmem:[#allocation3 + $0x110] sm:$0xff]
        %v282 = vld [vmem:[#allocation3 + $0x118] sm:$0xff]
        %v283 = vld [vmem:[#allocation3 + $0x120] sm:$0xff]
        %v284 = vld [vmem:[#allocation3 + $0x128] sm:$0xff]
        %v285 = vld [vmem:[#allocation3 + $0x130] sm:$0xff]
        %v286 = vld [vmem:[#allocation3 + $0x138] sm:$0xff]
        %v287 = vld [vmem:[#allocation3 + $0x140] sm:$0xff]
        %v288 = vld [vmem:[#allocation3 + $0x148] sm:$0xff]
        %v289 = vld [vmem:[#allocation3 + $0x150] sm:$0xff]
        %v290 = vld [vmem:[#allocation3 + $0x158] sm:$0xff]
        %v291 = vld [vmem:[#allocation3 + $0x160] sm:$0xff]
        %v292 = vld [vmem:[#allocation3 + $0x168] sm:$0xff]
        %v293 = vld [vmem:[#allocation3 + $0x170] sm:$0xff]
        %v294 = vld [vmem:[#allocation3 + $0x178] sm:$0xff]
        %v295 = vld [vmem:[#allocation3 + $0x180] sm:$0xff]
        %v296 = vld [vmem:[#allocation3 + $0x188] sm:$0xff]
        %v297 = vld [vmem:[#allocation3 + $0x190] sm:$0xff]
        %v298 = vld [vmem:[#allocation3 + $0x198] sm:$0xff]
        %v299 = vld [vmem:[#allocation3 + $0x1a0] sm:$0xff]
        %v300 = vld [vmem:[#allocation3 + $0x1a8] sm:$0xff]
        %v301 = vld [vmem:[#allocation3 + $0x1b0] sm:$0xff]
        %v302 = vld [vmem:[#allocation3 + $0x1b8] sm:$0xff]
        %v303 = vld [vmem:[#allocation3 + $0x1c0] sm:$0xff]
        %v304 = vld [vmem:[#allocation3 + $0x1c8] sm:$0xff]
        %v305 = vld [vmem:[#allocation3 + $0x1d0] sm:$0xff]
        %v306 = vld [vmem:[#allocation3 + $0x1d8] sm:$0xff]
        %v307 = vld [vmem:[#allocation3 + $0x1e0] sm:$0xff]
        %v308 = vld [vmem:[#allocation3 + $0x1e8] sm:$0xff]
        %v309 = vld [vmem:[#allocation3 + $0x1f0] sm:$0xff]
        %v310 = vld [vmem:[#allocation3 + $0x1f8] sm:$0xff]
        %v311 = vld [vmem:[#allocation3 + $0x200] sm:$0xff]
        %v312 = vld [vmem:[#allocation3 + $0x208] sm:$0xff]
        %v313 = vld [vmem:[#allocation3 + $0x210] sm:$0xff]
        %v314 = vld [vmem:[#allocation3 + $0x218] sm:$0xff]
        %v315 = vld [vmem:[#allocation3 + $0x220] sm:$0xff]
        %v316 = vld [vmem:[#allocation3 + $0x228] sm:$0xff]
        %v317 = vld [vmem:[#allocation3 + $0x230] sm:$0xff]
        %v318 = vld [vmem:[#allocation3 + $0x238] sm:$0xff]
        %v319 = vld [vmem:[#allocation3 + $0x240] sm:$0xff]
        %v320 = vld [vmem:[#allocation3 + $0x248] sm:$0xff]
        %v321 = vld [vmem:[#allocation3 + $0x250] sm:$0xff]
        %v322 = vld [vmem:[#allocation3 + $0x258] sm:$0xff]
        %v323 = vld [vmem:[#allocation3 + $0x260] sm:$0xff]
        %v324 = vld [vmem:[#allocation3 + $0x268] sm:$0xff]
        %v325 = vld [vmem:[#allocation3 + $0x270] sm:$0xff]
        %v326 = vld [vmem:[#allocation3 + $0x278] sm:$0xff]
        %v327 = vld [vmem:[#allocation3 + $0x280] sm:$0xff]
        %v328 = vld [vmem:[#allocation3 + $0x288] sm:$0xff]
        %v329 = vld [vmem:[#allocation3 + $0x290] sm:$0xff]
        %v330 = vld [vmem:[#allocation3 + $0x298] sm:$0xff]
        %v331 = vld [vmem:[#allocation3 + $0x2a0] sm:$0xff]
        %v332 = vld [vmem:[#allocation3 + $0x2a8] sm:$0xff]
        %v333 = vld [vmem:[#allocation3 + $0x2b0] sm:$0xff]
        %v334 = vld [vmem:[#allocation3 + $0x2b8] sm:$0xff]
        %v335 = vld [vmem:[#allocation3 + $0x2c0] sm:$0xff]
        %v336 = vld [vmem:[#allocation3 + $0x2c8] sm:$0xff]
        %v337 = vld [vmem:[#allocation3 + $0x2d0] sm:$0xff]
        %v338 = vld [vmem:[#allocation3 + $0x2d8] sm:$0xff]
        %v339 = vld [vmem:[#allocation3 + $0x2e0] sm:$0xff]
        %v340 = vld [vmem:[#allocation3 + $0x2e8] sm:$0xff]
        %v341 = vld [vmem:[#allocation3 + $0x2f0] sm:$0xff]
        %v342 = vld [vmem:[#allocation3 + $0x2f8] sm:$0xff]
        %v343 = vld [vmem:[#allocation3 + $0x300] sm:$0xff]
        %v344 = vld [vmem:[#allocation3 + $0x308] sm:$0xff]
        %v345 = vld [vmem:[#allocation3 + $0x310] sm:$0xff]
        %v346 = vld [vmem:[#allocation3 + $0x318] sm:$0xff]
        %v347 = vld [vmem:[#allocation3 + $0x320] sm:$0xff]
        %v348 = vld [vmem:[#allocation3 + $0x328] sm:$0xff]
        %v349 = vld [vmem:[#allocation3 + $0x330] sm:$0xff]
        %v350 = vld [vmem:[#allocation3 + $0x338] sm:$0xff]
        %v351 = vld [vmem:[#allocation3 + $0x340] sm:$0xff]
        %v352 = vld [vmem:[#allocation3 + $0x348] sm:$0xff]
        %v353 = vld [vmem:[#allocation3 + $0x350] sm:$0xff]
        %v354 = vld [vmem:[#allocation3 + $0x358] sm:$0xff]
        %v355 = vld [vmem:[#allocation3 + $0x360] sm:$0xff]
        %v356 = vld [vmem:[#allocation3 + $0x368] sm:$0xff]
        %v357 = vld [vmem:[#allocation3 + $0x370] sm:$0xff]
        %v358 = vld [vmem:[#allocation3 + $0x378] sm:$0xff]
        %v359 = vld [vmem:[#allocation3 + $0x380] sm:$0xff]
        %v360 = vld [vmem:[#allocation3 + $0x388] sm:$0xff]
        %v361 = vld [vmem:[#allocation3 + $0x390] sm:$0xff]
        %v362 = vld [vmem:[#allocation3 + $0x398] sm:$0xff]
        %v363 = vld [vmem:[#allocation3 + $0x3a0] sm:$0xff]
        %v364 = vld [vmem:[#allocation3 + $0x3a8] sm:$0xff]
        %v365 = vld [vmem:[#allocation3 + $0x3b0] sm:$0xff]
        %v366 = vld [vmem:[#allocation3 + $0x3b8] sm:$0xff]
        %v367 = vld [vmem:[#allocation3 + $0x3c0] sm:$0xff]
        %v368 = vld [vmem:[#allocation3 + $0x3c8] sm:$0xff]
        %v369 = vld [vmem:[#allocation3 + $0x3d0] sm:$0xff]
        %v370 = vld [vmem:[#allocation3 + $0x3d8] sm:$0xff]
        %v371 = vld [vmem:[#allocation3 + $0x3e0] sm:$0xff]
        %v372 = vld [vmem:[#allocation3 + $0x3e8] sm:$0xff]
        %v373 = vld [vmem:[#allocation3 + $0x3f0] sm:$0xff]
        %v374 = vld [vmem:[#allocation3 + $0x3f8] sm:$0xff]
        %v375 = vld [vmem:[#allocation3 + $0x400] sm:$0xff]
        %v376 = vld [vmem:[#allocation3 + $0x408] sm:$0xff]
        %v377 = vld [vmem:[#allocation3 + $0x410] sm:$0xff]
        %v378 = vld [vmem:[#allocation3 + $0x418] sm:$0xff]
        %v379 = vld [vmem:[#allocation3 + $0x420] sm:$0xff]
        %v380 = vld [vmem:[#allocation3 + $0x428] sm:$0xff]
        %v381 = vld [vmem:[#allocation3 + $0x430] sm:$0xff]
        %v382 = vld [vmem:[#allocation3 + $0x438] sm:$0xff]
        %v383 = vld [vmem:[#allocation3 + $0x440] sm:$0xff]
        %v384 = vld [vmem:[#allocation3 + $0x448] sm:$0xff]
        %v385 = vld [vmem:[#allocation3 + $0x450] sm:$0xff]
        %v386 = vld [vmem:[#allocation3 + $0x458] sm:$0xff]
        %v387 = vld [vmem:[#allocation3 + $0x460] sm:$0xff]
        %v388 = vld [vmem:[#allocation3 + $0x468] sm:$0xff]
        %v389 = vld [vmem:[#allocation3 + $0x470] sm:$0xff]
        %v390 = vld [vmem:[#allocation3 + $0x478] sm:$0xff]
        %v391 = vld [vmem:[#allocation3 + $0x480] sm:$0xff]
        %v392 = vld [vmem:[#allocation3 + $0x488] sm:$0xff]
        %v393 = vld [vmem:[#allocation3 + $0x490] sm:$0xff]
        %v394 = vld [vmem:[#allocation3 + $0x498] sm:$0xff]
        %v395 = vld [vmem:[#allocation3 + $0x4a0] sm:$0xff]
        %v396 = vld [vmem:[#allocation3 + $0x4a8] sm:$0xff]
        %v397 = vld [vmem:[#allocation3 + $0x4b0] sm:$0xff]
        %v398 = vld [vmem:[#allocation3 + $0x4b8] sm:$0xff]
        %v399 = vld [vmem:[#allocation3 + $0x4c0] sm:$0xff]
        %v400 = vld [vmem:[#allocation3 + $0x4c8] sm:$0xff]
        %v401 = vld [vmem:[#allocation3 + $0x4d0] sm:$0xff]
        %v402 = vld [vmem:[#allocation3 + $0x4d8] sm:$0xff]
        %v403 = vld [vmem:[#allocation3 + $0x4e0] sm:$0xff]
        %v404 = vld [vmem:[#allocation3 + $0x4e8] sm:$0xff]
        %v405 = vld [vmem:[#allocation3 + $0x4f0] sm:$0xff]
        %v406 = vld [vmem:[#allocation3 + $0x4f8] sm:$0xff]
        %v407 = vld [vmem:[#allocation3 + $0x500] sm:$0xff]
        %v408 = vld [vmem:[#allocation3 + $0x508] sm:$0xff]
        %v409 = vld [vmem:[#allocation3 + $0x510] sm:$0xff]
        %v410 = vld [vmem:[#allocation3 + $0x518] sm:$0xff]
        %v411 = vld [vmem:[#allocation3 + $0x520] sm:$0xff]
        %v412 = vld [vmem:[#allocation3 + $0x528] sm:$0xff]
        %v413 = vld [vmem:[#allocation3 + $0x530] sm:$0xff]
        %v414 = vld [vmem:[#allocation3 + $0x538] sm:$0xff]
        %v415 = vld [vmem:[#allocation3 + $0x540] sm:$0xff]
        %v416 = vld [vmem:[#allocation3 + $0x548] sm:$0xff]
        %v417 = vld [vmem:[#allocation3 + $0x550] sm:$0xff]
        %v418 = vld [vmem:[#allocation3 + $0x558] sm:$0xff]
        %v419 = vld [vmem:[#allocation3 + $0x560] sm:$0xff]
        %v420 = vld [vmem:[#allocation3 + $0x568] sm:$0xff]
        %v421 = vld [vmem:[#allocation3 + $0x570] sm:$0xff]
        %v422 = vld [vmem:[#allocation3 + $0x578] sm:$0xff]
        %v423 = vld [vmem:[#allocation3 + $0x580] sm:$0xff]
        %v424 = vld [vmem:[#allocation3 + $0x588] sm:$0xff]
        %v425 = vld [vmem:[#allocation3 + $0x590] sm:$0xff]
        %v426 = vld [vmem:[#allocation3 + $0x598] sm:$0xff]
        %v427 = vld [vmem:[#allocation3 + $0x5a0] sm:$0xff]
        %v428 = vld [vmem:[#allocation3 + $0x5a8] sm:$0xff]
        %v429 = vld [vmem:[#allocation3 + $0x5b0] sm:$0xff]
        %v430 = vld [vmem:[#allocation3 + $0x5b8] sm:$0xff]
        %v431 = vld [vmem:[#allocation3 + $0x5c0] sm:$0xff]
        %v432 = vld [vmem:[#allocation3 + $0x5c8] sm:$0xff]
        %v433 = vld [vmem:[#allocation3 + $0x5d0] sm:$0xff]
        %v434 = vld [vmem:[#allocation3 + $0x5d8] sm:$0xff]
        %v435 = vld [vmem:[#allocation3 + $0x5e0] sm:$0xff]
        %v436 = vld [vmem:[#allocation3 + $0x5e8] sm:$0xff]
        %v437 = vld [vmem:[#allocation3 + $0x5f0] sm:$0xff]
        %v438 = vld [vmem:[#allocation3 + $0x5f8] sm:$0xff]
        %v439 = vld [vmem:[#allocation3 + $0x600] sm:$0xff]
        %v440 = vld [vmem:[#allocation3 + $0x608] sm:$0xff]
        %v441 = vld [vmem:[#allocation3 + $0x610] sm:$0xff]
        %v442 = vld [vmem:[#allocation3 + $0x618] sm:$0xff]
        %v443 = vld [vmem:[#allocation3 + $0x620] sm:$0xff]
        %v444 = vld [vmem:[#allocation3 + $0x628] sm:$0xff]
        %v445 = vld [vmem:[#allocation3 + $0x630] sm:$0xff]
        %v446 = vld [vmem:[#allocation3 + $0x638] sm:$0xff]
        %v447 = vld [vmem:[#allocation3 + $0x640] sm:$0xff]
        %v448 = vld [vmem:[#allocation3 + $0x648] sm:$0xff]
        %v449 = vld [vmem:[#allocation3 + $0x650] sm:$0xff]
        %v450 = vld [vmem:[#allocation3 + $0x658] sm:$0xff]
        %v451 = vld [vmem:[#allocation3 + $0x660] sm:$0xff]
        %v452 = vld [vmem:[#allocation3 + $0x668] sm:$0xff]
        %v453 = vld [vmem:[#allocation3 + $0x670] sm:$0xff]
        %v454 = vld [vmem:[#allocation3 + $0x678] sm:$0xff]
        %v455 = vld [vmem:[#allocation3 + $0x680] sm:$0xff]
        %v456 = vld [vmem:[#allocation3 + $0x688] sm:$0xff]
        %v457 = vld [vmem:[#allocation3 + $0x690] sm:$0xff]
        %v458 = vld [vmem:[#allocation3 + $0x698] sm:$0xff]
        %v459 = vld [vmem:[#allocation3 + $0x6a0] sm:$0xff]
        %v460 = vld [vmem:[#allocation3 + $0x6a8] sm:$0xff]
        %v461 = vld [vmem:[#allocation3 + $0x6b0] sm:$0xff]
        %v462 = vld [vmem:[#allocation3 + $0x6b8] sm:$0xff]
        %v463 = vld [vmem:[#allocation3 + $0x6c0] sm:$0xff]
        %v464 = vld [vmem:[#allocation3 + $0x6c8] sm:$0xff]
        %v465 = vld [vmem:[#allocation3 + $0x6d0] sm:$0xff]
        %v466 = vld [vmem:[#allocation3 + $0x6d8] sm:$0xff]
        %v467 = vld [vmem:[#allocation3 + $0x6e0] sm:$0xff]
        %v468 = vld [vmem:[#allocation3 + $0x6e8] sm:$0xff]
        %v469 = vld [vmem:[#allocation3 + $0x6f0] sm:$0xff]
        %v470 = vld [vmem:[#allocation3 + $0x6f8] sm:$0xff]
        %v471 = vld [vmem:[#allocation3 + $0x700] sm:$0xff]
        %v472 = vld [vmem:[#allocation3 + $0x708] sm:$0xff]
        %v473 = vld [vmem:[#allocation3 + $0x710] sm:$0xff]
        %v474 = vld [vmem:[#allocation3 + $0x718] sm:$0xff]
        %v475 = vld [vmem:[#allocation3 + $0x720] sm:$0xff]
        %v476 = vld [vmem:[#allocation3 + $0x728] sm:$0xff]
        %v477 = vld [vmem:[#allocation3 + $0x730] sm:$0xff]
        %v478 = vld [vmem:[#allocation3 + $0x738] sm:$0xff]
        %v479 = vld [vmem:[#allocation3 + $0x740] sm:$0xff]
        %v480 = vld [vmem:[#allocation3 + $0x748] sm:$0xff]
        %v481 = vld [vmem:[#allocation3 + $0x750] sm:$0xff]
        %v482 = vld [vmem:[#allocation3 + $0x758] sm:$0xff]
        %v483 = vld [vmem:[#allocation3 + $0x760] sm:$0xff]
        %v484 = vld [vmem:[#allocation3 + $0x768] sm:$0xff]
        %v485 = vld [vmem:[#allocation3 + $0x770] sm:$0xff]
        %v486 = vld [vmem:[#allocation3 + $0x778] sm:$0xff]
        %v487 = vld [vmem:[#allocation3 + $0x780] sm:$0xff]
        %v488 = vld [vmem:[#allocation3 + $0x788] sm:$0xff]
        %v489 = vld [vmem:[#allocation3 + $0x790] sm:$0xff]
        %v490 = vld [vmem:[#allocation3 + $0x798] sm:$0xff]
        %v491 = vld [vmem:[#allocation3 + $0x7a0] sm:$0xff]
        %v492 = vld [vmem:[#allocation3 + $0x7a8] sm:$0xff]
        %v493 = vld [vmem:[#allocation3 + $0x7b0] sm:$0xff]
        %v494 = vld [vmem:[#allocation3 + $0x7b8] sm:$0xff]
        %v495 = vld [vmem:[#allocation3 + $0x7c0] sm:$0xff]
        %v496 = vld [vmem:[#allocation3 + $0x7c8] sm:$0xff]
        %v497 = vld [vmem:[#allocation3 + $0x7d0] sm:$0xff]
        %v498 = vld [vmem:[#allocation3 + $0x7d8] sm:$0xff]
        %v499 = vld [vmem:[#allocation3 + $0x7e0] sm:$0xff]
        %v500 = vld [vmem:[#allocation3 + $0x7e8] sm:$0xff]
        %v501 = vld [vmem:[#allocation3 + $0x7f0] sm:$0xff]
        %v502 = vld [vmem:[#allocation3 + $0x7f8] sm:$0xff]
        %v503 = vld [vmem:[#allocation3 + $0x800] sm:$0xff]
        %v504 = vld [vmem:[#allocation3 + $0x808] sm:$0xff]
        %v505 = vld [vmem:[#allocation3 + $0x810] sm:$0xff]
        %v506 = vld [vmem:[#allocation3 + $0x818] sm:$0xff]
        %v507 = vld [vmem:[#allocation3 + $0x820] sm:$0xff]
        %v508 = vld [vmem:[#allocation3 + $0x828] sm:$0xff]
        %v509 = vld [vmem:[#allocation3 + $0x830] sm:$0xff]
        %v510 = vld [vmem:[#allocation3 + $0x838] sm:$0xff]
        %v511 = vld [vmem:[#allocation3 + $0x840] sm:$0xff]
        %v512 = vld [vmem:[#allocation3 + $0x848] sm:$0xff]
        %v513 = vld [vmem:[#allocation3 + $0x850] sm:$0xff]
        %v514 = vld [vmem:[#allocation3 + $0x858] sm:$0xff]
        %v515 = vld [vmem:[#allocation3 + $0x860] sm:$0xff]
        %v516 = vld [vmem:[#allocation3 + $0x868] sm:$0xff]
        %v517 = vld [vmem:[#allocation3 + $0x870] sm:$0xff]
        %v518 = vld [vmem:[#allocation3 + $0x878] sm:$0xff]
        %v519 = vld [vmem:[#allocation3 + $0x880] sm:$0xff]
        %v520 = vld [vmem:[#allocation3 + $0x888] sm:$0xff]
        %v521 = vld [vmem:[#allocation3 + $0x890] sm:$0xff]
        %v522 = vld [vmem:[#allocation3 + $0x898] sm:$0xff]
        %v523 = vld [vmem:[#allocation3 + $0x8a0] sm:$0xff]
        %v524 = vld [vmem:[#allocation3 + $0x8a8] sm:$0xff]
        %v525 = vld [vmem:[#allocation3 + $0x8b0] sm:$0xff]
        %v526 = vld [vmem:[#allocation3 + $0x8b8] sm:$0xff]
        %v527 = vld [vmem:[#allocation3 + $0x8c0] sm:$0xff]
        %v528 = vld [vmem:[#allocation3 + $0x8c8] sm:$0xff]
        %v529 = vld [vmem:[#allocation3 + $0x8d0] sm:$0xff]
        %v530 = vld [vmem:[#allocation3 + $0x8d8] sm:$0xff]
        %v531 = vld [vmem:[#allocation3 + $0x8e0] sm:$0xff]
        %v532 = vld [vmem:[#allocation3 + $0x8e8] sm:$0xff]
        %v533 = vld [vmem:[#allocation3 + $0x8f0] sm:$0xff]
        %v534 = vld [vmem:[#allocation3 + $0x8f8] sm:$0xff]
        %v535 = vld [vmem:[#allocation3 + $0x900] sm:$0xff]
        %v536 = vld [vmem:[#allocation3 + $0x908] sm:$0xff]
        %v537 = vld [vmem:[#allocation3 + $0x910] sm:$0xff]
        %v538 = vld [vmem:[#allocation3 + $0x918] sm:$0xff]
        %v539 = vld [vmem:[#allocation3 + $0x920] sm:$0xff]
        %v540 = vld [vmem:[#allocation3 + $0x928] sm:$0xff]
        %v541 = vld [vmem:[#allocation3 + $0x930] sm:$0xff]
        %v542 = vld [vmem:[#allocation3 + $0x938] sm:$0xff]
        %v543 = vpack.c.bf16 %v321, %v247
        %v544 = vpack.c.bf16 %v322, %v248
        %v545 = vpack.c.bf16 %v323, %v249
        %v546 = vpack.c.bf16 %v324, %v250
        %v547 = vpack.c.bf16 %v325, %v251
        %v548 = vpack.c.bf16 %v326, %v252
        %v549 = vpack.c.bf16 %v327, %v253
        %v550 = vpack.c.bf16 %v328, %v254
        %v551 = vpack.c.bf16 %v329, %v255
        %v552 = vpack.c.bf16 %v330, %v256
        %v553 = vpack.c.bf16 %v331, %v257
        %v554 = vpack.c.bf16 %v332, %v258
        %v555 = vpack.c.bf16 %v333, %v259
        %v556 = vpack.c.bf16 %v334, %v260
        %v557 = vpack.c.bf16 %v335, %v261
        %v558 = vpack.c.bf16 %v336, %v262
        %v559 = vpack.c.bf16 %v337, %v263
        %v560 = vpack.c.bf16 %v338, %v264
        %v561 = vpack.c.bf16 %v339, %v265
        %v562 = vpack.c.bf16 %v340, %v266
        %v563 = vpack.c.bf16 %v341, %v267
        %v564 = vpack.c.bf16 %v342, %v268
        %v565 = vpack.c.bf16 %v343, %v269
        %v566 = vpack.c.bf16 %v344, %v270
        %v567 = vpack.c.bf16 %v345, %v271
        %v568 = vpack.c.bf16 %v346, %v272
        %v569 = vpack.c.bf16 %v347, %v273
        %v570 = vpack.c.bf16 %v348, %v274
        %v571 = vpack.c.bf16 %v349, %v275
        %v572 = vpack.c.bf16 %v350, %v276
        %v573 = vpack.c.bf16 %v351, %v277
        %v574 = vpack.c.bf16 %v352, %v278
        %v575 = vpack.c.bf16 %v353, %v279
        %v576 = vpack.c.bf16 %v354, %v280
        %v577 = vpack.c.bf16 %v355, %v281
        %v578 = vpack.c.bf16 %v356, %v282
        %v579 = vpack.c.bf16 %v357, %v283
        %v580 = vpack.c.bf16 %v358, %v284
        %v581 = vpack.c.bf16 %v359, %v285
        %v582 = vpack.c.bf16 %v360, %v286
        %v583 = vpack.c.bf16 %v361, %v287
        %v584 = vpack.c.bf16 %v362, %v288
        %v585 = vpack.c.bf16 %v363, %v289
        %v586 = vpack.c.bf16 %v364, %v290
        %v587 = vpack.c.bf16 %v365, %v291
        %v588 = vpack.c.bf16 %v366, %v292
        %v589 = vpack.c.bf16 %v367, %v293
        %v590 = vpack.c.bf16 %v368, %v294
        %v591 = vpack.c.bf16 %v369, %v295
        %v592 = vpack.c.bf16 %v370, %v296
        %v593 = vpack.c.bf16 %v371, %v297
        %v594 = vpack.c.bf16 %v372, %v298
        %v595 = vpack.c.bf16 %v373, %v299
        %v596 = vpack.c.bf16 %v374, %v300
        %v597 = vpack.c.bf16 %v375, %v301
        %v598 = vpack.c.bf16 %v376, %v302
        %v599 = vpack.c.bf16 %v377, %v303
        %v600 = vpack.c.bf16 %v378, %v304
        %v601 = vpack.c.bf16 %v379, %v305
        %v602 = vpack.c.bf16 %v380, %v306
        %v603 = vpack.c.bf16 %v381, %v307
        %v604 = vpack.c.bf16 %v382, %v308
        %v605 = vpack.c.bf16 %v383, %v309
        %v606 = vpack.c.bf16 %v384, %v310
        %v607 = vpack.c.bf16 %v385, %v311
        %v608 = vpack.c.bf16 %v386, %v312
        %v609 = vpack.c.bf16 %v387, %v313
        %v610 = vpack.c.bf16 %v388, %v314
        %v611 = vpack.c.bf16 %v389, %v315
        %v612 = vpack.c.bf16 %v390, %v316
        %v613 = vpack.c.bf16 %v391, %v317
        %v614 = vpack.c.bf16 %v392, %v318
        %v615 = vpack.c.bf16 %v393, %v319
        %v616 = vpack.c.bf16 %v394, %v320
        %v617 = vpack.c.bf16 %v469, %v395
        %v618 = vpack.c.bf16 %v470, %v396
        %v619 = vpack.c.bf16 %v471, %v397
        %v620 = vpack.c.bf16 %v472, %v398
        %v621 = vpack.c.bf16 %v473, %v399
        %v622 = vpack.c.bf16 %v474, %v400
        %v623 = vpack.c.bf16 %v475, %v401
        %v624 = vpack.c.bf16 %v476, %v402
        %v625 = vpack.c.bf16 %v477, %v403
        %v626 = vpack.c.bf16 %v478, %v404
        %v627 = vpack.c.bf16 %v479, %v405
        %v628 = vpack.c.bf16 %v480, %v406
        %v629 = vpack.c.bf16 %v481, %v407
        %v630 = vpack.c.bf16 %v482, %v408
        %v631 = vpack.c.bf16 %v483, %v409
        %v632 = vpack.c.bf16 %v484, %v410
        %v633 = vpack.c.bf16 %v485, %v411
        %v634 = vpack.c.bf16 %v486, %v412
        %v635 = vpack.c.bf16 %v487, %v413
        %v636 = vpack.c.bf16 %v488, %v414
        %v637 = vpack.c.bf16 %v489, %v415
        %v638 = vpack.c.bf16 %v490, %v416
        %v639 = vpack.c.bf16 %v491, %v417
        %v640 = vpack.c.bf16 %v492, %v418
        %v641 = vpack.c.bf16 %v493, %v419
        %v642 = vpack.c.bf16 %v494, %v420
        %v643 = vpack.c.bf16 %v495, %v421
        %v644 = vpack.c.bf16 %v496, %v422
        %v645 = vpack.c.bf16 %v497, %v423
        %v646 = vpack.c.bf16 %v498, %v424
        %v647 = vpack.c.bf16 %v499, %v425
        %v648 = vpack.c.bf16 %v500, %v426
        %v649 = vpack.c.bf16 %v501, %v427
        %v650 = vpack.c.bf16 %v502, %v428
        %v651 = vpack.c.bf16 %v503, %v429
        %v652 = vpack.c.bf16 %v504, %v430
        %v653 = vpack.c.bf16 %v505, %v431
        %v654 = vpack.c.bf16 %v506, %v432
        %v655 = vpack.c.bf16 %v507, %v433
        %v656 = vpack.c.bf16 %v508, %v434
        %v657 = vpack.c.bf16 %v509, %v435
        %v658 = vpack.c.bf16 %v510, %v436
        %v659 = vpack.c.bf16 %v511, %v437
        %v660 = vpack.c.bf16 %v512, %v438
        %v661 = vpack.c.bf16 %v513, %v439
        %v662 = vpack.c.bf16 %v514, %v440
        %v663 = vpack.c.bf16 %v515, %v441
        %v664 = vpack.c.bf16 %v516, %v442
        %v665 = vpack.c.bf16 %v517, %v443
        %v666 = vpack.c.bf16 %v518, %v444
        %v667 = vpack.c.bf16 %v519, %v445
        %v668 = vpack.c.bf16 %v520, %v446
        %v669 = vpack.c.bf16 %v521, %v447
        %v670 = vpack.c.bf16 %v522, %v448
        %v671 = vpack.c.bf16 %v523, %v449
        %v672 = vpack.c.bf16 %v524, %v450
        %v673 = vpack.c.bf16 %v525, %v451
        %v674 = vpack.c.bf16 %v526, %v452
        %v675 = vpack.c.bf16 %v527, %v453
        %v676 = vpack.c.bf16 %v528, %v454
        %v677 = vpack.c.bf16 %v529, %v455
        %v678 = vpack.c.bf16 %v530, %v456
        %v679 = vpack.c.bf16 %v531, %v457
        %v680 = vpack.c.bf16 %v532, %v458
        %v681 = vpack.c.bf16 %v533, %v459
        %v682 = vpack.c.bf16 %v534, %v460
        %v683 = vpack.c.bf16 %v535, %v461
        %v684 = vpack.c.bf16 %v536, %v462
        %v685 = vpack.c.bf16 %v537, %v463
        %v686 = vpack.c.bf16 %v538, %v464
        %v687 = vpack.c.bf16 %v539, %v465
        %v688 = vpack.c.bf16 %v540, %v466
        %v689 = vpack.c.bf16 %v541, %v467
        %v690 = vpack.c.bf16 %v542, %v468
        %v691 = vld [vmem:[%s198] sm:$0xff]
        %v692 = vld [vmem:[%s198 + $0x8] sm:$0xff]
        %v693 = vld [vmem:[%s198 + $0x10] sm:$0xff]
        %v694 = vld [vmem:[%s198 + $0x18] sm:$0xff]
        %v695 = vld [vmem:[%s198 + $0x20] sm:$0xff]
        %v696 = vld [vmem:[%s198 + $0x28] sm:$0xff]
        %v697 = vld [vmem:[%s198 + $0x30] sm:$0xff]
        %v698 = vld [vmem:[%s198 + $0x38] sm:$0xff]
        %v699 = vld [vmem:[%s198 + $0x40] sm:$0xff]
        %v700 = vld [vmem:[%s198 + $0x48] sm:$0xff]
        %v701 = vld [vmem:[%s198 + $0x50] sm:$0xff]
        %v702 = vld [vmem:[%s198 + $0x58] sm:$0xff]
        %v703 = vld [vmem:[%s198 + $0x60] sm:$0xff]
        %v704 = vld [vmem:[%s198 + $0x68] sm:$0xff]
        %v705 = vld [vmem:[%s198 + $0x70] sm:$0xff]
        %v706 = vld [vmem:[%s198 + $0x78] sm:$0xff]
        %v707 = vld [vmem:[%s198 + $0x80] sm:$0xff]
        %v708 = vld [vmem:[%s198 + $0x88] sm:$0xff]
        %v709 = vld [vmem:[%s198 + $0x90] sm:$0xff]
        %v710 = vld [vmem:[%s198 + $0x98] sm:$0xff]
        %v711 = vld [vmem:[%s198 + $0xa0] sm:$0xff]
        %v712 = vld [vmem:[%s198 + $0xa8] sm:$0xff]
        %v713 = vld [vmem:[%s198 + $0xb0] sm:$0xff]
        %v714 = vld [vmem:[%s198 + $0xb8] sm:$0xff]
        %v715 = vld [vmem:[%s198 + $0xc0] sm:$0xff]
        %v716 = vld [vmem:[%s198 + $0xc8] sm:$0xff]
        %v717 = vld [vmem:[%s198 + $0xd0] sm:$0xff]
        %v718 = vld [vmem:[%s198 + $0xd8] sm:$0xff]
        %v719 = vld [vmem:[%s198 + $0xe0] sm:$0xff]
        %v720 = vld [vmem:[%s198 + $0xe8] sm:$0xff]
        %v721 = vld [vmem:[%s198 + $0xf0] sm:$0xff]
        %v722 = vld [vmem:[%s198 + $0xf8] sm:$0xff]
        %v723 = vld [vmem:[%s198 + $0x100] sm:$0xff]
        %v724 = vld [vmem:[%s198 + $0x108] sm:$0xff]
        %v725 = vld [vmem:[%s198 + $0x110] sm:$0xff]
        %v726 = vld [vmem:[%s198 + $0x118] sm:$0xff]
        %v727 = vld [vmem:[%s198 + $0x120] sm:$0xff]
        %v728 = vld [vmem:[%s198 + $0x128] sm:$0xff]
        %v729 = vld [vmem:[%s198 + $0x130] sm:$0xff]
        %v730 = vld [vmem:[%s198 + $0x138] sm:$0xff]
        %v731 = vld [vmem:[%s198 + $0x140] sm:$0xff]
        %v732 = vld [vmem:[%s198 + $0x148] sm:$0xff]
        %v733 = vld [vmem:[%s198 + $0x150] sm:$0xff]
        %v734 = vld [vmem:[%s198 + $0x158] sm:$0xff]
        %v735 = vld [vmem:[%s198 + $0x160] sm:$0xff]
        %v736 = vld [vmem:[%s198 + $0x168] sm:$0xff]
        %v737 = vld [vmem:[%s198 + $0x170] sm:$0xff]
        %v738 = vld [vmem:[%s198 + $0x178] sm:$0xff]
        %v739 = vld [vmem:[%s198 + $0x180] sm:$0xff]
        %v740 = vld [vmem:[%s198 + $0x188] sm:$0xff]
        %v741 = vld [vmem:[%s198 + $0x190] sm:$0xff]
        %v742 = vld [vmem:[%s198 + $0x198] sm:$0xff]
        %v743 = vld [vmem:[%s198 + $0x1a0] sm:$0xff]
        %v744 = vld [vmem:[%s198 + $0x1a8] sm:$0xff]
        %v745 = vld [vmem:[%s198 + $0x1b0] sm:$0xff]
        %v746 = vld [vmem:[%s198 + $0x1b8] sm:$0xff]
        %v747 = vld [vmem:[%s198 + $0x1c0] sm:$0xff]
        %v748 = vld [vmem:[%s198 + $0x1c8] sm:$0xff]
        %v749 = vld [vmem:[%s198 + $0x1d0] sm:$0xff]
        %v750 = vld [vmem:[%s198 + $0x1d8] sm:$0xff]
        %v751 = vld [vmem:[%s198 + $0x1e0] sm:$0xff]
        %v752 = vld [vmem:[%s198 + $0x1e8] sm:$0xff]
        %v753 = vld [vmem:[%s198 + $0x1f0] sm:$0xff]
        %v754 = vld [vmem:[%s198 + $0x1f8] sm:$0xff]
        %v755 = vld [vmem:[%s198 + $0x200] sm:$0xff]
        %v756 = vld [vmem:[%s198 + $0x208] sm:$0xff]
        %v757 = vld [vmem:[%s198 + $0x210] sm:$0xff]
        %v758 = vld [vmem:[%s198 + $0x218] sm:$0xff]
        %v759 = vld [vmem:[%s198 + $0x220] sm:$0xff]
        %v760 = vld [vmem:[%s198 + $0x228] sm:$0xff]
        %v761 = vld [vmem:[%s198 + $0x230] sm:$0xff]
        %v762 = vld [vmem:[%s198 + $0x238] sm:$0xff]
        %v763 = vld [vmem:[%s198 + $0x240] sm:$0xff]
        %v764 = vld [vmem:[%s198 + $0x248] sm:$0xff]
        %v765 = vld [vmem:[%s198 + $0x250] sm:$0xff]
        %v766 = vld [vmem:[%s198 + $0x258] sm:$0xff]
        %v767 = vld [vmem:[%s198 + $0x260] sm:$0xff]
        %v768 = vld [vmem:[%s198 + $0x268] sm:$0xff]
        %v769 = vld [vmem:[%s198 + $0x270] sm:$0xff]
        %v770 = vld [vmem:[%s198 + $0x278] sm:$0xff]
        %v771 = vld [vmem:[%s198 + $0x280] sm:$0xff]
        %v772 = vld [vmem:[%s198 + $0x288] sm:$0xff]
        %v773 = vld [vmem:[%s198 + $0x290] sm:$0xff]
        %v774 = vld [vmem:[%s198 + $0x298] sm:$0xff]
        %v775 = vld [vmem:[%s198 + $0x2a0] sm:$0xff]
        %v776 = vld [vmem:[%s198 + $0x2a8] sm:$0xff]
        %v777 = vld [vmem:[%s198 + $0x2b0] sm:$0xff]
        %v778 = vld [vmem:[%s198 + $0x2b8] sm:$0xff]
        %v779 = vld [vmem:[%s198 + $0x2c0] sm:$0xff]
        %v780 = vld [vmem:[%s198 + $0x2c8] sm:$0xff]
        %v781 = vld [vmem:[%s198 + $0x2d0] sm:$0xff]
        %v782 = vld [vmem:[%s198 + $0x2d8] sm:$0xff]
        %v783 = vld [vmem:[%s198 + $0x2e0] sm:$0xff]
        %v784 = vld [vmem:[%s198 + $0x2e8] sm:$0xff]
        %v785 = vld [vmem:[%s198 + $0x2f0] sm:$0xff]
        %v786 = vld [vmem:[%s198 + $0x2f8] sm:$0xff]
        %v787 = vld [vmem:[%s198 + $0x300] sm:$0xff]
        %v788 = vld [vmem:[%s198 + $0x308] sm:$0xff]
        %v789 = vld [vmem:[%s198 + $0x310] sm:$0xff]
        %v790 = vld [vmem:[%s198 + $0x318] sm:$0xff]
        %v791 = vld [vmem:[%s198 + $0x320] sm:$0xff]
        %v792 = vld [vmem:[%s198 + $0x328] sm:$0xff]
        %v793 = vld [vmem:[%s198 + $0x330] sm:$0xff]
        %v794 = vld [vmem:[%s198 + $0x338] sm:$0xff]
        %v795 = vld [vmem:[%s198 + $0x340] sm:$0xff]
        %v796 = vld [vmem:[%s198 + $0x348] sm:$0xff]
        %v797 = vld [vmem:[%s198 + $0x350] sm:$0xff]
        %v798 = vld [vmem:[%s198 + $0x358] sm:$0xff]
        %v799 = vld [vmem:[%s198 + $0x360] sm:$0xff]
        %v800 = vld [vmem:[%s198 + $0x368] sm:$0xff]
        %v801 = vld [vmem:[%s198 + $0x370] sm:$0xff]
        %v802 = vld [vmem:[%s198 + $0x378] sm:$0xff]
        %v803 = vld [vmem:[%s198 + $0x380] sm:$0xff]
        %v804 = vld [vmem:[%s198 + $0x388] sm:$0xff]
        %v805 = vld [vmem:[%s198 + $0x390] sm:$0xff]
        %v806 = vld [vmem:[%s198 + $0x398] sm:$0xff]
        %v807 = vld [vmem:[%s198 + $0x3a0] sm:$0xff]
        %v808 = vld [vmem:[%s198 + $0x3a8] sm:$0xff]
        %v809 = vld [vmem:[%s198 + $0x3b0] sm:$0xff]
        %v810 = vld [vmem:[%s198 + $0x3b8] sm:$0xff]
        %v811 = vld [vmem:[%s198 + $0x3c0] sm:$0xff]
        %v812 = vld [vmem:[%s198 + $0x3c8] sm:$0xff]
        %v813 = vld [vmem:[%s198 + $0x3d0] sm:$0xff]
        %v814 = vld [vmem:[%s198 + $0x3d8] sm:$0xff]
        %v815 = vld [vmem:[%s198 + $0x3e0] sm:$0xff]
        %v816 = vld [vmem:[%s198 + $0x3e8] sm:$0xff]
        %v817 = vld [vmem:[%s198 + $0x3f0] sm:$0xff]
        %v818 = vld [vmem:[%s198 + $0x3f8] sm:$0xff]
        %v819 = vld [vmem:[%s198 + $0x400] sm:$0xff]
        %v820 = vld [vmem:[%s198 + $0x408] sm:$0xff]
        %v821 = vld [vmem:[%s198 + $0x410] sm:$0xff]
        %v822 = vld [vmem:[%s198 + $0x418] sm:$0xff]
        %v823 = vld [vmem:[%s198 + $0x420] sm:$0xff]
        %v824 = vld [vmem:[%s198 + $0x428] sm:$0xff]
        %v825 = vld [vmem:[%s198 + $0x430] sm:$0xff]
        %v826 = vld [vmem:[%s198 + $0x438] sm:$0xff]
        %v827 = vld [vmem:[%s198 + $0x440] sm:$0xff]
        %v828 = vld [vmem:[%s198 + $0x448] sm:$0xff]
        %v829 = vld [vmem:[%s198 + $0x450] sm:$0xff]
        %v830 = vld [vmem:[%s198 + $0x458] sm:$0xff]
        %v831 = vld [vmem:[%s198 + $0x460] sm:$0xff]
        %v832 = vld [vmem:[%s198 + $0x468] sm:$0xff]
        %v833 = vld [vmem:[%s198 + $0x470] sm:$0xff]
        %v834 = vld [vmem:[%s198 + $0x478] sm:$0xff]
        %v835 = vld [vmem:[%s198 + $0x480] sm:$0xff]
        %v836 = vld [vmem:[%s198 + $0x488] sm:$0xff]
        %v837 = vld [vmem:[%s198 + $0x490] sm:$0xff]
        %v838 = vld [vmem:[%s198 + $0x498] sm:$0xff]
        %v839 = vld [vmem:[%s198 + $0x4a0] sm:$0xff]
        %v840 = vld [vmem:[%s198 + $0x4a8] sm:$0xff]
        %v841 = vld [vmem:[%s198 + $0x4b0] sm:$0xff]
        %v842 = vld [vmem:[%s198 + $0x4b8] sm:$0xff]
        %v843 = vld [vmem:[%s198 + $0x4c0] sm:$0xff]
        %v844 = vld [vmem:[%s198 + $0x4c8] sm:$0xff]
        %v845 = vld [vmem:[%s198 + $0x4d0] sm:$0xff]
        %v846 = vld [vmem:[%s198 + $0x4d8] sm:$0xff]
        %v847 = vld [vmem:[%s198 + $0x4e0] sm:$0xff]
        %v848 = vld [vmem:[%s198 + $0x4e8] sm:$0xff]
        %v849 = vld [vmem:[%s198 + $0x4f0] sm:$0xff]
        %v850 = vld [vmem:[%s198 + $0x4f8] sm:$0xff]
        %v851 = vld [vmem:[%s198 + $0x500] sm:$0xff]
        %v852 = vld [vmem:[%s198 + $0x508] sm:$0xff]
        %v853 = vld [vmem:[%s198 + $0x510] sm:$0xff]
        %v854 = vld [vmem:[%s198 + $0x518] sm:$0xff]
        %v855 = vld [vmem:[%s198 + $0x520] sm:$0xff]
        %v856 = vld [vmem:[%s198 + $0x528] sm:$0xff]
        %v857 = vld [vmem:[%s198 + $0x530] sm:$0xff]
        %v858 = vld [vmem:[%s198 + $0x538] sm:$0xff]
        %v859 = vld [vmem:[%s198 + $0x540] sm:$0xff]
        %v860 = vld [vmem:[%s198 + $0x548] sm:$0xff]
        %v861 = vld [vmem:[%s198 + $0x550] sm:$0xff]
        %v862 = vld [vmem:[%s198 + $0x558] sm:$0xff]
        %v863 = vld [vmem:[%s198 + $0x560] sm:$0xff]
        %v864 = vld [vmem:[%s198 + $0x568] sm:$0xff]
        %v865 = vld [vmem:[%s198 + $0x570] sm:$0xff]
        %v866 = vld [vmem:[%s198 + $0x578] sm:$0xff]
        %v867 = vld [vmem:[%s198 + $0x580] sm:$0xff]
        %v868 = vld [vmem:[%s198 + $0x588] sm:$0xff]
        %v869 = vld [vmem:[%s198 + $0x590] sm:$0xff]
        %v870 = vld [vmem:[%s198 + $0x598] sm:$0xff]
        %v871 = vld [vmem:[%s198 + $0x5a0] sm:$0xff]
        %v872 = vld [vmem:[%s198 + $0x5a8] sm:$0xff]
        %v873 = vld [vmem:[%s198 + $0x5b0] sm:$0xff]
        %v874 = vld [vmem:[%s198 + $0x5b8] sm:$0xff]
        %v875 = vld [vmem:[%s198 + $0x5c0] sm:$0xff]
        %v876 = vld [vmem:[%s198 + $0x5c8] sm:$0xff]
        %v877 = vld [vmem:[%s198 + $0x5d0] sm:$0xff]
        %v878 = vld [vmem:[%s198 + $0x5d8] sm:$0xff]
        %v879 = vld [vmem:[%s198 + $0x5e0] sm:$0xff]
        %v880 = vld [vmem:[%s198 + $0x5e8] sm:$0xff]
        %v881 = vld [vmem:[%s198 + $0x5f0] sm:$0xff]
        %v882 = vld [vmem:[%s198 + $0x5f8] sm:$0xff]
        %v883 = vld [vmem:[%s198 + $0x600] sm:$0xff]
        %v884 = vld [vmem:[%s198 + $0x608] sm:$0xff]
        %v885 = vld [vmem:[%s198 + $0x610] sm:$0xff]
        %v886 = vld [vmem:[%s198 + $0x618] sm:$0xff]
        %v887 = vld [vmem:[%s198 + $0x620] sm:$0xff]
        %v888 = vld [vmem:[%s198 + $0x628] sm:$0xff]
        %v889 = vld [vmem:[%s198 + $0x630] sm:$0xff]
        %v890 = vld [vmem:[%s198 + $0x638] sm:$0xff]
        %v891 = vld [vmem:[%s198 + $0x640] sm:$0xff]
        %v892 = vld [vmem:[%s198 + $0x648] sm:$0xff]
        %v893 = vld [vmem:[%s198 + $0x650] sm:$0xff]
        %v894 = vld [vmem:[%s198 + $0x658] sm:$0xff]
        %v895 = vld [vmem:[%s198 + $0x660] sm:$0xff]
        %v896 = vld [vmem:[%s198 + $0x668] sm:$0xff]
        %v897 = vld [vmem:[%s198 + $0x670] sm:$0xff]
        %v898 = vld [vmem:[%s198 + $0x678] sm:$0xff]
        %v899 = vld [vmem:[%s198 + $0x680] sm:$0xff]
        %v900 = vld [vmem:[%s198 + $0x688] sm:$0xff]
        %v901 = vld [vmem:[%s198 + $0x690] sm:$0xff]
        %v902 = vld [vmem:[%s198 + $0x698] sm:$0xff]
        %v903 = vld [vmem:[%s198 + $0x6a0] sm:$0xff]
        %v904 = vld [vmem:[%s198 + $0x6a8] sm:$0xff]
        %v905 = vld [vmem:[%s198 + $0x6b0] sm:$0xff]
        %v906 = vld [vmem:[%s198 + $0x6b8] sm:$0xff]
        %v907 = vld [vmem:[%s198 + $0x6c0] sm:$0xff]
        %v908 = vld [vmem:[%s198 + $0x6c8] sm:$0xff]
        %v909 = vld [vmem:[%s198 + $0x6d0] sm:$0xff]
        %v910 = vld [vmem:[%s198 + $0x6d8] sm:$0xff]
        %v911 = vld [vmem:[%s198 + $0x6e0] sm:$0xff]
        %v912 = vld [vmem:[%s198 + $0x6e8] sm:$0xff]
        %v913 = vld [vmem:[%s198 + $0x6f0] sm:$0xff]
        %v914 = vld [vmem:[%s198 + $0x6f8] sm:$0xff]
        %v915 = vld [vmem:[%s198 + $0x700] sm:$0xff]
        %v916 = vld [vmem:[%s198 + $0x708] sm:$0xff]
        %v917 = vld [vmem:[%s198 + $0x710] sm:$0xff]
        %v918 = vld [vmem:[%s198 + $0x718] sm:$0xff]
        %v919 = vld [vmem:[%s198 + $0x720] sm:$0xff]
        %v920 = vld [vmem:[%s198 + $0x728] sm:$0xff]
        %v921 = vld [vmem:[%s198 + $0x730] sm:$0xff]
        %v922 = vld [vmem:[%s198 + $0x738] sm:$0xff]
        %v923 = vld [vmem:[%s198 + $0x740] sm:$0xff]
        %v924 = vld [vmem:[%s198 + $0x748] sm:$0xff]
        %v925 = vld [vmem:[%s198 + $0x750] sm:$0xff]
        %v926 = vld [vmem:[%s198 + $0x758] sm:$0xff]
        %v927 = vld [vmem:[%s198 + $0x760] sm:$0xff]
        %v928 = vld [vmem:[%s198 + $0x768] sm:$0xff]
        %v929 = vld [vmem:[%s198 + $0x770] sm:$0xff]
        %v930 = vld [vmem:[%s198 + $0x778] sm:$0xff]
        %v931 = vld [vmem:[%s198 + $0x780] sm:$0xff]
        %v932 = vld [vmem:[%s198 + $0x788] sm:$0xff]
        %v933 = vld [vmem:[%s198 + $0x790] sm:$0xff]
        %v934 = vld [vmem:[%s198 + $0x798] sm:$0xff]
        %v935 = vld [vmem:[%s198 + $0x7a0] sm:$0xff]
        %v936 = vld [vmem:[%s198 + $0x7a8] sm:$0xff]
        %v937 = vld [vmem:[%s198 + $0x7b0] sm:$0xff]
        %v938 = vld [vmem:[%s198 + $0x7b8] sm:$0xff]
        %v939 = vld [vmem:[%s198 + $0x7c0] sm:$0xff]
        %v940 = vld [vmem:[%s198 + $0x7c8] sm:$0xff]
        %v941 = vld [vmem:[%s198 + $0x7d0] sm:$0xff]
        %v942 = vld [vmem:[%s198 + $0x7d8] sm:$0xff]
        %v943 = vld [vmem:[%s198 + $0x7e0] sm:$0xff]
        %v944 = vld [vmem:[%s198 + $0x7e8] sm:$0xff]
        %v945 = vld [vmem:[%s198 + $0x7f0] sm:$0xff]
        %v946 = vld [vmem:[%s198 + $0x7f8] sm:$0xff]
        %v947 = vld [vmem:[%s198 + $0x800] sm:$0xff]
        %v948 = vld [vmem:[%s198 + $0x808] sm:$0xff]
        %v949 = vld [vmem:[%s198 + $0x810] sm:$0xff]
        %v950 = vld [vmem:[%s198 + $0x818] sm:$0xff]
        %v951 = vld [vmem:[%s198 + $0x820] sm:$0xff]
        %v952 = vld [vmem:[%s198 + $0x828] sm:$0xff]
        %v953 = vld [vmem:[%s198 + $0x830] sm:$0xff]
        %v954 = vld [vmem:[%s198 + $0x838] sm:$0xff]
        %v955 = vld [vmem:[%s198 + $0x840] sm:$0xff]
        %v956 = vld [vmem:[%s198 + $0x848] sm:$0xff]
        %v957 = vld [vmem:[%s198 + $0x850] sm:$0xff]
        %v958 = vld [vmem:[%s198 + $0x858] sm:$0xff]
        %v959 = vld [vmem:[%s198 + $0x860] sm:$0xff]
        %v960 = vld [vmem:[%s198 + $0x868] sm:$0xff]
        %v961 = vld [vmem:[%s198 + $0x870] sm:$0xff]
        %v962 = vld [vmem:[%s198 + $0x878] sm:$0xff]
        %v963 = vld [vmem:[%s198 + $0x880] sm:$0xff]
        %v964 = vld [vmem:[%s198 + $0x888] sm:$0xff]
        %v965 = vld [vmem:[%s198 + $0x890] sm:$0xff]
        %v966 = vld [vmem:[%s198 + $0x898] sm:$0xff]
        %v967 = vld [vmem:[%s198 + $0x8a0] sm:$0xff]
        %v968 = vld [vmem:[%s198 + $0x8a8] sm:$0xff]
        %v969 = vld [vmem:[%s198 + $0x8b0] sm:$0xff]
        %v970 = vld [vmem:[%s198 + $0x8b8] sm:$0xff]
        %v971 = vld [vmem:[%s198 + $0x8c0] sm:$0xff]
        %v972 = vld [vmem:[%s198 + $0x8c8] sm:$0xff]
        %v973 = vld [vmem:[%s198 + $0x8d0] sm:$0xff]
        %v974 = vld [vmem:[%s198 + $0x8d8] sm:$0xff]
        %v975 = vld [vmem:[%s198 + $0x8e0] sm:$0xff]
        %v976 = vld [vmem:[%s198 + $0x8e8] sm:$0xff]
        %v977 = vld [vmem:[%s198 + $0x8f0] sm:$0xff]
        %v978 = vld [vmem:[%s198 + $0x8f8] sm:$0xff]
        %v979 = vld [vmem:[%s198 + $0x900] sm:$0xff]
        %v980 = vld [vmem:[%s198 + $0x908] sm:$0xff]
        %v981 = vld [vmem:[%s198 + $0x910] sm:$0xff]
        %v982 = vld [vmem:[%s198 + $0x918] sm:$0xff]
        %v983 = vld [vmem:[%s198 + $0x920] sm:$0xff]
        %v984 = vld [vmem:[%s198 + $0x928] sm:$0xff]
        %v985 = vld [vmem:[%s198 + $0x930] sm:$0xff]
        %v986 = vld [vmem:[%s198 + $0x938] sm:$0xff]
        %v987 = vld [vmem:[%s198 + $0x940] sm:$0xff]
        %v988 = vld [vmem:[%s198 + $0x948] sm:$0xff]
        %v989 = vld [vmem:[%s198 + $0x950] sm:$0xff]
        %v990 = vld [vmem:[%s198 + $0x958] sm:$0xff]
        %v991 = vld [vmem:[%s198 + $0x960] sm:$0xff]
        %v992 = vld [vmem:[%s198 + $0x968] sm:$0xff]
        %v993 = vld [vmem:[%s198 + $0x970] sm:$0xff]
        %v994 = vld [vmem:[%s198 + $0x978] sm:$0xff]
        %v995 = vld [vmem:[%s198 + $0x980] sm:$0xff]
        %v996 = vld [vmem:[%s198 + $0x988] sm:$0xff]
        %v997 = vld [vmem:[%s198 + $0x990] sm:$0xff]
        %v998 = vld [vmem:[%s198 + $0x998] sm:$0xff]
        %v999 = vld [vmem:[%s198 + $0x9a0] sm:$0xff]
        %v1000 = vld [vmem:[%s198 + $0x9a8] sm:$0xff]
        %v1001 = vld [vmem:[%s198 + $0x9b0] sm:$0xff]
        %v1002 = vld [vmem:[%s198 + $0x9b8] sm:$0xff]
        %v1003 = vld [vmem:[%s198 + $0x9c0] sm:$0xff]
        %v1004 = vld [vmem:[%s198 + $0x9c8] sm:$0xff]
        %v1005 = vld [vmem:[%s198 + $0x9d0] sm:$0xff]
        %v1006 = vld [vmem:[%s198 + $0x9d8] sm:$0xff]
        %v1007 = vld [vmem:[%s198 + $0x9e0] sm:$0xff]
        %v1008 = vld [vmem:[%s198 + $0x9e8] sm:$0xff]
        %v1009 = vld [vmem:[%s198 + $0x9f0] sm:$0xff]
        %v1010 = vld [vmem:[%s198 + $0x9f8] sm:$0xff]
        %v1011 = vld [vmem:[%s198 + $0xa00] sm:$0xff]
        %v1012 = vld [vmem:[%s198 + $0xa08] sm:$0xff]
        %v1013 = vld [vmem:[%s198 + $0xa10] sm:$0xff]
        %v1014 = vld [vmem:[%s198 + $0xa18] sm:$0xff]
        %v1015 = vld [vmem:[%s198 + $0xa20] sm:$0xff]
        %v1016 = vld [vmem:[%s198 + $0xa28] sm:$0xff]
        %v1017 = vld [vmem:[%s198 + $0xa30] sm:$0xff]
        %v1018 = vld [vmem:[%s198 + $0xa38] sm:$0xff]
        %v1019 = vld [vmem:[%s198 + $0xa40] sm:$0xff]
        %v1020 = vld [vmem:[%s198 + $0xa48] sm:$0xff]
        %v1021 = vld [vmem:[%s198 + $0xa50] sm:$0xff]
        %v1022 = vld [vmem:[%s198 + $0xa58] sm:$0xff]
        %v1023 = vld [vmem:[%s198 + $0xa60] sm:$0xff]
        %v1024 = vld [vmem:[%s198 + $0xa68] sm:$0xff]
        %v1025 = vld [vmem:[%s198 + $0xa70] sm:$0xff]
        %v1026 = vld [vmem:[%s198 + $0xa78] sm:$0xff]
        %v1027 = vld [vmem:[%s198 + $0xa80] sm:$0xff]
        %v1028 = vld [vmem:[%s198 + $0xa88] sm:$0xff]
        %v1029 = vld [vmem:[%s198 + $0xa90] sm:$0xff]
        %v1030 = vld [vmem:[%s198 + $0xa98] sm:$0xff]
        %v1031 = vld [vmem:[%s198 + $0xaa0] sm:$0xff]
        %v1032 = vld [vmem:[%s198 + $0xaa8] sm:$0xff]
        %v1033 = vld [vmem:[%s198 + $0xab0] sm:$0xff]
        %v1034 = vld [vmem:[%s198 + $0xab8] sm:$0xff]
        %v1035 = vld [vmem:[%s198 + $0xac0] sm:$0xff]
        %v1036 = vld [vmem:[%s198 + $0xac8] sm:$0xff]
        %v1037 = vld [vmem:[%s198 + $0xad0] sm:$0xff]
        %v1038 = vld [vmem:[%s198 + $0xad8] sm:$0xff]
        %v1039 = vld [vmem:[%s198 + $0xae0] sm:$0xff]
        %v1040 = vld [vmem:[%s198 + $0xae8] sm:$0xff]
        %v1041 = vld [vmem:[%s198 + $0xaf0] sm:$0xff]
        %v1042 = vld [vmem:[%s198 + $0xaf8] sm:$0xff]
        %v1043 = vld [vmem:[%s198 + $0xb00] sm:$0xff]
        %v1044 = vld [vmem:[%s198 + $0xb08] sm:$0xff]
        %v1045 = vld [vmem:[%s198 + $0xb10] sm:$0xff]
        %v1046 = vld [vmem:[%s198 + $0xb18] sm:$0xff]
        %v1047 = vld [vmem:[%s198 + $0xb20] sm:$0xff]
        %v1048 = vld [vmem:[%s198 + $0xb28] sm:$0xff]
        %v1049 = vld [vmem:[%s198 + $0xb30] sm:$0xff]
        %v1050 = vld [vmem:[%s198 + $0xb38] sm:$0xff]
        %v1051 = vld [vmem:[%s198 + $0xb40] sm:$0xff]
        %v1052 = vld [vmem:[%s198 + $0xb48] sm:$0xff]
        %v1053 = vld [vmem:[%s198 + $0xb50] sm:$0xff]
        %v1054 = vld [vmem:[%s198 + $0xb58] sm:$0xff]
        %v1055 = vld [vmem:[%s198 + $0xb60] sm:$0xff]
        %v1056 = vld [vmem:[%s198 + $0xb68] sm:$0xff]
        %v1057 = vld [vmem:[%s198 + $0xb70] sm:$0xff]
        %v1058 = vld [vmem:[%s198 + $0xb78] sm:$0xff]
        %v1059 = vld [vmem:[%s198 + $0xb80] sm:$0xff]
        %v1060 = vld [vmem:[%s198 + $0xb88] sm:$0xff]
        %v1061 = vld [vmem:[%s198 + $0xb90] sm:$0xff]
        %v1062 = vld [vmem:[%s198 + $0xb98] sm:$0xff]
        %v1063 = vld [vmem:[%s198 + $0xba0] sm:$0xff]
        %v1064 = vld [vmem:[%s198 + $0xba8] sm:$0xff]
        %v1065 = vld [vmem:[%s198 + $0xbb0] sm:$0xff]
        %v1066 = vld [vmem:[%s198 + $0xbb8] sm:$0xff]
        %v1067 = vld [vmem:[%s198 + $0xbc0] sm:$0xff]
        %v1068 = vld [vmem:[%s198 + $0xbc8] sm:$0xff]
        %v1069 = vld [vmem:[%s198 + $0xbd0] sm:$0xff]
        %v1070 = vld [vmem:[%s198 + $0xbd8] sm:$0xff]
        %v1071 = vld [vmem:[%s198 + $0xbe0] sm:$0xff]
        %v1072 = vld [vmem:[%s198 + $0xbe8] sm:$0xff]
        %v1073 = vld [vmem:[%s198 + $0xbf0] sm:$0xff]
        %v1074 = vld [vmem:[%s198 + $0xbf8] sm:$0xff]
        %v1075 = vld [vmem:[%s198 + $0xc00] sm:$0xff]
        %v1076 = vld [vmem:[%s198 + $0xc08] sm:$0xff]
        %v1077 = vld [vmem:[%s198 + $0xc10] sm:$0xff]
        %v1078 = vld [vmem:[%s198 + $0xc18] sm:$0xff]
        %v1079 = vld [vmem:[%s198 + $0xc20] sm:$0xff]
        %v1080 = vld [vmem:[%s198 + $0xc28] sm:$0xff]
        %v1081 = vld [vmem:[%s198 + $0xc30] sm:$0xff]
        %v1082 = vld [vmem:[%s198 + $0xc38] sm:$0xff]
        %v1083 = vld [vmem:[%s198 + $0xc40] sm:$0xff]
        %v1084 = vld [vmem:[%s198 + $0xc48] sm:$0xff]
        %v1085 = vld [vmem:[%s198 + $0xc50] sm:$0xff]
        %v1086 = vld [vmem:[%s198 + $0xc58] sm:$0xff]
        %v1087 = vld [vmem:[%s198 + $0xc60] sm:$0xff]
        %v1088 = vld [vmem:[%s198 + $0xc68] sm:$0xff]
        %v1089 = vld [vmem:[%s198 + $0xc70] sm:$0xff]
        %v1090 = vld [vmem:[%s198 + $0xc78] sm:$0xff]
        %v1091 = vld [vmem:[%s198 + $0xc80] sm:$0xff]
        %v1092 = vld [vmem:[%s198 + $0xc88] sm:$0xff]
        %v1093 = vld [vmem:[%s198 + $0xc90] sm:$0xff]
        %v1094 = vld [vmem:[%s198 + $0xc98] sm:$0xff]
        %v1095 = vld [vmem:[%s198 + $0xca0] sm:$0xff]
        %v1096 = vld [vmem:[%s198 + $0xca8] sm:$0xff]
        %v1097 = vld [vmem:[%s198 + $0xcb0] sm:$0xff]
        %v1098 = vld [vmem:[%s198 + $0xcb8] sm:$0xff]
        %v1099 = vld [vmem:[%s198 + $0xcc0] sm:$0xff]
        %v1100 = vld [vmem:[%s198 + $0xcc8] sm:$0xff]
        %v1101 = vld [vmem:[%s198 + $0xcd0] sm:$0xff]
        %v1102 = vld [vmem:[%s198 + $0xcd8] sm:$0xff]
        %v1103 = vld [vmem:[%s198 + $0xce0] sm:$0xff]
        %v1104 = vld [vmem:[%s198 + $0xce8] sm:$0xff]
        %v1105 = vld [vmem:[%s198 + $0xcf0] sm:$0xff]
        %v1106 = vld [vmem:[%s198 + $0xcf8] sm:$0xff]
        %v1107 = vld [vmem:[%s198 + $0xd00] sm:$0xff]
        %v1108 = vld [vmem:[%s198 + $0xd08] sm:$0xff]
        %v1109 = vld [vmem:[%s198 + $0xd10] sm:$0xff]
        %v1110 = vld [vmem:[%s198 + $0xd18] sm:$0xff]
        %v1111 = vld [vmem:[%s198 + $0xd20] sm:$0xff]
        %v1112 = vld [vmem:[%s198 + $0xd28] sm:$0xff]
        %v1113 = vld [vmem:[%s198 + $0xd30] sm:$0xff]
        %v1114 = vld [vmem:[%s198 + $0xd38] sm:$0xff]
        %v1115 = vld [vmem:[%s198 + $0xd40] sm:$0xff]
        %v1116 = vld [vmem:[%s198 + $0xd48] sm:$0xff]
        %v1117 = vld [vmem:[%s198 + $0xd50] sm:$0xff]
        %v1118 = vld [vmem:[%s198 + $0xd58] sm:$0xff]
        %v1119 = vld [vmem:[%s198 + $0xd60] sm:$0xff]
        %v1120 = vld [vmem:[%s198 + $0xd68] sm:$0xff]
        %v1121 = vld [vmem:[%s198 + $0xd70] sm:$0xff]
        %v1122 = vld [vmem:[%s198 + $0xd78] sm:$0xff]
        %v1123 = vld [vmem:[%s198 + $0xd80] sm:$0xff]
        %v1124 = vld [vmem:[%s198 + $0xd88] sm:$0xff]
        %v1125 = vld [vmem:[%s198 + $0xd90] sm:$0xff]
        %v1126 = vld [vmem:[%s198 + $0xd98] sm:$0xff]
        %v1127 = vld [vmem:[%s198 + $0xda0] sm:$0xff]
        %v1128 = vld [vmem:[%s198 + $0xda8] sm:$0xff]
        %v1129 = vld [vmem:[%s198 + $0xdb0] sm:$0xff]
        %v1130 = vld [vmem:[%s198 + $0xdb8] sm:$0xff]
        %v1131 = vld [vmem:[%s198 + $0xdc0] sm:$0xff]
        %v1132 = vld [vmem:[%s198 + $0xdc8] sm:$0xff]
        %v1133 = vld [vmem:[%s198 + $0xdd0] sm:$0xff]
        %v1134 = vld [vmem:[%s198 + $0xdd8] sm:$0xff]
        %v1135 = vld [vmem:[%s198 + $0xde0] sm:$0xff]
        %v1136 = vld [vmem:[%s198 + $0xde8] sm:$0xff]
        %v1137 = vld [vmem:[%s198 + $0xdf0] sm:$0xff]
        %v1138 = vld [vmem:[%s198 + $0xdf8] sm:$0xff]
        %v1139 = vld [vmem:[%s198 + $0xe00] sm:$0xff]
        %v1140 = vld [vmem:[%s198 + $0xe08] sm:$0xff]
        %v1141 = vld [vmem:[%s198 + $0xe10] sm:$0xff]
        %v1142 = vld [vmem:[%s198 + $0xe18] sm:$0xff]
        %v1143 = vld [vmem:[%s198 + $0xe20] sm:$0xff]
        %v1144 = vld [vmem:[%s198 + $0xe28] sm:$0xff]
        %v1145 = vld [vmem:[%s198 + $0xe30] sm:$0xff]
        %v1146 = vld [vmem:[%s198 + $0xe38] sm:$0xff]
        %v1147 = vld [vmem:[%s198 + $0xe40] sm:$0xff]
        %v1148 = vld [vmem:[%s198 + $0xe48] sm:$0xff]
        %v1149 = vld [vmem:[%s198 + $0xe50] sm:$0xff]
        %v1150 = vld [vmem:[%s198 + $0xe58] sm:$0xff]
        %v1151 = vld [vmem:[%s198 + $0xe60] sm:$0xff]
        %v1152 = vld [vmem:[%s198 + $0xe68] sm:$0xff]
        %v1153 = vld [vmem:[%s198 + $0xe70] sm:$0xff]
        %v1154 = vld [vmem:[%s198 + $0xe78] sm:$0xff]
        %v1155 = vld [vmem:[%s198 + $0xe80] sm:$0xff]
        %v1156 = vld [vmem:[%s198 + $0xe88] sm:$0xff]
        %v1157 = vld [vmem:[%s198 + $0xe90] sm:$0xff]
        %v1158 = vld [vmem:[%s198 + $0xe98] sm:$0xff]
        %v1159 = vld [vmem:[%s198 + $0xea0] sm:$0xff]
        %v1160 = vld [vmem:[%s198 + $0xea8] sm:$0xff]
        %v1161 = vld [vmem:[%s198 + $0xeb0] sm:$0xff]
        %v1162 = vld [vmem:[%s198 + $0xeb8] sm:$0xff]
        %v1163 = vld [vmem:[%s198 + $0xec0] sm:$0xff]
        %v1164 = vld [vmem:[%s198 + $0xec8] sm:$0xff]
        %v1165 = vld [vmem:[%s198 + $0xed0] sm:$0xff]
        %v1166 = vld [vmem:[%s198 + $0xed8] sm:$0xff]
        %v1167 = vld [vmem:[%s198 + $0xee0] sm:$0xff]
        %v1168 = vld [vmem:[%s198 + $0xee8] sm:$0xff]
        %v1169 = vld [vmem:[%s198 + $0xef0] sm:$0xff]
        %v1170 = vld [vmem:[%s198 + $0xef8] sm:$0xff]
        %v1171 = vld [vmem:[%s198 + $0xf00] sm:$0xff]
        %v1172 = vld [vmem:[%s198 + $0xf08] sm:$0xff]
        %v1173 = vld [vmem:[%s198 + $0xf10] sm:$0xff]
        %v1174 = vld [vmem:[%s198 + $0xf18] sm:$0xff]
        %v1175 = vld [vmem:[%s198 + $0xf20] sm:$0xff]
        %v1176 = vld [vmem:[%s198 + $0xf28] sm:$0xff]
        %v1177 = vld [vmem:[%s198 + $0xf30] sm:$0xff]
        %v1178 = vld [vmem:[%s198 + $0xf38] sm:$0xff]
        %v1179 = vld [vmem:[%s198 + $0xf40] sm:$0xff]
        %v1180 = vld [vmem:[%s198 + $0xf48] sm:$0xff]
        %v1181 = vld [vmem:[%s198 + $0xf50] sm:$0xff]
        %v1182 = vld [vmem:[%s198 + $0xf58] sm:$0xff]
        %v1183 = vld [vmem:[%s198 + $0xf60] sm:$0xff]
        %v1184 = vld [vmem:[%s198 + $0xf68] sm:$0xff]
        %v1185 = vld [vmem:[%s198 + $0xf70] sm:$0xff]
        %v1186 = vld [vmem:[%s198 + $0xf78] sm:$0xff]
        %v1187 = vld [vmem:[%s198 + $0xf80] sm:$0xff]
        %v1188 = vld [vmem:[%s198 + $0xf88] sm:$0xff]
        %v1189 = vld [vmem:[%s198 + $0xf90] sm:$0xff]
        %v1190 = vld [vmem:[%s198 + $0xf98] sm:$0xff]
        %v1191 = vld [vmem:[%s198 + $0xfa0] sm:$0xff]
        %v1192 = vld [vmem:[%s198 + $0xfa8] sm:$0xff]
        %v1193 = vld [vmem:[%s198 + $0xfb0] sm:$0xff]
        %v1194 = vld [vmem:[%s198 + $0xfb8] sm:$0xff]
        %v1195 = vld [vmem:[%s198 + $0xfc0] sm:$0xff]
        %v1196 = vld [vmem:[%s198 + $0xfc8] sm:$0xff]
        %v1197 = vld [vmem:[%s198 + $0xfd0] sm:$0xff]
        %v1198 = vld [vmem:[%s198 + $0xfd8] sm:$0xff]
        %v1199 = vld [vmem:[%s198 + $0xfe0] sm:$0xff]
        %v1200 = vld [vmem:[%s198 + $0xfe8] sm:$0xff]
        %v1201 = vld [vmem:[%s198 + $0xff0] sm:$0xff]
        %v1202 = vld [vmem:[%s198 + $0xff8] sm:$0xff]
        %v1203 = vld [vmem:[%s198 + $0x1000] sm:$0xff]
        %v1204 = vld [vmem:[%s198 + $0x1008] sm:$0xff]
        %v1205 = vld [vmem:[%s198 + $0x1010] sm:$0xff]
        %v1206 = vld [vmem:[%s198 + $0x1018] sm:$0xff]
        %v1207 = vld [vmem:[%s198 + $0x1020] sm:$0xff]
        %v1208 = vld [vmem:[%s198 + $0x1028] sm:$0xff]
        %v1209 = vld [vmem:[%s198 + $0x1030] sm:$0xff]
        %v1210 = vld [vmem:[%s198 + $0x1038] sm:$0xff]
        %v1211 = vld [vmem:[%s198 + $0x1040] sm:$0xff]
        %v1212 = vld [vmem:[%s198 + $0x1048] sm:$0xff]
        %v1213 = vld [vmem:[%s198 + $0x1050] sm:$0xff]
        %v1214 = vld [vmem:[%s198 + $0x1058] sm:$0xff]
        %v1215 = vld [vmem:[%s198 + $0x1060] sm:$0xff]
        %v1216 = vld [vmem:[%s198 + $0x1068] sm:$0xff]
        %v1217 = vld [vmem:[%s198 + $0x1070] sm:$0xff]
        %v1218 = vld [vmem:[%s198 + $0x1078] sm:$0xff]
        %v1219 = vld [vmem:[%s198 + $0x1080] sm:$0xff]
        %v1220 = vld [vmem:[%s198 + $0x1088] sm:$0xff]
        %v1221 = vld [vmem:[%s198 + $0x1090] sm:$0xff]
        %v1222 = vld [vmem:[%s198 + $0x1098] sm:$0xff]
        %v1223 = vld [vmem:[%s198 + $0x10a0] sm:$0xff]
        %v1224 = vld [vmem:[%s198 + $0x10a8] sm:$0xff]
        %v1225 = vld [vmem:[%s198 + $0x10b0] sm:$0xff]
        %v1226 = vld [vmem:[%s198 + $0x10b8] sm:$0xff]
        %v1227 = vld [vmem:[%s198 + $0x10c0] sm:$0xff]
        %v1228 = vld [vmem:[%s198 + $0x10c8] sm:$0xff]
        %v1229 = vld [vmem:[%s198 + $0x10d0] sm:$0xff]
        %v1230 = vld [vmem:[%s198 + $0x10d8] sm:$0xff]
        %v1231 = vld [vmem:[%s198 + $0x10e0] sm:$0xff]
        %v1232 = vld [vmem:[%s198 + $0x10e8] sm:$0xff]
        %v1233 = vld [vmem:[%s198 + $0x10f0] sm:$0xff]
        %v1234 = vld [vmem:[%s198 + $0x10f8] sm:$0xff]
        %v1235 = vld [vmem:[%s198 + $0x1100] sm:$0xff]
        %v1236 = vld [vmem:[%s198 + $0x1108] sm:$0xff]
        %v1237 = vld [vmem:[%s198 + $0x1110] sm:$0xff]
        %v1238 = vld [vmem:[%s198 + $0x1118] sm:$0xff]
        %v1239 = vld [vmem:[%s198 + $0x1120] sm:$0xff]
        %v1240 = vld [vmem:[%s198 + $0x1128] sm:$0xff]
        %v1241 = vld [vmem:[%s198 + $0x1130] sm:$0xff]
        %v1242 = vld [vmem:[%s198 + $0x1138] sm:$0xff]
        %v1243 = vld [vmem:[%s198 + $0x1140] sm:$0xff]
        %v1244 = vld [vmem:[%s198 + $0x1148] sm:$0xff]
        %v1245 = vld [vmem:[%s198 + $0x1150] sm:$0xff]
        %v1246 = vld [vmem:[%s198 + $0x1158] sm:$0xff]
        %v1247 = vld [vmem:[%s198 + $0x1160] sm:$0xff]
        %v1248 = vld [vmem:[%s198 + $0x1168] sm:$0xff]
        %v1249 = vld [vmem:[%s198 + $0x1170] sm:$0xff]
        %v1250 = vld [vmem:[%s198 + $0x1178] sm:$0xff]
        %v1251 = vld [vmem:[%s198 + $0x1180] sm:$0xff]
        %v1252 = vld [vmem:[%s198 + $0x1188] sm:$0xff]
        %v1253 = vld [vmem:[%s198 + $0x1190] sm:$0xff]
        %v1254 = vld [vmem:[%s198 + $0x1198] sm:$0xff]
        %v1255 = vld [vmem:[%s198 + $0x11a0] sm:$0xff]
        %v1256 = vld [vmem:[%s198 + $0x11a8] sm:$0xff]
        %v1257 = vld [vmem:[%s198 + $0x11b0] sm:$0xff]
        %v1258 = vld [vmem:[%s198 + $0x11b8] sm:$0xff]
        %v1259 = vld [vmem:[%s198 + $0x11c0] sm:$0xff]
        %v1260 = vld [vmem:[%s198 + $0x11c8] sm:$0xff]
        %v1261 = vld [vmem:[%s198 + $0x11d0] sm:$0xff]
        %v1262 = vld [vmem:[%s198 + $0x11d8] sm:$0xff]
        %v1263 = vld [vmem:[%s198 + $0x11e0] sm:$0xff]
        %v1264 = vld [vmem:[%s198 + $0x11e8] sm:$0xff]
        %v1265 = vld [vmem:[%s198 + $0x11f0] sm:$0xff]
        %v1266 = vld [vmem:[%s198 + $0x11f8] sm:$0xff]
        %v1267 = vld [vmem:[%s198 + $0x1200] sm:$0xff]
        %v1268 = vld [vmem:[%s198 + $0x1208] sm:$0xff]
        %v1269 = vld [vmem:[%s198 + $0x1210] sm:$0xff]
        %v1270 = vld [vmem:[%s198 + $0x1218] sm:$0xff]
        %v1271 = vld [vmem:[%s198 + $0x1220] sm:$0xff]
        %v1272 = vld [vmem:[%s198 + $0x1228] sm:$0xff]
        %v1273 = vld [vmem:[%s198 + $0x1230] sm:$0xff]
        %v1274 = vld [vmem:[%s198 + $0x1238] sm:$0xff]
        %v1275 = vld [vmem:[%s198 + $0x1240] sm:$0xff]
        %v1276 = vld [vmem:[%s198 + $0x1248] sm:$0xff]
        %v1277 = vld [vmem:[%s198 + $0x1250] sm:$0xff]
        %v1278 = vld [vmem:[%s198 + $0x1258] sm:$0xff]
        %v1279 = vld [vmem:[%s198 + $0x1260] sm:$0xff]
        %v1280 = vld [vmem:[%s198 + $0x1268] sm:$0xff]
        %v1281 = vld [vmem:[%s198 + $0x1270] sm:$0xff]
        %v1282 = vld [vmem:[%s198 + $0x1278] sm:$0xff]
        %v1283 = vld [vmem:[%s198 + $0x1280] sm:$0xff]
        %v1284 = vld [vmem:[%s198 + $0x1288] sm:$0xff]
        %v1285 = vld [vmem:[%s198 + $0x1290] sm:$0xff]
        %v1286 = vld [vmem:[%s198 + $0x1298] sm:$0xff]
        %v1287 = vld [vmem:[%s198 + $0x12a0] sm:$0xff]
        %v1288 = vld [vmem:[%s198 + $0x12a8] sm:$0xff]
        %v1289 = vld [vmem:[%s198 + $0x12b0] sm:$0xff]
        %v1290 = vld [vmem:[%s198 + $0x12b8] sm:$0xff]
        %v1291 = vld [vmem:[%s198 + $0x12c0] sm:$0xff]
        %v1292 = vld [vmem:[%s198 + $0x12c8] sm:$0xff]
        %v1293 = vld [vmem:[%s198 + $0x12d0] sm:$0xff]
        %v1294 = vld [vmem:[%s198 + $0x12d8] sm:$0xff]
        %v1295 = vld [vmem:[%s198 + $0x12e0] sm:$0xff]
        %v1296 = vld [vmem:[%s198 + $0x12e8] sm:$0xff]
        %v1297 = vld [vmem:[%s198 + $0x12f0] sm:$0xff]
        %v1298 = vld [vmem:[%s198 + $0x12f8] sm:$0xff]
        %v1299 = vld [vmem:[%s198 + $0x1300] sm:$0xff]
        %v1300 = vld [vmem:[%s198 + $0x1308] sm:$0xff]
        %v1301 = vld [vmem:[%s198 + $0x1310] sm:$0xff]
        %v1302 = vld [vmem:[%s198 + $0x1318] sm:$0xff]
        %v1303 = vld [vmem:[%s198 + $0x1320] sm:$0xff]
        %v1304 = vld [vmem:[%s198 + $0x1328] sm:$0xff]
        %v1305 = vld [vmem:[%s198 + $0x1330] sm:$0xff]
        %v1306 = vld [vmem:[%s198 + $0x1338] sm:$0xff]
        %v1307 = vld [vmem:[%s198 + $0x1340] sm:$0xff]
        %v1308 = vld [vmem:[%s198 + $0x1348] sm:$0xff]
        %v1309 = vld [vmem:[%s198 + $0x1350] sm:$0xff]
        %v1310 = vld [vmem:[%s198 + $0x1358] sm:$0xff]
        %v1311 = vld [vmem:[%s198 + $0x1360] sm:$0xff]
        %v1312 = vld [vmem:[%s198 + $0x1368] sm:$0xff]
        %v1313 = vld [vmem:[%s198 + $0x1370] sm:$0xff]
        %v1314 = vld [vmem:[%s198 + $0x1378] sm:$0xff]
        %v1315 = vld [vmem:[%s198 + $0x1380] sm:$0xff]
        %v1316 = vld [vmem:[%s198 + $0x1388] sm:$0xff]
        %v1317 = vld [vmem:[%s198 + $0x1390] sm:$0xff]
        %v1318 = vld [vmem:[%s198 + $0x1398] sm:$0xff]
        %v1319 = vld [vmem:[%s198 + $0x13a0] sm:$0xff]
        %v1320 = vld [vmem:[%s198 + $0x13a8] sm:$0xff]
        %v1321 = vld [vmem:[%s198 + $0x13b0] sm:$0xff]
        %v1322 = vld [vmem:[%s198 + $0x13b8] sm:$0xff]
        %v1323 = vld [vmem:[%s198 + $0x13c0] sm:$0xff]
        %v1324 = vld [vmem:[%s198 + $0x13c8] sm:$0xff]
        %v1325 = vld [vmem:[%s198 + $0x13d0] sm:$0xff]
        %v1326 = vld [vmem:[%s198 + $0x13d8] sm:$0xff]
        %v1327 = vld [vmem:[%s198 + $0x13e0] sm:$0xff]
        %v1328 = vld [vmem:[%s198 + $0x13e8] sm:$0xff]
        %v1329 = vld [vmem:[%s198 + $0x13f0] sm:$0xff]
        %v1330 = vld [vmem:[%s198 + $0x13f8] sm:$0xff]
        %v1331 = vld [vmem:[%s198 + $0x1400] sm:$0xff]
        %v1332 = vld [vmem:[%s198 + $0x1408] sm:$0xff]
        %v1333 = vld [vmem:[%s198 + $0x1410] sm:$0xff]
        %v1334 = vld [vmem:[%s198 + $0x1418] sm:$0xff]
        %v1335 = vld [vmem:[%s198 + $0x1420] sm:$0xff]
        %v1336 = vld [vmem:[%s198 + $0x1428] sm:$0xff]
        %v1337 = vld [vmem:[%s198 + $0x1430] sm:$0xff]
        %v1338 = vld [vmem:[%s198 + $0x1438] sm:$0xff]
        %v1339 = vld [vmem:[%s198 + $0x1440] sm:$0xff]
        %v1340 = vld [vmem:[%s198 + $0x1448] sm:$0xff]
        %v1341 = vld [vmem:[%s198 + $0x1450] sm:$0xff]
        %v1342 = vld [vmem:[%s198 + $0x1458] sm:$0xff]
        %v1343 = vld [vmem:[%s198 + $0x1460] sm:$0xff]
        %v1344 = vld [vmem:[%s198 + $0x1468] sm:$0xff]
        %v1345 = vld [vmem:[%s198 + $0x1470] sm:$0xff]
        %v1346 = vld [vmem:[%s198 + $0x1478] sm:$0xff]
        %v1347 = vld [vmem:[%s198 + $0x1480] sm:$0xff]
        %v1348 = vld [vmem:[%s198 + $0x1488] sm:$0xff]
        %v1349 = vld [vmem:[%s198 + $0x1490] sm:$0xff]
        %v1350 = vld [vmem:[%s198 + $0x1498] sm:$0xff]
        %v1351 = vld [vmem:[%s198 + $0x14a0] sm:$0xff]
        %v1352 = vld [vmem:[%s198 + $0x14a8] sm:$0xff]
        %v1353 = vld [vmem:[%s198 + $0x14b0] sm:$0xff]
        %v1354 = vld [vmem:[%s198 + $0x14b8] sm:$0xff]
        %v1355 = vld [vmem:[%s198 + $0x14c0] sm:$0xff]
        %v1356 = vld [vmem:[%s198 + $0x14c8] sm:$0xff]
        %v1357 = vld [vmem:[%s198 + $0x14d0] sm:$0xff]
        %v1358 = vld [vmem:[%s198 + $0x14d8] sm:$0xff]
        %v1359 = vld [vmem:[%s198 + $0x14e0] sm:$0xff]
        %v1360 = vld [vmem:[%s198 + $0x14e8] sm:$0xff]
        %v1361 = vld [vmem:[%s198 + $0x14f0] sm:$0xff]
        %v1362 = vld [vmem:[%s198 + $0x14f8] sm:$0xff]
        %v1363 = vld [vmem:[%s198 + $0x1500] sm:$0xff]
        %v1364 = vld [vmem:[%s198 + $0x1508] sm:$0xff]
        %v1365 = vld [vmem:[%s198 + $0x1510] sm:$0xff]
        %v1366 = vld [vmem:[%s198 + $0x1518] sm:$0xff]
        %v1367 = vld [vmem:[%s198 + $0x1520] sm:$0xff]
        %v1368 = vld [vmem:[%s198 + $0x1528] sm:$0xff]
        %v1369 = vld [vmem:[%s198 + $0x1530] sm:$0xff]
        %v1370 = vld [vmem:[%s198 + $0x1538] sm:$0xff]
        %v1371 = vld [vmem:[%s198 + $0x1540] sm:$0xff]
        %v1372 = vld [vmem:[%s198 + $0x1548] sm:$0xff]
        %v1373 = vld [vmem:[%s198 + $0x1550] sm:$0xff]
        %v1374 = vld [vmem:[%s198 + $0x1558] sm:$0xff]
        %v1375 = vld [vmem:[%s198 + $0x1560] sm:$0xff]
        %v1376 = vld [vmem:[%s198 + $0x1568] sm:$0xff]
        %v1377 = vld [vmem:[%s198 + $0x1570] sm:$0xff]
        %v1378 = vld [vmem:[%s198 + $0x1578] sm:$0xff]
        %v1379 = vld [vmem:[%s198 + $0x1580] sm:$0xff]
        %v1380 = vld [vmem:[%s198 + $0x1588] sm:$0xff]
        %v1381 = vld [vmem:[%s198 + $0x1590] sm:$0xff]
        %v1382 = vld [vmem:[%s198 + $0x1598] sm:$0xff]
        %v1383 = vld [vmem:[%s198 + $0x15a0] sm:$0xff]
        %v1384 = vld [vmem:[%s198 + $0x15a8] sm:$0xff]
        %v1385 = vld [vmem:[%s198 + $0x15b0] sm:$0xff]
        %v1386 = vld [vmem:[%s198 + $0x15b8] sm:$0xff]
        %v1387 = vld [vmem:[%s198 + $0x15c0] sm:$0xff]
        %v1388 = vld [vmem:[%s198 + $0x15c8] sm:$0xff]
        %v1389 = vld [vmem:[%s198 + $0x15d0] sm:$0xff]
        %v1390 = vld [vmem:[%s198 + $0x15d8] sm:$0xff]
        %v1391 = vld [vmem:[%s198 + $0x15e0] sm:$0xff]
        %v1392 = vld [vmem:[%s198 + $0x15e8] sm:$0xff]
        %v1393 = vld [vmem:[%s198 + $0x15f0] sm:$0xff]
        %v1394 = vld [vmem:[%s198 + $0x15f8] sm:$0xff]
        %v1395 = vld [vmem:[%s198 + $0x1600] sm:$0xff]
        %v1396 = vld [vmem:[%s198 + $0x1608] sm:$0xff]
        %v1397 = vld [vmem:[%s198 + $0x1610] sm:$0xff]
        %v1398 = vld [vmem:[%s198 + $0x1618] sm:$0xff]
        %v1399 = vld [vmem:[%s198 + $0x1620] sm:$0xff]
        %v1400 = vld [vmem:[%s198 + $0x1628] sm:$0xff]
        %v1401 = vld [vmem:[%s198 + $0x1630] sm:$0xff]
        %v1402 = vld [vmem:[%s198 + $0x1638] sm:$0xff]
        %v1403 = vld [vmem:[%s198 + $0x1640] sm:$0xff]
        %v1404 = vld [vmem:[%s198 + $0x1648] sm:$0xff]
        %v1405 = vld [vmem:[%s198 + $0x1650] sm:$0xff]
        %v1406 = vld [vmem:[%s198 + $0x1658] sm:$0xff]
        %v1407 = vld [vmem:[%s198 + $0x1660] sm:$0xff]
        %v1408 = vld [vmem:[%s198 + $0x1668] sm:$0xff]
        %v1409 = vld [vmem:[%s198 + $0x1670] sm:$0xff]
        %v1410 = vld [vmem:[%s198 + $0x1678] sm:$0xff]
        %v1411 = vld [vmem:[%s198 + $0x1680] sm:$0xff]
        %v1412 = vld [vmem:[%s198 + $0x1688] sm:$0xff]
        %v1413 = vld [vmem:[%s198 + $0x1690] sm:$0xff]
        %v1414 = vld [vmem:[%s198 + $0x1698] sm:$0xff]
        %v1415 = vld [vmem:[%s198 + $0x16a0] sm:$0xff]
        %v1416 = vld [vmem:[%s198 + $0x16a8] sm:$0xff]
        %v1417 = vld [vmem:[%s198 + $0x16b0] sm:$0xff]
        %v1418 = vld [vmem:[%s198 + $0x16b8] sm:$0xff]
        %v1419 = vld [vmem:[%s198 + $0x16c0] sm:$0xff]
        %v1420 = vld [vmem:[%s198 + $0x16c8] sm:$0xff]
        %v1421 = vld [vmem:[%s198 + $0x16d0] sm:$0xff]
        %v1422 = vld [vmem:[%s198 + $0x16d8] sm:$0xff]
        %v1423 = vld [vmem:[%s198 + $0x16e0] sm:$0xff]
        %v1424 = vld [vmem:[%s198 + $0x16e8] sm:$0xff]
        %v1425 = vld [vmem:[%s198 + $0x16f0] sm:$0xff]
        %v1426 = vld [vmem:[%s198 + $0x16f8] sm:$0xff]
        %v1427 = vld [vmem:[%s198 + $0x1700] sm:$0xff]
        %v1428 = vld [vmem:[%s198 + $0x1708] sm:$0xff]
        %v1429 = vld [vmem:[%s198 + $0x1710] sm:$0xff]
        %v1430 = vld [vmem:[%s198 + $0x1718] sm:$0xff]
        %v1431 = vld [vmem:[%s198 + $0x1720] sm:$0xff]
        %v1432 = vld [vmem:[%s198 + $0x1728] sm:$0xff]
        %v1433 = vld [vmem:[%s198 + $0x1730] sm:$0xff]
        %v1434 = vld [vmem:[%s198 + $0x1738] sm:$0xff]
        %v1435 = vld [vmem:[%s198 + $0x1740] sm:$0xff]
        %v1436 = vld [vmem:[%s198 + $0x1748] sm:$0xff]
        %v1437 = vld [vmem:[%s198 + $0x1750] sm:$0xff]
        %v1438 = vld [vmem:[%s198 + $0x1758] sm:$0xff]
        %v1439 = vld [vmem:[%s198 + $0x1760] sm:$0xff]
        %v1440 = vld [vmem:[%s198 + $0x1768] sm:$0xff]
        %v1441 = vld [vmem:[%s198 + $0x1770] sm:$0xff]
        %v1442 = vld [vmem:[%s198 + $0x1778] sm:$0xff]
        %v1443 = vld [vmem:[%s198 + $0x1780] sm:$0xff]
        %v1444 = vld [vmem:[%s198 + $0x1788] sm:$0xff]
        %v1445 = vld [vmem:[%s198 + $0x1790] sm:$0xff]
        %v1446 = vld [vmem:[%s198 + $0x1798] sm:$0xff]
        %v1447 = vld [vmem:[%s198 + $0x17a0] sm:$0xff]
        %v1448 = vld [vmem:[%s198 + $0x17a8] sm:$0xff]
        %v1449 = vld [vmem:[%s198 + $0x17b0] sm:$0xff]
        %v1450 = vld [vmem:[%s198 + $0x17b8] sm:$0xff]
        %v1451 = vld [vmem:[%s198 + $0x17c0] sm:$0xff]
        %v1452 = vld [vmem:[%s198 + $0x17c8] sm:$0xff]
        %v1453 = vld [vmem:[%s198 + $0x17d0] sm:$0xff]
        %v1454 = vld [vmem:[%s198 + $0x17d8] sm:$0xff]
        %v1455 = vld [vmem:[%s198 + $0x17e0] sm:$0xff]
        %v1456 = vld [vmem:[%s198 + $0x17e8] sm:$0xff]
        %v1457 = vld [vmem:[%s198 + $0x17f0] sm:$0xff]
        %v1458 = vld [vmem:[%s198 + $0x17f8] sm:$0xff]
        %v1459 = vld [vmem:[%s198 + $0x1800] sm:$0xff]
        %v1460 = vld [vmem:[%s198 + $0x1808] sm:$0xff]
        %v1461 = vld [vmem:[%s198 + $0x1810] sm:$0xff]
        %v1462 = vld [vmem:[%s198 + $0x1818] sm:$0xff]
        %v1463 = vld [vmem:[%s198 + $0x1820] sm:$0xff]
        %v1464 = vld [vmem:[%s198 + $0x1828] sm:$0xff]
        %v1465 = vld [vmem:[%s198 + $0x1830] sm:$0xff]
        %v1466 = vld [vmem:[%s198 + $0x1838] sm:$0xff]
        %v1467 = vld [vmem:[%s198 + $0x1840] sm:$0xff]
        %v1468 = vld [vmem:[%s198 + $0x1848] sm:$0xff]
        %v1469 = vld [vmem:[%s198 + $0x1850] sm:$0xff]
        %v1470 = vld [vmem:[%s198 + $0x1858] sm:$0xff]
        %v1471 = vld [vmem:[%s198 + $0x1860] sm:$0xff]
        %v1472 = vld [vmem:[%s198 + $0x1868] sm:$0xff]
        %v1473 = vld [vmem:[%s198 + $0x1870] sm:$0xff]
        %v1474 = vld [vmem:[%s198 + $0x1878] sm:$0xff]
        %v1475 = vld [vmem:[%s198 + $0x1880] sm:$0xff]
        %v1476 = vld [vmem:[%s198 + $0x1888] sm:$0xff]
        %v1477 = vld [vmem:[%s198 + $0x1890] sm:$0xff]
        %v1478 = vld [vmem:[%s198 + $0x1898] sm:$0xff]
        %v1479 = vld [vmem:[%s198 + $0x18a0] sm:$0xff]
        %v1480 = vld [vmem:[%s198 + $0x18a8] sm:$0xff]
        %v1481 = vld [vmem:[%s198 + $0x18b0] sm:$0xff]
        %v1482 = vld [vmem:[%s198 + $0x18b8] sm:$0xff]
        %v1483 = vld [vmem:[%s198 + $0x18c0] sm:$0xff]
        %v1484 = vld [vmem:[%s198 + $0x18c8] sm:$0xff]
        %v1485 = vld [vmem:[%s198 + $0x18d0] sm:$0xff]
        %v1486 = vld [vmem:[%s198 + $0x18d8] sm:$0xff]
        %v1487 = vld [vmem:[%s198 + $0x18e0] sm:$0xff]
        %v1488 = vld [vmem:[%s198 + $0x18e8] sm:$0xff]
        %v1489 = vld [vmem:[%s198 + $0x18f0] sm:$0xff]
        %v1490 = vld [vmem:[%s198 + $0x18f8] sm:$0xff]
        %v1491 = vld [vmem:[%s198 + $0x1900] sm:$0xff]
        %v1492 = vld [vmem:[%s198 + $0x1908] sm:$0xff]
        %v1493 = vld [vmem:[%s198 + $0x1910] sm:$0xff]
        %v1494 = vld [vmem:[%s198 + $0x1918] sm:$0xff]
        %v1495 = vld [vmem:[%s198 + $0x1920] sm:$0xff]
        %v1496 = vld [vmem:[%s198 + $0x1928] sm:$0xff]
        %v1497 = vld [vmem:[%s198 + $0x1930] sm:$0xff]
        %v1498 = vld [vmem:[%s198 + $0x1938] sm:$0xff]
        %v1499 = vld [vmem:[%s198 + $0x1940] sm:$0xff]
        %v1500 = vld [vmem:[%s198 + $0x1948] sm:$0xff]
        %v1501 = vld [vmem:[%s198 + $0x1950] sm:$0xff]
        %v1502 = vld [vmem:[%s198 + $0x1958] sm:$0xff]
        %v1503 = vld [vmem:[%s198 + $0x1960] sm:$0xff]
        %v1504 = vld [vmem:[%s198 + $0x1968] sm:$0xff]
        %v1505 = vld [vmem:[%s198 + $0x1970] sm:$0xff]
        %v1506 = vld [vmem:[%s198 + $0x1978] sm:$0xff]
        %v1507 = vld [vmem:[%s198 + $0x1980] sm:$0xff]
        %v1508 = vld [vmem:[%s198 + $0x1988] sm:$0xff]
        %v1509 = vld [vmem:[%s198 + $0x1990] sm:$0xff]
        %v1510 = vld [vmem:[%s198 + $0x1998] sm:$0xff]
        %v1511 = vld [vmem:[%s198 + $0x19a0] sm:$0xff]
        %v1512 = vld [vmem:[%s198 + $0x19a8] sm:$0xff]
        %v1513 = vld [vmem:[%s198 + $0x19b0] sm:$0xff]
        %v1514 = vld [vmem:[%s198 + $0x19b8] sm:$0xff]
        %v1515 = vld [vmem:[%s198 + $0x19c0] sm:$0xff]
        %v1516 = vld [vmem:[%s198 + $0x19c8] sm:$0xff]
        %v1517 = vld [vmem:[%s198 + $0x19d0] sm:$0xff]
        %v1518 = vld [vmem:[%s198 + $0x19d8] sm:$0xff]
        %v1519 = vld [vmem:[%s198 + $0x19e0] sm:$0xff]
        %v1520 = vld [vmem:[%s198 + $0x19e8] sm:$0xff]
        %v1521 = vld [vmem:[%s198 + $0x19f0] sm:$0xff]
        %v1522 = vld [vmem:[%s198 + $0x19f8] sm:$0xff]
        %v1523 = vld [vmem:[%s198 + $0x1a00] sm:$0xff]
        %v1524 = vld [vmem:[%s198 + $0x1a08] sm:$0xff]
        %v1525 = vld [vmem:[%s198 + $0x1a10] sm:$0xff]
        %v1526 = vld [vmem:[%s198 + $0x1a18] sm:$0xff]
        %v1527 = vld [vmem:[%s198 + $0x1a20] sm:$0xff]
        %v1528 = vld [vmem:[%s198 + $0x1a28] sm:$0xff]
        %v1529 = vld [vmem:[%s198 + $0x1a30] sm:$0xff]
        %v1530 = vld [vmem:[%s198 + $0x1a38] sm:$0xff]
        %v1531 = vld [vmem:[%s198 + $0x1a40] sm:$0xff]
        %v1532 = vld [vmem:[%s198 + $0x1a48] sm:$0xff]
        %v1533 = vld [vmem:[%s198 + $0x1a50] sm:$0xff]
        %v1534 = vld [vmem:[%s198 + $0x1a58] sm:$0xff]
        %v1535 = vld [vmem:[%s198 + $0x1a60] sm:$0xff]
        %v1536 = vld [vmem:[%s198 + $0x1a68] sm:$0xff]
        %v1537 = vld [vmem:[%s198 + $0x1a70] sm:$0xff]
        %v1538 = vld [vmem:[%s198 + $0x1a78] sm:$0xff]
        %v1539 = vld [vmem:[%s198 + $0x1a80] sm:$0xff]
        %v1540 = vld [vmem:[%s198 + $0x1a88] sm:$0xff]
        %v1541 = vld [vmem:[%s198 + $0x1a90] sm:$0xff]
        %v1542 = vld [vmem:[%s198 + $0x1a98] sm:$0xff]
        %v1543 = vld [vmem:[%s198 + $0x1aa0] sm:$0xff]
        %v1544 = vld [vmem:[%s198 + $0x1aa8] sm:$0xff]
        %v1545 = vld [vmem:[%s198 + $0x1ab0] sm:$0xff]
        %v1546 = vld [vmem:[%s198 + $0x1ab8] sm:$0xff]
        %v1547 = vld [vmem:[%s198 + $0x1ac0] sm:$0xff]
        %v1548 = vld [vmem:[%s198 + $0x1ac8] sm:$0xff]
        %v1549 = vld [vmem:[%s198 + $0x1ad0] sm:$0xff]
        %v1550 = vld [vmem:[%s198 + $0x1ad8] sm:$0xff]
        %v1551 = vld [vmem:[%s198 + $0x1ae0] sm:$0xff]
        %v1552 = vld [vmem:[%s198 + $0x1ae8] sm:$0xff]
        %v1553 = vld [vmem:[%s198 + $0x1af0] sm:$0xff]
        %v1554 = vld [vmem:[%s198 + $0x1af8] sm:$0xff]
        %v1555 = vld [vmem:[%s198 + $0x1b00] sm:$0xff]
        %v1556 = vld [vmem:[%s198 + $0x1b08] sm:$0xff]
        %v1557 = vld [vmem:[%s198 + $0x1b10] sm:$0xff]
        %v1558 = vld [vmem:[%s198 + $0x1b18] sm:$0xff]
        %v1559 = vld [vmem:[%s198 + $0x1b20] sm:$0xff]
        %v1560 = vld [vmem:[%s198 + $0x1b28] sm:$0xff]
        %v1561 = vld [vmem:[%s198 + $0x1b30] sm:$0xff]
        %v1562 = vld [vmem:[%s198 + $0x1b38] sm:$0xff]
        %v1563 = vld [vmem:[%s198 + $0x1b40] sm:$0xff]
        %v1564 = vld [vmem:[%s198 + $0x1b48] sm:$0xff]
        %v1565 = vld [vmem:[%s198 + $0x1b50] sm:$0xff]
        %v1566 = vld [vmem:[%s198 + $0x1b58] sm:$0xff]
        %v1567 = vld [vmem:[%s198 + $0x1b60] sm:$0xff]
        %v1568 = vld [vmem:[%s198 + $0x1b68] sm:$0xff]
        %v1569 = vld [vmem:[%s198 + $0x1b70] sm:$0xff]
        %v1570 = vld [vmem:[%s198 + $0x1b78] sm:$0xff]
        %v1571 = vld [vmem:[%s198 + $0x1b80] sm:$0xff]
        %v1572 = vld [vmem:[%s198 + $0x1b88] sm:$0xff]
        %v1573 = vld [vmem:[%s198 + $0x1b90] sm:$0xff]
        %v1574 = vld [vmem:[%s198 + $0x1b98] sm:$0xff]
        %v1575 = vld [vmem:[%s198 + $0x1ba0] sm:$0xff]
        %v1576 = vld [vmem:[%s198 + $0x1ba8] sm:$0xff]
        %v1577 = vld [vmem:[%s198 + $0x1bb0] sm:$0xff]
        %v1578 = vld [vmem:[%s198 + $0x1bb8] sm:$0xff]
        %v1579 = vld [vmem:[%s198 + $0x1bc0] sm:$0xff]
        %v1580 = vld [vmem:[%s198 + $0x1bc8] sm:$0xff]
        %v1581 = vld [vmem:[%s198 + $0x1bd0] sm:$0xff]
        %v1582 = vld [vmem:[%s198 + $0x1bd8] sm:$0xff]
        %v1583 = vld [vmem:[%s198 + $0x1be0] sm:$0xff]
        %v1584 = vld [vmem:[%s198 + $0x1be8] sm:$0xff]
        %v1585 = vld [vmem:[%s198 + $0x1bf0] sm:$0xff]
        %v1586 = vld [vmem:[%s198 + $0x1bf8] sm:$0xff]
        %v1587 = vld [vmem:[%s198 + $0x1c00] sm:$0xff]
        %v1588 = vld [vmem:[%s198 + $0x1c08] sm:$0xff]
        %v1589 = vld [vmem:[%s198 + $0x1c10] sm:$0xff]
        %v1590 = vld [vmem:[%s198 + $0x1c18] sm:$0xff]
        %v1591 = vld [vmem:[%s198 + $0x1c20] sm:$0xff]
        %v1592 = vld [vmem:[%s198 + $0x1c28] sm:$0xff]
        %v1593 = vld [vmem:[%s198 + $0x1c30] sm:$0xff]
        %v1594 = vld [vmem:[%s198 + $0x1c38] sm:$0xff]
        %v1595 = vld [vmem:[%s198 + $0x1c40] sm:$0xff]
        %v1596 = vld [vmem:[%s198 + $0x1c48] sm:$0xff]
        %v1597 = vld [vmem:[%s198 + $0x1c50] sm:$0xff]
        %v1598 = vld [vmem:[%s198 + $0x1c58] sm:$0xff]
        %v1599 = vld [vmem:[%s198 + $0x1c60] sm:$0xff]
        %v1600 = vld [vmem:[%s198 + $0x1c68] sm:$0xff]
        %v1601 = vld [vmem:[%s198 + $0x1c70] sm:$0xff]
        %v1602 = vld [vmem:[%s198 + $0x1c78] sm:$0xff]
        %v1603 = vld [vmem:[%s198 + $0x1c80] sm:$0xff]
        %v1604 = vld [vmem:[%s198 + $0x1c88] sm:$0xff]
        %v1605 = vld [vmem:[%s198 + $0x1c90] sm:$0xff]
        %v1606 = vld [vmem:[%s198 + $0x1c98] sm:$0xff]
        %v1607 = vld [vmem:[%s198 + $0x1ca0] sm:$0xff]
        %v1608 = vld [vmem:[%s198 + $0x1ca8] sm:$0xff]
        %v1609 = vld [vmem:[%s198 + $0x1cb0] sm:$0xff]
        %v1610 = vld [vmem:[%s198 + $0x1cb8] sm:$0xff]
        %v1611 = vld [vmem:[%s198 + $0x1cc0] sm:$0xff]
        %v1612 = vld [vmem:[%s198 + $0x1cc8] sm:$0xff]
        %v1613 = vld [vmem:[%s198 + $0x1cd0] sm:$0xff]
        %v1614 = vld [vmem:[%s198 + $0x1cd8] sm:$0xff]
        %v1615 = vld [vmem:[%s198 + $0x1ce0] sm:$0xff]
        %v1616 = vld [vmem:[%s198 + $0x1ce8] sm:$0xff]
        %v1617 = vld [vmem:[%s198 + $0x1cf0] sm:$0xff]
        %v1618 = vld [vmem:[%s198 + $0x1cf8] sm:$0xff]
        %v1619 = vld [vmem:[%s198 + $0x1d00] sm:$0xff]
        %v1620 = vld [vmem:[%s198 + $0x1d08] sm:$0xff]
        %v1621 = vld [vmem:[%s198 + $0x1d10] sm:$0xff]
        %v1622 = vld [vmem:[%s198 + $0x1d18] sm:$0xff]
        %v1623 = vld [vmem:[%s198 + $0x1d20] sm:$0xff]
        %v1624 = vld [vmem:[%s198 + $0x1d28] sm:$0xff]
        %v1625 = vld [vmem:[%s198 + $0x1d30] sm:$0xff]
        %v1626 = vld [vmem:[%s198 + $0x1d38] sm:$0xff]
        %v1627 = vld [vmem:[%s198 + $0x1d40] sm:$0xff]
        %v1628 = vld [vmem:[%s198 + $0x1d48] sm:$0xff]
        %v1629 = vld [vmem:[%s198 + $0x1d50] sm:$0xff]
        %v1630 = vld [vmem:[%s198 + $0x1d58] sm:$0xff]
        %v1631 = vld [vmem:[%s198 + $0x1d60] sm:$0xff]
        %v1632 = vld [vmem:[%s198 + $0x1d68] sm:$0xff]
        %v1633 = vld [vmem:[%s198 + $0x1d70] sm:$0xff]
        %v1634 = vld [vmem:[%s198 + $0x1d78] sm:$0xff]
        %v1635 = vld [vmem:[%s198 + $0x1d80] sm:$0xff]
        %v1636 = vld [vmem:[%s198 + $0x1d88] sm:$0xff]
        %v1637 = vld [vmem:[%s198 + $0x1d90] sm:$0xff]
        %v1638 = vld [vmem:[%s198 + $0x1d98] sm:$0xff]
        %v1639 = vld [vmem:[%s198 + $0x1da0] sm:$0xff]
        %v1640 = vld [vmem:[%s198 + $0x1da8] sm:$0xff]
        %v1641 = vld [vmem:[%s198 + $0x1db0] sm:$0xff]
        %v1642 = vld [vmem:[%s198 + $0x1db8] sm:$0xff]
        %v1643 = vld [vmem:[%s198 + $0x1dc0] sm:$0xff]
        %v1644 = vld [vmem:[%s198 + $0x1dc8] sm:$0xff]
        %v1645 = vld [vmem:[%s198 + $0x1dd0] sm:$0xff]
        %v1646 = vld [vmem:[%s198 + $0x1dd8] sm:$0xff]
        %v1647 = vld [vmem:[%s198 + $0x1de0] sm:$0xff]
        %v1648 = vld [vmem:[%s198 + $0x1de8] sm:$0xff]
        %v1649 = vld [vmem:[%s198 + $0x1df0] sm:$0xff]
        %v1650 = vld [vmem:[%s198 + $0x1df8] sm:$0xff]
        %v1651 = vld [vmem:[%s198 + $0x1e00] sm:$0xff]
        %v1652 = vld [vmem:[%s198 + $0x1e08] sm:$0xff]
        %v1653 = vld [vmem:[%s198 + $0x1e10] sm:$0xff]
        %v1654 = vld [vmem:[%s198 + $0x1e18] sm:$0xff]
        %v1655 = vld [vmem:[%s198 + $0x1e20] sm:$0xff]
        %v1656 = vld [vmem:[%s198 + $0x1e28] sm:$0xff]
        %v1657 = vld [vmem:[%s198 + $0x1e30] sm:$0xff]
        %v1658 = vld [vmem:[%s198 + $0x1e38] sm:$0xff]
        %v1659 = vld [vmem:[%s198 + $0x1e40] sm:$0xff]
        %v1660 = vld [vmem:[%s198 + $0x1e48] sm:$0xff]
        %v1661 = vld [vmem:[%s198 + $0x1e50] sm:$0xff]
        %v1662 = vld [vmem:[%s198 + $0x1e58] sm:$0xff]
        %v1663 = vld [vmem:[%s198 + $0x1e60] sm:$0xff]
        %v1664 = vld [vmem:[%s198 + $0x1e68] sm:$0xff]
        %v1665 = vld [vmem:[%s198 + $0x1e70] sm:$0xff]
        %v1666 = vld [vmem:[%s198 + $0x1e78] sm:$0xff]
        %v1667 = vld [vmem:[%s198 + $0x1e80] sm:$0xff]
        %v1668 = vld [vmem:[%s198 + $0x1e88] sm:$0xff]
        %v1669 = vld [vmem:[%s198 + $0x1e90] sm:$0xff]
        %v1670 = vld [vmem:[%s198 + $0x1e98] sm:$0xff]
        %v1671 = vld [vmem:[%s198 + $0x1ea0] sm:$0xff]
        %v1672 = vld [vmem:[%s198 + $0x1ea8] sm:$0xff]
        %v1673 = vld [vmem:[%s198 + $0x1eb0] sm:$0xff]
        %v1674 = vld [vmem:[%s198 + $0x1eb8] sm:$0xff]
        %v1675 = vld [vmem:[%s198 + $0x1ec0] sm:$0xff]
        %v1676 = vld [vmem:[%s198 + $0x1ec8] sm:$0xff]
        %v1677 = vld [vmem:[%s198 + $0x1ed0] sm:$0xff]
        %v1678 = vld [vmem:[%s198 + $0x1ed8] sm:$0xff]
        %v1679 = vld [vmem:[%s198 + $0x1ee0] sm:$0xff]
        %v1680 = vld [vmem:[%s198 + $0x1ee8] sm:$0xff]
        %v1681 = vld [vmem:[%s198 + $0x1ef0] sm:$0xff]
        %v1682 = vld [vmem:[%s198 + $0x1ef8] sm:$0xff]
        %v1683 = vld [vmem:[%s198 + $0x1f00] sm:$0xff]
        %v1684 = vld [vmem:[%s198 + $0x1f08] sm:$0xff]
        %v1685 = vld [vmem:[%s198 + $0x1f10] sm:$0xff]
        %v1686 = vld [vmem:[%s198 + $0x1f18] sm:$0xff]
        %v1687 = vld [vmem:[%s198 + $0x1f20] sm:$0xff]
        %v1688 = vld [vmem:[%s198 + $0x1f28] sm:$0xff]
        %v1689 = vld [vmem:[%s198 + $0x1f30] sm:$0xff]
        %v1690 = vld [vmem:[%s198 + $0x1f38] sm:$0xff]
        %v1691 = vld [vmem:[%s198 + $0x1f40] sm:$0xff]
        %v1692 = vld [vmem:[%s198 + $0x1f48] sm:$0xff]
        %v1693 = vld [vmem:[%s198 + $0x1f50] sm:$0xff]
        %v1694 = vld [vmem:[%s198 + $0x1f58] sm:$0xff]
        %v1695 = vld [vmem:[%s198 + $0x1f60] sm:$0xff]
        %v1696 = vld [vmem:[%s198 + $0x1f68] sm:$0xff]
        %v1697 = vld [vmem:[%s198 + $0x1f70] sm:$0xff]
        %v1698 = vld [vmem:[%s198 + $0x1f78] sm:$0xff]
        %v1699 = vld [vmem:[%s198 + $0x1f80] sm:$0xff]
        %v1700 = vld [vmem:[%s198 + $0x1f88] sm:$0xff]
        %v1701 = vld [vmem:[%s198 + $0x1f90] sm:$0xff]
        %v1702 = vld [vmem:[%s198 + $0x1f98] sm:$0xff]
        %v1703 = vld [vmem:[%s198 + $0x1fa0] sm:$0xff]
        %v1704 = vld [vmem:[%s198 + $0x1fa8] sm:$0xff]
        %v1705 = vld [vmem:[%s198 + $0x1fb0] sm:$0xff]
        %v1706 = vld [vmem:[%s198 + $0x1fb8] sm:$0xff]
        %v1707 = vld [vmem:[%s198 + $0x1fc0] sm:$0xff]
        %v1708 = vld [vmem:[%s198 + $0x1fc8] sm:$0xff]
        %v1709 = vld [vmem:[%s198 + $0x1fd0] sm:$0xff]
        %v1710 = vld [vmem:[%s198 + $0x1fd8] sm:$0xff]
        %v1711 = vld [vmem:[%s198 + $0x1fe0] sm:$0xff]
        %v1712 = vld [vmem:[%s198 + $0x1fe8] sm:$0xff]
        %v1713 = vld [vmem:[%s198 + $0x1ff0] sm:$0xff]
        %v1714 = vld [vmem:[%s198 + $0x1ff8] sm:$0xff]
        %v1715 = vld [vmem:[%s198 + $0x2000] sm:$0xff]
        %v1716 = vld [vmem:[%s198 + $0x2008] sm:$0xff]
        %v1717 = vld [vmem:[%s198 + $0x2010] sm:$0xff]
        %v1718 = vld [vmem:[%s198 + $0x2018] sm:$0xff]
        %v1719 = vld [vmem:[%s198 + $0x2020] sm:$0xff]
        %v1720 = vld [vmem:[%s198 + $0x2028] sm:$0xff]
        %v1721 = vld [vmem:[%s198 + $0x2030] sm:$0xff]
        %v1722 = vld [vmem:[%s198 + $0x2038] sm:$0xff]
        %v1723 = vld [vmem:[%s198 + $0x2040] sm:$0xff]
        %v1724 = vld [vmem:[%s198 + $0x2048] sm:$0xff]
        %v1725 = vld [vmem:[%s198 + $0x2050] sm:$0xff]
        %v1726 = vld [vmem:[%s198 + $0x2058] sm:$0xff]
        %v1727 = vld [vmem:[%s198 + $0x2060] sm:$0xff]
        %v1728 = vld [vmem:[%s198 + $0x2068] sm:$0xff]
        %v1729 = vld [vmem:[%s198 + $0x2070] sm:$0xff]
        %v1730 = vld [vmem:[%s198 + $0x2078] sm:$0xff]
        %v1731 = vld [vmem:[%s198 + $0x2080] sm:$0xff]
        %v1732 = vld [vmem:[%s198 + $0x2088] sm:$0xff]
        %v1733 = vld [vmem:[%s198 + $0x2090] sm:$0xff]
        %v1734 = vld [vmem:[%s198 + $0x2098] sm:$0xff]
        %v1735 = vld [vmem:[%s198 + $0x20a0] sm:$0xff]
        %v1736 = vld [vmem:[%s198 + $0x20a8] sm:$0xff]
        %v1737 = vld [vmem:[%s198 + $0x20b0] sm:$0xff]
        %v1738 = vld [vmem:[%s198 + $0x20b8] sm:$0xff]
        %v1739 = vld [vmem:[%s198 + $0x20c0] sm:$0xff]
        %v1740 = vld [vmem:[%s198 + $0x20c8] sm:$0xff]
        %v1741 = vld [vmem:[%s198 + $0x20d0] sm:$0xff]
        %v1742 = vld [vmem:[%s198 + $0x20d8] sm:$0xff]
        %v1743 = vld [vmem:[%s198 + $0x20e0] sm:$0xff]
        %v1744 = vld [vmem:[%s198 + $0x20e8] sm:$0xff]
        %v1745 = vld [vmem:[%s198 + $0x20f0] sm:$0xff]
        %v1746 = vld [vmem:[%s198 + $0x20f8] sm:$0xff]
        %v1747 = vld [vmem:[%s198 + $0x2100] sm:$0xff]
        %v1748 = vld [vmem:[%s198 + $0x2108] sm:$0xff]
        %v1749 = vld [vmem:[%s198 + $0x2110] sm:$0xff]
        %v1750 = vld [vmem:[%s198 + $0x2118] sm:$0xff]
        %v1751 = vld [vmem:[%s198 + $0x2120] sm:$0xff]
        %v1752 = vld [vmem:[%s198 + $0x2128] sm:$0xff]
        %v1753 = vld [vmem:[%s198 + $0x2130] sm:$0xff]
        %v1754 = vld [vmem:[%s198 + $0x2138] sm:$0xff]
        %v1755 = vld [vmem:[%s198 + $0x2140] sm:$0xff]
        %v1756 = vld [vmem:[%s198 + $0x2148] sm:$0xff]
        %v1757 = vld [vmem:[%s198 + $0x2150] sm:$0xff]
        %v1758 = vld [vmem:[%s198 + $0x2158] sm:$0xff]
        %v1759 = vld [vmem:[%s198 + $0x2160] sm:$0xff]
        %v1760 = vld [vmem:[%s198 + $0x2168] sm:$0xff]
        %v1761 = vld [vmem:[%s198 + $0x2170] sm:$0xff]
        %v1762 = vld [vmem:[%s198 + $0x2178] sm:$0xff]
        %v1763 = vld [vmem:[%s198 + $0x2180] sm:$0xff]
        %v1764 = vld [vmem:[%s198 + $0x2188] sm:$0xff]
        %v1765 = vld [vmem:[%s198 + $0x2190] sm:$0xff]
        %v1766 = vld [vmem:[%s198 + $0x2198] sm:$0xff]
        %v1767 = vld [vmem:[%s198 + $0x21a0] sm:$0xff]
        %v1768 = vld [vmem:[%s198 + $0x21a8] sm:$0xff]
        %v1769 = vld [vmem:[%s198 + $0x21b0] sm:$0xff]
        %v1770 = vld [vmem:[%s198 + $0x21b8] sm:$0xff]
        %v1771 = vld [vmem:[%s198 + $0x21c0] sm:$0xff]
        %v1772 = vld [vmem:[%s198 + $0x21c8] sm:$0xff]
        %v1773 = vld [vmem:[%s198 + $0x21d0] sm:$0xff]
        %v1774 = vld [vmem:[%s198 + $0x21d8] sm:$0xff]
        %v1775 = vld [vmem:[%s198 + $0x21e0] sm:$0xff]
        %v1776 = vld [vmem:[%s198 + $0x21e8] sm:$0xff]
        %v1777 = vld [vmem:[%s198 + $0x21f0] sm:$0xff]
        %v1778 = vld [vmem:[%s198 + $0x21f8] sm:$0xff]
        %v1779 = vld [vmem:[%s198 + $0x2200] sm:$0xff]
        %v1780 = vld [vmem:[%s198 + $0x2208] sm:$0xff]
        %v1781 = vld [vmem:[%s198 + $0x2210] sm:$0xff]
        %v1782 = vld [vmem:[%s198 + $0x2218] sm:$0xff]
        %v1783 = vld [vmem:[%s198 + $0x2220] sm:$0xff]
        %v1784 = vld [vmem:[%s198 + $0x2228] sm:$0xff]
        %v1785 = vld [vmem:[%s198 + $0x2230] sm:$0xff]
        %v1786 = vld [vmem:[%s198 + $0x2238] sm:$0xff]
        %v1787 = vld [vmem:[%s198 + $0x2240] sm:$0xff]
        %v1788 = vld [vmem:[%s198 + $0x2248] sm:$0xff]
        %v1789 = vld [vmem:[%s198 + $0x2250] sm:$0xff]
        %v1790 = vld [vmem:[%s198 + $0x2258] sm:$0xff]
        %v1791 = vld [vmem:[%s198 + $0x2260] sm:$0xff]
        %v1792 = vld [vmem:[%s198 + $0x2268] sm:$0xff]
        %v1793 = vld [vmem:[%s198 + $0x2270] sm:$0xff]
        %v1794 = vld [vmem:[%s198 + $0x2278] sm:$0xff]
        %v1795 = vld [vmem:[%s198 + $0x2280] sm:$0xff]
        %v1796 = vld [vmem:[%s198 + $0x2288] sm:$0xff]
        %v1797 = vld [vmem:[%s198 + $0x2290] sm:$0xff]
        %v1798 = vld [vmem:[%s198 + $0x2298] sm:$0xff]
        %v1799 = vld [vmem:[%s198 + $0x22a0] sm:$0xff]
        %v1800 = vld [vmem:[%s198 + $0x22a8] sm:$0xff]
        %v1801 = vld [vmem:[%s198 + $0x22b0] sm:$0xff]
        %v1802 = vld [vmem:[%s198 + $0x22b8] sm:$0xff]
        %v1803 = vld [vmem:[%s198 + $0x22c0] sm:$0xff]
        %v1804 = vld [vmem:[%s198 + $0x22c8] sm:$0xff]
        %v1805 = vld [vmem:[%s198 + $0x22d0] sm:$0xff]
        %v1806 = vld [vmem:[%s198 + $0x22d8] sm:$0xff]
        %v1807 = vld [vmem:[%s198 + $0x22e0] sm:$0xff]
        %v1808 = vld [vmem:[%s198 + $0x22e8] sm:$0xff]
        %v1809 = vld [vmem:[%s198 + $0x22f0] sm:$0xff]
        %v1810 = vld [vmem:[%s198 + $0x22f8] sm:$0xff]
        %v1811 = vld [vmem:[%s198 + $0x2300] sm:$0xff]
        %v1812 = vld [vmem:[%s198 + $0x2308] sm:$0xff]
        %v1813 = vld [vmem:[%s198 + $0x2310] sm:$0xff]
        %v1814 = vld [vmem:[%s198 + $0x2318] sm:$0xff]
        %v1815 = vld [vmem:[%s198 + $0x2320] sm:$0xff]
        %v1816 = vld [vmem:[%s198 + $0x2328] sm:$0xff]
        %v1817 = vld [vmem:[%s198 + $0x2330] sm:$0xff]
        %v1818 = vld [vmem:[%s198 + $0x2338] sm:$0xff]
        %v1819 = vld [vmem:[%s198 + $0x2340] sm:$0xff]
        %v1820 = vld [vmem:[%s198 + $0x2348] sm:$0xff]
        %v1821 = vld [vmem:[%s198 + $0x2350] sm:$0xff]
        %v1822 = vld [vmem:[%s198 + $0x2358] sm:$0xff]
        %v1823 = vld [vmem:[%s198 + $0x2360] sm:$0xff]
        %v1824 = vld [vmem:[%s198 + $0x2368] sm:$0xff]
        %v1825 = vld [vmem:[%s198 + $0x2370] sm:$0xff]
        %v1826 = vld [vmem:[%s198 + $0x2378] sm:$0xff]
        %v1827 = vld [vmem:[%s198 + $0x2380] sm:$0xff]
        %v1828 = vld [vmem:[%s198 + $0x2388] sm:$0xff]
        %v1829 = vld [vmem:[%s198 + $0x2390] sm:$0xff]
        %v1830 = vld [vmem:[%s198 + $0x2398] sm:$0xff]
        %v1831 = vld [vmem:[%s198 + $0x23a0] sm:$0xff]
        %v1832 = vld [vmem:[%s198 + $0x23a8] sm:$0xff]
        %v1833 = vld [vmem:[%s198 + $0x23b0] sm:$0xff]
        %v1834 = vld [vmem:[%s198 + $0x23b8] sm:$0xff]
        %v1835 = vld [vmem:[%s198 + $0x23c0] sm:$0xff]
        %v1836 = vld [vmem:[%s198 + $0x23c8] sm:$0xff]
        %v1837 = vld [vmem:[%s198 + $0x23d0] sm:$0xff]
        %v1838 = vld [vmem:[%s198 + $0x23d8] sm:$0xff]
        %v1839 = vld [vmem:[%s198 + $0x23e0] sm:$0xff]
        %v1840 = vld [vmem:[%s198 + $0x23e8] sm:$0xff]
        %v1841 = vld [vmem:[%s198 + $0x23f0] sm:$0xff]
        %v1842 = vld [vmem:[%s198 + $0x23f8] sm:$0xff]
        %v1843 = vld [vmem:[%s198 + $0x2400] sm:$0xff]
        %v1844 = vld [vmem:[%s198 + $0x2408] sm:$0xff]
        %v1845 = vld [vmem:[%s198 + $0x2410] sm:$0xff]
        %v1846 = vld [vmem:[%s198 + $0x2418] sm:$0xff]
        %v1847 = vld [vmem:[%s198 + $0x2420] sm:$0xff]
        %v1848 = vld [vmem:[%s198 + $0x2428] sm:$0xff]
        %v1849 = vld [vmem:[%s198 + $0x2430] sm:$0xff]
        %v1850 = vld [vmem:[%s198 + $0x2438] sm:$0xff]
        %v1851 = vld [vmem:[%s198 + $0x2440] sm:$0xff]
        %v1852 = vld [vmem:[%s198 + $0x2448] sm:$0xff]
        %v1853 = vld [vmem:[%s198 + $0x2450] sm:$0xff]
        %v1854 = vld [vmem:[%s198 + $0x2458] sm:$0xff]
        %v1855 = vld [vmem:[%s198 + $0x2460] sm:$0xff]
        %v1856 = vld [vmem:[%s198 + $0x2468] sm:$0xff]
        %v1857 = vld [vmem:[%s198 + $0x2470] sm:$0xff]
        %v1858 = vld [vmem:[%s198 + $0x2478] sm:$0xff]
        %v1859 = vld [vmem:[%s198 + $0x2480] sm:$0xff]
        %v1860 = vld [vmem:[%s198 + $0x2488] sm:$0xff]
        %v1861 = vld [vmem:[%s198 + $0x2490] sm:$0xff]
        %v1862 = vld [vmem:[%s198 + $0x2498] sm:$0xff]
        %v1863 = vld [vmem:[%s198 + $0x24a0] sm:$0xff]
        %v1864 = vld [vmem:[%s198 + $0x24a8] sm:$0xff]
        %v1865 = vld [vmem:[%s198 + $0x24b0] sm:$0xff]
        %v1866 = vld [vmem:[%s198 + $0x24b8] sm:$0xff]
        %v3043 = vunpack.c.l.b16 %v691
        %v3044 = vunpack.c.h.b16 %v691
        %v3045 = vunpack.c.l.b16 %v692
        %v3046 = vunpack.c.h.b16 %v692
        %v3047 = vunpack.c.l.b16 %v693
        %v3048 = vunpack.c.h.b16 %v693
        %v3049 = vunpack.c.l.b16 %v694
        %v3050 = vunpack.c.h.b16 %v694
        %v3051 = vunpack.c.l.b16 %v695
        %v3052 = vunpack.c.h.b16 %v695
        %v3053 = vunpack.c.l.b16 %v696
        %v3054 = vunpack.c.h.b16 %v696
        %v3055 = vunpack.c.l.b16 %v697
        %v3056 = vunpack.c.h.b16 %v697
        %v3057 = vunpack.c.l.b16 %v698
        %v3058 = vunpack.c.h.b16 %v698
        %v3059 = vunpack.c.l.b16 %v699
        %v3060 = vunpack.c.h.b16 %v699
        %v3061 = vunpack.c.l.b16 %v700
        %v3062 = vunpack.c.h.b16 %v700
        %v3063 = vunpack.c.l.b16 %v701
        %v3064 = vunpack.c.h.b16 %v701
        %v3065 = vunpack.c.l.b16 %v702
        %v3066 = vunpack.c.h.b16 %v702
        %v3067 = vunpack.c.l.b16 %v703
        %v3068 = vunpack.c.h.b16 %v703
        %v3069 = vunpack.c.l.b16 %v704
        %v3070 = vunpack.c.h.b16 %v704
        %v3071 = vunpack.c.l.b16 %v705
        %v3072 = vunpack.c.h.b16 %v705
        %v3073 = vunpack.c.l.b16 %v706
        %v3074 = vunpack.c.h.b16 %v706
        %v3075 = vunpack.c.l.b16 %v707
        %v3076 = vunpack.c.h.b16 %v707
        %v3077 = vunpack.c.l.b16 %v708
        %v3078 = vunpack.c.h.b16 %v708
        %v3079 = vunpack.c.l.b16 %v709
        %v3080 = vunpack.c.h.b16 %v709
        %v3081 = vunpack.c.l.b16 %v710
        %v3082 = vunpack.c.h.b16 %v710
        %v3083 = vunpack.c.l.b16 %v711
        %v3084 = vunpack.c.h.b16 %v711
        %v3085 = vunpack.c.l.b16 %v712
        %v3086 = vunpack.c.h.b16 %v712
        %v3087 = vunpack.c.l.b16 %v713
        %v3088 = vunpack.c.h.b16 %v713
        %v3089 = vunpack.c.l.b16 %v714
        %v3090 = vunpack.c.h.b16 %v714
        %v3091 = vunpack.c.l.b16 %v715
        %v3092 = vunpack.c.h.b16 %v715
        %v3093 = vunpack.c.l.b16 %v716
        %v3094 = vunpack.c.h.b16 %v716
        %v3095 = vunpack.c.l.b16 %v717
        %v3096 = vunpack.c.h.b16 %v717
        %v3097 = vunpack.c.l.b16 %v718
        %v3098 = vunpack.c.h.b16 %v718
        %v3099 = vunpack.c.l.b16 %v719
        %v3100 = vunpack.c.h.b16 %v719
        %v3101 = vunpack.c.l.b16 %v720
        %v3102 = vunpack.c.h.b16 %v720
        %v3103 = vunpack.c.l.b16 %v721
        %v3104 = vunpack.c.h.b16 %v721
        %v3105 = vunpack.c.l.b16 %v722
        %v3106 = vunpack.c.h.b16 %v722
        %v3107 = vunpack.c.l.b16 %v723
        %v3108 = vunpack.c.h.b16 %v723
        %v3109 = vunpack.c.l.b16 %v724
        %v3110 = vunpack.c.h.b16 %v724
        %v3111 = vunpack.c.l.b16 %v725
        %v3112 = vunpack.c.h.b16 %v725
        %v3113 = vunpack.c.l.b16 %v726
        %v3114 = vunpack.c.h.b16 %v726
        %v3115 = vunpack.c.l.b16 %v727
        %v3116 = vunpack.c.h.b16 %v727
        %v3117 = vunpack.c.l.b16 %v728
        %v3118 = vunpack.c.h.b16 %v728
        %v3119 = vunpack.c.l.b16 %v729
        %v3120 = vunpack.c.h.b16 %v729
        %v3121 = vunpack.c.l.b16 %v730
        %v3122 = vunpack.c.h.b16 %v730
        %v3123 = vunpack.c.l.b16 %v731
        %v3124 = vunpack.c.h.b16 %v731
        %v3125 = vunpack.c.l.b16 %v732
        %v3126 = vunpack.c.h.b16 %v732
        %v3127 = vunpack.c.l.b16 %v733
        %v3128 = vunpack.c.h.b16 %v733
        %v3129 = vunpack.c.l.b16 %v734
        %v3130 = vunpack.c.h.b16 %v734
        %v3131 = vunpack.c.l.b16 %v735
        %v3132 = vunpack.c.h.b16 %v735
        %v3133 = vunpack.c.l.b16 %v736
        %v3134 = vunpack.c.h.b16 %v736
        %v3135 = vunpack.c.l.b16 %v737
        %v3136 = vunpack.c.h.b16 %v737
        %v3137 = vunpack.c.l.b16 %v738
        %v3138 = vunpack.c.h.b16 %v738
        %v3139 = vunpack.c.l.b16 %v739
        %v3140 = vunpack.c.h.b16 %v739
        %v3141 = vunpack.c.l.b16 %v740
        %v3142 = vunpack.c.h.b16 %v740
        %v3143 = vunpack.c.l.b16 %v741
        %v3144 = vunpack.c.h.b16 %v741
        %v3145 = vunpack.c.l.b16 %v742
        %v3146 = vunpack.c.h.b16 %v742
        %v3147 = vunpack.c.l.b16 %v743
        %v3148 = vunpack.c.h.b16 %v743
        %v3149 = vunpack.c.l.b16 %v744
        %v3150 = vunpack.c.h.b16 %v744
        %v3151 = vunpack.c.l.b16 %v745
        %v3152 = vunpack.c.h.b16 %v745
        %v3153 = vunpack.c.l.b16 %v746
        %v3154 = vunpack.c.h.b16 %v746
        %v3155 = vunpack.c.l.b16 %v747
        %v3156 = vunpack.c.h.b16 %v747
        %v3157 = vunpack.c.l.b16 %v748
        %v3158 = vunpack.c.h.b16 %v748
        %v3159 = vunpack.c.l.b16 %v749
        %v3160 = vunpack.c.h.b16 %v749
        %v3161 = vunpack.c.l.b16 %v750
        %v3162 = vunpack.c.h.b16 %v750
        %v3163 = vunpack.c.l.b16 %v751
        %v3164 = vunpack.c.h.b16 %v751
        %v3165 = vunpack.c.l.b16 %v752
        %v3166 = vunpack.c.h.b16 %v752
        %v3167 = vunpack.c.l.b16 %v753
        %v3168 = vunpack.c.h.b16 %v753
        %v3169 = vunpack.c.l.b16 %v754
        %v3170 = vunpack.c.h.b16 %v754
        %v3171 = vunpack.c.l.b16 %v755
        %v3172 = vunpack.c.h.b16 %v755
        %v3173 = vunpack.c.l.b16 %v756
        %v3174 = vunpack.c.h.b16 %v756
        %v3175 = vunpack.c.l.b16 %v757
        %v3176 = vunpack.c.h.b16 %v757
        %v3177 = vunpack.c.l.b16 %v758
        %v3178 = vunpack.c.h.b16 %v758
        %v3179 = vunpack.c.l.b16 %v759
        %v3180 = vunpack.c.h.b16 %v759
        %v3181 = vunpack.c.l.b16 %v760
        %v3182 = vunpack.c.h.b16 %v760
        %v3183 = vunpack.c.l.b16 %v761
        %v3184 = vunpack.c.h.b16 %v761
        %v3185 = vunpack.c.l.b16 %v762
        %v3186 = vunpack.c.h.b16 %v762
        %v3187 = vunpack.c.l.b16 %v763
        %v3188 = vunpack.c.h.b16 %v763
        %v3189 = vunpack.c.l.b16 %v764
        %v3190 = vunpack.c.h.b16 %v764
        %v3191 = vunpack.c.l.b16 %v765
        %v3192 = vunpack.c.h.b16 %v765
        %v3193 = vunpack.c.l.b16 %v766
        %v3194 = vunpack.c.h.b16 %v766
        %v3195 = vunpack.c.l.b16 %v767
        %v3196 = vunpack.c.h.b16 %v767
        %v3197 = vunpack.c.l.b16 %v768
        %v3198 = vunpack.c.h.b16 %v768
        %v3199 = vunpack.c.l.b16 %v769
        %v3200 = vunpack.c.h.b16 %v769
        %v3201 = vunpack.c.l.b16 %v770
        %v3202 = vunpack.c.h.b16 %v770
        %v3203 = vunpack.c.l.b16 %v771
        %v3204 = vunpack.c.h.b16 %v771
        %v3205 = vunpack.c.l.b16 %v772
        %v3206 = vunpack.c.h.b16 %v772
        %v3207 = vunpack.c.l.b16 %v773
        %v3208 = vunpack.c.h.b16 %v773
        %v3209 = vunpack.c.l.b16 %v774
        %v3210 = vunpack.c.h.b16 %v774
        %v3211 = vunpack.c.l.b16 %v775
        %v3212 = vunpack.c.h.b16 %v775
        %v3213 = vunpack.c.l.b16 %v776
        %v3214 = vunpack.c.h.b16 %v776
        %v3215 = vunpack.c.l.b16 %v777
        %v3216 = vunpack.c.h.b16 %v777
        %v3217 = vunpack.c.l.b16 %v778
        %v3218 = vunpack.c.h.b16 %v778
        %v3219 = vunpack.c.l.b16 %v779
        %v3220 = vunpack.c.h.b16 %v779
        %v3221 = vunpack.c.l.b16 %v780
        %v3222 = vunpack.c.h.b16 %v780
        %v3223 = vunpack.c.l.b16 %v781
        %v3224 = vunpack.c.h.b16 %v781
        %v3225 = vunpack.c.l.b16 %v782
        %v3226 = vunpack.c.h.b16 %v782
        %v3227 = vunpack.c.l.b16 %v783
        %v3228 = vunpack.c.h.b16 %v783
        %v3229 = vunpack.c.l.b16 %v784
        %v3230 = vunpack.c.h.b16 %v784
        %v3231 = vunpack.c.l.b16 %v785
        %v3232 = vunpack.c.h.b16 %v785
        %v3233 = vunpack.c.l.b16 %v786
        %v3234 = vunpack.c.h.b16 %v786
        %v3235 = vunpack.c.l.b16 %v787
        %v3236 = vunpack.c.h.b16 %v787
        %v3237 = vunpack.c.l.b16 %v788
        %v3238 = vunpack.c.h.b16 %v788
        %v3239 = vunpack.c.l.b16 %v789
        %v3240 = vunpack.c.h.b16 %v789
        %v3241 = vunpack.c.l.b16 %v790
        %v3242 = vunpack.c.h.b16 %v790
        %v3243 = vunpack.c.l.b16 %v791
        %v3244 = vunpack.c.h.b16 %v791
        %v3245 = vunpack.c.l.b16 %v792
        %v3246 = vunpack.c.h.b16 %v792
        %v3247 = vunpack.c.l.b16 %v793
        %v3248 = vunpack.c.h.b16 %v793
        %v3249 = vunpack.c.l.b16 %v794
        %v3250 = vunpack.c.h.b16 %v794
        %v3251 = vunpack.c.l.b16 %v795
        %v3252 = vunpack.c.h.b16 %v795
        %v3253 = vunpack.c.l.b16 %v796
        %v3254 = vunpack.c.h.b16 %v796
        %v3255 = vunpack.c.l.b16 %v797
        %v3256 = vunpack.c.h.b16 %v797
        %v3257 = vunpack.c.l.b16 %v798
        %v3258 = vunpack.c.h.b16 %v798
        %v3259 = vunpack.c.l.b16 %v799
        %v3260 = vunpack.c.h.b16 %v799
        %v3261 = vunpack.c.l.b16 %v800
        %v3262 = vunpack.c.h.b16 %v800
        %v3263 = vunpack.c.l.b16 %v801
        %v3264 = vunpack.c.h.b16 %v801
        %v3265 = vunpack.c.l.b16 %v802
        %v3266 = vunpack.c.h.b16 %v802
        %v3267 = vunpack.c.l.b16 %v803
        %v3268 = vunpack.c.h.b16 %v803
        %v3269 = vunpack.c.l.b16 %v804
        %v3270 = vunpack.c.h.b16 %v804
        %v3271 = vunpack.c.l.b16 %v805
        %v3272 = vunpack.c.h.b16 %v805
        %v3273 = vunpack.c.l.b16 %v806
        %v3274 = vunpack.c.h.b16 %v806
        %v3275 = vunpack.c.l.b16 %v807
        %v3276 = vunpack.c.h.b16 %v807
        %v3277 = vunpack.c.l.b16 %v808
        %v3278 = vunpack.c.h.b16 %v808
        %v3279 = vunpack.c.l.b16 %v809
        %v3280 = vunpack.c.h.b16 %v809
        %v3281 = vunpack.c.l.b16 %v810
        %v3282 = vunpack.c.h.b16 %v810
        %v3283 = vunpack.c.l.b16 %v811
        %v3284 = vunpack.c.h.b16 %v811
        %v3285 = vunpack.c.l.b16 %v812
        %v3286 = vunpack.c.h.b16 %v812
        %v3287 = vunpack.c.l.b16 %v813
        %v3288 = vunpack.c.h.b16 %v813
        %v3289 = vunpack.c.l.b16 %v814
        %v3290 = vunpack.c.h.b16 %v814
        %v3291 = vunpack.c.l.b16 %v815
        %v3292 = vunpack.c.h.b16 %v815
        %v3293 = vunpack.c.l.b16 %v816
        %v3294 = vunpack.c.h.b16 %v816
        %v3295 = vunpack.c.l.b16 %v817
        %v3296 = vunpack.c.h.b16 %v817
        %v3297 = vunpack.c.l.b16 %v818
        %v3298 = vunpack.c.h.b16 %v818
        %v3299 = vunpack.c.l.b16 %v819
        %v3300 = vunpack.c.h.b16 %v819
        %v3301 = vunpack.c.l.b16 %v820
        %v3302 = vunpack.c.h.b16 %v820
        %v3303 = vunpack.c.l.b16 %v821
        %v3304 = vunpack.c.h.b16 %v821
        %v3305 = vunpack.c.l.b16 %v822
        %v3306 = vunpack.c.h.b16 %v822
        %v3307 = vunpack.c.l.b16 %v823
        %v3308 = vunpack.c.h.b16 %v823
        %v3309 = vunpack.c.l.b16 %v824
        %v3310 = vunpack.c.h.b16 %v824
        %v3311 = vunpack.c.l.b16 %v825
        %v3312 = vunpack.c.h.b16 %v825
        %v3313 = vunpack.c.l.b16 %v826
        %v3314 = vunpack.c.h.b16 %v826
        %v3315 = vunpack.c.l.b16 %v827
        %v3316 = vunpack.c.h.b16 %v827
        %v3317 = vunpack.c.l.b16 %v828
        %v3318 = vunpack.c.h.b16 %v828
        %v3319 = vunpack.c.l.b16 %v829
        %v3320 = vunpack.c.h.b16 %v829
        %v3321 = vunpack.c.l.b16 %v830
        %v3322 = vunpack.c.h.b16 %v830
        %v3323 = vunpack.c.l.b16 %v831
        %v3324 = vunpack.c.h.b16 %v831
        %v3325 = vunpack.c.l.b16 %v832
        %v3326 = vunpack.c.h.b16 %v832
        %v3327 = vunpack.c.l.b16 %v833
        %v3328 = vunpack.c.h.b16 %v833
        %v3329 = vunpack.c.l.b16 %v834
        %v3330 = vunpack.c.h.b16 %v834
        %v3331 = vunpack.c.l.b16 %v835
        %v3332 = vunpack.c.h.b16 %v835
        %v3333 = vunpack.c.l.b16 %v836
        %v3334 = vunpack.c.h.b16 %v836
        %v3335 = vunpack.c.l.b16 %v837
        %v3336 = vunpack.c.h.b16 %v837
        %v3337 = vunpack.c.l.b16 %v838
        %v3338 = vunpack.c.h.b16 %v838
        %v3339 = vunpack.c.l.b16 %v839
        %v3340 = vunpack.c.h.b16 %v839
        %v3341 = vunpack.c.l.b16 %v840
        %v3342 = vunpack.c.h.b16 %v840
        %v3343 = vunpack.c.l.b16 %v841
        %v3344 = vunpack.c.h.b16 %v841
        %v3345 = vunpack.c.l.b16 %v842
        %v3346 = vunpack.c.h.b16 %v842
        %v3347 = vunpack.c.l.b16 %v843
        %v3348 = vunpack.c.h.b16 %v843
        %v3349 = vunpack.c.l.b16 %v844
        %v3350 = vunpack.c.h.b16 %v844
        %v3351 = vunpack.c.l.b16 %v845
        %v3352 = vunpack.c.h.b16 %v845
        %v3353 = vunpack.c.l.b16 %v846
        %v3354 = vunpack.c.h.b16 %v846
        %v3355 = vunpack.c.l.b16 %v847
        %v3356 = vunpack.c.h.b16 %v847
        %v3357 = vunpack.c.l.b16 %v848
        %v3358 = vunpack.c.h.b16 %v848
        %v3359 = vunpack.c.l.b16 %v849
        %v3360 = vunpack.c.h.b16 %v849
        %v3361 = vunpack.c.l.b16 %v850
        %v3362 = vunpack.c.h.b16 %v850
        %v3363 = vunpack.c.l.b16 %v851
        %v3364 = vunpack.c.h.b16 %v851
        %v3365 = vunpack.c.l.b16 %v852
        %v3366 = vunpack.c.h.b16 %v852
        %v3367 = vunpack.c.l.b16 %v853
        %v3368 = vunpack.c.h.b16 %v853
        %v3369 = vunpack.c.l.b16 %v854
        %v3370 = vunpack.c.h.b16 %v854
        %v3371 = vunpack.c.l.b16 %v855
        %v3372 = vunpack.c.h.b16 %v855
        %v3373 = vunpack.c.l.b16 %v856
        %v3374 = vunpack.c.h.b16 %v856
        %v3375 = vunpack.c.l.b16 %v857
        %v3376 = vunpack.c.h.b16 %v857
        %v3377 = vunpack.c.l.b16 %v858
        %v3378 = vunpack.c.h.b16 %v858
        %v3379 = vunpack.c.l.b16 %v859
        %v3380 = vunpack.c.h.b16 %v859
        %v3381 = vunpack.c.l.b16 %v860
        %v3382 = vunpack.c.h.b16 %v860
        %v3383 = vunpack.c.l.b16 %v861
        %v3384 = vunpack.c.h.b16 %v861
        %v3385 = vunpack.c.l.b16 %v862
        %v3386 = vunpack.c.h.b16 %v862
        %v3387 = vunpack.c.l.b16 %v863
        %v3388 = vunpack.c.h.b16 %v863
        %v3389 = vunpack.c.l.b16 %v864
        %v3390 = vunpack.c.h.b16 %v864
        %v3391 = vunpack.c.l.b16 %v865
        %v3392 = vunpack.c.h.b16 %v865
        %v3393 = vunpack.c.l.b16 %v866
        %v3394 = vunpack.c.h.b16 %v866
        %v3395 = vunpack.c.l.b16 %v867
        %v3396 = vunpack.c.h.b16 %v867
        %v3397 = vunpack.c.l.b16 %v868
        %v3398 = vunpack.c.h.b16 %v868
        %v3399 = vunpack.c.l.b16 %v869
        %v3400 = vunpack.c.h.b16 %v869
        %v3401 = vunpack.c.l.b16 %v870
        %v3402 = vunpack.c.h.b16 %v870
        %v3403 = vunpack.c.l.b16 %v871
        %v3404 = vunpack.c.h.b16 %v871
        %v3405 = vunpack.c.l.b16 %v872
        %v3406 = vunpack.c.h.b16 %v872
        %v3407 = vunpack.c.l.b16 %v873
        %v3408 = vunpack.c.h.b16 %v873
        %v3409 = vunpack.c.l.b16 %v874
        %v3410 = vunpack.c.h.b16 %v874
        %v3411 = vunpack.c.l.b16 %v875
        %v3412 = vunpack.c.h.b16 %v875
        %v3413 = vunpack.c.l.b16 %v876
        %v3414 = vunpack.c.h.b16 %v876
        %v3415 = vunpack.c.l.b16 %v877
        %v3416 = vunpack.c.h.b16 %v877
        %v3417 = vunpack.c.l.b16 %v878
        %v3418 = vunpack.c.h.b16 %v878
        %v3419 = vunpack.c.l.b16 %v879
        %v3420 = vunpack.c.h.b16 %v879
        %v3421 = vunpack.c.l.b16 %v880
        %v3422 = vunpack.c.h.b16 %v880
        %v3423 = vunpack.c.l.b16 %v881
        %v3424 = vunpack.c.h.b16 %v881
        %v3425 = vunpack.c.l.b16 %v882
        %v3426 = vunpack.c.h.b16 %v882
        %v3427 = vunpack.c.l.b16 %v883
        %v3428 = vunpack.c.h.b16 %v883
        %v3429 = vunpack.c.l.b16 %v884
        %v3430 = vunpack.c.h.b16 %v884
        %v3431 = vunpack.c.l.b16 %v885
        %v3432 = vunpack.c.h.b16 %v885
        %v3433 = vunpack.c.l.b16 %v886
        %v3434 = vunpack.c.h.b16 %v886
        %v3435 = vunpack.c.l.b16 %v887
        %v3436 = vunpack.c.h.b16 %v887
        %v3437 = vunpack.c.l.b16 %v888
        %v3438 = vunpack.c.h.b16 %v888
        %v3439 = vunpack.c.l.b16 %v889
        %v3440 = vunpack.c.h.b16 %v889
        %v3441 = vunpack.c.l.b16 %v890
        %v3442 = vunpack.c.h.b16 %v890
        %v3443 = vunpack.c.l.b16 %v891
        %v3444 = vunpack.c.h.b16 %v891
        %v3445 = vunpack.c.l.b16 %v892
        %v3446 = vunpack.c.h.b16 %v892
        %v3447 = vunpack.c.l.b16 %v893
        %v3448 = vunpack.c.h.b16 %v893
        %v3449 = vunpack.c.l.b16 %v894
        %v3450 = vunpack.c.h.b16 %v894
        %v3451 = vunpack.c.l.b16 %v895
        %v3452 = vunpack.c.h.b16 %v895
        %v3453 = vunpack.c.l.b16 %v896
        %v3454 = vunpack.c.h.b16 %v896
        %v3455 = vunpack.c.l.b16 %v897
        %v3456 = vunpack.c.h.b16 %v897
        %v3457 = vunpack.c.l.b16 %v898
        %v3458 = vunpack.c.h.b16 %v898
        %v3459 = vunpack.c.l.b16 %v899
        %v3460 = vunpack.c.h.b16 %v899
        %v3461 = vunpack.c.l.b16 %v900
        %v3462 = vunpack.c.h.b16 %v900
        %v3463 = vunpack.c.l.b16 %v901
        %v3464 = vunpack.c.h.b16 %v901
        %v3465 = vunpack.c.l.b16 %v902
        %v3466 = vunpack.c.h.b16 %v902
        %v3467 = vunpack.c.l.b16 %v903
        %v3468 = vunpack.c.h.b16 %v903
        %v3469 = vunpack.c.l.b16 %v904
        %v3470 = vunpack.c.h.b16 %v904
        %v3471 = vunpack.c.l.b16 %v905
        %v3472 = vunpack.c.h.b16 %v905
        %v3473 = vunpack.c.l.b16 %v906
        %v3474 = vunpack.c.h.b16 %v906
        %v3475 = vunpack.c.l.b16 %v907
        %v3476 = vunpack.c.h.b16 %v907
        %v3477 = vunpack.c.l.b16 %v908
        %v3478 = vunpack.c.h.b16 %v908
        %v3479 = vunpack.c.l.b16 %v909
        %v3480 = vunpack.c.h.b16 %v909
        %v3481 = vunpack.c.l.b16 %v910
        %v3482 = vunpack.c.h.b16 %v910
        %v3483 = vunpack.c.l.b16 %v911
        %v3484 = vunpack.c.h.b16 %v911
        %v3485 = vunpack.c.l.b16 %v912
        %v3486 = vunpack.c.h.b16 %v912
        %v3487 = vunpack.c.l.b16 %v913
        %v3488 = vunpack.c.h.b16 %v913
        %v3489 = vunpack.c.l.b16 %v914
        %v3490 = vunpack.c.h.b16 %v914
        %v3491 = vunpack.c.l.b16 %v915
        %v3492 = vunpack.c.h.b16 %v915
        %v3493 = vunpack.c.l.b16 %v916
        %v3494 = vunpack.c.h.b16 %v916
        %v3495 = vunpack.c.l.b16 %v917
        %v3496 = vunpack.c.h.b16 %v917
        %v3497 = vunpack.c.l.b16 %v918
        %v3498 = vunpack.c.h.b16 %v918
        %v3499 = vunpack.c.l.b16 %v919
        %v3500 = vunpack.c.h.b16 %v919
        %v3501 = vunpack.c.l.b16 %v920
        %v3502 = vunpack.c.h.b16 %v920
        %v3503 = vunpack.c.l.b16 %v921
        %v3504 = vunpack.c.h.b16 %v921
        %v3505 = vunpack.c.l.b16 %v922
        %v3506 = vunpack.c.h.b16 %v922
        %v3507 = vunpack.c.l.b16 %v923
        %v3508 = vunpack.c.h.b16 %v923
        %v3509 = vunpack.c.l.b16 %v924
        %v3510 = vunpack.c.h.b16 %v924
        %v3511 = vunpack.c.l.b16 %v925
        %v3512 = vunpack.c.h.b16 %v925
        %v3513 = vunpack.c.l.b16 %v926
        %v3514 = vunpack.c.h.b16 %v926
        %v3515 = vunpack.c.l.b16 %v927
        %v3516 = vunpack.c.h.b16 %v927
        %v3517 = vunpack.c.l.b16 %v928
        %v3518 = vunpack.c.h.b16 %v928
        %v3519 = vunpack.c.l.b16 %v929
        %v3520 = vunpack.c.h.b16 %v929
        %v3521 = vunpack.c.l.b16 %v930
        %v3522 = vunpack.c.h.b16 %v930
        %v3523 = vunpack.c.l.b16 %v931
        %v3524 = vunpack.c.h.b16 %v931
        %v3525 = vunpack.c.l.b16 %v932
        %v3526 = vunpack.c.h.b16 %v932
        %v3527 = vunpack.c.l.b16 %v933
        %v3528 = vunpack.c.h.b16 %v933
        %v3529 = vunpack.c.l.b16 %v934
        %v3530 = vunpack.c.h.b16 %v934
        %v3531 = vunpack.c.l.b16 %v935
        %v3532 = vunpack.c.h.b16 %v935
        %v3533 = vunpack.c.l.b16 %v936
        %v3534 = vunpack.c.h.b16 %v936
        %v3535 = vunpack.c.l.b16 %v937
        %v3536 = vunpack.c.h.b16 %v937
        %v3537 = vunpack.c.l.b16 %v938
        %v3538 = vunpack.c.h.b16 %v938
        %v3539 = vunpack.c.l.b16 %v939
        %v3540 = vunpack.c.h.b16 %v939
        %v3541 = vunpack.c.l.b16 %v940
        %v3542 = vunpack.c.h.b16 %v940
        %v3543 = vunpack.c.l.b16 %v941
        %v3544 = vunpack.c.h.b16 %v941
        %v3545 = vunpack.c.l.b16 %v942
        %v3546 = vunpack.c.h.b16 %v942
        %v3547 = vunpack.c.l.b16 %v943
        %v3548 = vunpack.c.h.b16 %v943
        %v3549 = vunpack.c.l.b16 %v944
        %v3550 = vunpack.c.h.b16 %v944
        %v3551 = vunpack.c.l.b16 %v945
        %v3552 = vunpack.c.h.b16 %v945
        %v3553 = vunpack.c.l.b16 %v946
        %v3554 = vunpack.c.h.b16 %v946
        %v3555 = vunpack.c.l.b16 %v947
        %v3556 = vunpack.c.h.b16 %v947
        %v3557 = vunpack.c.l.b16 %v948
        %v3558 = vunpack.c.h.b16 %v948
        %v3559 = vunpack.c.l.b16 %v949
        %v3560 = vunpack.c.h.b16 %v949
        %v3561 = vunpack.c.l.b16 %v950
        %v3562 = vunpack.c.h.b16 %v950
        %v3563 = vunpack.c.l.b16 %v951
        %v3564 = vunpack.c.h.b16 %v951
        %v3565 = vunpack.c.l.b16 %v952
        %v3566 = vunpack.c.h.b16 %v952
        %v3567 = vunpack.c.l.b16 %v953
        %v3568 = vunpack.c.h.b16 %v953
        %v3569 = vunpack.c.l.b16 %v954
        %v3570 = vunpack.c.h.b16 %v954
        %v3571 = vunpack.c.l.b16 %v955
        %v3572 = vunpack.c.h.b16 %v955
        %v3573 = vunpack.c.l.b16 %v956
        %v3574 = vunpack.c.h.b16 %v956
        %v3575 = vunpack.c.l.b16 %v957
        %v3576 = vunpack.c.h.b16 %v957
        %v3577 = vunpack.c.l.b16 %v958
        %v3578 = vunpack.c.h.b16 %v958
        %v3579 = vunpack.c.l.b16 %v959
        %v3580 = vunpack.c.h.b16 %v959
        %v3581 = vunpack.c.l.b16 %v960
        %v3582 = vunpack.c.h.b16 %v960
        %v3583 = vunpack.c.l.b16 %v961
        %v3584 = vunpack.c.h.b16 %v961
        %v3585 = vunpack.c.l.b16 %v962
        %v3586 = vunpack.c.h.b16 %v962
        %v3587 = vunpack.c.l.b16 %v963
        %v3588 = vunpack.c.h.b16 %v963
        %v3589 = vunpack.c.l.b16 %v964
        %v3590 = vunpack.c.h.b16 %v964
        %v3591 = vunpack.c.l.b16 %v965
        %v3592 = vunpack.c.h.b16 %v965
        %v3593 = vunpack.c.l.b16 %v966
        %v3594 = vunpack.c.h.b16 %v966
        %v3595 = vunpack.c.l.b16 %v967
        %v3596 = vunpack.c.h.b16 %v967
        %v3597 = vunpack.c.l.b16 %v968
        %v3598 = vunpack.c.h.b16 %v968
        %v3599 = vunpack.c.l.b16 %v969
        %v3600 = vunpack.c.h.b16 %v969
        %v3601 = vunpack.c.l.b16 %v970
        %v3602 = vunpack.c.h.b16 %v970
        %v3603 = vunpack.c.l.b16 %v971
        %v3604 = vunpack.c.h.b16 %v971
        %v3605 = vunpack.c.l.b16 %v972
        %v3606 = vunpack.c.h.b16 %v972
        %v3607 = vunpack.c.l.b16 %v973
        %v3608 = vunpack.c.h.b16 %v973
        %v3609 = vunpack.c.l.b16 %v974
        %v3610 = vunpack.c.h.b16 %v974
        %v3611 = vunpack.c.l.b16 %v975
        %v3612 = vunpack.c.h.b16 %v975
        %v3613 = vunpack.c.l.b16 %v976
        %v3614 = vunpack.c.h.b16 %v976
        %v3615 = vunpack.c.l.b16 %v977
        %v3616 = vunpack.c.h.b16 %v977
        %v3617 = vunpack.c.l.b16 %v978
        %v3618 = vunpack.c.h.b16 %v978
        %v3619 = vunpack.c.l.b16 %v979
        %v3620 = vunpack.c.h.b16 %v979
        %v3621 = vunpack.c.l.b16 %v980
        %v3622 = vunpack.c.h.b16 %v980
        %v3623 = vunpack.c.l.b16 %v981
        %v3624 = vunpack.c.h.b16 %v981
        %v3625 = vunpack.c.l.b16 %v982
        %v3626 = vunpack.c.h.b16 %v982
        %v3627 = vunpack.c.l.b16 %v983
        %v3628 = vunpack.c.h.b16 %v983
        %v3629 = vunpack.c.l.b16 %v984
        %v3630 = vunpack.c.h.b16 %v984
        %v3631 = vunpack.c.l.b16 %v985
        %v3632 = vunpack.c.h.b16 %v985
        %v3633 = vunpack.c.l.b16 %v986
        %v3634 = vunpack.c.h.b16 %v986
        %v3635 = vunpack.c.l.b16 %v987
        %v3636 = vunpack.c.h.b16 %v987
        %v3637 = vunpack.c.l.b16 %v988
        %v3638 = vunpack.c.h.b16 %v988
        %v3639 = vunpack.c.l.b16 %v989
        %v3640 = vunpack.c.h.b16 %v989
        %v3641 = vunpack.c.l.b16 %v990
        %v3642 = vunpack.c.h.b16 %v990
        %v3643 = vunpack.c.l.b16 %v991
        %v3644 = vunpack.c.h.b16 %v991
        %v3645 = vunpack.c.l.b16 %v992
        %v3646 = vunpack.c.h.b16 %v992
        %v3647 = vunpack.c.l.b16 %v993
        %v3648 = vunpack.c.h.b16 %v993
        %v3649 = vunpack.c.l.b16 %v994
        %v3650 = vunpack.c.h.b16 %v994
        %v3651 = vunpack.c.l.b16 %v995
        %v3652 = vunpack.c.h.b16 %v995
        %v3653 = vunpack.c.l.b16 %v996
        %v3654 = vunpack.c.h.b16 %v996
        %v3655 = vunpack.c.l.b16 %v997
        %v3656 = vunpack.c.h.b16 %v997
        %v3657 = vunpack.c.l.b16 %v998
        %v3658 = vunpack.c.h.b16 %v998
        %v3659 = vunpack.c.l.b16 %v999
        %v3660 = vunpack.c.h.b16 %v999
        %v3661 = vunpack.c.l.b16 %v1000
        %v3662 = vunpack.c.h.b16 %v1000
        %v3663 = vunpack.c.l.b16 %v1001
        %v3664 = vunpack.c.h.b16 %v1001
        %v3665 = vunpack.c.l.b16 %v1002
        %v3666 = vunpack.c.h.b16 %v1002
        %v3667 = vunpack.c.l.b16 %v1003
        %v3668 = vunpack.c.h.b16 %v1003
        %v3669 = vunpack.c.l.b16 %v1004
        %v3670 = vunpack.c.h.b16 %v1004
        %v3671 = vunpack.c.l.b16 %v1005
        %v3672 = vunpack.c.h.b16 %v1005
        %v3673 = vunpack.c.l.b16 %v1006
        %v3674 = vunpack.c.h.b16 %v1006
        %v3675 = vunpack.c.l.b16 %v1007
        %v3676 = vunpack.c.h.b16 %v1007
        %v3677 = vunpack.c.l.b16 %v1008
        %v3678 = vunpack.c.h.b16 %v1008
        %v3679 = vunpack.c.l.b16 %v1009
        %v3680 = vunpack.c.h.b16 %v1009
        %v3681 = vunpack.c.l.b16 %v1010
        %v3682 = vunpack.c.h.b16 %v1010
        %v3683 = vunpack.c.l.b16 %v1011
        %v3684 = vunpack.c.h.b16 %v1011
        %v3685 = vunpack.c.l.b16 %v1012
        %v3686 = vunpack.c.h.b16 %v1012
        %v3687 = vunpack.c.l.b16 %v1013
        %v3688 = vunpack.c.h.b16 %v1013
        %v3689 = vunpack.c.l.b16 %v1014
        %v3690 = vunpack.c.h.b16 %v1014
        %v3691 = vunpack.c.l.b16 %v1015
        %v3692 = vunpack.c.h.b16 %v1015
        %v3693 = vunpack.c.l.b16 %v1016
        %v3694 = vunpack.c.h.b16 %v1016
        %v3695 = vunpack.c.l.b16 %v1017
        %v3696 = vunpack.c.h.b16 %v1017
        %v3697 = vunpack.c.l.b16 %v1018
        %v3698 = vunpack.c.h.b16 %v1018
        %v3699 = vunpack.c.l.b16 %v1019
        %v3700 = vunpack.c.h.b16 %v1019
        %v3701 = vunpack.c.l.b16 %v1020
        %v3702 = vunpack.c.h.b16 %v1020
        %v3703 = vunpack.c.l.b16 %v1021
        %v3704 = vunpack.c.h.b16 %v1021
        %v3705 = vunpack.c.l.b16 %v1022
        %v3706 = vunpack.c.h.b16 %v1022
        %v3707 = vunpack.c.l.b16 %v1023
        %v3708 = vunpack.c.h.b16 %v1023
        %v3709 = vunpack.c.l.b16 %v1024
        %v3710 = vunpack.c.h.b16 %v1024
        %v3711 = vunpack.c.l.b16 %v1025
        %v3712 = vunpack.c.h.b16 %v1025
        %v3713 = vunpack.c.l.b16 %v1026
        %v3714 = vunpack.c.h.b16 %v1026
        %v3715 = vunpack.c.l.b16 %v1027
        %v3716 = vunpack.c.h.b16 %v1027
        %v3717 = vunpack.c.l.b16 %v1028
        %v3718 = vunpack.c.h.b16 %v1028
        %v3719 = vunpack.c.l.b16 %v1029
        %v3720 = vunpack.c.h.b16 %v1029
        %v3721 = vunpack.c.l.b16 %v1030
        %v3722 = vunpack.c.h.b16 %v1030
        %v3723 = vunpack.c.l.b16 %v1031
        %v3724 = vunpack.c.h.b16 %v1031
        %v3725 = vunpack.c.l.b16 %v1032
        %v3726 = vunpack.c.h.b16 %v1032
        %v3727 = vunpack.c.l.b16 %v1033
        %v3728 = vunpack.c.h.b16 %v1033
        %v3729 = vunpack.c.l.b16 %v1034
        %v3730 = vunpack.c.h.b16 %v1034
        %v3731 = vunpack.c.l.b16 %v1035
        %v3732 = vunpack.c.h.b16 %v1035
        %v3733 = vunpack.c.l.b16 %v1036
        %v3734 = vunpack.c.h.b16 %v1036
        %v3735 = vunpack.c.l.b16 %v1037
        %v3736 = vunpack.c.h.b16 %v1037
        %v3737 = vunpack.c.l.b16 %v1038
        %v3738 = vunpack.c.h.b16 %v1038
        %v3739 = vunpack.c.l.b16 %v1039
        %v3740 = vunpack.c.h.b16 %v1039
        %v3741 = vunpack.c.l.b16 %v1040
        %v3742 = vunpack.c.h.b16 %v1040
        %v3743 = vunpack.c.l.b16 %v1041
        %v3744 = vunpack.c.h.b16 %v1041
        %v3745 = vunpack.c.l.b16 %v1042
        %v3746 = vunpack.c.h.b16 %v1042
        %v3747 = vunpack.c.l.b16 %v1043
        %v3748 = vunpack.c.h.b16 %v1043
        %v3749 = vunpack.c.l.b16 %v1044
        %v3750 = vunpack.c.h.b16 %v1044
        %v3751 = vunpack.c.l.b16 %v1045
        %v3752 = vunpack.c.h.b16 %v1045
        %v3753 = vunpack.c.l.b16 %v1046
        %v3754 = vunpack.c.h.b16 %v1046
        %v3755 = vunpack.c.l.b16 %v1047
        %v3756 = vunpack.c.h.b16 %v1047
        %v3757 = vunpack.c.l.b16 %v1048
        %v3758 = vunpack.c.h.b16 %v1048
        %v3759 = vunpack.c.l.b16 %v1049
        %v3760 = vunpack.c.h.b16 %v1049
        %v3761 = vunpack.c.l.b16 %v1050
        %v3762 = vunpack.c.h.b16 %v1050
        %v3763 = vunpack.c.l.b16 %v1051
        %v3764 = vunpack.c.h.b16 %v1051
        %v3765 = vunpack.c.l.b16 %v1052
        %v3766 = vunpack.c.h.b16 %v1052
        %v3767 = vunpack.c.l.b16 %v1053
        %v3768 = vunpack.c.h.b16 %v1053
        %v3769 = vunpack.c.l.b16 %v1054
        %v3770 = vunpack.c.h.b16 %v1054
        %v3771 = vunpack.c.l.b16 %v1055
        %v3772 = vunpack.c.h.b16 %v1055
        %v3773 = vunpack.c.l.b16 %v1056
        %v3774 = vunpack.c.h.b16 %v1056
        %v3775 = vunpack.c.l.b16 %v1057
        %v3776 = vunpack.c.h.b16 %v1057
        %v3777 = vunpack.c.l.b16 %v1058
        %v3778 = vunpack.c.h.b16 %v1058
        %v3779 = vunpack.c.l.b16 %v1059
        %v3780 = vunpack.c.h.b16 %v1059
        %v3781 = vunpack.c.l.b16 %v1060
        %v3782 = vunpack.c.h.b16 %v1060
        %v3783 = vunpack.c.l.b16 %v1061
        %v3784 = vunpack.c.h.b16 %v1061
        %v3785 = vunpack.c.l.b16 %v1062
        %v3786 = vunpack.c.h.b16 %v1062
        %v3787 = vunpack.c.l.b16 %v1063
        %v3788 = vunpack.c.h.b16 %v1063
        %v3789 = vunpack.c.l.b16 %v1064
        %v3790 = vunpack.c.h.b16 %v1064
        %v3791 = vunpack.c.l.b16 %v1065
        %v3792 = vunpack.c.h.b16 %v1065
        %v3793 = vunpack.c.l.b16 %v1066
        %v3794 = vunpack.c.h.b16 %v1066
        %v3795 = vunpack.c.l.b16 %v1067
        %v3796 = vunpack.c.h.b16 %v1067
        %v3797 = vunpack.c.l.b16 %v1068
        %v3798 = vunpack.c.h.b16 %v1068
        %v3799 = vunpack.c.l.b16 %v1069
        %v3800 = vunpack.c.h.b16 %v1069
        %v3801 = vunpack.c.l.b16 %v1070
        %v3802 = vunpack.c.h.b16 %v1070
        %v3803 = vunpack.c.l.b16 %v1071
        %v3804 = vunpack.c.h.b16 %v1071
        %v3805 = vunpack.c.l.b16 %v1072
        %v3806 = vunpack.c.h.b16 %v1072
        %v3807 = vunpack.c.l.b16 %v1073
        %v3808 = vunpack.c.h.b16 %v1073
        %v3809 = vunpack.c.l.b16 %v1074
        %v3810 = vunpack.c.h.b16 %v1074
        %v3811 = vunpack.c.l.b16 %v1075
        %v3812 = vunpack.c.h.b16 %v1075
        %v3813 = vunpack.c.l.b16 %v1076
        %v3814 = vunpack.c.h.b16 %v1076
        %v3815 = vunpack.c.l.b16 %v1077
        %v3816 = vunpack.c.h.b16 %v1077
        %v3817 = vunpack.c.l.b16 %v1078
        %v3818 = vunpack.c.h.b16 %v1078
        %v3819 = vunpack.c.l.b16 %v1079
        %v3820 = vunpack.c.h.b16 %v1079
        %v3821 = vunpack.c.l.b16 %v1080
        %v3822 = vunpack.c.h.b16 %v1080
        %v3823 = vunpack.c.l.b16 %v1081
        %v3824 = vunpack.c.h.b16 %v1081
        %v3825 = vunpack.c.l.b16 %v1082
        %v3826 = vunpack.c.h.b16 %v1082
        %v3827 = vunpack.c.l.b16 %v1083
        %v3828 = vunpack.c.h.b16 %v1083
        %v3829 = vunpack.c.l.b16 %v1084
        %v3830 = vunpack.c.h.b16 %v1084
        %v3831 = vunpack.c.l.b16 %v1085
        %v3832 = vunpack.c.h.b16 %v1085
        %v3833 = vunpack.c.l.b16 %v1086
        %v3834 = vunpack.c.h.b16 %v1086
        %v3835 = vunpack.c.l.b16 %v1087
        %v3836 = vunpack.c.h.b16 %v1087
        %v3837 = vunpack.c.l.b16 %v1088
        %v3838 = vunpack.c.h.b16 %v1088
        %v3839 = vunpack.c.l.b16 %v1089
        %v3840 = vunpack.c.h.b16 %v1089
        %v3841 = vunpack.c.l.b16 %v1090
        %v3842 = vunpack.c.h.b16 %v1090
        %v3843 = vunpack.c.l.b16 %v1091
        %v3844 = vunpack.c.h.b16 %v1091
        %v3845 = vunpack.c.l.b16 %v1092
        %v3846 = vunpack.c.h.b16 %v1092
        %v3847 = vunpack.c.l.b16 %v1093
        %v3848 = vunpack.c.h.b16 %v1093
        %v3849 = vunpack.c.l.b16 %v1094
        %v3850 = vunpack.c.h.b16 %v1094
        %v3851 = vunpack.c.l.b16 %v1095
        %v3852 = vunpack.c.h.b16 %v1095
        %v3853 = vunpack.c.l.b16 %v1096
        %v3854 = vunpack.c.h.b16 %v1096
        %v3855 = vunpack.c.l.b16 %v1097
        %v3856 = vunpack.c.h.b16 %v1097
        %v3857 = vunpack.c.l.b16 %v1098
        %v3858 = vunpack.c.h.b16 %v1098
        %v3859 = vunpack.c.l.b16 %v1099
        %v3860 = vunpack.c.h.b16 %v1099
        %v3861 = vunpack.c.l.b16 %v1100
        %v3862 = vunpack.c.h.b16 %v1100
        %v3863 = vunpack.c.l.b16 %v1101
        %v3864 = vunpack.c.h.b16 %v1101
        %v3865 = vunpack.c.l.b16 %v1102
        %v3866 = vunpack.c.h.b16 %v1102
        %v3867 = vunpack.c.l.b16 %v1103
        %v3868 = vunpack.c.h.b16 %v1103
        %v3869 = vunpack.c.l.b16 %v1104
        %v3870 = vunpack.c.h.b16 %v1104
        %v3871 = vunpack.c.l.b16 %v1105
        %v3872 = vunpack.c.h.b16 %v1105
        %v3873 = vunpack.c.l.b16 %v1106
        %v3874 = vunpack.c.h.b16 %v1106
        %v3875 = vunpack.c.l.b16 %v1107
        %v3876 = vunpack.c.h.b16 %v1107
        %v3877 = vunpack.c.l.b16 %v1108
        %v3878 = vunpack.c.h.b16 %v1108
        %v3879 = vunpack.c.l.b16 %v1109
        %v3880 = vunpack.c.h.b16 %v1109
        %v3881 = vunpack.c.l.b16 %v1110
        %v3882 = vunpack.c.h.b16 %v1110
        %v3883 = vunpack.c.l.b16 %v1111
        %v3884 = vunpack.c.h.b16 %v1111
        %v3885 = vunpack.c.l.b16 %v1112
        %v3886 = vunpack.c.h.b16 %v1112
        %v3887 = vunpack.c.l.b16 %v1113
        %v3888 = vunpack.c.h.b16 %v1113
        %v3889 = vunpack.c.l.b16 %v1114
        %v3890 = vunpack.c.h.b16 %v1114
        %v3891 = vunpack.c.l.b16 %v1115
        %v3892 = vunpack.c.h.b16 %v1115
        %v3893 = vunpack.c.l.b16 %v1116
        %v3894 = vunpack.c.h.b16 %v1116
        %v3895 = vunpack.c.l.b16 %v1117
        %v3896 = vunpack.c.h.b16 %v1117
        %v3897 = vunpack.c.l.b16 %v1118
        %v3898 = vunpack.c.h.b16 %v1118
        %v3899 = vunpack.c.l.b16 %v1119
        %v3900 = vunpack.c.h.b16 %v1119
        %v3901 = vunpack.c.l.b16 %v1120
        %v3902 = vunpack.c.h.b16 %v1120
        %v3903 = vunpack.c.l.b16 %v1121
        %v3904 = vunpack.c.h.b16 %v1121
        %v3905 = vunpack.c.l.b16 %v1122
        %v3906 = vunpack.c.h.b16 %v1122
        %v3907 = vunpack.c.l.b16 %v1123
        %v3908 = vunpack.c.h.b16 %v1123
        %v3909 = vunpack.c.l.b16 %v1124
        %v3910 = vunpack.c.h.b16 %v1124
        %v3911 = vunpack.c.l.b16 %v1125
        %v3912 = vunpack.c.h.b16 %v1125
        %v3913 = vunpack.c.l.b16 %v1126
        %v3914 = vunpack.c.h.b16 %v1126
        %v3915 = vunpack.c.l.b16 %v1127
        %v3916 = vunpack.c.h.b16 %v1127
        %v3917 = vunpack.c.l.b16 %v1128
        %v3918 = vunpack.c.h.b16 %v1128
        %v3919 = vunpack.c.l.b16 %v1129
        %v3920 = vunpack.c.h.b16 %v1129
        %v3921 = vunpack.c.l.b16 %v1130
        %v3922 = vunpack.c.h.b16 %v1130
        %v3923 = vunpack.c.l.b16 %v1131
        %v3924 = vunpack.c.h.b16 %v1131
        %v3925 = vunpack.c.l.b16 %v1132
        %v3926 = vunpack.c.h.b16 %v1132
        %v3927 = vunpack.c.l.b16 %v1133
        %v3928 = vunpack.c.h.b16 %v1133
        %v3929 = vunpack.c.l.b16 %v1134
        %v3930 = vunpack.c.h.b16 %v1134
        %v3931 = vunpack.c.l.b16 %v1135
        %v3932 = vunpack.c.h.b16 %v1135
        %v3933 = vunpack.c.l.b16 %v1136
        %v3934 = vunpack.c.h.b16 %v1136
        %v3935 = vunpack.c.l.b16 %v1137
        %v3936 = vunpack.c.h.b16 %v1137
        %v3937 = vunpack.c.l.b16 %v1138
        %v3938 = vunpack.c.h.b16 %v1138
        %v3939 = vunpack.c.l.b16 %v1139
        %v3940 = vunpack.c.h.b16 %v1139
        %v3941 = vunpack.c.l.b16 %v1140
        %v3942 = vunpack.c.h.b16 %v1140
        %v3943 = vunpack.c.l.b16 %v1141
        %v3944 = vunpack.c.h.b16 %v1141
        %v3945 = vunpack.c.l.b16 %v1142
        %v3946 = vunpack.c.h.b16 %v1142
        %v3947 = vunpack.c.l.b16 %v1143
        %v3948 = vunpack.c.h.b16 %v1143
        %v3949 = vunpack.c.l.b16 %v1144
        %v3950 = vunpack.c.h.b16 %v1144
        %v3951 = vunpack.c.l.b16 %v1145
        %v3952 = vunpack.c.h.b16 %v1145
        %v3953 = vunpack.c.l.b16 %v1146
        %v3954 = vunpack.c.h.b16 %v1146
        %v3955 = vunpack.c.l.b16 %v1147
        %v3956 = vunpack.c.h.b16 %v1147
        %v3957 = vunpack.c.l.b16 %v1148
        %v3958 = vunpack.c.h.b16 %v1148
        %v3959 = vunpack.c.l.b16 %v1149
        %v3960 = vunpack.c.h.b16 %v1149
        %v3961 = vunpack.c.l.b16 %v1150
        %v3962 = vunpack.c.h.b16 %v1150
        %v3963 = vunpack.c.l.b16 %v1151
        %v3964 = vunpack.c.h.b16 %v1151
        %v3965 = vunpack.c.l.b16 %v1152
        %v3966 = vunpack.c.h.b16 %v1152
        %v3967 = vunpack.c.l.b16 %v1153
        %v3968 = vunpack.c.h.b16 %v1153
        %v3969 = vunpack.c.l.b16 %v1154
        %v3970 = vunpack.c.h.b16 %v1154
        %v3971 = vunpack.c.l.b16 %v1155
        %v3972 = vunpack.c.h.b16 %v1155
        %v3973 = vunpack.c.l.b16 %v1156
        %v3974 = vunpack.c.h.b16 %v1156
        %v3975 = vunpack.c.l.b16 %v1157
        %v3976 = vunpack.c.h.b16 %v1157
        %v3977 = vunpack.c.l.b16 %v1158
        %v3978 = vunpack.c.h.b16 %v1158
        %v3979 = vunpack.c.l.b16 %v1159
        %v3980 = vunpack.c.h.b16 %v1159
        %v3981 = vunpack.c.l.b16 %v1160
        %v3982 = vunpack.c.h.b16 %v1160
        %v3983 = vunpack.c.l.b16 %v1161
        %v3984 = vunpack.c.h.b16 %v1161
        %v3985 = vunpack.c.l.b16 %v1162
        %v3986 = vunpack.c.h.b16 %v1162
        %v3987 = vunpack.c.l.b16 %v1163
        %v3988 = vunpack.c.h.b16 %v1163
        %v3989 = vunpack.c.l.b16 %v1164
        %v3990 = vunpack.c.h.b16 %v1164
        %v3991 = vunpack.c.l.b16 %v1165
        %v3992 = vunpack.c.h.b16 %v1165
        %v3993 = vunpack.c.l.b16 %v1166
        %v3994 = vunpack.c.h.b16 %v1166
        %v3995 = vunpack.c.l.b16 %v1167
        %v3996 = vunpack.c.h.b16 %v1167
        %v3997 = vunpack.c.l.b16 %v1168
        %v3998 = vunpack.c.h.b16 %v1168
        %v3999 = vunpack.c.l.b16 %v1169
        %v4000 = vunpack.c.h.b16 %v1169
        %v4001 = vunpack.c.l.b16 %v1170
        %v4002 = vunpack.c.h.b16 %v1170
        %v4003 = vunpack.c.l.b16 %v1171
        %v4004 = vunpack.c.h.b16 %v1171
        %v4005 = vunpack.c.l.b16 %v1172
        %v4006 = vunpack.c.h.b16 %v1172
        %v4007 = vunpack.c.l.b16 %v1173
        %v4008 = vunpack.c.h.b16 %v1173
        %v4009 = vunpack.c.l.b16 %v1174
        %v4010 = vunpack.c.h.b16 %v1174
        %v4011 = vunpack.c.l.b16 %v1175
        %v4012 = vunpack.c.h.b16 %v1175
        %v4013 = vunpack.c.l.b16 %v1176
        %v4014 = vunpack.c.h.b16 %v1176
        %v4015 = vunpack.c.l.b16 %v1177
        %v4016 = vunpack.c.h.b16 %v1177
        %v4017 = vunpack.c.l.b16 %v1178
        %v4018 = vunpack.c.h.b16 %v1178
        %v4019 = vunpack.c.l.b16 %v1179
        %v4020 = vunpack.c.h.b16 %v1179
        %v4021 = vunpack.c.l.b16 %v1180
        %v4022 = vunpack.c.h.b16 %v1180
        %v4023 = vunpack.c.l.b16 %v1181
        %v4024 = vunpack.c.h.b16 %v1181
        %v4025 = vunpack.c.l.b16 %v1182
        %v4026 = vunpack.c.h.b16 %v1182
        %v4027 = vunpack.c.l.b16 %v1183
        %v4028 = vunpack.c.h.b16 %v1183
        %v4029 = vunpack.c.l.b16 %v1184
        %v4030 = vunpack.c.h.b16 %v1184
        %v4031 = vunpack.c.l.b16 %v1185
        %v4032 = vunpack.c.h.b16 %v1185
        %v4033 = vunpack.c.l.b16 %v1186
        %v4034 = vunpack.c.h.b16 %v1186
        %v4035 = vunpack.c.l.b16 %v1187
        %v4036 = vunpack.c.h.b16 %v1187
        %v4037 = vunpack.c.l.b16 %v1188
        %v4038 = vunpack.c.h.b16 %v1188
        %v4039 = vunpack.c.l.b16 %v1189
        %v4040 = vunpack.c.h.b16 %v1189
        %v4041 = vunpack.c.l.b16 %v1190
        %v4042 = vunpack.c.h.b16 %v1190
        %v4043 = vunpack.c.l.b16 %v1191
        %v4044 = vunpack.c.h.b16 %v1191
        %v4045 = vunpack.c.l.b16 %v1192
        %v4046 = vunpack.c.h.b16 %v1192
        %v4047 = vunpack.c.l.b16 %v1193
        %v4048 = vunpack.c.h.b16 %v1193
        %v4049 = vunpack.c.l.b16 %v1194
        %v4050 = vunpack.c.h.b16 %v1194
        %v4051 = vunpack.c.l.b16 %v1195
        %v4052 = vunpack.c.h.b16 %v1195
        %v4053 = vunpack.c.l.b16 %v1196
        %v4054 = vunpack.c.h.b16 %v1196
        %v4055 = vunpack.c.l.b16 %v1197
        %v4056 = vunpack.c.h.b16 %v1197
        %v4057 = vunpack.c.l.b16 %v1198
        %v4058 = vunpack.c.h.b16 %v1198
        %v4059 = vunpack.c.l.b16 %v1199
        %v4060 = vunpack.c.h.b16 %v1199
        %v4061 = vunpack.c.l.b16 %v1200
        %v4062 = vunpack.c.h.b16 %v1200
        %v4063 = vunpack.c.l.b16 %v1201
        %v4064 = vunpack.c.h.b16 %v1201
        %v4065 = vunpack.c.l.b16 %v1202
        %v4066 = vunpack.c.h.b16 %v1202
        %v4067 = vunpack.c.l.b16 %v1203
        %v4068 = vunpack.c.h.b16 %v1203
        %v4069 = vunpack.c.l.b16 %v1204
        %v4070 = vunpack.c.h.b16 %v1204
        %v4071 = vunpack.c.l.b16 %v1205
        %v4072 = vunpack.c.h.b16 %v1205
        %v4073 = vunpack.c.l.b16 %v1206
        %v4074 = vunpack.c.h.b16 %v1206
        %v4075 = vunpack.c.l.b16 %v1207
        %v4076 = vunpack.c.h.b16 %v1207
        %v4077 = vunpack.c.l.b16 %v1208
        %v4078 = vunpack.c.h.b16 %v1208
        %v4079 = vunpack.c.l.b16 %v1209
        %v4080 = vunpack.c.h.b16 %v1209
        %v4081 = vunpack.c.l.b16 %v1210
        %v4082 = vunpack.c.h.b16 %v1210
        %v4083 = vunpack.c.l.b16 %v1211
        %v4084 = vunpack.c.h.b16 %v1211
        %v4085 = vunpack.c.l.b16 %v1212
        %v4086 = vunpack.c.h.b16 %v1212
        %v4087 = vunpack.c.l.b16 %v1213
        %v4088 = vunpack.c.h.b16 %v1213
        %v4089 = vunpack.c.l.b16 %v1214
        %v4090 = vunpack.c.h.b16 %v1214
        %v4091 = vunpack.c.l.b16 %v1215
        %v4092 = vunpack.c.h.b16 %v1215
        %v4093 = vunpack.c.l.b16 %v1216
        %v4094 = vunpack.c.h.b16 %v1216
        %v4095 = vunpack.c.l.b16 %v1217
        %v4096 = vunpack.c.h.b16 %v1217
        %v4097 = vunpack.c.l.b16 %v1218
        %v4098 = vunpack.c.h.b16 %v1218
        %v4099 = vunpack.c.l.b16 %v1219
        %v4100 = vunpack.c.h.b16 %v1219
        %v4101 = vunpack.c.l.b16 %v1220
        %v4102 = vunpack.c.h.b16 %v1220
        %v4103 = vunpack.c.l.b16 %v1221
        %v4104 = vunpack.c.h.b16 %v1221
        %v4105 = vunpack.c.l.b16 %v1222
        %v4106 = vunpack.c.h.b16 %v1222
        %v4107 = vunpack.c.l.b16 %v1223
        %v4108 = vunpack.c.h.b16 %v1223
        %v4109 = vunpack.c.l.b16 %v1224
        %v4110 = vunpack.c.h.b16 %v1224
        %v4111 = vunpack.c.l.b16 %v1225
        %v4112 = vunpack.c.h.b16 %v1225
        %v4113 = vunpack.c.l.b16 %v1226
        %v4114 = vunpack.c.h.b16 %v1226
        %v4115 = vunpack.c.l.b16 %v1227
        %v4116 = vunpack.c.h.b16 %v1227
        %v4117 = vunpack.c.l.b16 %v1228
        %v4118 = vunpack.c.h.b16 %v1228
        %v4119 = vunpack.c.l.b16 %v1229
        %v4120 = vunpack.c.h.b16 %v1229
        %v4121 = vunpack.c.l.b16 %v1230
        %v4122 = vunpack.c.h.b16 %v1230
        %v4123 = vunpack.c.l.b16 %v1231
        %v4124 = vunpack.c.h.b16 %v1231
        %v4125 = vunpack.c.l.b16 %v1232
        %v4126 = vunpack.c.h.b16 %v1232
        %v4127 = vunpack.c.l.b16 %v1233
        %v4128 = vunpack.c.h.b16 %v1233
        %v4129 = vunpack.c.l.b16 %v1234
        %v4130 = vunpack.c.h.b16 %v1234
        %v4131 = vunpack.c.l.b16 %v1235
        %v4132 = vunpack.c.h.b16 %v1235
        %v4133 = vunpack.c.l.b16 %v1236
        %v4134 = vunpack.c.h.b16 %v1236
        %v4135 = vunpack.c.l.b16 %v1237
        %v4136 = vunpack.c.h.b16 %v1237
        %v4137 = vunpack.c.l.b16 %v1238
        %v4138 = vunpack.c.h.b16 %v1238
        %v4139 = vunpack.c.l.b16 %v1239
        %v4140 = vunpack.c.h.b16 %v1239
        %v4141 = vunpack.c.l.b16 %v1240
        %v4142 = vunpack.c.h.b16 %v1240
        %v4143 = vunpack.c.l.b16 %v1241
        %v4144 = vunpack.c.h.b16 %v1241
        %v4145 = vunpack.c.l.b16 %v1242
        %v4146 = vunpack.c.h.b16 %v1242
        %v4147 = vunpack.c.l.b16 %v1243
        %v4148 = vunpack.c.h.b16 %v1243
        %v4149 = vunpack.c.l.b16 %v1244
        %v4150 = vunpack.c.h.b16 %v1244
        %v4151 = vunpack.c.l.b16 %v1245
        %v4152 = vunpack.c.h.b16 %v1245
        %v4153 = vunpack.c.l.b16 %v1246
        %v4154 = vunpack.c.h.b16 %v1246
        %v4155 = vunpack.c.l.b16 %v1247
        %v4156 = vunpack.c.h.b16 %v1247
        %v4157 = vunpack.c.l.b16 %v1248
        %v4158 = vunpack.c.h.b16 %v1248
        %v4159 = vunpack.c.l.b16 %v1249
        %v4160 = vunpack.c.h.b16 %v1249
        %v4161 = vunpack.c.l.b16 %v1250
        %v4162 = vunpack.c.h.b16 %v1250
        %v4163 = vunpack.c.l.b16 %v1251
        %v4164 = vunpack.c.h.b16 %v1251
        %v4165 = vunpack.c.l.b16 %v1252
        %v4166 = vunpack.c.h.b16 %v1252
        %v4167 = vunpack.c.l.b16 %v1253
        %v4168 = vunpack.c.h.b16 %v1253
        %v4169 = vunpack.c.l.b16 %v1254
        %v4170 = vunpack.c.h.b16 %v1254
        %v4171 = vunpack.c.l.b16 %v1255
        %v4172 = vunpack.c.h.b16 %v1255
        %v4173 = vunpack.c.l.b16 %v1256
        %v4174 = vunpack.c.h.b16 %v1256
        %v4175 = vunpack.c.l.b16 %v1257
        %v4176 = vunpack.c.h.b16 %v1257
        %v4177 = vunpack.c.l.b16 %v1258
        %v4178 = vunpack.c.h.b16 %v1258
        %v4179 = vunpack.c.l.b16 %v1259
        %v4180 = vunpack.c.h.b16 %v1259
        %v4181 = vunpack.c.l.b16 %v1260
        %v4182 = vunpack.c.h.b16 %v1260
        %v4183 = vunpack.c.l.b16 %v1261
        %v4184 = vunpack.c.h.b16 %v1261
        %v4185 = vunpack.c.l.b16 %v1262
        %v4186 = vunpack.c.h.b16 %v1262
        %v4187 = vunpack.c.l.b16 %v1263
        %v4188 = vunpack.c.h.b16 %v1263
        %v4189 = vunpack.c.l.b16 %v1264
        %v4190 = vunpack.c.h.b16 %v1264
        %v4191 = vunpack.c.l.b16 %v1265
        %v4192 = vunpack.c.h.b16 %v1265
        %v4193 = vunpack.c.l.b16 %v1266
        %v4194 = vunpack.c.h.b16 %v1266
        %v4195 = vunpack.c.l.b16 %v1267
        %v4196 = vunpack.c.h.b16 %v1267
        %v4197 = vunpack.c.l.b16 %v1268
        %v4198 = vunpack.c.h.b16 %v1268
        %v4199 = vunpack.c.l.b16 %v1269
        %v4200 = vunpack.c.h.b16 %v1269
        %v4201 = vunpack.c.l.b16 %v1270
        %v4202 = vunpack.c.h.b16 %v1270
        %v4203 = vunpack.c.l.b16 %v1271
        %v4204 = vunpack.c.h.b16 %v1271
        %v4205 = vunpack.c.l.b16 %v1272
        %v4206 = vunpack.c.h.b16 %v1272
        %v4207 = vunpack.c.l.b16 %v1273
        %v4208 = vunpack.c.h.b16 %v1273
        %v4209 = vunpack.c.l.b16 %v1274
        %v4210 = vunpack.c.h.b16 %v1274
        %v4211 = vunpack.c.l.b16 %v1275
        %v4212 = vunpack.c.h.b16 %v1275
        %v4213 = vunpack.c.l.b16 %v1276
        %v4214 = vunpack.c.h.b16 %v1276
        %v4215 = vunpack.c.l.b16 %v1277
        %v4216 = vunpack.c.h.b16 %v1277
        %v4217 = vunpack.c.l.b16 %v1278
        %v4218 = vunpack.c.h.b16 %v1278
        %v4219 = vunpack.c.l.b16 %v1279
        %v4220 = vunpack.c.h.b16 %v1279
        %v4221 = vunpack.c.l.b16 %v1280
        %v4222 = vunpack.c.h.b16 %v1280
        %v4223 = vunpack.c.l.b16 %v1281
        %v4224 = vunpack.c.h.b16 %v1281
        %v4225 = vunpack.c.l.b16 %v1282
        %v4226 = vunpack.c.h.b16 %v1282
        %v4227 = vunpack.c.l.b16 %v1283
        %v4228 = vunpack.c.h.b16 %v1283
        %v4229 = vunpack.c.l.b16 %v1284
        %v4230 = vunpack.c.h.b16 %v1284
        %v4231 = vunpack.c.l.b16 %v1285
        %v4232 = vunpack.c.h.b16 %v1285
        %v4233 = vunpack.c.l.b16 %v1286
        %v4234 = vunpack.c.h.b16 %v1286
        %v4235 = vunpack.c.l.b16 %v1287
        %v4236 = vunpack.c.h.b16 %v1287
        %v4237 = vunpack.c.l.b16 %v1288
        %v4238 = vunpack.c.h.b16 %v1288
        %v4239 = vunpack.c.l.b16 %v1289
        %v4240 = vunpack.c.h.b16 %v1289
        %v4241 = vunpack.c.l.b16 %v1290
        %v4242 = vunpack.c.h.b16 %v1290
        %v4243 = vunpack.c.l.b16 %v1291
        %v4244 = vunpack.c.h.b16 %v1291
        %v4245 = vunpack.c.l.b16 %v1292
        %v4246 = vunpack.c.h.b16 %v1292
        %v4247 = vunpack.c.l.b16 %v1293
        %v4248 = vunpack.c.h.b16 %v1293
        %v4249 = vunpack.c.l.b16 %v1294
        %v4250 = vunpack.c.h.b16 %v1294
        %v4251 = vunpack.c.l.b16 %v1295
        %v4252 = vunpack.c.h.b16 %v1295
        %v4253 = vunpack.c.l.b16 %v1296
        %v4254 = vunpack.c.h.b16 %v1296
        %v4255 = vunpack.c.l.b16 %v1297
        %v4256 = vunpack.c.h.b16 %v1297
        %v4257 = vunpack.c.l.b16 %v1298
        %v4258 = vunpack.c.h.b16 %v1298
        %v4259 = vunpack.c.l.b16 %v1299
        %v4260 = vunpack.c.h.b16 %v1299
        %v4261 = vunpack.c.l.b16 %v1300
        %v4262 = vunpack.c.h.b16 %v1300
        %v4263 = vunpack.c.l.b16 %v1301
        %v4264 = vunpack.c.h.b16 %v1301
        %v4265 = vunpack.c.l.b16 %v1302
        %v4266 = vunpack.c.h.b16 %v1302
        %v4267 = vunpack.c.l.b16 %v1303
        %v4268 = vunpack.c.h.b16 %v1303
        %v4269 = vunpack.c.l.b16 %v1304
        %v4270 = vunpack.c.h.b16 %v1304
        %v4271 = vunpack.c.l.b16 %v1305
        %v4272 = vunpack.c.h.b16 %v1305
        %v4273 = vunpack.c.l.b16 %v1306
        %v4274 = vunpack.c.h.b16 %v1306
        %v4275 = vunpack.c.l.b16 %v1307
        %v4276 = vunpack.c.h.b16 %v1307
        %v4277 = vunpack.c.l.b16 %v1308
        %v4278 = vunpack.c.h.b16 %v1308
        %v4279 = vunpack.c.l.b16 %v1309
        %v4280 = vunpack.c.h.b16 %v1309
        %v4281 = vunpack.c.l.b16 %v1310
        %v4282 = vunpack.c.h.b16 %v1310
        %v4283 = vunpack.c.l.b16 %v1311
        %v4284 = vunpack.c.h.b16 %v1311
        %v4285 = vunpack.c.l.b16 %v1312
        %v4286 = vunpack.c.h.b16 %v1312
        %v4287 = vunpack.c.l.b16 %v1313
        %v4288 = vunpack.c.h.b16 %v1313
        %v4289 = vunpack.c.l.b16 %v1314
        %v4290 = vunpack.c.h.b16 %v1314
        %v4291 = vunpack.c.l.b16 %v1315
        %v4292 = vunpack.c.h.b16 %v1315
        %v4293 = vunpack.c.l.b16 %v1316
        %v4294 = vunpack.c.h.b16 %v1316
        %v4295 = vunpack.c.l.b16 %v1317
        %v4296 = vunpack.c.h.b16 %v1317
        %v4297 = vunpack.c.l.b16 %v1318
        %v4298 = vunpack.c.h.b16 %v1318
        %v4299 = vunpack.c.l.b16 %v1319
        %v4300 = vunpack.c.h.b16 %v1319
        %v4301 = vunpack.c.l.b16 %v1320
        %v4302 = vunpack.c.h.b16 %v1320
        %v4303 = vunpack.c.l.b16 %v1321
        %v4304 = vunpack.c.h.b16 %v1321
        %v4305 = vunpack.c.l.b16 %v1322
        %v4306 = vunpack.c.h.b16 %v1322
        %v4307 = vunpack.c.l.b16 %v1323
        %v4308 = vunpack.c.h.b16 %v1323
        %v4309 = vunpack.c.l.b16 %v1324
        %v4310 = vunpack.c.h.b16 %v1324
        %v4311 = vunpack.c.l.b16 %v1325
        %v4312 = vunpack.c.h.b16 %v1325
        %v4313 = vunpack.c.l.b16 %v1326
        %v4314 = vunpack.c.h.b16 %v1326
        %v4315 = vunpack.c.l.b16 %v1327
        %v4316 = vunpack.c.h.b16 %v1327
        %v4317 = vunpack.c.l.b16 %v1328
        %v4318 = vunpack.c.h.b16 %v1328
        %v4319 = vunpack.c.l.b16 %v1329
        %v4320 = vunpack.c.h.b16 %v1329
        %v4321 = vunpack.c.l.b16 %v1330
        %v4322 = vunpack.c.h.b16 %v1330
        %v4323 = vunpack.c.l.b16 %v1331
        %v4324 = vunpack.c.h.b16 %v1331
        %v4325 = vunpack.c.l.b16 %v1332
        %v4326 = vunpack.c.h.b16 %v1332
        %v4327 = vunpack.c.l.b16 %v1333
        %v4328 = vunpack.c.h.b16 %v1333
        %v4329 = vunpack.c.l.b16 %v1334
        %v4330 = vunpack.c.h.b16 %v1334
        %v4331 = vunpack.c.l.b16 %v1335
        %v4332 = vunpack.c.h.b16 %v1335
        %v4333 = vunpack.c.l.b16 %v1336
        %v4334 = vunpack.c.h.b16 %v1336
        %v4335 = vunpack.c.l.b16 %v1337
        %v4336 = vunpack.c.h.b16 %v1337
        %v4337 = vunpack.c.l.b16 %v1338
        %v4338 = vunpack.c.h.b16 %v1338
        %v4339 = vunpack.c.l.b16 %v1339
        %v4340 = vunpack.c.h.b16 %v1339
        %v4341 = vunpack.c.l.b16 %v1340
        %v4342 = vunpack.c.h.b16 %v1340
        %v4343 = vunpack.c.l.b16 %v1341
        %v4344 = vunpack.c.h.b16 %v1341
        %v4345 = vunpack.c.l.b16 %v1342
        %v4346 = vunpack.c.h.b16 %v1342
        %v4347 = vunpack.c.l.b16 %v1343
        %v4348 = vunpack.c.h.b16 %v1343
        %v4349 = vunpack.c.l.b16 %v1344
        %v4350 = vunpack.c.h.b16 %v1344
        %v4351 = vunpack.c.l.b16 %v1345
        %v4352 = vunpack.c.h.b16 %v1345
        %v4353 = vunpack.c.l.b16 %v1346
        %v4354 = vunpack.c.h.b16 %v1346
        %v4355 = vunpack.c.l.b16 %v1347
        %v4356 = vunpack.c.h.b16 %v1347
        %v4357 = vunpack.c.l.b16 %v1348
        %v4358 = vunpack.c.h.b16 %v1348
        %v4359 = vunpack.c.l.b16 %v1349
        %v4360 = vunpack.c.h.b16 %v1349
        %v4361 = vunpack.c.l.b16 %v1350
        %v4362 = vunpack.c.h.b16 %v1350
        %v4363 = vunpack.c.l.b16 %v1351
        %v4364 = vunpack.c.h.b16 %v1351
        %v4365 = vunpack.c.l.b16 %v1352
        %v4366 = vunpack.c.h.b16 %v1352
        %v4367 = vunpack.c.l.b16 %v1353
        %v4368 = vunpack.c.h.b16 %v1353
        %v4369 = vunpack.c.l.b16 %v1354
        %v4370 = vunpack.c.h.b16 %v1354
        %v4371 = vunpack.c.l.b16 %v1355
        %v4372 = vunpack.c.h.b16 %v1355
        %v4373 = vunpack.c.l.b16 %v1356
        %v4374 = vunpack.c.h.b16 %v1356
        %v4375 = vunpack.c.l.b16 %v1357
        %v4376 = vunpack.c.h.b16 %v1357
        %v4377 = vunpack.c.l.b16 %v1358
        %v4378 = vunpack.c.h.b16 %v1358
        %v4379 = vunpack.c.l.b16 %v1359
        %v4380 = vunpack.c.h.b16 %v1359
        %v4381 = vunpack.c.l.b16 %v1360
        %v4382 = vunpack.c.h.b16 %v1360
        %v4383 = vunpack.c.l.b16 %v1361
        %v4384 = vunpack.c.h.b16 %v1361
        %v4385 = vunpack.c.l.b16 %v1362
        %v4386 = vunpack.c.h.b16 %v1362
        %v4387 = vunpack.c.l.b16 %v1363
        %v4388 = vunpack.c.h.b16 %v1363
        %v4389 = vunpack.c.l.b16 %v1364
        %v4390 = vunpack.c.h.b16 %v1364
        %v4391 = vunpack.c.l.b16 %v1365
        %v4392 = vunpack.c.h.b16 %v1365
        %v4393 = vunpack.c.l.b16 %v1366
        %v4394 = vunpack.c.h.b16 %v1366
        %v4395 = vunpack.c.l.b16 %v1367
        %v4396 = vunpack.c.h.b16 %v1367
        %v4397 = vunpack.c.l.b16 %v1368
        %v4398 = vunpack.c.h.b16 %v1368
        %v4399 = vunpack.c.l.b16 %v1369
        %v4400 = vunpack.c.h.b16 %v1369
        %v4401 = vunpack.c.l.b16 %v1370
        %v4402 = vunpack.c.h.b16 %v1370
        %v4403 = vunpack.c.l.b16 %v1371
        %v4404 = vunpack.c.h.b16 %v1371
        %v4405 = vunpack.c.l.b16 %v1372
        %v4406 = vunpack.c.h.b16 %v1372
        %v4407 = vunpack.c.l.b16 %v1373
        %v4408 = vunpack.c.h.b16 %v1373
        %v4409 = vunpack.c.l.b16 %v1374
        %v4410 = vunpack.c.h.b16 %v1374
        %v4411 = vunpack.c.l.b16 %v1375
        %v4412 = vunpack.c.h.b16 %v1375
        %v4413 = vunpack.c.l.b16 %v1376
        %v4414 = vunpack.c.h.b16 %v1376
        %v4415 = vunpack.c.l.b16 %v1377
        %v4416 = vunpack.c.h.b16 %v1377
        %v4417 = vunpack.c.l.b16 %v1378
        %v4418 = vunpack.c.h.b16 %v1378
        %v4419 = vunpack.c.l.b16 %v1379
        %v4420 = vunpack.c.h.b16 %v1379
        %v4421 = vunpack.c.l.b16 %v1380
        %v4422 = vunpack.c.h.b16 %v1380
        %v4423 = vunpack.c.l.b16 %v1381
        %v4424 = vunpack.c.h.b16 %v1381
        %v4425 = vunpack.c.l.b16 %v1382
        %v4426 = vunpack.c.h.b16 %v1382
        %v4427 = vunpack.c.l.b16 %v1383
        %v4428 = vunpack.c.h.b16 %v1383
        %v4429 = vunpack.c.l.b16 %v1384
        %v4430 = vunpack.c.h.b16 %v1384
        %v4431 = vunpack.c.l.b16 %v1385
        %v4432 = vunpack.c.h.b16 %v1385
        %v4433 = vunpack.c.l.b16 %v1386
        %v4434 = vunpack.c.h.b16 %v1386
        %v4435 = vunpack.c.l.b16 %v1387
        %v4436 = vunpack.c.h.b16 %v1387
        %v4437 = vunpack.c.l.b16 %v1388
        %v4438 = vunpack.c.h.b16 %v1388
        %v4439 = vunpack.c.l.b16 %v1389
        %v4440 = vunpack.c.h.b16 %v1389
        %v4441 = vunpack.c.l.b16 %v1390
        %v4442 = vunpack.c.h.b16 %v1390
        %v4443 = vunpack.c.l.b16 %v1391
        %v4444 = vunpack.c.h.b16 %v1391
        %v4445 = vunpack.c.l.b16 %v1392
        %v4446 = vunpack.c.h.b16 %v1392
        %v4447 = vunpack.c.l.b16 %v1393
        %v4448 = vunpack.c.h.b16 %v1393
        %v4449 = vunpack.c.l.b16 %v1394
        %v4450 = vunpack.c.h.b16 %v1394
        %v4451 = vunpack.c.l.b16 %v1395
        %v4452 = vunpack.c.h.b16 %v1395
        %v4453 = vunpack.c.l.b16 %v1396
        %v4454 = vunpack.c.h.b16 %v1396
        %v4455 = vunpack.c.l.b16 %v1397
        %v4456 = vunpack.c.h.b16 %v1397
        %v4457 = vunpack.c.l.b16 %v1398
        %v4458 = vunpack.c.h.b16 %v1398
        %v4459 = vunpack.c.l.b16 %v1399
        %v4460 = vunpack.c.h.b16 %v1399
        %v4461 = vunpack.c.l.b16 %v1400
        %v4462 = vunpack.c.h.b16 %v1400
        %v4463 = vunpack.c.l.b16 %v1401
        %v4464 = vunpack.c.h.b16 %v1401
        %v4465 = vunpack.c.l.b16 %v1402
        %v4466 = vunpack.c.h.b16 %v1402
        %v4467 = vunpack.c.l.b16 %v1403
        %v4468 = vunpack.c.h.b16 %v1403
        %v4469 = vunpack.c.l.b16 %v1404
        %v4470 = vunpack.c.h.b16 %v1404
        %v4471 = vunpack.c.l.b16 %v1405
        %v4472 = vunpack.c.h.b16 %v1405
        %v4473 = vunpack.c.l.b16 %v1406
        %v4474 = vunpack.c.h.b16 %v1406
        %v4475 = vunpack.c.l.b16 %v1407
        %v4476 = vunpack.c.h.b16 %v1407
        %v4477 = vunpack.c.l.b16 %v1408
        %v4478 = vunpack.c.h.b16 %v1408
        %v4479 = vunpack.c.l.b16 %v1409
        %v4480 = vunpack.c.h.b16 %v1409
        %v4481 = vunpack.c.l.b16 %v1410
        %v4482 = vunpack.c.h.b16 %v1410
        %v4483 = vunpack.c.l.b16 %v1411
        %v4484 = vunpack.c.h.b16 %v1411
        %v4485 = vunpack.c.l.b16 %v1412
        %v4486 = vunpack.c.h.b16 %v1412
        %v4487 = vunpack.c.l.b16 %v1413
        %v4488 = vunpack.c.h.b16 %v1413
        %v4489 = vunpack.c.l.b16 %v1414
        %v4490 = vunpack.c.h.b16 %v1414
        %v4491 = vunpack.c.l.b16 %v1415
        %v4492 = vunpack.c.h.b16 %v1415
        %v4493 = vunpack.c.l.b16 %v1416
        %v4494 = vunpack.c.h.b16 %v1416
        %v4495 = vunpack.c.l.b16 %v1417
        %v4496 = vunpack.c.h.b16 %v1417
        %v4497 = vunpack.c.l.b16 %v1418
        %v4498 = vunpack.c.h.b16 %v1418
        %v4499 = vunpack.c.l.b16 %v1419
        %v4500 = vunpack.c.h.b16 %v1419
        %v4501 = vunpack.c.l.b16 %v1420
        %v4502 = vunpack.c.h.b16 %v1420
        %v4503 = vunpack.c.l.b16 %v1421
        %v4504 = vunpack.c.h.b16 %v1421
        %v4505 = vunpack.c.l.b16 %v1422
        %v4506 = vunpack.c.h.b16 %v1422
        %v4507 = vunpack.c.l.b16 %v1423
        %v4508 = vunpack.c.h.b16 %v1423
        %v4509 = vunpack.c.l.b16 %v1424
        %v4510 = vunpack.c.h.b16 %v1424
        %v4511 = vunpack.c.l.b16 %v1425
        %v4512 = vunpack.c.h.b16 %v1425
        %v4513 = vunpack.c.l.b16 %v1426
        %v4514 = vunpack.c.h.b16 %v1426
        %v4515 = vunpack.c.l.b16 %v1427
        %v4516 = vunpack.c.h.b16 %v1427
        %v4517 = vunpack.c.l.b16 %v1428
        %v4518 = vunpack.c.h.b16 %v1428
        %v4519 = vunpack.c.l.b16 %v1429
        %v4520 = vunpack.c.h.b16 %v1429
        %v4521 = vunpack.c.l.b16 %v1430
        %v4522 = vunpack.c.h.b16 %v1430
        %v4523 = vunpack.c.l.b16 %v1431
        %v4524 = vunpack.c.h.b16 %v1431
        %v4525 = vunpack.c.l.b16 %v1432
        %v4526 = vunpack.c.h.b16 %v1432
        %v4527 = vunpack.c.l.b16 %v1433
        %v4528 = vunpack.c.h.b16 %v1433
        %v4529 = vunpack.c.l.b16 %v1434
        %v4530 = vunpack.c.h.b16 %v1434
        %v4531 = vunpack.c.l.b16 %v1435
        %v4532 = vunpack.c.h.b16 %v1435
        %v4533 = vunpack.c.l.b16 %v1436
        %v4534 = vunpack.c.h.b16 %v1436
        %v4535 = vunpack.c.l.b16 %v1437
        %v4536 = vunpack.c.h.b16 %v1437
        %v4537 = vunpack.c.l.b16 %v1438
        %v4538 = vunpack.c.h.b16 %v1438
        %v4539 = vunpack.c.l.b16 %v1439
        %v4540 = vunpack.c.h.b16 %v1439
        %v4541 = vunpack.c.l.b16 %v1440
        %v4542 = vunpack.c.h.b16 %v1440
        %v4543 = vunpack.c.l.b16 %v1441
        %v4544 = vunpack.c.h.b16 %v1441
        %v4545 = vunpack.c.l.b16 %v1442
        %v4546 = vunpack.c.h.b16 %v1442
        %v4547 = vunpack.c.l.b16 %v1443
        %v4548 = vunpack.c.h.b16 %v1443
        %v4549 = vunpack.c.l.b16 %v1444
        %v4550 = vunpack.c.h.b16 %v1444
        %v4551 = vunpack.c.l.b16 %v1445
        %v4552 = vunpack.c.h.b16 %v1445
        %v4553 = vunpack.c.l.b16 %v1446
        %v4554 = vunpack.c.h.b16 %v1446
        %v4555 = vunpack.c.l.b16 %v1447
        %v4556 = vunpack.c.h.b16 %v1447
        %v4557 = vunpack.c.l.b16 %v1448
        %v4558 = vunpack.c.h.b16 %v1448
        %v4559 = vunpack.c.l.b16 %v1449
        %v4560 = vunpack.c.h.b16 %v1449
        %v4561 = vunpack.c.l.b16 %v1450
        %v4562 = vunpack.c.h.b16 %v1450
        %v4563 = vunpack.c.l.b16 %v1451
        %v4564 = vunpack.c.h.b16 %v1451
        %v4565 = vunpack.c.l.b16 %v1452
        %v4566 = vunpack.c.h.b16 %v1452
        %v4567 = vunpack.c.l.b16 %v1453
        %v4568 = vunpack.c.h.b16 %v1453
        %v4569 = vunpack.c.l.b16 %v1454
        %v4570 = vunpack.c.h.b16 %v1454
        %v4571 = vunpack.c.l.b16 %v1455
        %v4572 = vunpack.c.h.b16 %v1455
        %v4573 = vunpack.c.l.b16 %v1456
        %v4574 = vunpack.c.h.b16 %v1456
        %v4575 = vunpack.c.l.b16 %v1457
        %v4576 = vunpack.c.h.b16 %v1457
        %v4577 = vunpack.c.l.b16 %v1458
        %v4578 = vunpack.c.h.b16 %v1458
        %v4579 = vunpack.c.l.b16 %v1459
        %v4580 = vunpack.c.h.b16 %v1459
        %v4581 = vunpack.c.l.b16 %v1460
        %v4582 = vunpack.c.h.b16 %v1460
        %v4583 = vunpack.c.l.b16 %v1461
        %v4584 = vunpack.c.h.b16 %v1461
        %v4585 = vunpack.c.l.b16 %v1462
        %v4586 = vunpack.c.h.b16 %v1462
        %v4587 = vunpack.c.l.b16 %v1463
        %v4588 = vunpack.c.h.b16 %v1463
        %v4589 = vunpack.c.l.b16 %v1464
        %v4590 = vunpack.c.h.b16 %v1464
        %v4591 = vunpack.c.l.b16 %v1465
        %v4592 = vunpack.c.h.b16 %v1465
        %v4593 = vunpack.c.l.b16 %v1466
        %v4594 = vunpack.c.h.b16 %v1466
        %v4595 = vunpack.c.l.b16 %v1467
        %v4596 = vunpack.c.h.b16 %v1467
        %v4597 = vunpack.c.l.b16 %v1468
        %v4598 = vunpack.c.h.b16 %v1468
        %v4599 = vunpack.c.l.b16 %v1469
        %v4600 = vunpack.c.h.b16 %v1469
        %v4601 = vunpack.c.l.b16 %v1470
        %v4602 = vunpack.c.h.b16 %v1470
        %v4603 = vunpack.c.l.b16 %v1471
        %v4604 = vunpack.c.h.b16 %v1471
        %v4605 = vunpack.c.l.b16 %v1472
        %v4606 = vunpack.c.h.b16 %v1472
        %v4607 = vunpack.c.l.b16 %v1473
        %v4608 = vunpack.c.h.b16 %v1473
        %v4609 = vunpack.c.l.b16 %v1474
        %v4610 = vunpack.c.h.b16 %v1474
        %v4611 = vunpack.c.l.b16 %v1475
        %v4612 = vunpack.c.h.b16 %v1475
        %v4613 = vunpack.c.l.b16 %v1476
        %v4614 = vunpack.c.h.b16 %v1476
        %v4615 = vunpack.c.l.b16 %v1477
        %v4616 = vunpack.c.h.b16 %v1477
        %v4617 = vunpack.c.l.b16 %v1478
        %v4618 = vunpack.c.h.b16 %v1478
        %v4619 = vunpack.c.l.b16 %v1479
        %v4620 = vunpack.c.h.b16 %v1479
        %v4621 = vunpack.c.l.b16 %v1480
        %v4622 = vunpack.c.h.b16 %v1480
        %v4623 = vunpack.c.l.b16 %v1481
        %v4624 = vunpack.c.h.b16 %v1481
        %v4625 = vunpack.c.l.b16 %v1482
        %v4626 = vunpack.c.h.b16 %v1482
        %v4627 = vunpack.c.l.b16 %v1483
        %v4628 = vunpack.c.h.b16 %v1483
        %v4629 = vunpack.c.l.b16 %v1484
        %v4630 = vunpack.c.h.b16 %v1484
        %v4631 = vunpack.c.l.b16 %v1485
        %v4632 = vunpack.c.h.b16 %v1485
        %v4633 = vunpack.c.l.b16 %v1486
        %v4634 = vunpack.c.h.b16 %v1486
        %v4635 = vunpack.c.l.b16 %v1487
        %v4636 = vunpack.c.h.b16 %v1487
        %v4637 = vunpack.c.l.b16 %v1488
        %v4638 = vunpack.c.h.b16 %v1488
        %v4639 = vunpack.c.l.b16 %v1489
        %v4640 = vunpack.c.h.b16 %v1489
        %v4641 = vunpack.c.l.b16 %v1490
        %v4642 = vunpack.c.h.b16 %v1490
        %v4643 = vunpack.c.l.b16 %v1491
        %v4644 = vunpack.c.h.b16 %v1491
        %v4645 = vunpack.c.l.b16 %v1492
        %v4646 = vunpack.c.h.b16 %v1492
        %v4647 = vunpack.c.l.b16 %v1493
        %v4648 = vunpack.c.h.b16 %v1493
        %v4649 = vunpack.c.l.b16 %v1494
        %v4650 = vunpack.c.h.b16 %v1494
        %v4651 = vunpack.c.l.b16 %v1495
        %v4652 = vunpack.c.h.b16 %v1495
        %v4653 = vunpack.c.l.b16 %v1496
        %v4654 = vunpack.c.h.b16 %v1496
        %v4655 = vunpack.c.l.b16 %v1497
        %v4656 = vunpack.c.h.b16 %v1497
        %v4657 = vunpack.c.l.b16 %v1498
        %v4658 = vunpack.c.h.b16 %v1498
        %v4659 = vunpack.c.l.b16 %v1499
        %v4660 = vunpack.c.h.b16 %v1499
        %v4661 = vunpack.c.l.b16 %v1500
        %v4662 = vunpack.c.h.b16 %v1500
        %v4663 = vunpack.c.l.b16 %v1501
        %v4664 = vunpack.c.h.b16 %v1501
        %v4665 = vunpack.c.l.b16 %v1502
        %v4666 = vunpack.c.h.b16 %v1502
        %v4667 = vunpack.c.l.b16 %v1503
        %v4668 = vunpack.c.h.b16 %v1503
        %v4669 = vunpack.c.l.b16 %v1504
        %v4670 = vunpack.c.h.b16 %v1504
        %v4671 = vunpack.c.l.b16 %v1505
        %v4672 = vunpack.c.h.b16 %v1505
        %v4673 = vunpack.c.l.b16 %v1506
        %v4674 = vunpack.c.h.b16 %v1506
        %v4675 = vunpack.c.l.b16 %v1507
        %v4676 = vunpack.c.h.b16 %v1507
        %v4677 = vunpack.c.l.b16 %v1508
        %v4678 = vunpack.c.h.b16 %v1508
        %v4679 = vunpack.c.l.b16 %v1509
        %v4680 = vunpack.c.h.b16 %v1509
        %v4681 = vunpack.c.l.b16 %v1510
        %v4682 = vunpack.c.h.b16 %v1510
        %v4683 = vunpack.c.l.b16 %v1511
        %v4684 = vunpack.c.h.b16 %v1511
        %v4685 = vunpack.c.l.b16 %v1512
        %v4686 = vunpack.c.h.b16 %v1512
        %v4687 = vunpack.c.l.b16 %v1513
        %v4688 = vunpack.c.h.b16 %v1513
        %v4689 = vunpack.c.l.b16 %v1514
        %v4690 = vunpack.c.h.b16 %v1514
        %v4691 = vunpack.c.l.b16 %v1515
        %v4692 = vunpack.c.h.b16 %v1515
        %v4693 = vunpack.c.l.b16 %v1516
        %v4694 = vunpack.c.h.b16 %v1516
        %v4695 = vunpack.c.l.b16 %v1517
        %v4696 = vunpack.c.h.b16 %v1517
        %v4697 = vunpack.c.l.b16 %v1518
        %v4698 = vunpack.c.h.b16 %v1518
        %v4699 = vunpack.c.l.b16 %v1519
        %v4700 = vunpack.c.h.b16 %v1519
        %v4701 = vunpack.c.l.b16 %v1520
        %v4702 = vunpack.c.h.b16 %v1520
        %v4703 = vunpack.c.l.b16 %v1521
        %v4704 = vunpack.c.h.b16 %v1521
        %v4705 = vunpack.c.l.b16 %v1522
        %v4706 = vunpack.c.h.b16 %v1522
        %v4707 = vunpack.c.l.b16 %v1523
        %v4708 = vunpack.c.h.b16 %v1523
        %v4709 = vunpack.c.l.b16 %v1524
        %v4710 = vunpack.c.h.b16 %v1524
        %v4711 = vunpack.c.l.b16 %v1525
        %v4712 = vunpack.c.h.b16 %v1525
        %v4713 = vunpack.c.l.b16 %v1526
        %v4714 = vunpack.c.h.b16 %v1526
        %v4715 = vunpack.c.l.b16 %v1527
        %v4716 = vunpack.c.h.b16 %v1527
        %v4717 = vunpack.c.l.b16 %v1528
        %v4718 = vunpack.c.h.b16 %v1528
        %v4719 = vunpack.c.l.b16 %v1529
        %v4720 = vunpack.c.h.b16 %v1529
        %v4721 = vunpack.c.l.b16 %v1530
        %v4722 = vunpack.c.h.b16 %v1530
        %v4723 = vunpack.c.l.b16 %v1531
        %v4724 = vunpack.c.h.b16 %v1531
        %v4725 = vunpack.c.l.b16 %v1532
        %v4726 = vunpack.c.h.b16 %v1532
        %v4727 = vunpack.c.l.b16 %v1533
        %v4728 = vunpack.c.h.b16 %v1533
        %v4729 = vunpack.c.l.b16 %v1534
        %v4730 = vunpack.c.h.b16 %v1534
        %v4731 = vunpack.c.l.b16 %v1535
        %v4732 = vunpack.c.h.b16 %v1535
        %v4733 = vunpack.c.l.b16 %v1536
        %v4734 = vunpack.c.h.b16 %v1536
        %v4735 = vunpack.c.l.b16 %v1537
        %v4736 = vunpack.c.h.b16 %v1537
        %v4737 = vunpack.c.l.b16 %v1538
        %v4738 = vunpack.c.h.b16 %v1538
        %v4739 = vunpack.c.l.b16 %v1539
        %v4740 = vunpack.c.h.b16 %v1539
        %v4741 = vunpack.c.l.b16 %v1540
        %v4742 = vunpack.c.h.b16 %v1540
        %v4743 = vunpack.c.l.b16 %v1541
        %v4744 = vunpack.c.h.b16 %v1541
        %v4745 = vunpack.c.l.b16 %v1542
        %v4746 = vunpack.c.h.b16 %v1542
        %v4747 = vunpack.c.l.b16 %v1543
        %v4748 = vunpack.c.h.b16 %v1543
        %v4749 = vunpack.c.l.b16 %v1544
        %v4750 = vunpack.c.h.b16 %v1544
        %v4751 = vunpack.c.l.b16 %v1545
        %v4752 = vunpack.c.h.b16 %v1545
        %v4753 = vunpack.c.l.b16 %v1546
        %v4754 = vunpack.c.h.b16 %v1546
        %v4755 = vunpack.c.l.b16 %v1547
        %v4756 = vunpack.c.h.b16 %v1547
        %v4757 = vunpack.c.l.b16 %v1548
        %v4758 = vunpack.c.h.b16 %v1548
        %v4759 = vunpack.c.l.b16 %v1549
        %v4760 = vunpack.c.h.b16 %v1549
        %v4761 = vunpack.c.l.b16 %v1550
        %v4762 = vunpack.c.h.b16 %v1550
        %v4763 = vunpack.c.l.b16 %v1551
        %v4764 = vunpack.c.h.b16 %v1551
        %v4765 = vunpack.c.l.b16 %v1552
        %v4766 = vunpack.c.h.b16 %v1552
        %v4767 = vunpack.c.l.b16 %v1553
        %v4768 = vunpack.c.h.b16 %v1553
        %v4769 = vunpack.c.l.b16 %v1554
        %v4770 = vunpack.c.h.b16 %v1554
        %v4771 = vunpack.c.l.b16 %v1555
        %v4772 = vunpack.c.h.b16 %v1555
        %v4773 = vunpack.c.l.b16 %v1556
        %v4774 = vunpack.c.h.b16 %v1556
        %v4775 = vunpack.c.l.b16 %v1557
        %v4776 = vunpack.c.h.b16 %v1557
        %v4777 = vunpack.c.l.b16 %v1558
        %v4778 = vunpack.c.h.b16 %v1558
        %v4779 = vunpack.c.l.b16 %v1559
        %v4780 = vunpack.c.h.b16 %v1559
        %v4781 = vunpack.c.l.b16 %v1560
        %v4782 = vunpack.c.h.b16 %v1560
        %v4783 = vunpack.c.l.b16 %v1561
        %v4784 = vunpack.c.h.b16 %v1561
        %v4785 = vunpack.c.l.b16 %v1562
        %v4786 = vunpack.c.h.b16 %v1562
        %v4787 = vunpack.c.l.b16 %v1563
        %v4788 = vunpack.c.h.b16 %v1563
        %v4789 = vunpack.c.l.b16 %v1564
        %v4790 = vunpack.c.h.b16 %v1564
        %v4791 = vunpack.c.l.b16 %v1565
        %v4792 = vunpack.c.h.b16 %v1565
        %v4793 = vunpack.c.l.b16 %v1566
        %v4794 = vunpack.c.h.b16 %v1566
        %v4795 = vunpack.c.l.b16 %v1567
        %v4796 = vunpack.c.h.b16 %v1567
        %v4797 = vunpack.c.l.b16 %v1568
        %v4798 = vunpack.c.h.b16 %v1568
        %v4799 = vunpack.c.l.b16 %v1569
        %v4800 = vunpack.c.h.b16 %v1569
        %v4801 = vunpack.c.l.b16 %v1570
        %v4802 = vunpack.c.h.b16 %v1570
        %v4803 = vunpack.c.l.b16 %v1571
        %v4804 = vunpack.c.h.b16 %v1571
        %v4805 = vunpack.c.l.b16 %v1572
        %v4806 = vunpack.c.h.b16 %v1572
        %v4807 = vunpack.c.l.b16 %v1573
        %v4808 = vunpack.c.h.b16 %v1573
        %v4809 = vunpack.c.l.b16 %v1574
        %v4810 = vunpack.c.h.b16 %v1574
        %v4811 = vunpack.c.l.b16 %v1575
        %v4812 = vunpack.c.h.b16 %v1575
        %v4813 = vunpack.c.l.b16 %v1576
        %v4814 = vunpack.c.h.b16 %v1576
        %v4815 = vunpack.c.l.b16 %v1577
        %v4816 = vunpack.c.h.b16 %v1577
        %v4817 = vunpack.c.l.b16 %v1578
        %v4818 = vunpack.c.h.b16 %v1578
        %v4819 = vunpack.c.l.b16 %v1579
        %v4820 = vunpack.c.h.b16 %v1579
        %v4821 = vunpack.c.l.b16 %v1580
        %v4822 = vunpack.c.h.b16 %v1580
        %v4823 = vunpack.c.l.b16 %v1581
        %v4824 = vunpack.c.h.b16 %v1581
        %v4825 = vunpack.c.l.b16 %v1582
        %v4826 = vunpack.c.h.b16 %v1582
        %v4827 = vunpack.c.l.b16 %v1583
        %v4828 = vunpack.c.h.b16 %v1583
        %v4829 = vunpack.c.l.b16 %v1584
        %v4830 = vunpack.c.h.b16 %v1584
        %v4831 = vunpack.c.l.b16 %v1585
        %v4832 = vunpack.c.h.b16 %v1585
        %v4833 = vunpack.c.l.b16 %v1586
        %v4834 = vunpack.c.h.b16 %v1586
        %v4835 = vunpack.c.l.b16 %v1587
        %v4836 = vunpack.c.h.b16 %v1587
        %v4837 = vunpack.c.l.b16 %v1588
        %v4838 = vunpack.c.h.b16 %v1588
        %v4839 = vunpack.c.l.b16 %v1589
        %v4840 = vunpack.c.h.b16 %v1589
        %v4841 = vunpack.c.l.b16 %v1590
        %v4842 = vunpack.c.h.b16 %v1590
        %v4843 = vunpack.c.l.b16 %v1591
        %v4844 = vunpack.c.h.b16 %v1591
        %v4845 = vunpack.c.l.b16 %v1592
        %v4846 = vunpack.c.h.b16 %v1592
        %v4847 = vunpack.c.l.b16 %v1593
        %v4848 = vunpack.c.h.b16 %v1593
        %v4849 = vunpack.c.l.b16 %v1594
        %v4850 = vunpack.c.h.b16 %v1594
        %v4851 = vunpack.c.l.b16 %v1595
        %v4852 = vunpack.c.h.b16 %v1595
        %v4853 = vunpack.c.l.b16 %v1596
        %v4854 = vunpack.c.h.b16 %v1596
        %v4855 = vunpack.c.l.b16 %v1597
        %v4856 = vunpack.c.h.b16 %v1597
        %v4857 = vunpack.c.l.b16 %v1598
        %v4858 = vunpack.c.h.b16 %v1598
        %v4859 = vunpack.c.l.b16 %v1599
        %v4860 = vunpack.c.h.b16 %v1599
        %v4861 = vunpack.c.l.b16 %v1600
        %v4862 = vunpack.c.h.b16 %v1600
        %v4863 = vunpack.c.l.b16 %v1601
        %v4864 = vunpack.c.h.b16 %v1601
        %v4865 = vunpack.c.l.b16 %v1602
        %v4866 = vunpack.c.h.b16 %v1602
        %v4867 = vunpack.c.l.b16 %v1603
        %v4868 = vunpack.c.h.b16 %v1603
        %v4869 = vunpack.c.l.b16 %v1604
        %v4870 = vunpack.c.h.b16 %v1604
        %v4871 = vunpack.c.l.b16 %v1605
        %v4872 = vunpack.c.h.b16 %v1605
        %v4873 = vunpack.c.l.b16 %v1606
        %v4874 = vunpack.c.h.b16 %v1606
        %v4875 = vunpack.c.l.b16 %v1607
        %v4876 = vunpack.c.h.b16 %v1607
        %v4877 = vunpack.c.l.b16 %v1608
        %v4878 = vunpack.c.h.b16 %v1608
        %v4879 = vunpack.c.l.b16 %v1609
        %v4880 = vunpack.c.h.b16 %v1609
        %v4881 = vunpack.c.l.b16 %v1610
        %v4882 = vunpack.c.h.b16 %v1610
        %v4883 = vunpack.c.l.b16 %v1611
        %v4884 = vunpack.c.h.b16 %v1611
        %v4885 = vunpack.c.l.b16 %v1612
        %v4886 = vunpack.c.h.b16 %v1612
        %v4887 = vunpack.c.l.b16 %v1613
        %v4888 = vunpack.c.h.b16 %v1613
        %v4889 = vunpack.c.l.b16 %v1614
        %v4890 = vunpack.c.h.b16 %v1614
        %v4891 = vunpack.c.l.b16 %v1615
        %v4892 = vunpack.c.h.b16 %v1615
        %v4893 = vunpack.c.l.b16 %v1616
        %v4894 = vunpack.c.h.b16 %v1616
        %v4895 = vunpack.c.l.b16 %v1617
        %v4896 = vunpack.c.h.b16 %v1617
        %v4897 = vunpack.c.l.b16 %v1618
        %v4898 = vunpack.c.h.b16 %v1618
        %v4899 = vunpack.c.l.b16 %v1619
        %v4900 = vunpack.c.h.b16 %v1619
        %v4901 = vunpack.c.l.b16 %v1620
        %v4902 = vunpack.c.h.b16 %v1620
        %v4903 = vunpack.c.l.b16 %v1621
        %v4904 = vunpack.c.h.b16 %v1621
        %v4905 = vunpack.c.l.b16 %v1622
        %v4906 = vunpack.c.h.b16 %v1622
        %v4907 = vunpack.c.l.b16 %v1623
        %v4908 = vunpack.c.h.b16 %v1623
        %v4909 = vunpack.c.l.b16 %v1624
        %v4910 = vunpack.c.h.b16 %v1624
        %v4911 = vunpack.c.l.b16 %v1625
        %v4912 = vunpack.c.h.b16 %v1625
        %v4913 = vunpack.c.l.b16 %v1626
        %v4914 = vunpack.c.h.b16 %v1626
        %v4915 = vunpack.c.l.b16 %v1627
        %v4916 = vunpack.c.h.b16 %v1627
        %v4917 = vunpack.c.l.b16 %v1628
        %v4918 = vunpack.c.h.b16 %v1628
        %v4919 = vunpack.c.l.b16 %v1629
        %v4920 = vunpack.c.h.b16 %v1629
        %v4921 = vunpack.c.l.b16 %v1630
        %v4922 = vunpack.c.h.b16 %v1630
        %v4923 = vunpack.c.l.b16 %v1631
        %v4924 = vunpack.c.h.b16 %v1631
        %v4925 = vunpack.c.l.b16 %v1632
        %v4926 = vunpack.c.h.b16 %v1632
        %v4927 = vunpack.c.l.b16 %v1633
        %v4928 = vunpack.c.h.b16 %v1633
        %v4929 = vunpack.c.l.b16 %v1634
        %v4930 = vunpack.c.h.b16 %v1634
        %v4931 = vunpack.c.l.b16 %v1635
        %v4932 = vunpack.c.h.b16 %v1635
        %v4933 = vunpack.c.l.b16 %v1636
        %v4934 = vunpack.c.h.b16 %v1636
        %v4935 = vunpack.c.l.b16 %v1637
        %v4936 = vunpack.c.h.b16 %v1637
        %v4937 = vunpack.c.l.b16 %v1638
        %v4938 = vunpack.c.h.b16 %v1638
        %v4939 = vunpack.c.l.b16 %v1639
        %v4940 = vunpack.c.h.b16 %v1639
        %v4941 = vunpack.c.l.b16 %v1640
        %v4942 = vunpack.c.h.b16 %v1640
        %v4943 = vunpack.c.l.b16 %v1641
        %v4944 = vunpack.c.h.b16 %v1641
        %v4945 = vunpack.c.l.b16 %v1642
        %v4946 = vunpack.c.h.b16 %v1642
        %v4947 = vunpack.c.l.b16 %v1643
        %v4948 = vunpack.c.h.b16 %v1643
        %v4949 = vunpack.c.l.b16 %v1644
        %v4950 = vunpack.c.h.b16 %v1644
        %v4951 = vunpack.c.l.b16 %v1645
        %v4952 = vunpack.c.h.b16 %v1645
        %v4953 = vunpack.c.l.b16 %v1646
        %v4954 = vunpack.c.h.b16 %v1646
        %v4955 = vunpack.c.l.b16 %v1647
        %v4956 = vunpack.c.h.b16 %v1647
        %v4957 = vunpack.c.l.b16 %v1648
        %v4958 = vunpack.c.h.b16 %v1648
        %v4959 = vunpack.c.l.b16 %v1649
        %v4960 = vunpack.c.h.b16 %v1649
        %v4961 = vunpack.c.l.b16 %v1650
        %v4962 = vunpack.c.h.b16 %v1650
        %v4963 = vunpack.c.l.b16 %v1651
        %v4964 = vunpack.c.h.b16 %v1651
        %v4965 = vunpack.c.l.b16 %v1652
        %v4966 = vunpack.c.h.b16 %v1652
        %v4967 = vunpack.c.l.b16 %v1653
        %v4968 = vunpack.c.h.b16 %v1653
        %v4969 = vunpack.c.l.b16 %v1654
        %v4970 = vunpack.c.h.b16 %v1654
        %v4971 = vunpack.c.l.b16 %v1655
        %v4972 = vunpack.c.h.b16 %v1655
        %v4973 = vunpack.c.l.b16 %v1656
        %v4974 = vunpack.c.h.b16 %v1656
        %v4975 = vunpack.c.l.b16 %v1657
        %v4976 = vunpack.c.h.b16 %v1657
        %v4977 = vunpack.c.l.b16 %v1658
        %v4978 = vunpack.c.h.b16 %v1658
        %v4979 = vunpack.c.l.b16 %v1659
        %v4980 = vunpack.c.h.b16 %v1659
        %v4981 = vunpack.c.l.b16 %v1660
        %v4982 = vunpack.c.h.b16 %v1660
        %v4983 = vunpack.c.l.b16 %v1661
        %v4984 = vunpack.c.h.b16 %v1661
        %v4985 = vunpack.c.l.b16 %v1662
        %v4986 = vunpack.c.h.b16 %v1662
        %v4987 = vunpack.c.l.b16 %v1663
        %v4988 = vunpack.c.h.b16 %v1663
        %v4989 = vunpack.c.l.b16 %v1664
        %v4990 = vunpack.c.h.b16 %v1664
        %v4991 = vunpack.c.l.b16 %v1665
        %v4992 = vunpack.c.h.b16 %v1665
        %v4993 = vunpack.c.l.b16 %v1666
        %v4994 = vunpack.c.h.b16 %v1666
        %v4995 = vunpack.c.l.b16 %v1667
        %v4996 = vunpack.c.h.b16 %v1667
        %v4997 = vunpack.c.l.b16 %v1668
        %v4998 = vunpack.c.h.b16 %v1668
        %v4999 = vunpack.c.l.b16 %v1669
        %v5000 = vunpack.c.h.b16 %v1669
        %v5001 = vunpack.c.l.b16 %v1670
        %v5002 = vunpack.c.h.b16 %v1670
        %v5003 = vunpack.c.l.b16 %v1671
        %v5004 = vunpack.c.h.b16 %v1671
        %v5005 = vunpack.c.l.b16 %v1672
        %v5006 = vunpack.c.h.b16 %v1672
        %v5007 = vunpack.c.l.b16 %v1673
        %v5008 = vunpack.c.h.b16 %v1673
        %v5009 = vunpack.c.l.b16 %v1674
        %v5010 = vunpack.c.h.b16 %v1674
        %v5011 = vunpack.c.l.b16 %v1675
        %v5012 = vunpack.c.h.b16 %v1675
        %v5013 = vunpack.c.l.b16 %v1676
        %v5014 = vunpack.c.h.b16 %v1676
        %v5015 = vunpack.c.l.b16 %v1677
        %v5016 = vunpack.c.h.b16 %v1677
        %v5017 = vunpack.c.l.b16 %v1678
        %v5018 = vunpack.c.h.b16 %v1678
        %v5019 = vunpack.c.l.b16 %v1679
        %v5020 = vunpack.c.h.b16 %v1679
        %v5021 = vunpack.c.l.b16 %v1680
        %v5022 = vunpack.c.h.b16 %v1680
        %v5023 = vunpack.c.l.b16 %v1681
        %v5024 = vunpack.c.h.b16 %v1681
        %v5025 = vunpack.c.l.b16 %v1682
        %v5026 = vunpack.c.h.b16 %v1682
        %v5027 = vunpack.c.l.b16 %v1683
        %v5028 = vunpack.c.h.b16 %v1683
        %v5029 = vunpack.c.l.b16 %v1684
        %v5030 = vunpack.c.h.b16 %v1684
        %v5031 = vunpack.c.l.b16 %v1685
        %v5032 = vunpack.c.h.b16 %v1685
        %v5033 = vunpack.c.l.b16 %v1686
        %v5034 = vunpack.c.h.b16 %v1686
        %v5035 = vunpack.c.l.b16 %v1687
        %v5036 = vunpack.c.h.b16 %v1687
        %v5037 = vunpack.c.l.b16 %v1688
        %v5038 = vunpack.c.h.b16 %v1688
        %v5039 = vunpack.c.l.b16 %v1689
        %v5040 = vunpack.c.h.b16 %v1689
        %v5041 = vunpack.c.l.b16 %v1690
        %v5042 = vunpack.c.h.b16 %v1690
        %v5043 = vunpack.c.l.b16 %v1691
        %v5044 = vunpack.c.h.b16 %v1691
        %v5045 = vunpack.c.l.b16 %v1692
        %v5046 = vunpack.c.h.b16 %v1692
        %v5047 = vunpack.c.l.b16 %v1693
        %v5048 = vunpack.c.h.b16 %v1693
        %v5049 = vunpack.c.l.b16 %v1694
        %v5050 = vunpack.c.h.b16 %v1694
        %v5051 = vunpack.c.l.b16 %v1695
        %v5052 = vunpack.c.h.b16 %v1695
        %v5053 = vunpack.c.l.b16 %v1696
        %v5054 = vunpack.c.h.b16 %v1696
        %v5055 = vunpack.c.l.b16 %v1697
        %v5056 = vunpack.c.h.b16 %v1697
        %v5057 = vunpack.c.l.b16 %v1698
        %v5058 = vunpack.c.h.b16 %v1698
        %v5059 = vunpack.c.l.b16 %v1699
        %v5060 = vunpack.c.h.b16 %v1699
        %v5061 = vunpack.c.l.b16 %v1700
        %v5062 = vunpack.c.h.b16 %v1700
        %v5063 = vunpack.c.l.b16 %v1701
        %v5064 = vunpack.c.h.b16 %v1701
        %v5065 = vunpack.c.l.b16 %v1702
        %v5066 = vunpack.c.h.b16 %v1702
        %v5067 = vunpack.c.l.b16 %v1703
        %v5068 = vunpack.c.h.b16 %v1703
        %v5069 = vunpack.c.l.b16 %v1704
        %v5070 = vunpack.c.h.b16 %v1704
        %v5071 = vunpack.c.l.b16 %v1705
        %v5072 = vunpack.c.h.b16 %v1705
        %v5073 = vunpack.c.l.b16 %v1706
        %v5074 = vunpack.c.h.b16 %v1706
        %v5075 = vunpack.c.l.b16 %v1707
        %v5076 = vunpack.c.h.b16 %v1707
        %v5077 = vunpack.c.l.b16 %v1708
        %v5078 = vunpack.c.h.b16 %v1708
        %v5079 = vunpack.c.l.b16 %v1709
        %v5080 = vunpack.c.h.b16 %v1709
        %v5081 = vunpack.c.l.b16 %v1710
        %v5082 = vunpack.c.h.b16 %v1710
        %v5083 = vunpack.c.l.b16 %v1711
        %v5084 = vunpack.c.h.b16 %v1711
        %v5085 = vunpack.c.l.b16 %v1712
        %v5086 = vunpack.c.h.b16 %v1712
        %v5087 = vunpack.c.l.b16 %v1713
        %v5088 = vunpack.c.h.b16 %v1713
        %v5089 = vunpack.c.l.b16 %v1714
        %v5090 = vunpack.c.h.b16 %v1714
        %v5091 = vunpack.c.l.b16 %v1715
        %v5092 = vunpack.c.h.b16 %v1715
        %v5093 = vunpack.c.l.b16 %v1716
        %v5094 = vunpack.c.h.b16 %v1716
        %v5095 = vunpack.c.l.b16 %v1717
        %v5096 = vunpack.c.h.b16 %v1717
        %v5097 = vunpack.c.l.b16 %v1718
        %v5098 = vunpack.c.h.b16 %v1718
        %v5099 = vunpack.c.l.b16 %v1719
        %v5100 = vunpack.c.h.b16 %v1719
        %v5101 = vunpack.c.l.b16 %v1720
        %v5102 = vunpack.c.h.b16 %v1720
        %v5103 = vunpack.c.l.b16 %v1721
        %v5104 = vunpack.c.h.b16 %v1721
        %v5105 = vunpack.c.l.b16 %v1722
        %v5106 = vunpack.c.h.b16 %v1722
        %v5107 = vunpack.c.l.b16 %v1723
        %v5108 = vunpack.c.h.b16 %v1723
        %v5109 = vunpack.c.l.b16 %v1724
        %v5110 = vunpack.c.h.b16 %v1724
        %v5111 = vunpack.c.l.b16 %v1725
        %v5112 = vunpack.c.h.b16 %v1725
        %v5113 = vunpack.c.l.b16 %v1726
        %v5114 = vunpack.c.h.b16 %v1726
        %v5115 = vunpack.c.l.b16 %v1727
        %v5116 = vunpack.c.h.b16 %v1727
        %v5117 = vunpack.c.l.b16 %v1728
        %v5118 = vunpack.c.h.b16 %v1728
        %v5119 = vunpack.c.l.b16 %v1729
        %v5120 = vunpack.c.h.b16 %v1729
        %v5121 = vunpack.c.l.b16 %v1730
        %v5122 = vunpack.c.h.b16 %v1730
        %v5123 = vunpack.c.l.b16 %v1731
        %v5124 = vunpack.c.h.b16 %v1731
        %v5125 = vunpack.c.l.b16 %v1732
        %v5126 = vunpack.c.h.b16 %v1732
        %v5127 = vunpack.c.l.b16 %v1733
        %v5128 = vunpack.c.h.b16 %v1733
        %v5129 = vunpack.c.l.b16 %v1734
        %v5130 = vunpack.c.h.b16 %v1734
        %v5131 = vunpack.c.l.b16 %v1735
        %v5132 = vunpack.c.h.b16 %v1735
        %v5133 = vunpack.c.l.b16 %v1736
        %v5134 = vunpack.c.h.b16 %v1736
        %v5135 = vunpack.c.l.b16 %v1737
        %v5136 = vunpack.c.h.b16 %v1737
        %v5137 = vunpack.c.l.b16 %v1738
        %v5138 = vunpack.c.h.b16 %v1738
        %v5139 = vunpack.c.l.b16 %v1739
        %v5140 = vunpack.c.h.b16 %v1739
        %v5141 = vunpack.c.l.b16 %v1740
        %v5142 = vunpack.c.h.b16 %v1740
        %v5143 = vunpack.c.l.b16 %v1741
        %v5144 = vunpack.c.h.b16 %v1741
        %v5145 = vunpack.c.l.b16 %v1742
        %v5146 = vunpack.c.h.b16 %v1742
        %v5147 = vunpack.c.l.b16 %v1743
        %v5148 = vunpack.c.h.b16 %v1743
        %v5149 = vunpack.c.l.b16 %v1744
        %v5150 = vunpack.c.h.b16 %v1744
        %v5151 = vunpack.c.l.b16 %v1745
        %v5152 = vunpack.c.h.b16 %v1745
        %v5153 = vunpack.c.l.b16 %v1746
        %v5154 = vunpack.c.h.b16 %v1746
        %v5155 = vunpack.c.l.b16 %v1747
        %v5156 = vunpack.c.h.b16 %v1747
        %v5157 = vunpack.c.l.b16 %v1748
        %v5158 = vunpack.c.h.b16 %v1748
        %v5159 = vunpack.c.l.b16 %v1749
        %v5160 = vunpack.c.h.b16 %v1749
        %v5161 = vunpack.c.l.b16 %v1750
        %v5162 = vunpack.c.h.b16 %v1750
        %v5163 = vunpack.c.l.b16 %v1751
        %v5164 = vunpack.c.h.b16 %v1751
        %v5165 = vunpack.c.l.b16 %v1752
        %v5166 = vunpack.c.h.b16 %v1752
        %v5167 = vunpack.c.l.b16 %v1753
        %v5168 = vunpack.c.h.b16 %v1753
        %v5169 = vunpack.c.l.b16 %v1754
        %v5170 = vunpack.c.h.b16 %v1754
        %v5171 = vunpack.c.l.b16 %v1755
        %v5172 = vunpack.c.h.b16 %v1755
        %v5173 = vunpack.c.l.b16 %v1756
        %v5174 = vunpack.c.h.b16 %v1756
        %v5175 = vunpack.c.l.b16 %v1757
        %v5176 = vunpack.c.h.b16 %v1757
        %v5177 = vunpack.c.l.b16 %v1758
        %v5178 = vunpack.c.h.b16 %v1758
        %v5179 = vunpack.c.l.b16 %v1759
        %v5180 = vunpack.c.h.b16 %v1759
        %v5181 = vunpack.c.l.b16 %v1760
        %v5182 = vunpack.c.h.b16 %v1760
        %v5183 = vunpack.c.l.b16 %v1761
        %v5184 = vunpack.c.h.b16 %v1761
        %v5185 = vunpack.c.l.b16 %v1762
        %v5186 = vunpack.c.h.b16 %v1762
        %v5187 = vunpack.c.l.b16 %v1763
        %v5188 = vunpack.c.h.b16 %v1763
        %v5189 = vunpack.c.l.b16 %v1764
        %v5190 = vunpack.c.h.b16 %v1764
        %v5191 = vunpack.c.l.b16 %v1765
        %v5192 = vunpack.c.h.b16 %v1765
        %v5193 = vunpack.c.l.b16 %v1766
        %v5194 = vunpack.c.h.b16 %v1766
        %v5195 = vunpack.c.l.b16 %v1767
        %v5196 = vunpack.c.h.b16 %v1767
        %v5197 = vunpack.c.l.b16 %v1768
        %v5198 = vunpack.c.h.b16 %v1768
        %v5199 = vunpack.c.l.b16 %v1769
        %v5200 = vunpack.c.h.b16 %v1769
        %v5201 = vunpack.c.l.b16 %v1770
        %v5202 = vunpack.c.h.b16 %v1770
        %v5203 = vunpack.c.l.b16 %v1771
        %v5204 = vunpack.c.h.b16 %v1771
        %v5205 = vunpack.c.l.b16 %v1772
        %v5206 = vunpack.c.h.b16 %v1772
        %v5207 = vunpack.c.l.b16 %v1773
        %v5208 = vunpack.c.h.b16 %v1773
        %v5209 = vunpack.c.l.b16 %v1774
        %v5210 = vunpack.c.h.b16 %v1774
        %v5211 = vunpack.c.l.b16 %v1775
        %v5212 = vunpack.c.h.b16 %v1775
        %v5213 = vunpack.c.l.b16 %v1776
        %v5214 = vunpack.c.h.b16 %v1776
        %v5215 = vunpack.c.l.b16 %v1777
        %v5216 = vunpack.c.h.b16 %v1777
        %v5217 = vunpack.c.l.b16 %v1778
        %v5218 = vunpack.c.h.b16 %v1778
        %v5219 = vunpack.c.l.b16 %v1779
        %v5220 = vunpack.c.h.b16 %v1779
        %v5221 = vunpack.c.l.b16 %v1780
        %v5222 = vunpack.c.h.b16 %v1780
        %v5223 = vunpack.c.l.b16 %v1781
        %v5224 = vunpack.c.h.b16 %v1781
        %v5225 = vunpack.c.l.b16 %v1782
        %v5226 = vunpack.c.h.b16 %v1782
        %v5227 = vunpack.c.l.b16 %v1783
        %v5228 = vunpack.c.h.b16 %v1783
        %v5229 = vunpack.c.l.b16 %v1784
        %v5230 = vunpack.c.h.b16 %v1784
        %v5231 = vunpack.c.l.b16 %v1785
        %v5232 = vunpack.c.h.b16 %v1785
        %v5233 = vunpack.c.l.b16 %v1786
        %v5234 = vunpack.c.h.b16 %v1786
        %v5235 = vunpack.c.l.b16 %v1787
        %v5236 = vunpack.c.h.b16 %v1787
        %v5237 = vunpack.c.l.b16 %v1788
        %v5238 = vunpack.c.h.b16 %v1788
        %v5239 = vunpack.c.l.b16 %v1789
        %v5240 = vunpack.c.h.b16 %v1789
        %v5241 = vunpack.c.l.b16 %v1790
        %v5242 = vunpack.c.h.b16 %v1790
        %v5243 = vunpack.c.l.b16 %v1791
        %v5244 = vunpack.c.h.b16 %v1791
        %v5245 = vunpack.c.l.b16 %v1792
        %v5246 = vunpack.c.h.b16 %v1792
        %v5247 = vunpack.c.l.b16 %v1793
        %v5248 = vunpack.c.h.b16 %v1793
        %v5249 = vunpack.c.l.b16 %v1794
        %v5250 = vunpack.c.h.b16 %v1794
        %v5251 = vunpack.c.l.b16 %v1795
        %v5252 = vunpack.c.h.b16 %v1795
        %v5253 = vunpack.c.l.b16 %v1796
        %v5254 = vunpack.c.h.b16 %v1796
        %v5255 = vunpack.c.l.b16 %v1797
        %v5256 = vunpack.c.h.b16 %v1797
        %v5257 = vunpack.c.l.b16 %v1798
        %v5258 = vunpack.c.h.b16 %v1798
        %v5259 = vunpack.c.l.b16 %v1799
        %v5260 = vunpack.c.h.b16 %v1799
        %v5261 = vunpack.c.l.b16 %v1800
        %v5262 = vunpack.c.h.b16 %v1800
        %v5263 = vunpack.c.l.b16 %v1801
        %v5264 = vunpack.c.h.b16 %v1801
        %v5265 = vunpack.c.l.b16 %v1802
        %v5266 = vunpack.c.h.b16 %v1802
        %v5267 = vunpack.c.l.b16 %v1803
        %v5268 = vunpack.c.h.b16 %v1803
        %v5269 = vunpack.c.l.b16 %v1804
        %v5270 = vunpack.c.h.b16 %v1804
        %v5271 = vunpack.c.l.b16 %v1805
        %v5272 = vunpack.c.h.b16 %v1805
        %v5273 = vunpack.c.l.b16 %v1806
        %v5274 = vunpack.c.h.b16 %v1806
        %v5275 = vunpack.c.l.b16 %v1807
        %v5276 = vunpack.c.h.b16 %v1807
        %v5277 = vunpack.c.l.b16 %v1808
        %v5278 = vunpack.c.h.b16 %v1808
        %v5279 = vunpack.c.l.b16 %v1809
        %v5280 = vunpack.c.h.b16 %v1809
        %v5281 = vunpack.c.l.b16 %v1810
        %v5282 = vunpack.c.h.b16 %v1810
        %v5283 = vunpack.c.l.b16 %v1811
        %v5284 = vunpack.c.h.b16 %v1811
        %v5285 = vunpack.c.l.b16 %v1812
        %v5286 = vunpack.c.h.b16 %v1812
        %v5287 = vunpack.c.l.b16 %v1813
        %v5288 = vunpack.c.h.b16 %v1813
        %v5289 = vunpack.c.l.b16 %v1814
        %v5290 = vunpack.c.h.b16 %v1814
        %v5291 = vunpack.c.l.b16 %v1815
        %v5292 = vunpack.c.h.b16 %v1815
        %v5293 = vunpack.c.l.b16 %v1816
        %v5294 = vunpack.c.h.b16 %v1816
        %v5295 = vunpack.c.l.b16 %v1817
        %v5296 = vunpack.c.h.b16 %v1817
        %v5297 = vunpack.c.l.b16 %v1818
        %v5298 = vunpack.c.h.b16 %v1818
        %v5299 = vunpack.c.l.b16 %v1819
        %v5300 = vunpack.c.h.b16 %v1819
        %v5301 = vunpack.c.l.b16 %v1820
        %v5302 = vunpack.c.h.b16 %v1820
        %v5303 = vunpack.c.l.b16 %v1821
        %v5304 = vunpack.c.h.b16 %v1821
        %v5305 = vunpack.c.l.b16 %v1822
        %v5306 = vunpack.c.h.b16 %v1822
        %v5307 = vunpack.c.l.b16 %v1823
        %v5308 = vunpack.c.h.b16 %v1823
        %v5309 = vunpack.c.l.b16 %v1824
        %v5310 = vunpack.c.h.b16 %v1824
        %v5311 = vunpack.c.l.b16 %v1825
        %v5312 = vunpack.c.h.b16 %v1825
        %v5313 = vunpack.c.l.b16 %v1826
        %v5314 = vunpack.c.h.b16 %v1826
        %v5315 = vunpack.c.l.b16 %v1827
        %v5316 = vunpack.c.h.b16 %v1827
        %v5317 = vunpack.c.l.b16 %v1828
        %v5318 = vunpack.c.h.b16 %v1828
        %v5319 = vunpack.c.l.b16 %v1829
        %v5320 = vunpack.c.h.b16 %v1829
        %v5321 = vunpack.c.l.b16 %v1830
        %v5322 = vunpack.c.h.b16 %v1830
        %v5323 = vunpack.c.l.b16 %v1831
        %v5324 = vunpack.c.h.b16 %v1831
        %v5325 = vunpack.c.l.b16 %v1832
        %v5326 = vunpack.c.h.b16 %v1832
        %v5327 = vunpack.c.l.b16 %v1833
        %v5328 = vunpack.c.h.b16 %v1833
        %v5329 = vunpack.c.l.b16 %v1834
        %v5330 = vunpack.c.h.b16 %v1834
        %v5331 = vunpack.c.l.b16 %v1835
        %v5332 = vunpack.c.h.b16 %v1835
        %v5333 = vunpack.c.l.b16 %v1836
        %v5334 = vunpack.c.h.b16 %v1836
        %v5335 = vunpack.c.l.b16 %v1837
        %v5336 = vunpack.c.h.b16 %v1837
        %v5337 = vunpack.c.l.b16 %v1838
        %v5338 = vunpack.c.h.b16 %v1838
        %v5339 = vunpack.c.l.b16 %v1839
        %v5340 = vunpack.c.h.b16 %v1839
        %v5341 = vunpack.c.l.b16 %v1840
        %v5342 = vunpack.c.h.b16 %v1840
        %v5343 = vunpack.c.l.b16 %v1841
        %v5344 = vunpack.c.h.b16 %v1841
        %v5345 = vunpack.c.l.b16 %v1842
        %v5346 = vunpack.c.h.b16 %v1842
        %v5347 = vunpack.c.l.b16 %v1843
        %v5348 = vunpack.c.h.b16 %v1843
        %v5349 = vunpack.c.l.b16 %v1844
        %v5350 = vunpack.c.h.b16 %v1844
        %v5351 = vunpack.c.l.b16 %v1845
        %v5352 = vunpack.c.h.b16 %v1845
        %v5353 = vunpack.c.l.b16 %v1846
        %v5354 = vunpack.c.h.b16 %v1846
        %v5355 = vunpack.c.l.b16 %v1847
        %v5356 = vunpack.c.h.b16 %v1847
        %v5357 = vunpack.c.l.b16 %v1848
        %v5358 = vunpack.c.h.b16 %v1848
        %v5359 = vunpack.c.l.b16 %v1849
        %v5360 = vunpack.c.h.b16 %v1849
        %v5361 = vunpack.c.l.b16 %v1850
        %v5362 = vunpack.c.h.b16 %v1850
        %v5363 = vunpack.c.l.b16 %v1851
        %v5364 = vunpack.c.h.b16 %v1851
        %v5365 = vunpack.c.l.b16 %v1852
        %v5366 = vunpack.c.h.b16 %v1852
        %v5367 = vunpack.c.l.b16 %v1853
        %v5368 = vunpack.c.h.b16 %v1853
        %v5369 = vunpack.c.l.b16 %v1854
        %v5370 = vunpack.c.h.b16 %v1854
        %v5371 = vunpack.c.l.b16 %v1855
        %v5372 = vunpack.c.h.b16 %v1855
        %v5373 = vunpack.c.l.b16 %v1856
        %v5374 = vunpack.c.h.b16 %v1856
        %v5375 = vunpack.c.l.b16 %v1857
        %v5376 = vunpack.c.h.b16 %v1857
        %v5377 = vunpack.c.l.b16 %v1858
        %v5378 = vunpack.c.h.b16 %v1858
        %v5379 = vunpack.c.l.b16 %v1859
        %v5380 = vunpack.c.h.b16 %v1859
        %v5381 = vunpack.c.l.b16 %v1860
        %v5382 = vunpack.c.h.b16 %v1860
        %v5383 = vunpack.c.l.b16 %v1861
        %v5384 = vunpack.c.h.b16 %v1861
        %v5385 = vunpack.c.l.b16 %v1862
        %v5386 = vunpack.c.h.b16 %v1862
        %v5387 = vunpack.c.l.b16 %v1863
        %v5388 = vunpack.c.h.b16 %v1863
        %v5389 = vunpack.c.l.b16 %v1864
        %v5390 = vunpack.c.h.b16 %v1864
        %v5391 = vunpack.c.l.b16 %v1865
        %v5392 = vunpack.c.h.b16 %v1865
        %v5393 = vunpack.c.l.b16 %v1866
        %v5394 = vunpack.c.h.b16 %v1866
        %v5395 = vpack.c.b16 %v3045, %v3043
        %v5396 = vpack.c.b16 %v3046, %v3044
        %v5397 = vpack.c.b16 %v3049, %v3047
        %v5398 = vpack.c.b16 %v3050, %v3048
        %v5399 = vpack.c.b16 %v3053, %v3051
        %v5400 = vpack.c.b16 %v3054, %v3052
        %v5401 = vpack.c.b16 %v3057, %v3055
        %v5402 = vpack.c.b16 %v3058, %v3056
        %v5403 = vpack.c.b16 %v3061, %v3059
        %v5404 = vpack.c.b16 %v3062, %v3060
        %v5405 = vpack.c.b16 %v3065, %v3063
        %v5406 = vpack.c.b16 %v3066, %v3064
        %v5407 = vpack.c.b16 %v3069, %v3067
        %v5408 = vpack.c.b16 %v3070, %v3068
        %v5409 = vpack.c.b16 %v3073, %v3071
        %v5410 = vpack.c.b16 %v3074, %v3072
        %v5411 = vpack.c.b16 %v3077, %v3075
        %v5412 = vpack.c.b16 %v3078, %v3076
        %v5413 = vpack.c.b16 %v3081, %v3079
        %v5414 = vpack.c.b16 %v3082, %v3080
        %v5415 = vpack.c.b16 %v3085, %v3083
        %v5416 = vpack.c.b16 %v3086, %v3084
        %v5417 = vpack.c.b16 %v3089, %v3087
        %v5418 = vpack.c.b16 %v3090, %v3088
        %v5419 = vpack.c.b16 %v3093, %v3091
        %v5420 = vpack.c.b16 %v3094, %v3092
        %v5421 = vpack.c.b16 %v3097, %v3095
        %v5422 = vpack.c.b16 %v3098, %v3096
        %v5423 = vpack.c.b16 %v3101, %v3099
        %v5424 = vpack.c.b16 %v3102, %v3100
        %v5425 = vpack.c.b16 %v3105, %v3103
        %v5426 = vpack.c.b16 %v3106, %v3104
        %v5427 = vpack.c.b16 %v3109, %v3107
        %v5428 = vpack.c.b16 %v3110, %v3108
        %v5429 = vpack.c.b16 %v3113, %v3111
        %v5430 = vpack.c.b16 %v3114, %v3112
        %v5431 = vpack.c.b16 %v3117, %v3115
        %v5432 = vpack.c.b16 %v3118, %v3116
        %v5433 = vpack.c.b16 %v3121, %v3119
        %v5434 = vpack.c.b16 %v3122, %v3120
        %v5435 = vpack.c.b16 %v3125, %v3123
        %v5436 = vpack.c.b16 %v3126, %v3124
        %v5437 = vpack.c.b16 %v3129, %v3127
        %v5438 = vpack.c.b16 %v3130, %v3128
        %v5439 = vpack.c.b16 %v3133, %v3131
        %v5440 = vpack.c.b16 %v3134, %v3132
        %v5441 = vpack.c.b16 %v3137, %v3135
        %v5442 = vpack.c.b16 %v3138, %v3136
        %v5443 = vpack.c.b16 %v3141, %v3139
        %v5444 = vpack.c.b16 %v3142, %v3140
        %v5445 = vpack.c.b16 %v3145, %v3143
        %v5446 = vpack.c.b16 %v3146, %v3144
        %v5447 = vpack.c.b16 %v3149, %v3147
        %v5448 = vpack.c.b16 %v3150, %v3148
        %v5449 = vpack.c.b16 %v3153, %v3151
        %v5450 = vpack.c.b16 %v3154, %v3152
        %v5451 = vpack.c.b16 %v3157, %v3155
        %v5452 = vpack.c.b16 %v3158, %v3156
        %v5453 = vpack.c.b16 %v3161, %v3159
        %v5454 = vpack.c.b16 %v3162, %v3160
        %v5455 = vpack.c.b16 %v3165, %v3163
        %v5456 = vpack.c.b16 %v3166, %v3164
        %v5457 = vpack.c.b16 %v3169, %v3167
        %v5458 = vpack.c.b16 %v3170, %v3168
        %v5459 = vpack.c.b16 %v3173, %v3171
        %v5460 = vpack.c.b16 %v3174, %v3172
        %v5461 = vpack.c.b16 %v3177, %v3175
        %v5462 = vpack.c.b16 %v3178, %v3176
        %v5463 = vpack.c.b16 %v3181, %v3179
        %v5464 = vpack.c.b16 %v3182, %v3180
        %v5465 = vpack.c.b16 %v3185, %v3183
        %v5466 = vpack.c.b16 %v3186, %v3184
        %v5467 = vpack.c.b16 %v3189, %v3187
        %v5468 = vpack.c.b16 %v3190, %v3188
        %v5469 = vpack.c.b16 %v3193, %v3191
        %v5470 = vpack.c.b16 %v3194, %v3192
        %v5471 = vpack.c.b16 %v3197, %v3195
        %v5472 = vpack.c.b16 %v3198, %v3196
        %v5473 = vpack.c.b16 %v3201, %v3199
        %v5474 = vpack.c.b16 %v3202, %v3200
        %v5475 = vpack.c.b16 %v3205, %v3203
        %v5476 = vpack.c.b16 %v3206, %v3204
        %v5477 = vpack.c.b16 %v3209, %v3207
        %v5478 = vpack.c.b16 %v3210, %v3208
        %v5479 = vpack.c.b16 %v3213, %v3211
        %v5480 = vpack.c.b16 %v3214, %v3212
        %v5481 = vpack.c.b16 %v3217, %v3215
        %v5482 = vpack.c.b16 %v3218, %v3216
        %v5483 = vpack.c.b16 %v3221, %v3219
        %v5484 = vpack.c.b16 %v3222, %v3220
        %v5485 = vpack.c.b16 %v3225, %v3223
        %v5486 = vpack.c.b16 %v3226, %v3224
        %v5487 = vpack.c.b16 %v3229, %v3227
        %v5488 = vpack.c.b16 %v3230, %v3228
        %v5489 = vpack.c.b16 %v3233, %v3231
        %v5490 = vpack.c.b16 %v3234, %v3232
        %v5491 = vpack.c.b16 %v3237, %v3235
        %v5492 = vpack.c.b16 %v3238, %v3236
        %v5493 = vpack.c.b16 %v3241, %v3239
        %v5494 = vpack.c.b16 %v3242, %v3240
        %v5495 = vpack.c.b16 %v3245, %v3243
        %v5496 = vpack.c.b16 %v3246, %v3244
        %v5497 = vpack.c.b16 %v3249, %v3247
        %v5498 = vpack.c.b16 %v3250, %v3248
        %v5499 = vpack.c.b16 %v3253, %v3251
        %v5500 = vpack.c.b16 %v3254, %v3252
        %v5501 = vpack.c.b16 %v3257, %v3255
        %v5502 = vpack.c.b16 %v3258, %v3256
        %v5503 = vpack.c.b16 %v3261, %v3259
        %v5504 = vpack.c.b16 %v3262, %v3260
        %v5505 = vpack.c.b16 %v3265, %v3263
        %v5506 = vpack.c.b16 %v3266, %v3264
        %v5507 = vpack.c.b16 %v3269, %v3267
        %v5508 = vpack.c.b16 %v3270, %v3268
        %v5509 = vpack.c.b16 %v3273, %v3271
        %v5510 = vpack.c.b16 %v3274, %v3272
        %v5511 = vpack.c.b16 %v3277, %v3275
        %v5512 = vpack.c.b16 %v3278, %v3276
        %v5513 = vpack.c.b16 %v3281, %v3279
        %v5514 = vpack.c.b16 %v3282, %v3280
        %v5515 = vpack.c.b16 %v3285, %v3283
        %v5516 = vpack.c.b16 %v3286, %v3284
        %v5517 = vpack.c.b16 %v3289, %v3287
        %v5518 = vpack.c.b16 %v3290, %v3288
        %v5519 = vpack.c.b16 %v3293, %v3291
        %v5520 = vpack.c.b16 %v3294, %v3292
        %v5521 = vpack.c.b16 %v3297, %v3295
        %v5522 = vpack.c.b16 %v3298, %v3296
        %v5523 = vpack.c.b16 %v3301, %v3299
        %v5524 = vpack.c.b16 %v3302, %v3300
        %v5525 = vpack.c.b16 %v3305, %v3303
        %v5526 = vpack.c.b16 %v3306, %v3304
        %v5527 = vpack.c.b16 %v3309, %v3307
        %v5528 = vpack.c.b16 %v3310, %v3308
        %v5529 = vpack.c.b16 %v3313, %v3311
        %v5530 = vpack.c.b16 %v3314, %v3312
        %v5531 = vpack.c.b16 %v3317, %v3315
        %v5532 = vpack.c.b16 %v3318, %v3316
        %v5533 = vpack.c.b16 %v3321, %v3319
        %v5534 = vpack.c.b16 %v3322, %v3320
        %v5535 = vpack.c.b16 %v3325, %v3323
        %v5536 = vpack.c.b16 %v3326, %v3324
        %v5537 = vpack.c.b16 %v3329, %v3327
        %v5538 = vpack.c.b16 %v3330, %v3328
        %v5539 = vpack.c.b16 %v3333, %v3331
        %v5540 = vpack.c.b16 %v3334, %v3332
        %v5541 = vpack.c.b16 %v3337, %v3335
        %v5542 = vpack.c.b16 %v3338, %v3336
        %v5543 = vpack.c.b16 %v3341, %v3339
        %v5544 = vpack.c.b16 %v3342, %v3340
        %v5545 = vpack.c.b16 %v3345, %v3343
        %v5546 = vpack.c.b16 %v3346, %v3344
        %v5547 = vpack.c.b16 %v3349, %v3347
        %v5548 = vpack.c.b16 %v3350, %v3348
        %v5549 = vpack.c.b16 %v3353, %v3351
        %v5550 = vpack.c.b16 %v3354, %v3352
        %v5551 = vpack.c.b16 %v3357, %v3355
        %v5552 = vpack.c.b16 %v3358, %v3356
        %v5553 = vpack.c.b16 %v3361, %v3359
        %v5554 = vpack.c.b16 %v3362, %v3360
        %v5555 = vpack.c.b16 %v3365, %v3363
        %v5556 = vpack.c.b16 %v3366, %v3364
        %v5557 = vpack.c.b16 %v3369, %v3367
        %v5558 = vpack.c.b16 %v3370, %v3368
        %v5559 = vpack.c.b16 %v3373, %v3371
        %v5560 = vpack.c.b16 %v3374, %v3372
        %v5561 = vpack.c.b16 %v3377, %v3375
        %v5562 = vpack.c.b16 %v3378, %v3376
        %v5563 = vpack.c.b16 %v3381, %v3379
        %v5564 = vpack.c.b16 %v3382, %v3380
        %v5565 = vpack.c.b16 %v3385, %v3383
        %v5566 = vpack.c.b16 %v3386, %v3384
        %v5567 = vpack.c.b16 %v3389, %v3387
        %v5568 = vpack.c.b16 %v3390, %v3388
        %v5569 = vpack.c.b16 %v3393, %v3391
        %v5570 = vpack.c.b16 %v3394, %v3392
        %v5571 = vpack.c.b16 %v3397, %v3395
        %v5572 = vpack.c.b16 %v3398, %v3396
        %v5573 = vpack.c.b16 %v3401, %v3399
        %v5574 = vpack.c.b16 %v3402, %v3400
        %v5575 = vpack.c.b16 %v3405, %v3403
        %v5576 = vpack.c.b16 %v3406, %v3404
        %v5577 = vpack.c.b16 %v3409, %v3407
        %v5578 = vpack.c.b16 %v3410, %v3408
        %v5579 = vpack.c.b16 %v3413, %v3411
        %v5580 = vpack.c.b16 %v3414, %v3412
        %v5581 = vpack.c.b16 %v3417, %v3415
        %v5582 = vpack.c.b16 %v3418, %v3416
        %v5583 = vpack.c.b16 %v3421, %v3419
        %v5584 = vpack.c.b16 %v3422, %v3420
        %v5585 = vpack.c.b16 %v3425, %v3423
        %v5586 = vpack.c.b16 %v3426, %v3424
        %v5587 = vpack.c.b16 %v3429, %v3427
        %v5588 = vpack.c.b16 %v3430, %v3428
        %v5589 = vpack.c.b16 %v3433, %v3431
        %v5590 = vpack.c.b16 %v3434, %v3432
        %v5591 = vpack.c.b16 %v3437, %v3435
        %v5592 = vpack.c.b16 %v3438, %v3436
        %v5593 = vpack.c.b16 %v3441, %v3439
        %v5594 = vpack.c.b16 %v3442, %v3440
        %v5595 = vpack.c.b16 %v3445, %v3443
        %v5596 = vpack.c.b16 %v3446, %v3444
        %v5597 = vpack.c.b16 %v3449, %v3447
        %v5598 = vpack.c.b16 %v3450, %v3448
        %v5599 = vpack.c.b16 %v3453, %v3451
        %v5600 = vpack.c.b16 %v3454, %v3452
        %v5601 = vpack.c.b16 %v3457, %v3455
        %v5602 = vpack.c.b16 %v3458, %v3456
        %v5603 = vpack.c.b16 %v3461, %v3459
        %v5604 = vpack.c.b16 %v3462, %v3460
        %v5605 = vpack.c.b16 %v3465, %v3463
        %v5606 = vpack.c.b16 %v3466, %v3464
        %v5607 = vpack.c.b16 %v3469, %v3467
        %v5608 = vpack.c.b16 %v3470, %v3468
        %v5609 = vpack.c.b16 %v3473, %v3471
        %v5610 = vpack.c.b16 %v3474, %v3472
        %v5611 = vpack.c.b16 %v3477, %v3475
        %v5612 = vpack.c.b16 %v3478, %v3476
        %v5613 = vpack.c.b16 %v3481, %v3479
        %v5614 = vpack.c.b16 %v3482, %v3480
        %v5615 = vpack.c.b16 %v3485, %v3483
        %v5616 = vpack.c.b16 %v3486, %v3484
        %v5617 = vpack.c.b16 %v3489, %v3487
        %v5618 = vpack.c.b16 %v3490, %v3488
        %v5619 = vpack.c.b16 %v3493, %v3491
        %v5620 = vpack.c.b16 %v3494, %v3492
        %v5621 = vpack.c.b16 %v3497, %v3495
        %v5622 = vpack.c.b16 %v3498, %v3496
        %v5623 = vpack.c.b16 %v3501, %v3499
        %v5624 = vpack.c.b16 %v3502, %v3500
        %v5625 = vpack.c.b16 %v3505, %v3503
        %v5626 = vpack.c.b16 %v3506, %v3504
        %v5627 = vpack.c.b16 %v3509, %v3507
        %v5628 = vpack.c.b16 %v3510, %v3508
        %v5629 = vpack.c.b16 %v3513, %v3511
        %v5630 = vpack.c.b16 %v3514, %v3512
        %v5631 = vpack.c.b16 %v3517, %v3515
        %v5632 = vpack.c.b16 %v3518, %v3516
        %v5633 = vpack.c.b16 %v3521, %v3519
        %v5634 = vpack.c.b16 %v3522, %v3520
        %v5635 = vpack.c.b16 %v3525, %v3523
        %v5636 = vpack.c.b16 %v3526, %v3524
        %v5637 = vpack.c.b16 %v3529, %v3527
        %v5638 = vpack.c.b16 %v3530, %v3528
        %v5639 = vpack.c.b16 %v3533, %v3531
        %v5640 = vpack.c.b16 %v3534, %v3532
        %v5641 = vpack.c.b16 %v3537, %v3535
        %v5642 = vpack.c.b16 %v3538, %v3536
        %v5643 = vpack.c.b16 %v3541, %v3539
        %v5644 = vpack.c.b16 %v3542, %v3540
        %v5645 = vpack.c.b16 %v3545, %v3543
        %v5646 = vpack.c.b16 %v3546, %v3544
        %v5647 = vpack.c.b16 %v3549, %v3547
        %v5648 = vpack.c.b16 %v3550, %v3548
        %v5649 = vpack.c.b16 %v3553, %v3551
        %v5650 = vpack.c.b16 %v3554, %v3552
        %v5651 = vpack.c.b16 %v3557, %v3555
        %v5652 = vpack.c.b16 %v3558, %v3556
        %v5653 = vpack.c.b16 %v3561, %v3559
        %v5654 = vpack.c.b16 %v3562, %v3560
        %v5655 = vpack.c.b16 %v3565, %v3563
        %v5656 = vpack.c.b16 %v3566, %v3564
        %v5657 = vpack.c.b16 %v3569, %v3567
        %v5658 = vpack.c.b16 %v3570, %v3568
        %v5659 = vpack.c.b16 %v3573, %v3571
        %v5660 = vpack.c.b16 %v3574, %v3572
        %v5661 = vpack.c.b16 %v3577, %v3575
        %v5662 = vpack.c.b16 %v3578, %v3576
        %v5663 = vpack.c.b16 %v3581, %v3579
        %v5664 = vpack.c.b16 %v3582, %v3580
        %v5665 = vpack.c.b16 %v3585, %v3583
        %v5666 = vpack.c.b16 %v3586, %v3584
        %v5667 = vpack.c.b16 %v3589, %v3587
        %v5668 = vpack.c.b16 %v3590, %v3588
        %v5669 = vpack.c.b16 %v3593, %v3591
        %v5670 = vpack.c.b16 %v3594, %v3592
        %v5671 = vpack.c.b16 %v3597, %v3595
        %v5672 = vpack.c.b16 %v3598, %v3596
        %v5673 = vpack.c.b16 %v3601, %v3599
        %v5674 = vpack.c.b16 %v3602, %v3600
        %v5675 = vpack.c.b16 %v3605, %v3603
        %v5676 = vpack.c.b16 %v3606, %v3604
        %v5677 = vpack.c.b16 %v3609, %v3607
        %v5678 = vpack.c.b16 %v3610, %v3608
        %v5679 = vpack.c.b16 %v3613, %v3611
        %v5680 = vpack.c.b16 %v3614, %v3612
        %v5681 = vpack.c.b16 %v3617, %v3615
        %v5682 = vpack.c.b16 %v3618, %v3616
        %v5683 = vpack.c.b16 %v3621, %v3619
        %v5684 = vpack.c.b16 %v3622, %v3620
        %v5685 = vpack.c.b16 %v3625, %v3623
        %v5686 = vpack.c.b16 %v3626, %v3624
        %v5687 = vpack.c.b16 %v3629, %v3627
        %v5688 = vpack.c.b16 %v3630, %v3628
        %v5689 = vpack.c.b16 %v3633, %v3631
        %v5690 = vpack.c.b16 %v3634, %v3632
        %v5691 = vpack.c.b16 %v3637, %v3635
        %v5692 = vpack.c.b16 %v3638, %v3636
        %v5693 = vpack.c.b16 %v3641, %v3639
        %v5694 = vpack.c.b16 %v3642, %v3640
        %v5695 = vpack.c.b16 %v3645, %v3643
        %v5696 = vpack.c.b16 %v3646, %v3644
        %v5697 = vpack.c.b16 %v3649, %v3647
        %v5698 = vpack.c.b16 %v3650, %v3648
        %v5699 = vpack.c.b16 %v3653, %v3651
        %v5700 = vpack.c.b16 %v3654, %v3652
        %v5701 = vpack.c.b16 %v3657, %v3655
        %v5702 = vpack.c.b16 %v3658, %v3656
        %v5703 = vpack.c.b16 %v3661, %v3659
        %v5704 = vpack.c.b16 %v3662, %v3660
        %v5705 = vpack.c.b16 %v3665, %v3663
        %v5706 = vpack.c.b16 %v3666, %v3664
        %v5707 = vpack.c.b16 %v3669, %v3667
        %v5708 = vpack.c.b16 %v3670, %v3668
        %v5709 = vpack.c.b16 %v3673, %v3671
        %v5710 = vpack.c.b16 %v3674, %v3672
        %v5711 = vpack.c.b16 %v3677, %v3675
        %v5712 = vpack.c.b16 %v3678, %v3676
        %v5713 = vpack.c.b16 %v3681, %v3679
        %v5714 = vpack.c.b16 %v3682, %v3680
        %v5715 = vpack.c.b16 %v3685, %v3683
        %v5716 = vpack.c.b16 %v3686, %v3684
        %v5717 = vpack.c.b16 %v3689, %v3687
        %v5718 = vpack.c.b16 %v3690, %v3688
        %v5719 = vpack.c.b16 %v3693, %v3691
        %v5720 = vpack.c.b16 %v3694, %v3692
        %v5721 = vpack.c.b16 %v3697, %v3695
        %v5722 = vpack.c.b16 %v3698, %v3696
        %v5723 = vpack.c.b16 %v3701, %v3699
        %v5724 = vpack.c.b16 %v3702, %v3700
        %v5725 = vpack.c.b16 %v3705, %v3703
        %v5726 = vpack.c.b16 %v3706, %v3704
        %v5727 = vpack.c.b16 %v3709, %v3707
        %v5728 = vpack.c.b16 %v3710, %v3708
        %v5729 = vpack.c.b16 %v3713, %v3711
        %v5730 = vpack.c.b16 %v3714, %v3712
        %v5731 = vpack.c.b16 %v3717, %v3715
        %v5732 = vpack.c.b16 %v3718, %v3716
        %v5733 = vpack.c.b16 %v3721, %v3719
        %v5734 = vpack.c.b16 %v3722, %v3720
        %v5735 = vpack.c.b16 %v3725, %v3723
        %v5736 = vpack.c.b16 %v3726, %v3724
        %v5737 = vpack.c.b16 %v3729, %v3727
        %v5738 = vpack.c.b16 %v3730, %v3728
        %v5739 = vpack.c.b16 %v3733, %v3731
        %v5740 = vpack.c.b16 %v3734, %v3732
        %v5741 = vpack.c.b16 %v3737, %v3735
        %v5742 = vpack.c.b16 %v3738, %v3736
        %v5743 = vpack.c.b16 %v3741, %v3739
        %v5744 = vpack.c.b16 %v3742, %v3740
        %v5745 = vpack.c.b16 %v3745, %v3743
        %v5746 = vpack.c.b16 %v3746, %v3744
        %v5747 = vpack.c.b16 %v3749, %v3747
        %v5748 = vpack.c.b16 %v3750, %v3748
        %v5749 = vpack.c.b16 %v3753, %v3751
        %v5750 = vpack.c.b16 %v3754, %v3752
        %v5751 = vpack.c.b16 %v3757, %v3755
        %v5752 = vpack.c.b16 %v3758, %v3756
        %v5753 = vpack.c.b16 %v3761, %v3759
        %v5754 = vpack.c.b16 %v3762, %v3760
        %v5755 = vpack.c.b16 %v3765, %v3763
        %v5756 = vpack.c.b16 %v3766, %v3764
        %v5757 = vpack.c.b16 %v3769, %v3767
        %v5758 = vpack.c.b16 %v3770, %v3768
        %v5759 = vpack.c.b16 %v3773, %v3771
        %v5760 = vpack.c.b16 %v3774, %v3772
        %v5761 = vpack.c.b16 %v3777, %v3775
        %v5762 = vpack.c.b16 %v3778, %v3776
        %v5763 = vpack.c.b16 %v3781, %v3779
        %v5764 = vpack.c.b16 %v3782, %v3780
        %v5765 = vpack.c.b16 %v3785, %v3783
        %v5766 = vpack.c.b16 %v3786, %v3784
        %v5767 = vpack.c.b16 %v3789, %v3787
        %v5768 = vpack.c.b16 %v3790, %v3788
        %v5769 = vpack.c.b16 %v3793, %v3791
        %v5770 = vpack.c.b16 %v3794, %v3792
        %v5771 = vpack.c.b16 %v3797, %v3795
        %v5772 = vpack.c.b16 %v3798, %v3796
        %v5773 = vpack.c.b16 %v3801, %v3799
        %v5774 = vpack.c.b16 %v3802, %v3800
        %v5775 = vpack.c.b16 %v3805, %v3803
        %v5776 = vpack.c.b16 %v3806, %v3804
        %v5777 = vpack.c.b16 %v3809, %v3807
        %v5778 = vpack.c.b16 %v3810, %v3808
        %v5779 = vpack.c.b16 %v3813, %v3811
        %v5780 = vpack.c.b16 %v3814, %v3812
        %v5781 = vpack.c.b16 %v3817, %v3815
        %v5782 = vpack.c.b16 %v3818, %v3816
        %v5783 = vpack.c.b16 %v3821, %v3819
        %v5784 = vpack.c.b16 %v3822, %v3820
        %v5785 = vpack.c.b16 %v3825, %v3823
        %v5786 = vpack.c.b16 %v3826, %v3824
        %v5787 = vpack.c.b16 %v3829, %v3827
        %v5788 = vpack.c.b16 %v3830, %v3828
        %v5789 = vpack.c.b16 %v3833, %v3831
        %v5790 = vpack.c.b16 %v3834, %v3832
        %v5791 = vpack.c.b16 %v3837, %v3835
        %v5792 = vpack.c.b16 %v3838, %v3836
        %v5793 = vpack.c.b16 %v3841, %v3839
        %v5794 = vpack.c.b16 %v3842, %v3840
        %v5795 = vpack.c.b16 %v3845, %v3843
        %v5796 = vpack.c.b16 %v3846, %v3844
        %v5797 = vpack.c.b16 %v3849, %v3847
        %v5798 = vpack.c.b16 %v3850, %v3848
        %v5799 = vpack.c.b16 %v3853, %v3851
        %v5800 = vpack.c.b16 %v3854, %v3852
        %v5801 = vpack.c.b16 %v3857, %v3855
        %v5802 = vpack.c.b16 %v3858, %v3856
        %v5803 = vpack.c.b16 %v3861, %v3859
        %v5804 = vpack.c.b16 %v3862, %v3860
        %v5805 = vpack.c.b16 %v3865, %v3863
        %v5806 = vpack.c.b16 %v3866, %v3864
        %v5807 = vpack.c.b16 %v3869, %v3867
        %v5808 = vpack.c.b16 %v3870, %v3868
        %v5809 = vpack.c.b16 %v3873, %v3871
        %v5810 = vpack.c.b16 %v3874, %v3872
        %v5811 = vpack.c.b16 %v3877, %v3875
        %v5812 = vpack.c.b16 %v3878, %v3876
        %v5813 = vpack.c.b16 %v3881, %v3879
        %v5814 = vpack.c.b16 %v3882, %v3880
        %v5815 = vpack.c.b16 %v3885, %v3883
        %v5816 = vpack.c.b16 %v3886, %v3884
        %v5817 = vpack.c.b16 %v3889, %v3887
        %v5818 = vpack.c.b16 %v3890, %v3888
        %v5819 = vpack.c.b16 %v3893, %v3891
        %v5820 = vpack.c.b16 %v3894, %v3892
        %v5821 = vpack.c.b16 %v3897, %v3895
        %v5822 = vpack.c.b16 %v3898, %v3896
        %v5823 = vpack.c.b16 %v3901, %v3899
        %v5824 = vpack.c.b16 %v3902, %v3900
        %v5825 = vpack.c.b16 %v3905, %v3903
        %v5826 = vpack.c.b16 %v3906, %v3904
        %v5827 = vpack.c.b16 %v3909, %v3907
        %v5828 = vpack.c.b16 %v3910, %v3908
        %v5829 = vpack.c.b16 %v3913, %v3911
        %v5830 = vpack.c.b16 %v3914, %v3912
        %v5831 = vpack.c.b16 %v3917, %v3915
        %v5832 = vpack.c.b16 %v3918, %v3916
        %v5833 = vpack.c.b16 %v3921, %v3919
        %v5834 = vpack.c.b16 %v3922, %v3920
        %v5835 = vpack.c.b16 %v3925, %v3923
        %v5836 = vpack.c.b16 %v3926, %v3924
        %v5837 = vpack.c.b16 %v3929, %v3927
        %v5838 = vpack.c.b16 %v3930, %v3928
        %v5839 = vpack.c.b16 %v3933, %v3931
        %v5840 = vpack.c.b16 %v3934, %v3932
        %v5841 = vpack.c.b16 %v3937, %v3935
        %v5842 = vpack.c.b16 %v3938, %v3936
        %v5843 = vpack.c.b16 %v3941, %v3939
        %v5844 = vpack.c.b16 %v3942, %v3940
        %v5845 = vpack.c.b16 %v3945, %v3943
        %v5846 = vpack.c.b16 %v3946, %v3944
        %v5847 = vpack.c.b16 %v3949, %v3947
        %v5848 = vpack.c.b16 %v3950, %v3948
        %v5849 = vpack.c.b16 %v3953, %v3951
        %v5850 = vpack.c.b16 %v3954, %v3952
        %v5851 = vpack.c.b16 %v3957, %v3955
        %v5852 = vpack.c.b16 %v3958, %v3956
        %v5853 = vpack.c.b16 %v3961, %v3959
        %v5854 = vpack.c.b16 %v3962, %v3960
        %v5855 = vpack.c.b16 %v3965, %v3963
        %v5856 = vpack.c.b16 %v3966, %v3964
        %v5857 = vpack.c.b16 %v3969, %v3967
        %v5858 = vpack.c.b16 %v3970, %v3968
        %v5859 = vpack.c.b16 %v3973, %v3971
        %v5860 = vpack.c.b16 %v3974, %v3972
        %v5861 = vpack.c.b16 %v3977, %v3975
        %v5862 = vpack.c.b16 %v3978, %v3976
        %v5863 = vpack.c.b16 %v3981, %v3979
        %v5864 = vpack.c.b16 %v3982, %v3980
        %v5865 = vpack.c.b16 %v3985, %v3983
        %v5866 = vpack.c.b16 %v3986, %v3984
        %v5867 = vpack.c.b16 %v3989, %v3987
        %v5868 = vpack.c.b16 %v3990, %v3988
        %v5869 = vpack.c.b16 %v3993, %v3991
        %v5870 = vpack.c.b16 %v3994, %v3992
        %v5871 = vpack.c.b16 %v3997, %v3995
        %v5872 = vpack.c.b16 %v3998, %v3996
        %v5873 = vpack.c.b16 %v4001, %v3999
        %v5874 = vpack.c.b16 %v4002, %v4000
        %v5875 = vpack.c.b16 %v4005, %v4003
        %v5876 = vpack.c.b16 %v4006, %v4004
        %v5877 = vpack.c.b16 %v4009, %v4007
        %v5878 = vpack.c.b16 %v4010, %v4008
        %v5879 = vpack.c.b16 %v4013, %v4011
        %v5880 = vpack.c.b16 %v4014, %v4012
        %v5881 = vpack.c.b16 %v4017, %v4015
        %v5882 = vpack.c.b16 %v4018, %v4016
        %v5883 = vpack.c.b16 %v4021, %v4019
        %v5884 = vpack.c.b16 %v4022, %v4020
        %v5885 = vpack.c.b16 %v4025, %v4023
        %v5886 = vpack.c.b16 %v4026, %v4024
        %v5887 = vpack.c.b16 %v4029, %v4027
        %v5888 = vpack.c.b16 %v4030, %v4028
        %v5889 = vpack.c.b16 %v4033, %v4031
        %v5890 = vpack.c.b16 %v4034, %v4032
        %v5891 = vpack.c.b16 %v4037, %v4035
        %v5892 = vpack.c.b16 %v4038, %v4036
        %v5893 = vpack.c.b16 %v4041, %v4039
        %v5894 = vpack.c.b16 %v4042, %v4040
        %v5895 = vpack.c.b16 %v4045, %v4043
        %v5896 = vpack.c.b16 %v4046, %v4044
        %v5897 = vpack.c.b16 %v4049, %v4047
        %v5898 = vpack.c.b16 %v4050, %v4048
        %v5899 = vpack.c.b16 %v4053, %v4051
        %v5900 = vpack.c.b16 %v4054, %v4052
        %v5901 = vpack.c.b16 %v4057, %v4055
        %v5902 = vpack.c.b16 %v4058, %v4056
        %v5903 = vpack.c.b16 %v4061, %v4059
        %v5904 = vpack.c.b16 %v4062, %v4060
        %v5905 = vpack.c.b16 %v4065, %v4063
        %v5906 = vpack.c.b16 %v4066, %v4064
        %v5907 = vpack.c.b16 %v4069, %v4067
        %v5908 = vpack.c.b16 %v4070, %v4068
        %v5909 = vpack.c.b16 %v4073, %v4071
        %v5910 = vpack.c.b16 %v4074, %v4072
        %v5911 = vpack.c.b16 %v4077, %v4075
        %v5912 = vpack.c.b16 %v4078, %v4076
        %v5913 = vpack.c.b16 %v4081, %v4079
        %v5914 = vpack.c.b16 %v4082, %v4080
        %v5915 = vpack.c.b16 %v4085, %v4083
        %v5916 = vpack.c.b16 %v4086, %v4084
        %v5917 = vpack.c.b16 %v4089, %v4087
        %v5918 = vpack.c.b16 %v4090, %v4088
        %v5919 = vpack.c.b16 %v4093, %v4091
        %v5920 = vpack.c.b16 %v4094, %v4092
        %v5921 = vpack.c.b16 %v4097, %v4095
        %v5922 = vpack.c.b16 %v4098, %v4096
        %v5923 = vpack.c.b16 %v4101, %v4099
        %v5924 = vpack.c.b16 %v4102, %v4100
        %v5925 = vpack.c.b16 %v4105, %v4103
        %v5926 = vpack.c.b16 %v4106, %v4104
        %v5927 = vpack.c.b16 %v4109, %v4107
        %v5928 = vpack.c.b16 %v4110, %v4108
        %v5929 = vpack.c.b16 %v4113, %v4111
        %v5930 = vpack.c.b16 %v4114, %v4112
        %v5931 = vpack.c.b16 %v4117, %v4115
        %v5932 = vpack.c.b16 %v4118, %v4116
        %v5933 = vpack.c.b16 %v4121, %v4119
        %v5934 = vpack.c.b16 %v4122, %v4120
        %v5935 = vpack.c.b16 %v4125, %v4123
        %v5936 = vpack.c.b16 %v4126, %v4124
        %v5937 = vpack.c.b16 %v4129, %v4127
        %v5938 = vpack.c.b16 %v4130, %v4128
        %v5939 = vpack.c.b16 %v4133, %v4131
        %v5940 = vpack.c.b16 %v4134, %v4132
        %v5941 = vpack.c.b16 %v4137, %v4135
        %v5942 = vpack.c.b16 %v4138, %v4136
        %v5943 = vpack.c.b16 %v4141, %v4139
        %v5944 = vpack.c.b16 %v4142, %v4140
        %v5945 = vpack.c.b16 %v4145, %v4143
        %v5946 = vpack.c.b16 %v4146, %v4144
        %v5947 = vpack.c.b16 %v4149, %v4147
        %v5948 = vpack.c.b16 %v4150, %v4148
        %v5949 = vpack.c.b16 %v4153, %v4151
        %v5950 = vpack.c.b16 %v4154, %v4152
        %v5951 = vpack.c.b16 %v4157, %v4155
        %v5952 = vpack.c.b16 %v4158, %v4156
        %v5953 = vpack.c.b16 %v4161, %v4159
        %v5954 = vpack.c.b16 %v4162, %v4160
        %v5955 = vpack.c.b16 %v4165, %v4163
        %v5956 = vpack.c.b16 %v4166, %v4164
        %v5957 = vpack.c.b16 %v4169, %v4167
        %v5958 = vpack.c.b16 %v4170, %v4168
        %v5959 = vpack.c.b16 %v4173, %v4171
        %v5960 = vpack.c.b16 %v4174, %v4172
        %v5961 = vpack.c.b16 %v4177, %v4175
        %v5962 = vpack.c.b16 %v4178, %v4176
        %v5963 = vpack.c.b16 %v4181, %v4179
        %v5964 = vpack.c.b16 %v4182, %v4180
        %v5965 = vpack.c.b16 %v4185, %v4183
        %v5966 = vpack.c.b16 %v4186, %v4184
        %v5967 = vpack.c.b16 %v4189, %v4187
        %v5968 = vpack.c.b16 %v4190, %v4188
        %v5969 = vpack.c.b16 %v4193, %v4191
        %v5970 = vpack.c.b16 %v4194, %v4192
        %v5971 = vpack.c.b16 %v4197, %v4195
        %v5972 = vpack.c.b16 %v4198, %v4196
        %v5973 = vpack.c.b16 %v4201, %v4199
        %v5974 = vpack.c.b16 %v4202, %v4200
        %v5975 = vpack.c.b16 %v4205, %v4203
        %v5976 = vpack.c.b16 %v4206, %v4204
        %v5977 = vpack.c.b16 %v4209, %v4207
        %v5978 = vpack.c.b16 %v4210, %v4208
        %v5979 = vpack.c.b16 %v4213, %v4211
        %v5980 = vpack.c.b16 %v4214, %v4212
        %v5981 = vpack.c.b16 %v4217, %v4215
        %v5982 = vpack.c.b16 %v4218, %v4216
        %v5983 = vpack.c.b16 %v4221, %v4219
        %v5984 = vpack.c.b16 %v4222, %v4220
        %v5985 = vpack.c.b16 %v4225, %v4223
        %v5986 = vpack.c.b16 %v4226, %v4224
        %v5987 = vpack.c.b16 %v4229, %v4227
        %v5988 = vpack.c.b16 %v4230, %v4228
        %v5989 = vpack.c.b16 %v4233, %v4231
        %v5990 = vpack.c.b16 %v4234, %v4232
        %v5991 = vpack.c.b16 %v4237, %v4235
        %v5992 = vpack.c.b16 %v4238, %v4236
        %v5993 = vpack.c.b16 %v4241, %v4239
        %v5994 = vpack.c.b16 %v4242, %v4240
        %v5995 = vpack.c.b16 %v4245, %v4243
        %v5996 = vpack.c.b16 %v4246, %v4244
        %v5997 = vpack.c.b16 %v4249, %v4247
        %v5998 = vpack.c.b16 %v4250, %v4248
        %v5999 = vpack.c.b16 %v4253, %v4251
        %v6000 = vpack.c.b16 %v4254, %v4252
        %v6001 = vpack.c.b16 %v4257, %v4255
        %v6002 = vpack.c.b16 %v4258, %v4256
        %v6003 = vpack.c.b16 %v4261, %v4259
        %v6004 = vpack.c.b16 %v4262, %v4260
        %v6005 = vpack.c.b16 %v4265, %v4263
        %v6006 = vpack.c.b16 %v4266, %v4264
        %v6007 = vpack.c.b16 %v4269, %v4267
        %v6008 = vpack.c.b16 %v4270, %v4268
        %v6009 = vpack.c.b16 %v4273, %v4271
        %v6010 = vpack.c.b16 %v4274, %v4272
        %v6011 = vpack.c.b16 %v4277, %v4275
        %v6012 = vpack.c.b16 %v4278, %v4276
        %v6013 = vpack.c.b16 %v4281, %v4279
        %v6014 = vpack.c.b16 %v4282, %v4280
        %v6015 = vpack.c.b16 %v4285, %v4283
        %v6016 = vpack.c.b16 %v4286, %v4284
        %v6017 = vpack.c.b16 %v4289, %v4287
        %v6018 = vpack.c.b16 %v4290, %v4288
        %v6019 = vpack.c.b16 %v4293, %v4291
        %v6020 = vpack.c.b16 %v4294, %v4292
        %v6021 = vpack.c.b16 %v4297, %v4295
        %v6022 = vpack.c.b16 %v4298, %v4296
        %v6023 = vpack.c.b16 %v4301, %v4299
        %v6024 = vpack.c.b16 %v4302, %v4300
        %v6025 = vpack.c.b16 %v4305, %v4303
        %v6026 = vpack.c.b16 %v4306, %v4304
        %v6027 = vpack.c.b16 %v4309, %v4307
        %v6028 = vpack.c.b16 %v4310, %v4308
        %v6029 = vpack.c.b16 %v4313, %v4311
        %v6030 = vpack.c.b16 %v4314, %v4312
        %v6031 = vpack.c.b16 %v4317, %v4315
        %v6032 = vpack.c.b16 %v4318, %v4316
        %v6033 = vpack.c.b16 %v4321, %v4319
        %v6034 = vpack.c.b16 %v4322, %v4320
        %v6035 = vpack.c.b16 %v4325, %v4323
        %v6036 = vpack.c.b16 %v4326, %v4324
        %v6037 = vpack.c.b16 %v4329, %v4327
        %v6038 = vpack.c.b16 %v4330, %v4328
        %v6039 = vpack.c.b16 %v4333, %v4331
        %v6040 = vpack.c.b16 %v4334, %v4332
        %v6041 = vpack.c.b16 %v4337, %v4335
        %v6042 = vpack.c.b16 %v4338, %v4336
        %v6043 = vpack.c.b16 %v4341, %v4339
        %v6044 = vpack.c.b16 %v4342, %v4340
        %v6045 = vpack.c.b16 %v4345, %v4343
        %v6046 = vpack.c.b16 %v4346, %v4344
        %v6047 = vpack.c.b16 %v4349, %v4347
        %v6048 = vpack.c.b16 %v4350, %v4348
        %v6049 = vpack.c.b16 %v4353, %v4351
        %v6050 = vpack.c.b16 %v4354, %v4352
        %v6051 = vpack.c.b16 %v4357, %v4355
        %v6052 = vpack.c.b16 %v4358, %v4356
        %v6053 = vpack.c.b16 %v4361, %v4359
        %v6054 = vpack.c.b16 %v4362, %v4360
        %v6055 = vpack.c.b16 %v4365, %v4363
        %v6056 = vpack.c.b16 %v4366, %v4364
        %v6057 = vpack.c.b16 %v4369, %v4367
        %v6058 = vpack.c.b16 %v4370, %v4368
        %v6059 = vpack.c.b16 %v4373, %v4371
        %v6060 = vpack.c.b16 %v4374, %v4372
        %v6061 = vpack.c.b16 %v4377, %v4375
        %v6062 = vpack.c.b16 %v4378, %v4376
        %v6063 = vpack.c.b16 %v4381, %v4379
        %v6064 = vpack.c.b16 %v4382, %v4380
        %v6065 = vpack.c.b16 %v4385, %v4383
        %v6066 = vpack.c.b16 %v4386, %v4384
        %v6067 = vpack.c.b16 %v4389, %v4387
        %v6068 = vpack.c.b16 %v4390, %v4388
        %v6069 = vpack.c.b16 %v4393, %v4391
        %v6070 = vpack.c.b16 %v4394, %v4392
        %v6071 = vpack.c.b16 %v4397, %v4395
        %v6072 = vpack.c.b16 %v4398, %v4396
        %v6073 = vpack.c.b16 %v4401, %v4399
        %v6074 = vpack.c.b16 %v4402, %v4400
        %v6075 = vpack.c.b16 %v4405, %v4403
        %v6076 = vpack.c.b16 %v4406, %v4404
        %v6077 = vpack.c.b16 %v4409, %v4407
        %v6078 = vpack.c.b16 %v4410, %v4408
        %v6079 = vpack.c.b16 %v4413, %v4411
        %v6080 = vpack.c.b16 %v4414, %v4412
        %v6081 = vpack.c.b16 %v4417, %v4415
        %v6082 = vpack.c.b16 %v4418, %v4416
        %v6083 = vpack.c.b16 %v4421, %v4419
        %v6084 = vpack.c.b16 %v4422, %v4420
        %v6085 = vpack.c.b16 %v4425, %v4423
        %v6086 = vpack.c.b16 %v4426, %v4424
        %v6087 = vpack.c.b16 %v4429, %v4427
        %v6088 = vpack.c.b16 %v4430, %v4428
        %v6089 = vpack.c.b16 %v4433, %v4431
        %v6090 = vpack.c.b16 %v4434, %v4432
        %v6091 = vpack.c.b16 %v4437, %v4435
        %v6092 = vpack.c.b16 %v4438, %v4436
        %v6093 = vpack.c.b16 %v4441, %v4439
        %v6094 = vpack.c.b16 %v4442, %v4440
        %v6095 = vpack.c.b16 %v4445, %v4443
        %v6096 = vpack.c.b16 %v4446, %v4444
        %v6097 = vpack.c.b16 %v4449, %v4447
        %v6098 = vpack.c.b16 %v4450, %v4448
        %v6099 = vpack.c.b16 %v4453, %v4451
        %v6100 = vpack.c.b16 %v4454, %v4452
        %v6101 = vpack.c.b16 %v4457, %v4455
        %v6102 = vpack.c.b16 %v4458, %v4456
        %v6103 = vpack.c.b16 %v4461, %v4459
        %v6104 = vpack.c.b16 %v4462, %v4460
        %v6105 = vpack.c.b16 %v4465, %v4463
        %v6106 = vpack.c.b16 %v4466, %v4464
        %v6107 = vpack.c.b16 %v4469, %v4467
        %v6108 = vpack.c.b16 %v4470, %v4468
        %v6109 = vpack.c.b16 %v4473, %v4471
        %v6110 = vpack.c.b16 %v4474, %v4472
        %v6111 = vpack.c.b16 %v4477, %v4475
        %v6112 = vpack.c.b16 %v4478, %v4476
        %v6113 = vpack.c.b16 %v4481, %v4479
        %v6114 = vpack.c.b16 %v4482, %v4480
        %v6115 = vpack.c.b16 %v4485, %v4483
        %v6116 = vpack.c.b16 %v4486, %v4484
        %v6117 = vpack.c.b16 %v4489, %v4487
        %v6118 = vpack.c.b16 %v4490, %v4488
        %v6119 = vpack.c.b16 %v4493, %v4491
        %v6120 = vpack.c.b16 %v4494, %v4492
        %v6121 = vpack.c.b16 %v4497, %v4495
        %v6122 = vpack.c.b16 %v4498, %v4496
        %v6123 = vpack.c.b16 %v4501, %v4499
        %v6124 = vpack.c.b16 %v4502, %v4500
        %v6125 = vpack.c.b16 %v4505, %v4503
        %v6126 = vpack.c.b16 %v4506, %v4504
        %v6127 = vpack.c.b16 %v4509, %v4507
        %v6128 = vpack.c.b16 %v4510, %v4508
        %v6129 = vpack.c.b16 %v4513, %v4511
        %v6130 = vpack.c.b16 %v4514, %v4512
        %v6131 = vpack.c.b16 %v4517, %v4515
        %v6132 = vpack.c.b16 %v4518, %v4516
        %v6133 = vpack.c.b16 %v4521, %v4519
        %v6134 = vpack.c.b16 %v4522, %v4520
        %v6135 = vpack.c.b16 %v4525, %v4523
        %v6136 = vpack.c.b16 %v4526, %v4524
        %v6137 = vpack.c.b16 %v4529, %v4527
        %v6138 = vpack.c.b16 %v4530, %v4528
        %v6139 = vpack.c.b16 %v4533, %v4531
        %v6140 = vpack.c.b16 %v4534, %v4532
        %v6141 = vpack.c.b16 %v4537, %v4535
        %v6142 = vpack.c.b16 %v4538, %v4536
        %v6143 = vpack.c.b16 %v4541, %v4539
        %v6144 = vpack.c.b16 %v4542, %v4540
        %v6145 = vpack.c.b16 %v4545, %v4543
        %v6146 = vpack.c.b16 %v4546, %v4544
        %v6147 = vpack.c.b16 %v4549, %v4547
        %v6148 = vpack.c.b16 %v4550, %v4548
        %v6149 = vpack.c.b16 %v4553, %v4551
        %v6150 = vpack.c.b16 %v4554, %v4552
        %v6151 = vpack.c.b16 %v4557, %v4555
        %v6152 = vpack.c.b16 %v4558, %v4556
        %v6153 = vpack.c.b16 %v4561, %v4559
        %v6154 = vpack.c.b16 %v4562, %v4560
        %v6155 = vpack.c.b16 %v4565, %v4563
        %v6156 = vpack.c.b16 %v4566, %v4564
        %v6157 = vpack.c.b16 %v4569, %v4567
        %v6158 = vpack.c.b16 %v4570, %v4568
        %v6159 = vpack.c.b16 %v4573, %v4571
        %v6160 = vpack.c.b16 %v4574, %v4572
        %v6161 = vpack.c.b16 %v4577, %v4575
        %v6162 = vpack.c.b16 %v4578, %v4576
        %v6163 = vpack.c.b16 %v4581, %v4579
        %v6164 = vpack.c.b16 %v4582, %v4580
        %v6165 = vpack.c.b16 %v4585, %v4583
        %v6166 = vpack.c.b16 %v4586, %v4584
        %v6167 = vpack.c.b16 %v4589, %v4587
        %v6168 = vpack.c.b16 %v4590, %v4588
        %v6169 = vpack.c.b16 %v4593, %v4591
        %v6170 = vpack.c.b16 %v4594, %v4592
        %v6171 = vpack.c.b16 %v4597, %v4595
        %v6172 = vpack.c.b16 %v4598, %v4596
        %v6173 = vpack.c.b16 %v4601, %v4599
        %v6174 = vpack.c.b16 %v4602, %v4600
        %v6175 = vpack.c.b16 %v4605, %v4603
        %v6176 = vpack.c.b16 %v4606, %v4604
        %v6177 = vpack.c.b16 %v4609, %v4607
        %v6178 = vpack.c.b16 %v4610, %v4608
        %v6179 = vpack.c.b16 %v4613, %v4611
        %v6180 = vpack.c.b16 %v4614, %v4612
        %v6181 = vpack.c.b16 %v4617, %v4615
        %v6182 = vpack.c.b16 %v4618, %v4616
        %v6183 = vpack.c.b16 %v4621, %v4619
        %v6184 = vpack.c.b16 %v4622, %v4620
        %v6185 = vpack.c.b16 %v4625, %v4623
        %v6186 = vpack.c.b16 %v4626, %v4624
        %v6187 = vpack.c.b16 %v4629, %v4627
        %v6188 = vpack.c.b16 %v4630, %v4628
        %v6189 = vpack.c.b16 %v4633, %v4631
        %v6190 = vpack.c.b16 %v4634, %v4632
        %v6191 = vpack.c.b16 %v4637, %v4635
        %v6192 = vpack.c.b16 %v4638, %v4636
        %v6193 = vpack.c.b16 %v4641, %v4639
        %v6194 = vpack.c.b16 %v4642, %v4640
        %v6195 = vpack.c.b16 %v4645, %v4643
        %v6196 = vpack.c.b16 %v4646, %v4644
        %v6197 = vpack.c.b16 %v4649, %v4647
        %v6198 = vpack.c.b16 %v4650, %v4648
        %v6199 = vpack.c.b16 %v4653, %v4651
        %v6200 = vpack.c.b16 %v4654, %v4652
        %v6201 = vpack.c.b16 %v4657, %v4655
        %v6202 = vpack.c.b16 %v4658, %v4656
        %v6203 = vpack.c.b16 %v4661, %v4659
        %v6204 = vpack.c.b16 %v4662, %v4660
        %v6205 = vpack.c.b16 %v4665, %v4663
        %v6206 = vpack.c.b16 %v4666, %v4664
        %v6207 = vpack.c.b16 %v4669, %v4667
        %v6208 = vpack.c.b16 %v4670, %v4668
        %v6209 = vpack.c.b16 %v4673, %v4671
        %v6210 = vpack.c.b16 %v4674, %v4672
        %v6211 = vpack.c.b16 %v4677, %v4675
        %v6212 = vpack.c.b16 %v4678, %v4676
        %v6213 = vpack.c.b16 %v4681, %v4679
        %v6214 = vpack.c.b16 %v4682, %v4680
        %v6215 = vpack.c.b16 %v4685, %v4683
        %v6216 = vpack.c.b16 %v4686, %v4684
        %v6217 = vpack.c.b16 %v4689, %v4687
        %v6218 = vpack.c.b16 %v4690, %v4688
        %v6219 = vpack.c.b16 %v4693, %v4691
        %v6220 = vpack.c.b16 %v4694, %v4692
        %v6221 = vpack.c.b16 %v4697, %v4695
        %v6222 = vpack.c.b16 %v4698, %v4696
        %v6223 = vpack.c.b16 %v4701, %v4699
        %v6224 = vpack.c.b16 %v4702, %v4700
        %v6225 = vpack.c.b16 %v4705, %v4703
        %v6226 = vpack.c.b16 %v4706, %v4704
        %v6227 = vpack.c.b16 %v4709, %v4707
        %v6228 = vpack.c.b16 %v4710, %v4708
        %v6229 = vpack.c.b16 %v4713, %v4711
        %v6230 = vpack.c.b16 %v4714, %v4712
        %v6231 = vpack.c.b16 %v4717, %v4715
        %v6232 = vpack.c.b16 %v4718, %v4716
        %v6233 = vpack.c.b16 %v4721, %v4719
        %v6234 = vpack.c.b16 %v4722, %v4720
        %v6235 = vpack.c.b16 %v4725, %v4723
        %v6236 = vpack.c.b16 %v4726, %v4724
        %v6237 = vpack.c.b16 %v4729, %v4727
        %v6238 = vpack.c.b16 %v4730, %v4728
        %v6239 = vpack.c.b16 %v4733, %v4731
        %v6240 = vpack.c.b16 %v4734, %v4732
        %v6241 = vpack.c.b16 %v4737, %v4735
        %v6242 = vpack.c.b16 %v4738, %v4736
        %v6243 = vpack.c.b16 %v4741, %v4739
        %v6244 = vpack.c.b16 %v4742, %v4740
        %v6245 = vpack.c.b16 %v4745, %v4743
        %v6246 = vpack.c.b16 %v4746, %v4744
        %v6247 = vpack.c.b16 %v4749, %v4747
        %v6248 = vpack.c.b16 %v4750, %v4748
        %v6249 = vpack.c.b16 %v4753, %v4751
        %v6250 = vpack.c.b16 %v4754, %v4752
        %v6251 = vpack.c.b16 %v4757, %v4755
        %v6252 = vpack.c.b16 %v4758, %v4756
        %v6253 = vpack.c.b16 %v4761, %v4759
        %v6254 = vpack.c.b16 %v4762, %v4760
        %v6255 = vpack.c.b16 %v4765, %v4763
        %v6256 = vpack.c.b16 %v4766, %v4764
        %v6257 = vpack.c.b16 %v4769, %v4767
        %v6258 = vpack.c.b16 %v4770, %v4768
        %v6259 = vpack.c.b16 %v4773, %v4771
        %v6260 = vpack.c.b16 %v4774, %v4772
        %v6261 = vpack.c.b16 %v4777, %v4775
        %v6262 = vpack.c.b16 %v4778, %v4776
        %v6263 = vpack.c.b16 %v4781, %v4779
        %v6264 = vpack.c.b16 %v4782, %v4780
        %v6265 = vpack.c.b16 %v4785, %v4783
        %v6266 = vpack.c.b16 %v4786, %v4784
        %v6267 = vpack.c.b16 %v4789, %v4787
        %v6268 = vpack.c.b16 %v4790, %v4788
        %v6269 = vpack.c.b16 %v4793, %v4791
        %v6270 = vpack.c.b16 %v4794, %v4792
        %v6271 = vpack.c.b16 %v4797, %v4795
        %v6272 = vpack.c.b16 %v4798, %v4796
        %v6273 = vpack.c.b16 %v4801, %v4799
        %v6274 = vpack.c.b16 %v4802, %v4800
        %v6275 = vpack.c.b16 %v4805, %v4803
        %v6276 = vpack.c.b16 %v4806, %v4804
        %v6277 = vpack.c.b16 %v4809, %v4807
        %v6278 = vpack.c.b16 %v4810, %v4808
        %v6279 = vpack.c.b16 %v4813, %v4811
        %v6280 = vpack.c.b16 %v4814, %v4812
        %v6281 = vpack.c.b16 %v4817, %v4815
        %v6282 = vpack.c.b16 %v4818, %v4816
        %v6283 = vpack.c.b16 %v4821, %v4819
        %v6284 = vpack.c.b16 %v4822, %v4820
        %v6285 = vpack.c.b16 %v4825, %v4823
        %v6286 = vpack.c.b16 %v4826, %v4824
        %v6287 = vpack.c.b16 %v4829, %v4827
        %v6288 = vpack.c.b16 %v4830, %v4828
        %v6289 = vpack.c.b16 %v4833, %v4831
        %v6290 = vpack.c.b16 %v4834, %v4832
        %v6291 = vpack.c.b16 %v4837, %v4835
        %v6292 = vpack.c.b16 %v4838, %v4836
        %v6293 = vpack.c.b16 %v4841, %v4839
        %v6294 = vpack.c.b16 %v4842, %v4840
        %v6295 = vpack.c.b16 %v4845, %v4843
        %v6296 = vpack.c.b16 %v4846, %v4844
        %v6297 = vpack.c.b16 %v4849, %v4847
        %v6298 = vpack.c.b16 %v4850, %v4848
        %v6299 = vpack.c.b16 %v4853, %v4851
        %v6300 = vpack.c.b16 %v4854, %v4852
        %v6301 = vpack.c.b16 %v4857, %v4855
        %v6302 = vpack.c.b16 %v4858, %v4856
        %v6303 = vpack.c.b16 %v4861, %v4859
        %v6304 = vpack.c.b16 %v4862, %v4860
        %v6305 = vpack.c.b16 %v4865, %v4863
        %v6306 = vpack.c.b16 %v4866, %v4864
        %v6307 = vpack.c.b16 %v4869, %v4867
        %v6308 = vpack.c.b16 %v4870, %v4868
        %v6309 = vpack.c.b16 %v4873, %v4871
        %v6310 = vpack.c.b16 %v4874, %v4872
        %v6311 = vpack.c.b16 %v4877, %v4875
        %v6312 = vpack.c.b16 %v4878, %v4876
        %v6313 = vpack.c.b16 %v4881, %v4879
        %v6314 = vpack.c.b16 %v4882, %v4880
        %v6315 = vpack.c.b16 %v4885, %v4883
        %v6316 = vpack.c.b16 %v4886, %v4884
        %v6317 = vpack.c.b16 %v4889, %v4887
        %v6318 = vpack.c.b16 %v4890, %v4888
        %v6319 = vpack.c.b16 %v4893, %v4891
        %v6320 = vpack.c.b16 %v4894, %v4892
        %v6321 = vpack.c.b16 %v4897, %v4895
        %v6322 = vpack.c.b16 %v4898, %v4896
        %v6323 = vpack.c.b16 %v4901, %v4899
        %v6324 = vpack.c.b16 %v4902, %v4900
        %v6325 = vpack.c.b16 %v4905, %v4903
        %v6326 = vpack.c.b16 %v4906, %v4904
        %v6327 = vpack.c.b16 %v4909, %v4907
        %v6328 = vpack.c.b16 %v4910, %v4908
        %v6329 = vpack.c.b16 %v4913, %v4911
        %v6330 = vpack.c.b16 %v4914, %v4912
        %v6331 = vpack.c.b16 %v4917, %v4915
        %v6332 = vpack.c.b16 %v4918, %v4916
        %v6333 = vpack.c.b16 %v4921, %v4919
        %v6334 = vpack.c.b16 %v4922, %v4920
        %v6335 = vpack.c.b16 %v4925, %v4923
        %v6336 = vpack.c.b16 %v4926, %v4924
        %v6337 = vpack.c.b16 %v4929, %v4927
        %v6338 = vpack.c.b16 %v4930, %v4928
        %v6339 = vpack.c.b16 %v4933, %v4931
        %v6340 = vpack.c.b16 %v4934, %v4932
        %v6341 = vpack.c.b16 %v4937, %v4935
        %v6342 = vpack.c.b16 %v4938, %v4936
        %v6343 = vpack.c.b16 %v4941, %v4939
        %v6344 = vpack.c.b16 %v4942, %v4940
        %v6345 = vpack.c.b16 %v4945, %v4943
        %v6346 = vpack.c.b16 %v4946, %v4944
        %v6347 = vpack.c.b16 %v4949, %v4947
        %v6348 = vpack.c.b16 %v4950, %v4948
        %v6349 = vpack.c.b16 %v4953, %v4951
        %v6350 = vpack.c.b16 %v4954, %v4952
        %v6351 = vpack.c.b16 %v4957, %v4955
        %v6352 = vpack.c.b16 %v4958, %v4956
        %v6353 = vpack.c.b16 %v4961, %v4959
        %v6354 = vpack.c.b16 %v4962, %v4960
        %v6355 = vpack.c.b16 %v4965, %v4963
        %v6356 = vpack.c.b16 %v4966, %v4964
        %v6357 = vpack.c.b16 %v4969, %v4967
        %v6358 = vpack.c.b16 %v4970, %v4968
        %v6359 = vpack.c.b16 %v4973, %v4971
        %v6360 = vpack.c.b16 %v4974, %v4972
        %v6361 = vpack.c.b16 %v4977, %v4975
        %v6362 = vpack.c.b16 %v4978, %v4976
        %v6363 = vpack.c.b16 %v4981, %v4979
        %v6364 = vpack.c.b16 %v4982, %v4980
        %v6365 = vpack.c.b16 %v4985, %v4983
        %v6366 = vpack.c.b16 %v4986, %v4984
        %v6367 = vpack.c.b16 %v4989, %v4987
        %v6368 = vpack.c.b16 %v4990, %v4988
        %v6369 = vpack.c.b16 %v4993, %v4991
        %v6370 = vpack.c.b16 %v4994, %v4992
        %v6371 = vpack.c.b16 %v4997, %v4995
        %v6372 = vpack.c.b16 %v4998, %v4996
        %v6373 = vpack.c.b16 %v5001, %v4999
        %v6374 = vpack.c.b16 %v5002, %v5000
        %v6375 = vpack.c.b16 %v5005, %v5003
        %v6376 = vpack.c.b16 %v5006, %v5004
        %v6377 = vpack.c.b16 %v5009, %v5007
        %v6378 = vpack.c.b16 %v5010, %v5008
        %v6379 = vpack.c.b16 %v5013, %v5011
        %v6380 = vpack.c.b16 %v5014, %v5012
        %v6381 = vpack.c.b16 %v5017, %v5015
        %v6382 = vpack.c.b16 %v5018, %v5016
        %v6383 = vpack.c.b16 %v5021, %v5019
        %v6384 = vpack.c.b16 %v5022, %v5020
        %v6385 = vpack.c.b16 %v5025, %v5023
        %v6386 = vpack.c.b16 %v5026, %v5024
        %v6387 = vpack.c.b16 %v5029, %v5027
        %v6388 = vpack.c.b16 %v5030, %v5028
        %v6389 = vpack.c.b16 %v5033, %v5031
        %v6390 = vpack.c.b16 %v5034, %v5032
        %v6391 = vpack.c.b16 %v5037, %v5035
        %v6392 = vpack.c.b16 %v5038, %v5036
        %v6393 = vpack.c.b16 %v5041, %v5039
        %v6394 = vpack.c.b16 %v5042, %v5040
        %v6395 = vpack.c.b16 %v5045, %v5043
        %v6396 = vpack.c.b16 %v5046, %v5044
        %v6397 = vpack.c.b16 %v5049, %v5047
        %v6398 = vpack.c.b16 %v5050, %v5048
        %v6399 = vpack.c.b16 %v5053, %v5051
        %v6400 = vpack.c.b16 %v5054, %v5052
        %v6401 = vpack.c.b16 %v5057, %v5055
        %v6402 = vpack.c.b16 %v5058, %v5056
        %v6403 = vpack.c.b16 %v5061, %v5059
        %v6404 = vpack.c.b16 %v5062, %v5060
        %v6405 = vpack.c.b16 %v5065, %v5063
        %v6406 = vpack.c.b16 %v5066, %v5064
        %v6407 = vpack.c.b16 %v5069, %v5067
        %v6408 = vpack.c.b16 %v5070, %v5068
        %v6409 = vpack.c.b16 %v5073, %v5071
        %v6410 = vpack.c.b16 %v5074, %v5072
        %v6411 = vpack.c.b16 %v5077, %v5075
        %v6412 = vpack.c.b16 %v5078, %v5076
        %v6413 = vpack.c.b16 %v5081, %v5079
        %v6414 = vpack.c.b16 %v5082, %v5080
        %v6415 = vpack.c.b16 %v5085, %v5083
        %v6416 = vpack.c.b16 %v5086, %v5084
        %v6417 = vpack.c.b16 %v5089, %v5087
        %v6418 = vpack.c.b16 %v5090, %v5088
        %v6419 = vpack.c.b16 %v5093, %v5091
        %v6420 = vpack.c.b16 %v5094, %v5092
        %v6421 = vpack.c.b16 %v5097, %v5095
        %v6422 = vpack.c.b16 %v5098, %v5096
        %v6423 = vpack.c.b16 %v5101, %v5099
        %v6424 = vpack.c.b16 %v5102, %v5100
        %v6425 = vpack.c.b16 %v5105, %v5103
        %v6426 = vpack.c.b16 %v5106, %v5104
        %v6427 = vpack.c.b16 %v5109, %v5107
        %v6428 = vpack.c.b16 %v5110, %v5108
        %v6429 = vpack.c.b16 %v5113, %v5111
        %v6430 = vpack.c.b16 %v5114, %v5112
        %v6431 = vpack.c.b16 %v5117, %v5115
        %v6432 = vpack.c.b16 %v5118, %v5116
        %v6433 = vpack.c.b16 %v5121, %v5119
        %v6434 = vpack.c.b16 %v5122, %v5120
        %v6435 = vpack.c.b16 %v5125, %v5123
        %v6436 = vpack.c.b16 %v5126, %v5124
        %v6437 = vpack.c.b16 %v5129, %v5127
        %v6438 = vpack.c.b16 %v5130, %v5128
        %v6439 = vpack.c.b16 %v5133, %v5131
        %v6440 = vpack.c.b16 %v5134, %v5132
        %v6441 = vpack.c.b16 %v5137, %v5135
        %v6442 = vpack.c.b16 %v5138, %v5136
        %v6443 = vpack.c.b16 %v5141, %v5139
        %v6444 = vpack.c.b16 %v5142, %v5140
        %v6445 = vpack.c.b16 %v5145, %v5143
        %v6446 = vpack.c.b16 %v5146, %v5144
        %v6447 = vpack.c.b16 %v5149, %v5147
        %v6448 = vpack.c.b16 %v5150, %v5148
        %v6449 = vpack.c.b16 %v5153, %v5151
        %v6450 = vpack.c.b16 %v5154, %v5152
        %v6451 = vpack.c.b16 %v5157, %v5155
        %v6452 = vpack.c.b16 %v5158, %v5156
        %v6453 = vpack.c.b16 %v5161, %v5159
        %v6454 = vpack.c.b16 %v5162, %v5160
        %v6455 = vpack.c.b16 %v5165, %v5163
        %v6456 = vpack.c.b16 %v5166, %v5164
        %v6457 = vpack.c.b16 %v5169, %v5167
        %v6458 = vpack.c.b16 %v5170, %v5168
        %v6459 = vpack.c.b16 %v5173, %v5171
        %v6460 = vpack.c.b16 %v5174, %v5172
        %v6461 = vpack.c.b16 %v5177, %v5175
        %v6462 = vpack.c.b16 %v5178, %v5176
        %v6463 = vpack.c.b16 %v5181, %v5179
        %v6464 = vpack.c.b16 %v5182, %v5180
        %v6465 = vpack.c.b16 %v5185, %v5183
        %v6466 = vpack.c.b16 %v5186, %v5184
        %v6467 = vpack.c.b16 %v5189, %v5187
        %v6468 = vpack.c.b16 %v5190, %v5188
        %v6469 = vpack.c.b16 %v5193, %v5191
        %v6470 = vpack.c.b16 %v5194, %v5192
        %v6471 = vpack.c.b16 %v5197, %v5195
        %v6472 = vpack.c.b16 %v5198, %v5196
        %v6473 = vpack.c.b16 %v5201, %v5199
        %v6474 = vpack.c.b16 %v5202, %v5200
        %v6475 = vpack.c.b16 %v5205, %v5203
        %v6476 = vpack.c.b16 %v5206, %v5204
        %v6477 = vpack.c.b16 %v5209, %v5207
        %v6478 = vpack.c.b16 %v5210, %v5208
        %v6479 = vpack.c.b16 %v5213, %v5211
        %v6480 = vpack.c.b16 %v5214, %v5212
        %v6481 = vpack.c.b16 %v5217, %v5215
        %v6482 = vpack.c.b16 %v5218, %v5216
        %v6483 = vpack.c.b16 %v5221, %v5219
        %v6484 = vpack.c.b16 %v5222, %v5220
        %v6485 = vpack.c.b16 %v5225, %v5223
        %v6486 = vpack.c.b16 %v5226, %v5224
        %v6487 = vpack.c.b16 %v5229, %v5227
        %v6488 = vpack.c.b16 %v5230, %v5228
        %v6489 = vpack.c.b16 %v5233, %v5231
        %v6490 = vpack.c.b16 %v5234, %v5232
        %v6491 = vpack.c.b16 %v5237, %v5235
        %v6492 = vpack.c.b16 %v5238, %v5236
        %v6493 = vpack.c.b16 %v5241, %v5239
        %v6494 = vpack.c.b16 %v5242, %v5240
        %v6495 = vpack.c.b16 %v5245, %v5243
        %v6496 = vpack.c.b16 %v5246, %v5244
        %v6497 = vpack.c.b16 %v5249, %v5247
        %v6498 = vpack.c.b16 %v5250, %v5248
        %v6499 = vpack.c.b16 %v5253, %v5251
        %v6500 = vpack.c.b16 %v5254, %v5252
        %v6501 = vpack.c.b16 %v5257, %v5255
        %v6502 = vpack.c.b16 %v5258, %v5256
        %v6503 = vpack.c.b16 %v5261, %v5259
        %v6504 = vpack.c.b16 %v5262, %v5260
        %v6505 = vpack.c.b16 %v5265, %v5263
        %v6506 = vpack.c.b16 %v5266, %v5264
        %v6507 = vpack.c.b16 %v5269, %v5267
        %v6508 = vpack.c.b16 %v5270, %v5268
        %v6509 = vpack.c.b16 %v5273, %v5271
        %v6510 = vpack.c.b16 %v5274, %v5272
        %v6511 = vpack.c.b16 %v5277, %v5275
        %v6512 = vpack.c.b16 %v5278, %v5276
        %v6513 = vpack.c.b16 %v5281, %v5279
        %v6514 = vpack.c.b16 %v5282, %v5280
        %v6515 = vpack.c.b16 %v5285, %v5283
        %v6516 = vpack.c.b16 %v5286, %v5284
        %v6517 = vpack.c.b16 %v5289, %v5287
        %v6518 = vpack.c.b16 %v5290, %v5288
        %v6519 = vpack.c.b16 %v5293, %v5291
        %v6520 = vpack.c.b16 %v5294, %v5292
        %v6521 = vpack.c.b16 %v5297, %v5295
        %v6522 = vpack.c.b16 %v5298, %v5296
        %v6523 = vpack.c.b16 %v5301, %v5299
        %v6524 = vpack.c.b16 %v5302, %v5300
        %v6525 = vpack.c.b16 %v5305, %v5303
        %v6526 = vpack.c.b16 %v5306, %v5304
        %v6527 = vpack.c.b16 %v5309, %v5307
        %v6528 = vpack.c.b16 %v5310, %v5308
        %v6529 = vpack.c.b16 %v5313, %v5311
        %v6530 = vpack.c.b16 %v5314, %v5312
        %v6531 = vpack.c.b16 %v5317, %v5315
        %v6532 = vpack.c.b16 %v5318, %v5316
        %v6533 = vpack.c.b16 %v5321, %v5319
        %v6534 = vpack.c.b16 %v5322, %v5320
        %v6535 = vpack.c.b16 %v5325, %v5323
        %v6536 = vpack.c.b16 %v5326, %v5324
        %v6537 = vpack.c.b16 %v5329, %v5327
        %v6538 = vpack.c.b16 %v5330, %v5328
        %v6539 = vpack.c.b16 %v5333, %v5331
        %v6540 = vpack.c.b16 %v5334, %v5332
        %v6541 = vpack.c.b16 %v5337, %v5335
        %v6542 = vpack.c.b16 %v5338, %v5336
        %v6543 = vpack.c.b16 %v5341, %v5339
        %v6544 = vpack.c.b16 %v5342, %v5340
        %v6545 = vpack.c.b16 %v5345, %v5343
        %v6546 = vpack.c.b16 %v5346, %v5344
        %v6547 = vpack.c.b16 %v5349, %v5347
        %v6548 = vpack.c.b16 %v5350, %v5348
        %v6549 = vpack.c.b16 %v5353, %v5351
        %v6550 = vpack.c.b16 %v5354, %v5352
        %v6551 = vpack.c.b16 %v5357, %v5355
        %v6552 = vpack.c.b16 %v5358, %v5356
        %v6553 = vpack.c.b16 %v5361, %v5359
        %v6554 = vpack.c.b16 %v5362, %v5360
        %v6555 = vpack.c.b16 %v5365, %v5363
        %v6556 = vpack.c.b16 %v5366, %v5364
        %v6557 = vpack.c.b16 %v5369, %v5367
        %v6558 = vpack.c.b16 %v5370, %v5368
        %v6559 = vpack.c.b16 %v5373, %v5371
        %v6560 = vpack.c.b16 %v5374, %v5372
        %v6561 = vpack.c.b16 %v5377, %v5375
        %v6562 = vpack.c.b16 %v5378, %v5376
        %v6563 = vpack.c.b16 %v5381, %v5379
        %v6564 = vpack.c.b16 %v5382, %v5380
        %v6565 = vpack.c.b16 %v5385, %v5383
        %v6566 = vpack.c.b16 %v5386, %v5384
        %v6567 = vpack.c.b16 %v5389, %v5387
        %v6568 = vpack.c.b16 %v5390, %v5388
        %v6569 = vpack.c.b16 %v5393, %v5391
        %v6570 = vpack.c.b16 %v5394, %v5392
        %vm7747 = vcmask 523264
        %v7749 = vsel %vm7747, %v616, 0
        %v7752 = vsel %vm7747, %v690, 0
        %7754 = vmatpush.bf16.msra.mxu0 %v5409
        %7755 = vmatpush.bf16.msra.mxu0 %v5407
        %7756 = vmatpush.bf16.msra.mxu0 %v5405
        %7757 = vmatpush.bf16.msra.mxu0 %v5403
        %7758 = vmatpush.bf16.msra.mxu0 %v5401
        %7759 = vmatpush.bf16.msra.mxu0 %v5399
        %7760 = vmatpush.bf16.msra.mxu0 %v5397
        %7761 = vmatpush.bf16.msra.mxu0 %v5395
        %7762 = vmatmul.bf16.gmra.mxu0 %v543
        %v7763 = vpop.f32.mrf.mxu0
        %v7764 = vadd.f32 0.0, %v7763
        %v7765 = vpop.f32.mrf.mxu0
        %v7766 = vadd.f32 0.0, %v7765
        %7767 = vmatmul.bf16.gmra.mxu0 %v617
        %v7768 = vpop.f32.mrf.mxu0
        %v7769 = vadd.f32 0.0, %v7768
        %v7770 = vpop.f32.mrf.mxu0
        %v7771 = vadd.f32 0.0, %v7770
        %7772 = vdwg.mxu0
        %7773 = vmatpush.bf16.msra.mxu0 %v5425
        %7774 = vmatpush.bf16.msra.mxu0 %v5423
        %7775 = vmatpush.bf16.msra.mxu0 %v5421
        %7776 = vmatpush.bf16.msra.mxu0 %v5419
        %7777 = vmatpush.bf16.msra.mxu0 %v5417
        %7778 = vmatpush.bf16.msra.mxu0 %v5415
        %7779 = vmatpush.bf16.msra.mxu0 %v5413
        %7780 = vmatpush.bf16.msra.mxu0 %v5411
        %7781 = vmatmul.bf16.gmra.mxu0 %v544
        %v7782 = vpop.f32.mrf.mxu0
        %v7783 = vadd.f32 %v7764, %v7782
        %v7784 = vpop.f32.mrf.mxu0
        %v7785 = vadd.f32 %v7766, %v7784
        %7786 = vmatmul.bf16.gmra.mxu0 %v618
        %v7787 = vpop.f32.mrf.mxu0
        %v7788 = vadd.f32 %v7769, %v7787
        %v7789 = vpop.f32.mrf.mxu0
        %v7790 = vadd.f32 %v7771, %v7789
        %7791 = vdwg.mxu0
        %7792 = vmatpush.bf16.msra.mxu0 %v5441
        %7793 = vmatpush.bf16.msra.mxu0 %v5439
        %7794 = vmatpush.bf16.msra.mxu0 %v5437
        %7795 = vmatpush.bf16.msra.mxu0 %v5435
        %7796 = vmatpush.bf16.msra.mxu0 %v5433
        %7797 = vmatpush.bf16.msra.mxu0 %v5431
        %7798 = vmatpush.bf16.msra.mxu0 %v5429
        %7799 = vmatpush.bf16.msra.mxu0 %v5427
        %7800 = vmatmul.bf16.gmra.mxu0 %v545
        %v7801 = vpop.f32.mrf.mxu0
        %v7802 = vadd.f32 %v7783, %v7801
        %v7803 = vpop.f32.mrf.mxu0
        %v7804 = vadd.f32 %v7785, %v7803
        %7805 = vmatmul.bf16.gmra.mxu0 %v619
        %v7806 = vpop.f32.mrf.mxu0
        %v7807 = vadd.f32 %v7788, %v7806
        %v7808 = vpop.f32.mrf.mxu0
        %v7809 = vadd.f32 %v7790, %v7808
        %7810 = vdwg.mxu0
        %7811 = vmatpush.bf16.msra.mxu0 %v5457
        %7812 = vmatpush.bf16.msra.mxu0 %v5455
        %7813 = vmatpush.bf16.msra.mxu0 %v5453
        %7814 = vmatpush.bf16.msra.mxu0 %v5451
        %7815 = vmatpush.bf16.msra.mxu0 %v5449
        %7816 = vmatpush.bf16.msra.mxu0 %v5447
        %7817 = vmatpush.bf16.msra.mxu0 %v5445
        %7818 = vmatpush.bf16.msra.mxu0 %v5443
        %7819 = vmatmul.bf16.gmra.mxu0 %v546
        %v7820 = vpop.f32.mrf.mxu0
        %v7821 = vadd.f32 %v7802, %v7820
        %v7822 = vpop.f32.mrf.mxu0
        %v7823 = vadd.f32 %v7804, %v7822
        %7824 = vmatmul.bf16.gmra.mxu0 %v620
        %v7825 = vpop.f32.mrf.mxu0
        %v7826 = vadd.f32 %v7807, %v7825
        %v7827 = vpop.f32.mrf.mxu0
        %v7828 = vadd.f32 %v7809, %v7827
        %7829 = vdwg.mxu0
        %7830 = vmatpush.bf16.msra.mxu0 %v5473
        %7831 = vmatpush.bf16.msra.mxu0 %v5471
        %7832 = vmatpush.bf16.msra.mxu0 %v5469
        %7833 = vmatpush.bf16.msra.mxu0 %v5467
        %7834 = vmatpush.bf16.msra.mxu0 %v5465
        %7835 = vmatpush.bf16.msra.mxu0 %v5463
        %7836 = vmatpush.bf16.msra.mxu0 %v5461
        %7837 = vmatpush.bf16.msra.mxu0 %v5459
        %7838 = vmatmul.bf16.gmra.mxu0 %v547
        %v7839 = vpop.f32.mrf.mxu0
        %v7840 = vadd.f32 %v7821, %v7839
        %v7841 = vpop.f32.mrf.mxu0
        %v7842 = vadd.f32 %v7823, %v7841
        %7843 = vmatmul.bf16.gmra.mxu0 %v621
        %v7844 = vpop.f32.mrf.mxu0
        %v7845 = vadd.f32 %v7826, %v7844
        %v7846 = vpop.f32.mrf.mxu0
        %v7847 = vadd.f32 %v7828, %v7846
        %7848 = vdwg.mxu0
        %7849 = vmatpush.bf16.msra.mxu0 %v5489
        %7850 = vmatpush.bf16.msra.mxu0 %v5487
        %7851 = vmatpush.bf16.msra.mxu0 %v5485
        %7852 = vmatpush.bf16.msra.mxu0 %v5483
        %7853 = vmatpush.bf16.msra.mxu0 %v5481
        %7854 = vmatpush.bf16.msra.mxu0 %v5479
        %7855 = vmatpush.bf16.msra.mxu0 %v5477
        %7856 = vmatpush.bf16.msra.mxu0 %v5475
        %7857 = vmatmul.bf16.gmra.mxu0 %v548
        %v7858 = vpop.f32.mrf.mxu0
        %v7859 = vadd.f32 %v7840, %v7858
        %v7860 = vpop.f32.mrf.mxu0
        %v7861 = vadd.f32 %v7842, %v7860
        %7862 = vmatmul.bf16.gmra.mxu0 %v622
        %v7863 = vpop.f32.mrf.mxu0
        %v7864 = vadd.f32 %v7845, %v7863
        %v7865 = vpop.f32.mrf.mxu0
        %v7866 = vadd.f32 %v7847, %v7865
        %7867 = vdwg.mxu0
        %7868 = vmatpush.bf16.msra.mxu0 %v5505
        %7869 = vmatpush.bf16.msra.mxu0 %v5503
        %7870 = vmatpush.bf16.msra.mxu0 %v5501
        %7871 = vmatpush.bf16.msra.mxu0 %v5499
        %7872 = vmatpush.bf16.msra.mxu0 %v5497
        %7873 = vmatpush.bf16.msra.mxu0 %v5495
        %7874 = vmatpush.bf16.msra.mxu0 %v5493
        %7875 = vmatpush.bf16.msra.mxu0 %v5491
        %7876 = vmatmul.bf16.gmra.mxu0 %v549
        %v7877 = vpop.f32.mrf.mxu0
        %v7878 = vadd.f32 %v7859, %v7877
        %v7879 = vpop.f32.mrf.mxu0
        %v7880 = vadd.f32 %v7861, %v7879
        %7881 = vmatmul.bf16.gmra.mxu0 %v623
        %v7882 = vpop.f32.mrf.mxu0
        %v7883 = vadd.f32 %v7864, %v7882
        %v7884 = vpop.f32.mrf.mxu0
        %v7885 = vadd.f32 %v7866, %v7884
        %7886 = vdwg.mxu0
        %7887 = vmatpush.bf16.msra.mxu0 %v5521
        %7888 = vmatpush.bf16.msra.mxu0 %v5519
        %7889 = vmatpush.bf16.msra.mxu0 %v5517
        %7890 = vmatpush.bf16.msra.mxu0 %v5515
        %7891 = vmatpush.bf16.msra.mxu0 %v5513
        %7892 = vmatpush.bf16.msra.mxu0 %v5511
        %7893 = vmatpush.bf16.msra.mxu0 %v5509
        %7894 = vmatpush.bf16.msra.mxu0 %v5507
        %7895 = vmatmul.bf16.gmra.mxu0 %v550
        %v7896 = vpop.f32.mrf.mxu0
        %v7897 = vadd.f32 %v7878, %v7896
        %v7898 = vpop.f32.mrf.mxu0
        %v7899 = vadd.f32 %v7880, %v7898
        %7900 = vmatmul.bf16.gmra.mxu0 %v624
        %v7901 = vpop.f32.mrf.mxu0
        %v7902 = vadd.f32 %v7883, %v7901
        %v7903 = vpop.f32.mrf.mxu0
        %v7904 = vadd.f32 %v7885, %v7903
        %7905 = vdwg.mxu0
        %7906 = vmatpush.bf16.msra.mxu0 %v5537
        %7907 = vmatpush.bf16.msra.mxu0 %v5535
        %7908 = vmatpush.bf16.msra.mxu0 %v5533
        %7909 = vmatpush.bf16.msra.mxu0 %v5531
        %7910 = vmatpush.bf16.msra.mxu0 %v5529
        %7911 = vmatpush.bf16.msra.mxu0 %v5527
        %7912 = vmatpush.bf16.msra.mxu0 %v5525
        %7913 = vmatpush.bf16.msra.mxu0 %v5523
        %7914 = vmatmul.bf16.gmra.mxu0 %v551
        %v7915 = vpop.f32.mrf.mxu0
        %v7916 = vadd.f32 %v7897, %v7915
        %v7917 = vpop.f32.mrf.mxu0
        %v7918 = vadd.f32 %v7899, %v7917
        %7919 = vmatmul.bf16.gmra.mxu0 %v625
        %v7920 = vpop.f32.mrf.mxu0
        %v7921 = vadd.f32 %v7902, %v7920
        %v7922 = vpop.f32.mrf.mxu0
        %v7923 = vadd.f32 %v7904, %v7922
        %7924 = vdwg.mxu0
        %7925 = vmatpush.bf16.msra.mxu0 %v5553
        %7926 = vmatpush.bf16.msra.mxu0 %v5551
        %7927 = vmatpush.bf16.msra.mxu0 %v5549
        %7928 = vmatpush.bf16.msra.mxu0 %v5547
        %7929 = vmatpush.bf16.msra.mxu0 %v5545
        %7930 = vmatpush.bf16.msra.mxu0 %v5543
        %7931 = vmatpush.bf16.msra.mxu0 %v5541
        %7932 = vmatpush.bf16.msra.mxu0 %v5539
        %7933 = vmatmul.bf16.gmra.mxu0 %v552
        %v7934 = vpop.f32.mrf.mxu0
        %v7935 = vadd.f32 %v7916, %v7934
        %v7936 = vpop.f32.mrf.mxu0
        %v7937 = vadd.f32 %v7918, %v7936
        %7938 = vmatmul.bf16.gmra.mxu0 %v626
        %v7939 = vpop.f32.mrf.mxu0
        %v7940 = vadd.f32 %v7921, %v7939
        %v7941 = vpop.f32.mrf.mxu0
        %v7942 = vadd.f32 %v7923, %v7941
        %7943 = vdwg.mxu0
        %7944 = vmatpush.bf16.msra.mxu0 %v5569
        %7945 = vmatpush.bf16.msra.mxu0 %v5567
        %7946 = vmatpush.bf16.msra.mxu0 %v5565
        %7947 = vmatpush.bf16.msra.mxu0 %v5563
        %7948 = vmatpush.bf16.msra.mxu0 %v5561
        %7949 = vmatpush.bf16.msra.mxu0 %v5559
        %7950 = vmatpush.bf16.msra.mxu0 %v5557
        %7951 = vmatpush.bf16.msra.mxu0 %v5555
        %7952 = vmatmul.bf16.gmra.mxu0 %v553
        %v7953 = vpop.f32.mrf.mxu0
        %v7954 = vadd.f32 %v7935, %v7953
        %v7955 = vpop.f32.mrf.mxu0
        %v7956 = vadd.f32 %v7937, %v7955
        %7957 = vmatmul.bf16.gmra.mxu0 %v627
        %v7958 = vpop.f32.mrf.mxu0
        %v7959 = vadd.f32 %v7940, %v7958
        %v7960 = vpop.f32.mrf.mxu0
        %v7961 = vadd.f32 %v7942, %v7960
        %7962 = vdwg.mxu0
        %7963 = vmatpush.bf16.msra.mxu0 %v5585
        %7964 = vmatpush.bf16.msra.mxu0 %v5583
        %7965 = vmatpush.bf16.msra.mxu0 %v5581
        %7966 = vmatpush.bf16.msra.mxu0 %v5579
        %7967 = vmatpush.bf16.msra.mxu0 %v5577
        %7968 = vmatpush.bf16.msra.mxu0 %v5575
        %7969 = vmatpush.bf16.msra.mxu0 %v5573
        %7970 = vmatpush.bf16.msra.mxu0 %v5571
        %7971 = vmatmul.bf16.gmra.mxu0 %v554
        %v7972 = vpop.f32.mrf.mxu0
        %v7973 = vadd.f32 %v7954, %v7972
        %v7974 = vpop.f32.mrf.mxu0
        %v7975 = vadd.f32 %v7956, %v7974
        %7976 = vmatmul.bf16.gmra.mxu0 %v628
        %v7977 = vpop.f32.mrf.mxu0
        %v7978 = vadd.f32 %v7959, %v7977
        %v7979 = vpop.f32.mrf.mxu0
        %v7980 = vadd.f32 %v7961, %v7979
        %7981 = vdwg.mxu0
        %7982 = vmatpush.bf16.msra.mxu0 %v5601
        %7983 = vmatpush.bf16.msra.mxu0 %v5599
        %7984 = vmatpush.bf16.msra.mxu0 %v5597
        %7985 = vmatpush.bf16.msra.mxu0 %v5595
        %7986 = vmatpush.bf16.msra.mxu0 %v5593
        %7987 = vmatpush.bf16.msra.mxu0 %v5591
        %7988 = vmatpush.bf16.msra.mxu0 %v5589
        %7989 = vmatpush.bf16.msra.mxu0 %v5587
        %7990 = vmatmul.bf16.gmra.mxu0 %v555
        %v7991 = vpop.f32.mrf.mxu0
        %v7992 = vadd.f32 %v7973, %v7991
        %v7993 = vpop.f32.mrf.mxu0
        %v7994 = vadd.f32 %v7975, %v7993
        %7995 = vmatmul.bf16.gmra.mxu0 %v629
        %v7996 = vpop.f32.mrf.mxu0
        %v7997 = vadd.f32 %v7978, %v7996
        %v7998 = vpop.f32.mrf.mxu0
        %v7999 = vadd.f32 %v7980, %v7998
        %8000 = vdwg.mxu0
        %8001 = vmatpush.bf16.msra.mxu0 %v5617
        %8002 = vmatpush.bf16.msra.mxu0 %v5615
        %8003 = vmatpush.bf16.msra.mxu0 %v5613
        %8004 = vmatpush.bf16.msra.mxu0 %v5611
        %8005 = vmatpush.bf16.msra.mxu0 %v5609
        %8006 = vmatpush.bf16.msra.mxu0 %v5607
        %8007 = vmatpush.bf16.msra.mxu0 %v5605
        %8008 = vmatpush.bf16.msra.mxu0 %v5603
        %8009 = vmatmul.bf16.gmra.mxu0 %v556
        %v8010 = vpop.f32.mrf.mxu0
        %v8011 = vadd.f32 %v7992, %v8010
        %v8012 = vpop.f32.mrf.mxu0
        %v8013 = vadd.f32 %v7994, %v8012
        %8014 = vmatmul.bf16.gmra.mxu0 %v630
        %v8015 = vpop.f32.mrf.mxu0
        %v8016 = vadd.f32 %v7997, %v8015
        %v8017 = vpop.f32.mrf.mxu0
        %v8018 = vadd.f32 %v7999, %v8017
        %8019 = vdwg.mxu0
        %8020 = vmatpush.bf16.msra.mxu0 %v5633
        %8021 = vmatpush.bf16.msra.mxu0 %v5631
        %8022 = vmatpush.bf16.msra.mxu0 %v5629
        %8023 = vmatpush.bf16.msra.mxu0 %v5627
        %8024 = vmatpush.bf16.msra.mxu0 %v5625
        %8025 = vmatpush.bf16.msra.mxu0 %v5623
        %8026 = vmatpush.bf16.msra.mxu0 %v5621
        %8027 = vmatpush.bf16.msra.mxu0 %v5619
        %8028 = vmatmul.bf16.gmra.mxu0 %v557
        %v8029 = vpop.f32.mrf.mxu0
        %v8030 = vadd.f32 %v8011, %v8029
        %v8031 = vpop.f32.mrf.mxu0
        %v8032 = vadd.f32 %v8013, %v8031
        %8033 = vmatmul.bf16.gmra.mxu0 %v631
        %v8034 = vpop.f32.mrf.mxu0
        %v8035 = vadd.f32 %v8016, %v8034
        %v8036 = vpop.f32.mrf.mxu0
        %v8037 = vadd.f32 %v8018, %v8036
        %8038 = vdwg.mxu0
        %8039 = vmatpush.bf16.msra.mxu0 %v5649
        %8040 = vmatpush.bf16.msra.mxu0 %v5647
        %8041 = vmatpush.bf16.msra.mxu0 %v5645
        %8042 = vmatpush.bf16.msra.mxu0 %v5643
        %8043 = vmatpush.bf16.msra.mxu0 %v5641
        %8044 = vmatpush.bf16.msra.mxu0 %v5639
        %8045 = vmatpush.bf16.msra.mxu0 %v5637
        %8046 = vmatpush.bf16.msra.mxu0 %v5635
        %8047 = vmatmul.bf16.gmra.mxu0 %v558
        %v8048 = vpop.f32.mrf.mxu0
        %v8049 = vadd.f32 %v8030, %v8048
        %v8050 = vpop.f32.mrf.mxu0
        %v8051 = vadd.f32 %v8032, %v8050
        %8052 = vmatmul.bf16.gmra.mxu0 %v632
        %v8053 = vpop.f32.mrf.mxu0
        %v8054 = vadd.f32 %v8035, %v8053
        %v8055 = vpop.f32.mrf.mxu0
        %v8056 = vadd.f32 %v8037, %v8055
        %8057 = vdwg.mxu0
        %8058 = vmatpush.bf16.msra.mxu0 %v5665
        %8059 = vmatpush.bf16.msra.mxu0 %v5663
        %8060 = vmatpush.bf16.msra.mxu0 %v5661
        %8061 = vmatpush.bf16.msra.mxu0 %v5659
        %8062 = vmatpush.bf16.msra.mxu0 %v5657
        %8063 = vmatpush.bf16.msra.mxu0 %v5655
        %8064 = vmatpush.bf16.msra.mxu0 %v5653
        %8065 = vmatpush.bf16.msra.mxu0 %v5651
        %8066 = vmatmul.bf16.gmra.mxu0 %v559
        %v8067 = vpop.f32.mrf.mxu0
        %v8068 = vadd.f32 %v8049, %v8067
        %v8069 = vpop.f32.mrf.mxu0
        %v8070 = vadd.f32 %v8051, %v8069
        %8071 = vmatmul.bf16.gmra.mxu0 %v633
        %v8072 = vpop.f32.mrf.mxu0
        %v8073 = vadd.f32 %v8054, %v8072
        %v8074 = vpop.f32.mrf.mxu0
        %v8075 = vadd.f32 %v8056, %v8074
        %8076 = vdwg.mxu0
        %8077 = vmatpush.bf16.msra.mxu0 %v5681
        %8078 = vmatpush.bf16.msra.mxu0 %v5679
        %8079 = vmatpush.bf16.msra.mxu0 %v5677
        %8080 = vmatpush.bf16.msra.mxu0 %v5675
        %8081 = vmatpush.bf16.msra.mxu0 %v5673
        %8082 = vmatpush.bf16.msra.mxu0 %v5671
        %8083 = vmatpush.bf16.msra.mxu0 %v5669
        %8084 = vmatpush.bf16.msra.mxu0 %v5667
        %8085 = vmatmul.bf16.gmra.mxu0 %v560
        %v8086 = vpop.f32.mrf.mxu0
        %v8087 = vadd.f32 %v8068, %v8086
        %v8088 = vpop.f32.mrf.mxu0
        %v8089 = vadd.f32 %v8070, %v8088
        %8090 = vmatmul.bf16.gmra.mxu0 %v634
        %v8091 = vpop.f32.mrf.mxu0
        %v8092 = vadd.f32 %v8073, %v8091
        %v8093 = vpop.f32.mrf.mxu0
        %v8094 = vadd.f32 %v8075, %v8093
        %8095 = vdwg.mxu0
        %8096 = vmatpush.bf16.msra.mxu0 %v5697
        %8097 = vmatpush.bf16.msra.mxu0 %v5695
        %8098 = vmatpush.bf16.msra.mxu0 %v5693
        %8099 = vmatpush.bf16.msra.mxu0 %v5691
        %8100 = vmatpush.bf16.msra.mxu0 %v5689
        %8101 = vmatpush.bf16.msra.mxu0 %v5687
        %8102 = vmatpush.bf16.msra.mxu0 %v5685
        %8103 = vmatpush.bf16.msra.mxu0 %v5683
        %8104 = vmatmul.bf16.gmra.mxu0 %v561
        %v8105 = vpop.f32.mrf.mxu0
        %v8106 = vadd.f32 %v8087, %v8105
        %v8107 = vpop.f32.mrf.mxu0
        %v8108 = vadd.f32 %v8089, %v8107
        %8109 = vmatmul.bf16.gmra.mxu0 %v635
        %v8110 = vpop.f32.mrf.mxu0
        %v8111 = vadd.f32 %v8092, %v8110
        %v8112 = vpop.f32.mrf.mxu0
        %v8113 = vadd.f32 %v8094, %v8112
        %8114 = vdwg.mxu0
        %8115 = vmatpush.bf16.msra.mxu0 %v5713
        %8116 = vmatpush.bf16.msra.mxu0 %v5711
        %8117 = vmatpush.bf16.msra.mxu0 %v5709
        %8118 = vmatpush.bf16.msra.mxu0 %v5707
        %8119 = vmatpush.bf16.msra.mxu0 %v5705
        %8120 = vmatpush.bf16.msra.mxu0 %v5703
        %8121 = vmatpush.bf16.msra.mxu0 %v5701
        %8122 = vmatpush.bf16.msra.mxu0 %v5699
        %8123 = vmatmul.bf16.gmra.mxu0 %v562
        %v8124 = vpop.f32.mrf.mxu0
        %v8125 = vadd.f32 %v8106, %v8124
        %v8126 = vpop.f32.mrf.mxu0
        %v8127 = vadd.f32 %v8108, %v8126
        %8128 = vmatmul.bf16.gmra.mxu0 %v636
        %v8129 = vpop.f32.mrf.mxu0
        %v8130 = vadd.f32 %v8111, %v8129
        %v8131 = vpop.f32.mrf.mxu0
        %v8132 = vadd.f32 %v8113, %v8131
        %8133 = vdwg.mxu0
        %8134 = vmatpush.bf16.msra.mxu0 %v5729
        %8135 = vmatpush.bf16.msra.mxu0 %v5727
        %8136 = vmatpush.bf16.msra.mxu0 %v5725
        %8137 = vmatpush.bf16.msra.mxu0 %v5723
        %8138 = vmatpush.bf16.msra.mxu0 %v5721
        %8139 = vmatpush.bf16.msra.mxu0 %v5719
        %8140 = vmatpush.bf16.msra.mxu0 %v5717
        %8141 = vmatpush.bf16.msra.mxu0 %v5715
        %8142 = vmatmul.bf16.gmra.mxu0 %v563
        %v8143 = vpop.f32.mrf.mxu0
        %v8144 = vadd.f32 %v8125, %v8143
        %v8145 = vpop.f32.mrf.mxu0
        %v8146 = vadd.f32 %v8127, %v8145
        %8147 = vmatmul.bf16.gmra.mxu0 %v637
        %v8148 = vpop.f32.mrf.mxu0
        %v8149 = vadd.f32 %v8130, %v8148
        %v8150 = vpop.f32.mrf.mxu0
        %v8151 = vadd.f32 %v8132, %v8150
        %8152 = vdwg.mxu0
        %8153 = vmatpush.bf16.msra.mxu0 %v5745
        %8154 = vmatpush.bf16.msra.mxu0 %v5743
        %8155 = vmatpush.bf16.msra.mxu0 %v5741
        %8156 = vmatpush.bf16.msra.mxu0 %v5739
        %8157 = vmatpush.bf16.msra.mxu0 %v5737
        %8158 = vmatpush.bf16.msra.mxu0 %v5735
        %8159 = vmatpush.bf16.msra.mxu0 %v5733
        %8160 = vmatpush.bf16.msra.mxu0 %v5731
        %8161 = vmatmul.bf16.gmra.mxu0 %v564
        %v8162 = vpop.f32.mrf.mxu0
        %v8163 = vadd.f32 %v8144, %v8162
        %v8164 = vpop.f32.mrf.mxu0
        %v8165 = vadd.f32 %v8146, %v8164
        %8166 = vmatmul.bf16.gmra.mxu0 %v638
        %v8167 = vpop.f32.mrf.mxu0
        %v8168 = vadd.f32 %v8149, %v8167
        %v8169 = vpop.f32.mrf.mxu0
        %v8170 = vadd.f32 %v8151, %v8169
        %8171 = vdwg.mxu0
        %8172 = vmatpush.bf16.msra.mxu0 %v5761
        %8173 = vmatpush.bf16.msra.mxu0 %v5759
        %8174 = vmatpush.bf16.msra.mxu0 %v5757
        %8175 = vmatpush.bf16.msra.mxu0 %v5755
        %8176 = vmatpush.bf16.msra.mxu0 %v5753
        %8177 = vmatpush.bf16.msra.mxu0 %v5751
        %8178 = vmatpush.bf16.msra.mxu0 %v5749
        %8179 = vmatpush.bf16.msra.mxu0 %v5747
        %8180 = vmatmul.bf16.gmra.mxu0 %v565
        %v8181 = vpop.f32.mrf.mxu0
        %v8182 = vadd.f32 %v8163, %v8181
        %v8183 = vpop.f32.mrf.mxu0
        %v8184 = vadd.f32 %v8165, %v8183
        %8185 = vmatmul.bf16.gmra.mxu0 %v639
        %v8186 = vpop.f32.mrf.mxu0
        %v8187 = vadd.f32 %v8168, %v8186
        %v8188 = vpop.f32.mrf.mxu0
        %v8189 = vadd.f32 %v8170, %v8188
        %8190 = vdwg.mxu0
        %8191 = vmatpush.bf16.msra.mxu0 %v5777
        %8192 = vmatpush.bf16.msra.mxu0 %v5775
        %8193 = vmatpush.bf16.msra.mxu0 %v5773
        %8194 = vmatpush.bf16.msra.mxu0 %v5771
        %8195 = vmatpush.bf16.msra.mxu0 %v5769
        %8196 = vmatpush.bf16.msra.mxu0 %v5767
        %8197 = vmatpush.bf16.msra.mxu0 %v5765
        %8198 = vmatpush.bf16.msra.mxu0 %v5763
        %8199 = vmatmul.bf16.gmra.mxu0 %v566
        %v8200 = vpop.f32.mrf.mxu0
        %v8201 = vadd.f32 %v8182, %v8200
        %v8202 = vpop.f32.mrf.mxu0
        %v8203 = vadd.f32 %v8184, %v8202
        %8204 = vmatmul.bf16.gmra.mxu0 %v640
        %v8205 = vpop.f32.mrf.mxu0
        %v8206 = vadd.f32 %v8187, %v8205
        %v8207 = vpop.f32.mrf.mxu0
        %v8208 = vadd.f32 %v8189, %v8207
        %8209 = vdwg.mxu0
        %8210 = vmatpush.bf16.msra.mxu0 %v5793
        %8211 = vmatpush.bf16.msra.mxu0 %v5791
        %8212 = vmatpush.bf16.msra.mxu0 %v5789
        %8213 = vmatpush.bf16.msra.mxu0 %v5787
        %8214 = vmatpush.bf16.msra.mxu0 %v5785
        %8215 = vmatpush.bf16.msra.mxu0 %v5783
        %8216 = vmatpush.bf16.msra.mxu0 %v5781
        %8217 = vmatpush.bf16.msra.mxu0 %v5779
        %8218 = vmatmul.bf16.gmra.mxu0 %v567
        %v8219 = vpop.f32.mrf.mxu0
        %v8220 = vadd.f32 %v8201, %v8219
        %v8221 = vpop.f32.mrf.mxu0
        %v8222 = vadd.f32 %v8203, %v8221
        %8223 = vmatmul.bf16.gmra.mxu0 %v641
        %v8224 = vpop.f32.mrf.mxu0
        %v8225 = vadd.f32 %v8206, %v8224
        %v8226 = vpop.f32.mrf.mxu0
        %v8227 = vadd.f32 %v8208, %v8226
        %8228 = vdwg.mxu0
        %8229 = vmatpush.bf16.msra.mxu0 %v5809
        %8230 = vmatpush.bf16.msra.mxu0 %v5807
        %8231 = vmatpush.bf16.msra.mxu0 %v5805
        %8232 = vmatpush.bf16.msra.mxu0 %v5803
        %8233 = vmatpush.bf16.msra.mxu0 %v5801
        %8234 = vmatpush.bf16.msra.mxu0 %v5799
        %8235 = vmatpush.bf16.msra.mxu0 %v5797
        %8236 = vmatpush.bf16.msra.mxu0 %v5795
        %8237 = vmatmul.bf16.gmra.mxu0 %v568
        %v8238 = vpop.f32.mrf.mxu0
        %v8239 = vadd.f32 %v8220, %v8238
        %v8240 = vpop.f32.mrf.mxu0
        %v8241 = vadd.f32 %v8222, %v8240
        %8242 = vmatmul.bf16.gmra.mxu0 %v642
        %v8243 = vpop.f32.mrf.mxu0
        %v8244 = vadd.f32 %v8225, %v8243
        %v8245 = vpop.f32.mrf.mxu0
        %v8246 = vadd.f32 %v8227, %v8245
        %8247 = vdwg.mxu0
        %8248 = vmatpush.bf16.msra.mxu0 %v5825
        %8249 = vmatpush.bf16.msra.mxu0 %v5823
        %8250 = vmatpush.bf16.msra.mxu0 %v5821
        %8251 = vmatpush.bf16.msra.mxu0 %v5819
        %8252 = vmatpush.bf16.msra.mxu0 %v5817
        %8253 = vmatpush.bf16.msra.mxu0 %v5815
        %8254 = vmatpush.bf16.msra.mxu0 %v5813
        %8255 = vmatpush.bf16.msra.mxu0 %v5811
        %8256 = vmatmul.bf16.gmra.mxu0 %v569
        %v8257 = vpop.f32.mrf.mxu0
        %v8258 = vadd.f32 %v8239, %v8257
        %v8259 = vpop.f32.mrf.mxu0
        %v8260 = vadd.f32 %v8241, %v8259
        %8261 = vmatmul.bf16.gmra.mxu0 %v643
        %v8262 = vpop.f32.mrf.mxu0
        %v8263 = vadd.f32 %v8244, %v8262
        %v8264 = vpop.f32.mrf.mxu0
        %v8265 = vadd.f32 %v8246, %v8264
        %8266 = vdwg.mxu0
        %8267 = vmatpush.bf16.msra.mxu0 %v5841
        %8268 = vmatpush.bf16.msra.mxu0 %v5839
        %8269 = vmatpush.bf16.msra.mxu0 %v5837
        %8270 = vmatpush.bf16.msra.mxu0 %v5835
        %8271 = vmatpush.bf16.msra.mxu0 %v5833
        %8272 = vmatpush.bf16.msra.mxu0 %v5831
        %8273 = vmatpush.bf16.msra.mxu0 %v5829
        %8274 = vmatpush.bf16.msra.mxu0 %v5827
        %8275 = vmatmul.bf16.gmra.mxu0 %v570
        %v8276 = vpop.f32.mrf.mxu0
        %v8277 = vadd.f32 %v8258, %v8276
        %v8278 = vpop.f32.mrf.mxu0
        %v8279 = vadd.f32 %v8260, %v8278
        %8280 = vmatmul.bf16.gmra.mxu0 %v644
        %v8281 = vpop.f32.mrf.mxu0
        %v8282 = vadd.f32 %v8263, %v8281
        %v8283 = vpop.f32.mrf.mxu0
        %v8284 = vadd.f32 %v8265, %v8283
        %8285 = vdwg.mxu0
        %8286 = vmatpush.bf16.msra.mxu0 %v5857
        %8287 = vmatpush.bf16.msra.mxu0 %v5855
        %8288 = vmatpush.bf16.msra.mxu0 %v5853
        %8289 = vmatpush.bf16.msra.mxu0 %v5851
        %8290 = vmatpush.bf16.msra.mxu0 %v5849
        %8291 = vmatpush.bf16.msra.mxu0 %v5847
        %8292 = vmatpush.bf16.msra.mxu0 %v5845
        %8293 = vmatpush.bf16.msra.mxu0 %v5843
        %8294 = vmatmul.bf16.gmra.mxu0 %v571
        %v8295 = vpop.f32.mrf.mxu0
        %v8296 = vadd.f32 %v8277, %v8295
        %v8297 = vpop.f32.mrf.mxu0
        %v8298 = vadd.f32 %v8279, %v8297
        %8299 = vmatmul.bf16.gmra.mxu0 %v645
        %v8300 = vpop.f32.mrf.mxu0
        %v8301 = vadd.f32 %v8282, %v8300
        %v8302 = vpop.f32.mrf.mxu0
        %v8303 = vadd.f32 %v8284, %v8302
        %8304 = vdwg.mxu0
        %8305 = vmatpush.bf16.msra.mxu0 %v5873
        %8306 = vmatpush.bf16.msra.mxu0 %v5871
        %8307 = vmatpush.bf16.msra.mxu0 %v5869
        %8308 = vmatpush.bf16.msra.mxu0 %v5867
        %8309 = vmatpush.bf16.msra.mxu0 %v5865
        %8310 = vmatpush.bf16.msra.mxu0 %v5863
        %8311 = vmatpush.bf16.msra.mxu0 %v5861
        %8312 = vmatpush.bf16.msra.mxu0 %v5859
        %8313 = vmatmul.bf16.gmra.mxu0 %v572
        %v8314 = vpop.f32.mrf.mxu0
        %v8315 = vadd.f32 %v8296, %v8314
        %v8316 = vpop.f32.mrf.mxu0
        %v8317 = vadd.f32 %v8298, %v8316
        %8318 = vmatmul.bf16.gmra.mxu0 %v646
        %v8319 = vpop.f32.mrf.mxu0
        %v8320 = vadd.f32 %v8301, %v8319
        %v8321 = vpop.f32.mrf.mxu0
        %v8322 = vadd.f32 %v8303, %v8321
        %8323 = vdwg.mxu0
        %8324 = vmatpush.bf16.msra.mxu0 %v5889
        %8325 = vmatpush.bf16.msra.mxu0 %v5887
        %8326 = vmatpush.bf16.msra.mxu0 %v5885
        %8327 = vmatpush.bf16.msra.mxu0 %v5883
        %8328 = vmatpush.bf16.msra.mxu0 %v5881
        %8329 = vmatpush.bf16.msra.mxu0 %v5879
        %8330 = vmatpush.bf16.msra.mxu0 %v5877
        %8331 = vmatpush.bf16.msra.mxu0 %v5875
        %8332 = vmatmul.bf16.gmra.mxu0 %v573
        %v8333 = vpop.f32.mrf.mxu0
        %v8334 = vadd.f32 %v8315, %v8333
        %v8335 = vpop.f32.mrf.mxu0
        %v8336 = vadd.f32 %v8317, %v8335
        %8337 = vmatmul.bf16.gmra.mxu0 %v647
        %v8338 = vpop.f32.mrf.mxu0
        %v8339 = vadd.f32 %v8320, %v8338
        %v8340 = vpop.f32.mrf.mxu0
        %v8341 = vadd.f32 %v8322, %v8340
        %8342 = vdwg.mxu0
        %8343 = vmatpush.bf16.msra.mxu0 %v5905
        %8344 = vmatpush.bf16.msra.mxu0 %v5903
        %8345 = vmatpush.bf16.msra.mxu0 %v5901
        %8346 = vmatpush.bf16.msra.mxu0 %v5899
        %8347 = vmatpush.bf16.msra.mxu0 %v5897
        %8348 = vmatpush.bf16.msra.mxu0 %v5895
        %8349 = vmatpush.bf16.msra.mxu0 %v5893
        %8350 = vmatpush.bf16.msra.mxu0 %v5891
        %8351 = vmatmul.bf16.gmra.mxu0 %v574
        %v8352 = vpop.f32.mrf.mxu0
        %v8353 = vadd.f32 %v8334, %v8352
        %v8354 = vpop.f32.mrf.mxu0
        %v8355 = vadd.f32 %v8336, %v8354
        %8356 = vmatmul.bf16.gmra.mxu0 %v648
        %v8357 = vpop.f32.mrf.mxu0
        %v8358 = vadd.f32 %v8339, %v8357
        %v8359 = vpop.f32.mrf.mxu0
        %v8360 = vadd.f32 %v8341, %v8359
        %8361 = vdwg.mxu0
        %8362 = vmatpush.bf16.msra.mxu0 %v5921
        %8363 = vmatpush.bf16.msra.mxu0 %v5919
        %8364 = vmatpush.bf16.msra.mxu0 %v5917
        %8365 = vmatpush.bf16.msra.mxu0 %v5915
        %8366 = vmatpush.bf16.msra.mxu0 %v5913
        %8367 = vmatpush.bf16.msra.mxu0 %v5911
        %8368 = vmatpush.bf16.msra.mxu0 %v5909
        %8369 = vmatpush.bf16.msra.mxu0 %v5907
        %8370 = vmatmul.bf16.gmra.mxu0 %v575
        %v8371 = vpop.f32.mrf.mxu0
        %v8372 = vadd.f32 %v8353, %v8371
        %v8373 = vpop.f32.mrf.mxu0
        %v8374 = vadd.f32 %v8355, %v8373
        %8375 = vmatmul.bf16.gmra.mxu0 %v649
        %v8376 = vpop.f32.mrf.mxu0
        %v8377 = vadd.f32 %v8358, %v8376
        %v8378 = vpop.f32.mrf.mxu0
        %v8379 = vadd.f32 %v8360, %v8378
        %8380 = vdwg.mxu0
        %8381 = vmatpush.bf16.msra.mxu0 %v5937
        %8382 = vmatpush.bf16.msra.mxu0 %v5935
        %8383 = vmatpush.bf16.msra.mxu0 %v5933
        %8384 = vmatpush.bf16.msra.mxu0 %v5931
        %8385 = vmatpush.bf16.msra.mxu0 %v5929
        %8386 = vmatpush.bf16.msra.mxu0 %v5927
        %8387 = vmatpush.bf16.msra.mxu0 %v5925
        %8388 = vmatpush.bf16.msra.mxu0 %v5923
        %8389 = vmatmul.bf16.gmra.mxu0 %v576
        %v8390 = vpop.f32.mrf.mxu0
        %v8391 = vadd.f32 %v8372, %v8390
        %v8392 = vpop.f32.mrf.mxu0
        %v8393 = vadd.f32 %v8374, %v8392
        %8394 = vmatmul.bf16.gmra.mxu0 %v650
        %v8395 = vpop.f32.mrf.mxu0
        %v8396 = vadd.f32 %v8377, %v8395
        %v8397 = vpop.f32.mrf.mxu0
        %v8398 = vadd.f32 %v8379, %v8397
        %8399 = vdwg.mxu0
        %8400 = vmatpush.bf16.msra.mxu0 %v5953
        %8401 = vmatpush.bf16.msra.mxu0 %v5951
        %8402 = vmatpush.bf16.msra.mxu0 %v5949
        %8403 = vmatpush.bf16.msra.mxu0 %v5947
        %8404 = vmatpush.bf16.msra.mxu0 %v5945
        %8405 = vmatpush.bf16.msra.mxu0 %v5943
        %8406 = vmatpush.bf16.msra.mxu0 %v5941
        %8407 = vmatpush.bf16.msra.mxu0 %v5939
        %8408 = vmatmul.bf16.gmra.mxu0 %v577
        %v8409 = vpop.f32.mrf.mxu0
        %v8410 = vadd.f32 %v8391, %v8409
        %v8411 = vpop.f32.mrf.mxu0
        %v8412 = vadd.f32 %v8393, %v8411
        %8413 = vmatmul.bf16.gmra.mxu0 %v651
        %v8414 = vpop.f32.mrf.mxu0
        %v8415 = vadd.f32 %v8396, %v8414
        %v8416 = vpop.f32.mrf.mxu0
        %v8417 = vadd.f32 %v8398, %v8416
        %8418 = vdwg.mxu0
        %8419 = vmatpush.bf16.msra.mxu0 %v5969
        %8420 = vmatpush.bf16.msra.mxu0 %v5967
        %8421 = vmatpush.bf16.msra.mxu0 %v5965
        %8422 = vmatpush.bf16.msra.mxu0 %v5963
        %8423 = vmatpush.bf16.msra.mxu0 %v5961
        %8424 = vmatpush.bf16.msra.mxu0 %v5959
        %8425 = vmatpush.bf16.msra.mxu0 %v5957
        %8426 = vmatpush.bf16.msra.mxu0 %v5955
        %8427 = vmatmul.bf16.gmra.mxu0 %v578
        %v8428 = vpop.f32.mrf.mxu0
        %v8429 = vadd.f32 %v8410, %v8428
        %v8430 = vpop.f32.mrf.mxu0
        %v8431 = vadd.f32 %v8412, %v8430
        %8432 = vmatmul.bf16.gmra.mxu0 %v652
        %v8433 = vpop.f32.mrf.mxu0
        %v8434 = vadd.f32 %v8415, %v8433
        %v8435 = vpop.f32.mrf.mxu0
        %v8436 = vadd.f32 %v8417, %v8435
        %8437 = vdwg.mxu0
        %8438 = vmatpush.bf16.msra.mxu0 %v5985
        %8439 = vmatpush.bf16.msra.mxu0 %v5983
        %8440 = vmatpush.bf16.msra.mxu0 %v5981
        %8441 = vmatpush.bf16.msra.mxu0 %v5979
        %8442 = vmatpush.bf16.msra.mxu0 %v5977
        %8443 = vmatpush.bf16.msra.mxu0 %v5975
        %8444 = vmatpush.bf16.msra.mxu0 %v5973
        %8445 = vmatpush.bf16.msra.mxu0 %v5971
        %8446 = vmatmul.bf16.gmra.mxu0 %v579
        %v8447 = vpop.f32.mrf.mxu0
        %v8448 = vadd.f32 %v8429, %v8447
        %v8449 = vpop.f32.mrf.mxu0
        %v8450 = vadd.f32 %v8431, %v8449
        %8451 = vmatmul.bf16.gmra.mxu0 %v653
        %v8452 = vpop.f32.mrf.mxu0
        %v8453 = vadd.f32 %v8434, %v8452
        %v8454 = vpop.f32.mrf.mxu0
        %v8455 = vadd.f32 %v8436, %v8454
        %8456 = vdwg.mxu0
        %8457 = vmatpush.bf16.msra.mxu0 %v6001
        %8458 = vmatpush.bf16.msra.mxu0 %v5999
        %8459 = vmatpush.bf16.msra.mxu0 %v5997
        %8460 = vmatpush.bf16.msra.mxu0 %v5995
        %8461 = vmatpush.bf16.msra.mxu0 %v5993
        %8462 = vmatpush.bf16.msra.mxu0 %v5991
        %8463 = vmatpush.bf16.msra.mxu0 %v5989
        %8464 = vmatpush.bf16.msra.mxu0 %v5987
        %8465 = vmatmul.bf16.gmra.mxu0 %v580
        %v8466 = vpop.f32.mrf.mxu0
        %v8467 = vadd.f32 %v8448, %v8466
        %v8468 = vpop.f32.mrf.mxu0
        %v8469 = vadd.f32 %v8450, %v8468
        %8470 = vmatmul.bf16.gmra.mxu0 %v654
        %v8471 = vpop.f32.mrf.mxu0
        %v8472 = vadd.f32 %v8453, %v8471
        %v8473 = vpop.f32.mrf.mxu0
        %v8474 = vadd.f32 %v8455, %v8473
        %8475 = vdwg.mxu0
        %8476 = vmatpush.bf16.msra.mxu0 %v6017
        %8477 = vmatpush.bf16.msra.mxu0 %v6015
        %8478 = vmatpush.bf16.msra.mxu0 %v6013
        %8479 = vmatpush.bf16.msra.mxu0 %v6011
        %8480 = vmatpush.bf16.msra.mxu0 %v6009
        %8481 = vmatpush.bf16.msra.mxu0 %v6007
        %8482 = vmatpush.bf16.msra.mxu0 %v6005
        %8483 = vmatpush.bf16.msra.mxu0 %v6003
        %8484 = vmatmul.bf16.gmra.mxu0 %v581
        %v8485 = vpop.f32.mrf.mxu0
        %v8486 = vadd.f32 %v8467, %v8485
        %v8487 = vpop.f32.mrf.mxu0
        %v8488 = vadd.f32 %v8469, %v8487
        %8489 = vmatmul.bf16.gmra.mxu0 %v655
        %v8490 = vpop.f32.mrf.mxu0
        %v8491 = vadd.f32 %v8472, %v8490
        %v8492 = vpop.f32.mrf.mxu0
        %v8493 = vadd.f32 %v8474, %v8492
        %8494 = vdwg.mxu0
        %8495 = vmatpush.bf16.msra.mxu0 %v6033
        %8496 = vmatpush.bf16.msra.mxu0 %v6031
        %8497 = vmatpush.bf16.msra.mxu0 %v6029
        %8498 = vmatpush.bf16.msra.mxu0 %v6027
        %8499 = vmatpush.bf16.msra.mxu0 %v6025
        %8500 = vmatpush.bf16.msra.mxu0 %v6023
        %8501 = vmatpush.bf16.msra.mxu0 %v6021
        %8502 = vmatpush.bf16.msra.mxu0 %v6019
        %8503 = vmatmul.bf16.gmra.mxu0 %v582
        %v8504 = vpop.f32.mrf.mxu0
        %v8505 = vadd.f32 %v8486, %v8504
        %v8506 = vpop.f32.mrf.mxu0
        %v8507 = vadd.f32 %v8488, %v8506
        %8508 = vmatmul.bf16.gmra.mxu0 %v656
        %v8509 = vpop.f32.mrf.mxu0
        %v8510 = vadd.f32 %v8491, %v8509
        %v8511 = vpop.f32.mrf.mxu0
        %v8512 = vadd.f32 %v8493, %v8511
        %8513 = vdwg.mxu0
        %8514 = vmatpush.bf16.msra.mxu0 %v6049
        %8515 = vmatpush.bf16.msra.mxu0 %v6047
        %8516 = vmatpush.bf16.msra.mxu0 %v6045
        %8517 = vmatpush.bf16.msra.mxu0 %v6043
        %8518 = vmatpush.bf16.msra.mxu0 %v6041
        %8519 = vmatpush.bf16.msra.mxu0 %v6039
        %8520 = vmatpush.bf16.msra.mxu0 %v6037
        %8521 = vmatpush.bf16.msra.mxu0 %v6035
        %8522 = vmatmul.bf16.gmra.mxu0 %v583
        %v8523 = vpop.f32.mrf.mxu0
        %v8524 = vadd.f32 %v8505, %v8523
        %v8525 = vpop.f32.mrf.mxu0
        %v8526 = vadd.f32 %v8507, %v8525
        %8527 = vmatmul.bf16.gmra.mxu0 %v657
        %v8528 = vpop.f32.mrf.mxu0
        %v8529 = vadd.f32 %v8510, %v8528
        %v8530 = vpop.f32.mrf.mxu0
        %v8531 = vadd.f32 %v8512, %v8530
        %8532 = vdwg.mxu0
        %8533 = vmatpush.bf16.msra.mxu0 %v6065
        %8534 = vmatpush.bf16.msra.mxu0 %v6063
        %8535 = vmatpush.bf16.msra.mxu0 %v6061
        %8536 = vmatpush.bf16.msra.mxu0 %v6059
        %8537 = vmatpush.bf16.msra.mxu0 %v6057
        %8538 = vmatpush.bf16.msra.mxu0 %v6055
        %8539 = vmatpush.bf16.msra.mxu0 %v6053
        %8540 = vmatpush.bf16.msra.mxu0 %v6051
        %8541 = vmatmul.bf16.gmra.mxu0 %v584
        %v8542 = vpop.f32.mrf.mxu0
        %v8543 = vadd.f32 %v8524, %v8542
        %v8544 = vpop.f32.mrf.mxu0
        %v8545 = vadd.f32 %v8526, %v8544
        %8546 = vmatmul.bf16.gmra.mxu0 %v658
        %v8547 = vpop.f32.mrf.mxu0
        %v8548 = vadd.f32 %v8529, %v8547
        %v8549 = vpop.f32.mrf.mxu0
        %v8550 = vadd.f32 %v8531, %v8549
        %8551 = vdwg.mxu0
        %8552 = vmatpush.bf16.msra.mxu0 %v6081
        %8553 = vmatpush.bf16.msra.mxu0 %v6079
        %8554 = vmatpush.bf16.msra.mxu0 %v6077
        %8555 = vmatpush.bf16.msra.mxu0 %v6075
        %8556 = vmatpush.bf16.msra.mxu0 %v6073
        %8557 = vmatpush.bf16.msra.mxu0 %v6071
        %8558 = vmatpush.bf16.msra.mxu0 %v6069
        %8559 = vmatpush.bf16.msra.mxu0 %v6067
        %8560 = vmatmul.bf16.gmra.mxu0 %v585
        %v8561 = vpop.f32.mrf.mxu0
        %v8562 = vadd.f32 %v8543, %v8561
        %v8563 = vpop.f32.mrf.mxu0
        %v8564 = vadd.f32 %v8545, %v8563
        %8565 = vmatmul.bf16.gmra.mxu0 %v659
        %v8566 = vpop.f32.mrf.mxu0
        %v8567 = vadd.f32 %v8548, %v8566
        %v8568 = vpop.f32.mrf.mxu0
        %v8569 = vadd.f32 %v8550, %v8568
        %8570 = vdwg.mxu0
        %8571 = vmatpush.bf16.msra.mxu0 %v6097
        %8572 = vmatpush.bf16.msra.mxu0 %v6095
        %8573 = vmatpush.bf16.msra.mxu0 %v6093
        %8574 = vmatpush.bf16.msra.mxu0 %v6091
        %8575 = vmatpush.bf16.msra.mxu0 %v6089
        %8576 = vmatpush.bf16.msra.mxu0 %v6087
        %8577 = vmatpush.bf16.msra.mxu0 %v6085
        %8578 = vmatpush.bf16.msra.mxu0 %v6083
        %8579 = vmatmul.bf16.gmra.mxu0 %v586
        %v8580 = vpop.f32.mrf.mxu0
        %v8581 = vadd.f32 %v8562, %v8580
        %v8582 = vpop.f32.mrf.mxu0
        %v8583 = vadd.f32 %v8564, %v8582
        %8584 = vmatmul.bf16.gmra.mxu0 %v660
        %v8585 = vpop.f32.mrf.mxu0
        %v8586 = vadd.f32 %v8567, %v8585
        %v8587 = vpop.f32.mrf.mxu0
        %v8588 = vadd.f32 %v8569, %v8587
        %8589 = vdwg.mxu0
        %8590 = vmatpush.bf16.msra.mxu0 %v6113
        %8591 = vmatpush.bf16.msra.mxu0 %v6111
        %8592 = vmatpush.bf16.msra.mxu0 %v6109
        %8593 = vmatpush.bf16.msra.mxu0 %v6107
        %8594 = vmatpush.bf16.msra.mxu0 %v6105
        %8595 = vmatpush.bf16.msra.mxu0 %v6103
        %8596 = vmatpush.bf16.msra.mxu0 %v6101
        %8597 = vmatpush.bf16.msra.mxu0 %v6099
        %8598 = vmatmul.bf16.gmra.mxu0 %v587
        %v8599 = vpop.f32.mrf.mxu0
        %v8600 = vadd.f32 %v8581, %v8599
        %v8601 = vpop.f32.mrf.mxu0
        %v8602 = vadd.f32 %v8583, %v8601
        %8603 = vmatmul.bf16.gmra.mxu0 %v661
        %v8604 = vpop.f32.mrf.mxu0
        %v8605 = vadd.f32 %v8586, %v8604
        %v8606 = vpop.f32.mrf.mxu0
        %v8607 = vadd.f32 %v8588, %v8606
        %8608 = vdwg.mxu0
        %8609 = vmatpush.bf16.msra.mxu0 %v6129
        %8610 = vmatpush.bf16.msra.mxu0 %v6127
        %8611 = vmatpush.bf16.msra.mxu0 %v6125
        %8612 = vmatpush.bf16.msra.mxu0 %v6123
        %8613 = vmatpush.bf16.msra.mxu0 %v6121
        %8614 = vmatpush.bf16.msra.mxu0 %v6119
        %8615 = vmatpush.bf16.msra.mxu0 %v6117
        %8616 = vmatpush.bf16.msra.mxu0 %v6115
        %8617 = vmatmul.bf16.gmra.mxu0 %v588
        %v8618 = vpop.f32.mrf.mxu0
        %v8619 = vadd.f32 %v8600, %v8618
        %v8620 = vpop.f32.mrf.mxu0
        %v8621 = vadd.f32 %v8602, %v8620
        %8622 = vmatmul.bf16.gmra.mxu0 %v662
        %v8623 = vpop.f32.mrf.mxu0
        %v8624 = vadd.f32 %v8605, %v8623
        %v8625 = vpop.f32.mrf.mxu0
        %v8626 = vadd.f32 %v8607, %v8625
        %8627 = vdwg.mxu0
        %8628 = vmatpush.bf16.msra.mxu0 %v6145
        %8629 = vmatpush.bf16.msra.mxu0 %v6143
        %8630 = vmatpush.bf16.msra.mxu0 %v6141
        %8631 = vmatpush.bf16.msra.mxu0 %v6139
        %8632 = vmatpush.bf16.msra.mxu0 %v6137
        %8633 = vmatpush.bf16.msra.mxu0 %v6135
        %8634 = vmatpush.bf16.msra.mxu0 %v6133
        %8635 = vmatpush.bf16.msra.mxu0 %v6131
        %8636 = vmatmul.bf16.gmra.mxu0 %v589
        %v8637 = vpop.f32.mrf.mxu0
        %v8638 = vadd.f32 %v8619, %v8637
        %v8639 = vpop.f32.mrf.mxu0
        %v8640 = vadd.f32 %v8621, %v8639
        %8641 = vmatmul.bf16.gmra.mxu0 %v663
        %v8642 = vpop.f32.mrf.mxu0
        %v8643 = vadd.f32 %v8624, %v8642
        %v8644 = vpop.f32.mrf.mxu0
        %v8645 = vadd.f32 %v8626, %v8644
        %8646 = vdwg.mxu0
        %8647 = vmatpush.bf16.msra.mxu0 %v6161
        %8648 = vmatpush.bf16.msra.mxu0 %v6159
        %8649 = vmatpush.bf16.msra.mxu0 %v6157
        %8650 = vmatpush.bf16.msra.mxu0 %v6155
        %8651 = vmatpush.bf16.msra.mxu0 %v6153
        %8652 = vmatpush.bf16.msra.mxu0 %v6151
        %8653 = vmatpush.bf16.msra.mxu0 %v6149
        %8654 = vmatpush.bf16.msra.mxu0 %v6147
        %8655 = vmatmul.bf16.gmra.mxu0 %v590
        %v8656 = vpop.f32.mrf.mxu0
        %v8657 = vadd.f32 %v8638, %v8656
        %v8658 = vpop.f32.mrf.mxu0
        %v8659 = vadd.f32 %v8640, %v8658
        %8660 = vmatmul.bf16.gmra.mxu0 %v664
        %v8661 = vpop.f32.mrf.mxu0
        %v8662 = vadd.f32 %v8643, %v8661
        %v8663 = vpop.f32.mrf.mxu0
        %v8664 = vadd.f32 %v8645, %v8663
        %8665 = vdwg.mxu0
        %8666 = vmatpush.bf16.msra.mxu0 %v6177
        %8667 = vmatpush.bf16.msra.mxu0 %v6175
        %8668 = vmatpush.bf16.msra.mxu0 %v6173
        %8669 = vmatpush.bf16.msra.mxu0 %v6171
        %8670 = vmatpush.bf16.msra.mxu0 %v6169
        %8671 = vmatpush.bf16.msra.mxu0 %v6167
        %8672 = vmatpush.bf16.msra.mxu0 %v6165
        %8673 = vmatpush.bf16.msra.mxu0 %v6163
        %8674 = vmatmul.bf16.gmra.mxu0 %v591
        %v8675 = vpop.f32.mrf.mxu0
        %v8676 = vadd.f32 %v8657, %v8675
        %v8677 = vpop.f32.mrf.mxu0
        %v8678 = vadd.f32 %v8659, %v8677
        %8679 = vmatmul.bf16.gmra.mxu0 %v665
        %v8680 = vpop.f32.mrf.mxu0
        %v8681 = vadd.f32 %v8662, %v8680
        %v8682 = vpop.f32.mrf.mxu0
        %v8683 = vadd.f32 %v8664, %v8682
        %8684 = vdwg.mxu0
        %8685 = vmatpush.bf16.msra.mxu0 %v6193
        %8686 = vmatpush.bf16.msra.mxu0 %v6191
        %8687 = vmatpush.bf16.msra.mxu0 %v6189
        %8688 = vmatpush.bf16.msra.mxu0 %v6187
        %8689 = vmatpush.bf16.msra.mxu0 %v6185
        %8690 = vmatpush.bf16.msra.mxu0 %v6183
        %8691 = vmatpush.bf16.msra.mxu0 %v6181
        %8692 = vmatpush.bf16.msra.mxu0 %v6179
        %8693 = vmatmul.bf16.gmra.mxu0 %v592
        %v8694 = vpop.f32.mrf.mxu0
        %v8695 = vadd.f32 %v8676, %v8694
        %v8696 = vpop.f32.mrf.mxu0
        %v8697 = vadd.f32 %v8678, %v8696
        %8698 = vmatmul.bf16.gmra.mxu0 %v666
        %v8699 = vpop.f32.mrf.mxu0
        %v8700 = vadd.f32 %v8681, %v8699
        %v8701 = vpop.f32.mrf.mxu0
        %v8702 = vadd.f32 %v8683, %v8701
        %8703 = vdwg.mxu0
        %8704 = vmatpush.bf16.msra.mxu0 %v6209
        %8705 = vmatpush.bf16.msra.mxu0 %v6207
        %8706 = vmatpush.bf16.msra.mxu0 %v6205
        %8707 = vmatpush.bf16.msra.mxu0 %v6203
        %8708 = vmatpush.bf16.msra.mxu0 %v6201
        %8709 = vmatpush.bf16.msra.mxu0 %v6199
        %8710 = vmatpush.bf16.msra.mxu0 %v6197
        %8711 = vmatpush.bf16.msra.mxu0 %v6195
        %8712 = vmatmul.bf16.gmra.mxu0 %v593
        %v8713 = vpop.f32.mrf.mxu0
        %v8714 = vadd.f32 %v8695, %v8713
        %v8715 = vpop.f32.mrf.mxu0
        %v8716 = vadd.f32 %v8697, %v8715
        %8717 = vmatmul.bf16.gmra.mxu0 %v667
        %v8718 = vpop.f32.mrf.mxu0
        %v8719 = vadd.f32 %v8700, %v8718
        %v8720 = vpop.f32.mrf.mxu0
        %v8721 = vadd.f32 %v8702, %v8720
        %8722 = vdwg.mxu0
        %8723 = vmatpush.bf16.msra.mxu0 %v6225
        %8724 = vmatpush.bf16.msra.mxu0 %v6223
        %8725 = vmatpush.bf16.msra.mxu0 %v6221
        %8726 = vmatpush.bf16.msra.mxu0 %v6219
        %8727 = vmatpush.bf16.msra.mxu0 %v6217
        %8728 = vmatpush.bf16.msra.mxu0 %v6215
        %8729 = vmatpush.bf16.msra.mxu0 %v6213
        %8730 = vmatpush.bf16.msra.mxu0 %v6211
        %8731 = vmatmul.bf16.gmra.mxu0 %v594
        %v8732 = vpop.f32.mrf.mxu0
        %v8733 = vadd.f32 %v8714, %v8732
        %v8734 = vpop.f32.mrf.mxu0
        %v8735 = vadd.f32 %v8716, %v8734
        %8736 = vmatmul.bf16.gmra.mxu0 %v668
        %v8737 = vpop.f32.mrf.mxu0
        %v8738 = vadd.f32 %v8719, %v8737
        %v8739 = vpop.f32.mrf.mxu0
        %v8740 = vadd.f32 %v8721, %v8739
        %8741 = vdwg.mxu0
        %8742 = vmatpush.bf16.msra.mxu0 %v6241
        %8743 = vmatpush.bf16.msra.mxu0 %v6239
        %8744 = vmatpush.bf16.msra.mxu0 %v6237
        %8745 = vmatpush.bf16.msra.mxu0 %v6235
        %8746 = vmatpush.bf16.msra.mxu0 %v6233
        %8747 = vmatpush.bf16.msra.mxu0 %v6231
        %8748 = vmatpush.bf16.msra.mxu0 %v6229
        %8749 = vmatpush.bf16.msra.mxu0 %v6227
        %8750 = vmatmul.bf16.gmra.mxu0 %v595
        %v8751 = vpop.f32.mrf.mxu0
        %v8752 = vadd.f32 %v8733, %v8751
        %v8753 = vpop.f32.mrf.mxu0
        %v8754 = vadd.f32 %v8735, %v8753
        %8755 = vmatmul.bf16.gmra.mxu0 %v669
        %v8756 = vpop.f32.mrf.mxu0
        %v8757 = vadd.f32 %v8738, %v8756
        %v8758 = vpop.f32.mrf.mxu0
        %v8759 = vadd.f32 %v8740, %v8758
        %8760 = vdwg.mxu0
        %8761 = vmatpush.bf16.msra.mxu0 %v6257
        %8762 = vmatpush.bf16.msra.mxu0 %v6255
        %8763 = vmatpush.bf16.msra.mxu0 %v6253
        %8764 = vmatpush.bf16.msra.mxu0 %v6251
        %8765 = vmatpush.bf16.msra.mxu0 %v6249
        %8766 = vmatpush.bf16.msra.mxu0 %v6247
        %8767 = vmatpush.bf16.msra.mxu0 %v6245
        %8768 = vmatpush.bf16.msra.mxu0 %v6243
        %8769 = vmatmul.bf16.gmra.mxu0 %v596
        %v8770 = vpop.f32.mrf.mxu0
        %v8771 = vadd.f32 %v8752, %v8770
        %v8772 = vpop.f32.mrf.mxu0
        %v8773 = vadd.f32 %v8754, %v8772
        %8774 = vmatmul.bf16.gmra.mxu0 %v670
        %v8775 = vpop.f32.mrf.mxu0
        %v8776 = vadd.f32 %v8757, %v8775
        %v8777 = vpop.f32.mrf.mxu0
        %v8778 = vadd.f32 %v8759, %v8777
        %8779 = vdwg.mxu0
        %8780 = vmatpush.bf16.msra.mxu0 %v6273
        %8781 = vmatpush.bf16.msra.mxu0 %v6271
        %8782 = vmatpush.bf16.msra.mxu0 %v6269
        %8783 = vmatpush.bf16.msra.mxu0 %v6267
        %8784 = vmatpush.bf16.msra.mxu0 %v6265
        %8785 = vmatpush.bf16.msra.mxu0 %v6263
        %8786 = vmatpush.bf16.msra.mxu0 %v6261
        %8787 = vmatpush.bf16.msra.mxu0 %v6259
        %8788 = vmatmul.bf16.gmra.mxu0 %v597
        %v8789 = vpop.f32.mrf.mxu0
        %v8790 = vadd.f32 %v8771, %v8789
        %v8791 = vpop.f32.mrf.mxu0
        %v8792 = vadd.f32 %v8773, %v8791
        %8793 = vmatmul.bf16.gmra.mxu0 %v671
        %v8794 = vpop.f32.mrf.mxu0
        %v8795 = vadd.f32 %v8776, %v8794
        %v8796 = vpop.f32.mrf.mxu0
        %v8797 = vadd.f32 %v8778, %v8796
        %8798 = vdwg.mxu0
        %8799 = vmatpush.bf16.msra.mxu0 %v6289
        %8800 = vmatpush.bf16.msra.mxu0 %v6287
        %8801 = vmatpush.bf16.msra.mxu0 %v6285
        %8802 = vmatpush.bf16.msra.mxu0 %v6283
        %8803 = vmatpush.bf16.msra.mxu0 %v6281
        %8804 = vmatpush.bf16.msra.mxu0 %v6279
        %8805 = vmatpush.bf16.msra.mxu0 %v6277
        %8806 = vmatpush.bf16.msra.mxu0 %v6275
        %8807 = vmatmul.bf16.gmra.mxu0 %v598
        %v8808 = vpop.f32.mrf.mxu0
        %v8809 = vadd.f32 %v8790, %v8808
        %v8810 = vpop.f32.mrf.mxu0
        %v8811 = vadd.f32 %v8792, %v8810
        %8812 = vmatmul.bf16.gmra.mxu0 %v672
        %v8813 = vpop.f32.mrf.mxu0
        %v8814 = vadd.f32 %v8795, %v8813
        %v8815 = vpop.f32.mrf.mxu0
        %v8816 = vadd.f32 %v8797, %v8815
        %8817 = vdwg.mxu0
        %8818 = vmatpush.bf16.msra.mxu0 %v6305
        %8819 = vmatpush.bf16.msra.mxu0 %v6303
        %8820 = vmatpush.bf16.msra.mxu0 %v6301
        %8821 = vmatpush.bf16.msra.mxu0 %v6299
        %8822 = vmatpush.bf16.msra.mxu0 %v6297
        %8823 = vmatpush.bf16.msra.mxu0 %v6295
        %8824 = vmatpush.bf16.msra.mxu0 %v6293
        %8825 = vmatpush.bf16.msra.mxu0 %v6291
        %8826 = vmatmul.bf16.gmra.mxu0 %v599
        %v8827 = vpop.f32.mrf.mxu0
        %v8828 = vadd.f32 %v8809, %v8827
        %v8829 = vpop.f32.mrf.mxu0
        %v8830 = vadd.f32 %v8811, %v8829
        %8831 = vmatmul.bf16.gmra.mxu0 %v673
        %v8832 = vpop.f32.mrf.mxu0
        %v8833 = vadd.f32 %v8814, %v8832
        %v8834 = vpop.f32.mrf.mxu0
        %v8835 = vadd.f32 %v8816, %v8834
        %8836 = vdwg.mxu0
        %8837 = vmatpush.bf16.msra.mxu0 %v6321
        %8838 = vmatpush.bf16.msra.mxu0 %v6319
        %8839 = vmatpush.bf16.msra.mxu0 %v6317
        %8840 = vmatpush.bf16.msra.mxu0 %v6315
        %8841 = vmatpush.bf16.msra.mxu0 %v6313
        %8842 = vmatpush.bf16.msra.mxu0 %v6311
        %8843 = vmatpush.bf16.msra.mxu0 %v6309
        %8844 = vmatpush.bf16.msra.mxu0 %v6307
        %8845 = vmatmul.bf16.gmra.mxu0 %v600
        %v8846 = vpop.f32.mrf.mxu0
        %v8847 = vadd.f32 %v8828, %v8846
        %v8848 = vpop.f32.mrf.mxu0
        %v8849 = vadd.f32 %v8830, %v8848
        %8850 = vmatmul.bf16.gmra.mxu0 %v674
        %v8851 = vpop.f32.mrf.mxu0
        %v8852 = vadd.f32 %v8833, %v8851
        %v8853 = vpop.f32.mrf.mxu0
        %v8854 = vadd.f32 %v8835, %v8853
        %8855 = vdwg.mxu0
        %8856 = vmatpush.bf16.msra.mxu0 %v6337
        %8857 = vmatpush.bf16.msra.mxu0 %v6335
        %8858 = vmatpush.bf16.msra.mxu0 %v6333
        %8859 = vmatpush.bf16.msra.mxu0 %v6331
        %8860 = vmatpush.bf16.msra.mxu0 %v6329
        %8861 = vmatpush.bf16.msra.mxu0 %v6327
        %8862 = vmatpush.bf16.msra.mxu0 %v6325
        %8863 = vmatpush.bf16.msra.mxu0 %v6323
        %8864 = vmatmul.bf16.gmra.mxu0 %v601
        %v8865 = vpop.f32.mrf.mxu0
        %v8866 = vadd.f32 %v8847, %v8865
        %v8867 = vpop.f32.mrf.mxu0
        %v8868 = vadd.f32 %v8849, %v8867
        %8869 = vmatmul.bf16.gmra.mxu0 %v675
        %v8870 = vpop.f32.mrf.mxu0
        %v8871 = vadd.f32 %v8852, %v8870
        %v8872 = vpop.f32.mrf.mxu0
        %v8873 = vadd.f32 %v8854, %v8872
        %8874 = vdwg.mxu0
        %8875 = vmatpush.bf16.msra.mxu0 %v6353
        %8876 = vmatpush.bf16.msra.mxu0 %v6351
        %8877 = vmatpush.bf16.msra.mxu0 %v6349
        %8878 = vmatpush.bf16.msra.mxu0 %v6347
        %8879 = vmatpush.bf16.msra.mxu0 %v6345
        %8880 = vmatpush.bf16.msra.mxu0 %v6343
        %8881 = vmatpush.bf16.msra.mxu0 %v6341
        %8882 = vmatpush.bf16.msra.mxu0 %v6339
        %8883 = vmatmul.bf16.gmra.mxu0 %v602
        %v8884 = vpop.f32.mrf.mxu0
        %v8885 = vadd.f32 %v8866, %v8884
        %v8886 = vpop.f32.mrf.mxu0
        %v8887 = vadd.f32 %v8868, %v8886
        %8888 = vmatmul.bf16.gmra.mxu0 %v676
        %v8889 = vpop.f32.mrf.mxu0
        %v8890 = vadd.f32 %v8871, %v8889
        %v8891 = vpop.f32.mrf.mxu0
        %v8892 = vadd.f32 %v8873, %v8891
        %8893 = vdwg.mxu0
        %8894 = vmatpush.bf16.msra.mxu0 %v6369
        %8895 = vmatpush.bf16.msra.mxu0 %v6367
        %8896 = vmatpush.bf16.msra.mxu0 %v6365
        %8897 = vmatpush.bf16.msra.mxu0 %v6363
        %8898 = vmatpush.bf16.msra.mxu0 %v6361
        %8899 = vmatpush.bf16.msra.mxu0 %v6359
        %8900 = vmatpush.bf16.msra.mxu0 %v6357
        %8901 = vmatpush.bf16.msra.mxu0 %v6355
        %8902 = vmatmul.bf16.gmra.mxu0 %v603
        %v8903 = vpop.f32.mrf.mxu0
        %v8904 = vadd.f32 %v8885, %v8903
        %v8905 = vpop.f32.mrf.mxu0
        %v8906 = vadd.f32 %v8887, %v8905
        %8907 = vmatmul.bf16.gmra.mxu0 %v677
        %v8908 = vpop.f32.mrf.mxu0
        %v8909 = vadd.f32 %v8890, %v8908
        %v8910 = vpop.f32.mrf.mxu0
        %v8911 = vadd.f32 %v8892, %v8910
        %8912 = vdwg.mxu0
        %8913 = vmatpush.bf16.msra.mxu0 %v6385
        %8914 = vmatpush.bf16.msra.mxu0 %v6383
        %8915 = vmatpush.bf16.msra.mxu0 %v6381
        %8916 = vmatpush.bf16.msra.mxu0 %v6379
        %8917 = vmatpush.bf16.msra.mxu0 %v6377
        %8918 = vmatpush.bf16.msra.mxu0 %v6375
        %8919 = vmatpush.bf16.msra.mxu0 %v6373
        %8920 = vmatpush.bf16.msra.mxu0 %v6371
        %8921 = vmatmul.bf16.gmra.mxu0 %v604
        %v8922 = vpop.f32.mrf.mxu0
        %v8923 = vadd.f32 %v8904, %v8922
        %v8924 = vpop.f32.mrf.mxu0
        %v8925 = vadd.f32 %v8906, %v8924
        %8926 = vmatmul.bf16.gmra.mxu0 %v678
        %v8927 = vpop.f32.mrf.mxu0
        %v8928 = vadd.f32 %v8909, %v8927
        %v8929 = vpop.f32.mrf.mxu0
        %v8930 = vadd.f32 %v8911, %v8929
        %8931 = vdwg.mxu0
        %8932 = vmatpush.bf16.msra.mxu0 %v6401
        %8933 = vmatpush.bf16.msra.mxu0 %v6399
        %8934 = vmatpush.bf16.msra.mxu0 %v6397
        %8935 = vmatpush.bf16.msra.mxu0 %v6395
        %8936 = vmatpush.bf16.msra.mxu0 %v6393
        %8937 = vmatpush.bf16.msra.mxu0 %v6391
        %8938 = vmatpush.bf16.msra.mxu0 %v6389
        %8939 = vmatpush.bf16.msra.mxu0 %v6387
        %8940 = vmatmul.bf16.gmra.mxu0 %v605
        %v8941 = vpop.f32.mrf.mxu0
        %v8942 = vadd.f32 %v8923, %v8941
        %v8943 = vpop.f32.mrf.mxu0
        %v8944 = vadd.f32 %v8925, %v8943
        %8945 = vmatmul.bf16.gmra.mxu0 %v679
        %v8946 = vpop.f32.mrf.mxu0
        %v8947 = vadd.f32 %v8928, %v8946
        %v8948 = vpop.f32.mrf.mxu0
        %v8949 = vadd.f32 %v8930, %v8948
        %8950 = vdwg.mxu0
        %8951 = vmatpush.bf16.msra.mxu0 %v6417
        %8952 = vmatpush.bf16.msra.mxu0 %v6415
        %8953 = vmatpush.bf16.msra.mxu0 %v6413
        %8954 = vmatpush.bf16.msra.mxu0 %v6411
        %8955 = vmatpush.bf16.msra.mxu0 %v6409
        %8956 = vmatpush.bf16.msra.mxu0 %v6407
        %8957 = vmatpush.bf16.msra.mxu0 %v6405
        %8958 = vmatpush.bf16.msra.mxu0 %v6403
        %8959 = vmatmul.bf16.gmra.mxu0 %v606
        %v8960 = vpop.f32.mrf.mxu0
        %v8961 = vadd.f32 %v8942, %v8960
        %v8962 = vpop.f32.mrf.mxu0
        %v8963 = vadd.f32 %v8944, %v8962
        %8964 = vmatmul.bf16.gmra.mxu0 %v680
        %v8965 = vpop.f32.mrf.mxu0
        %v8966 = vadd.f32 %v8947, %v8965
        %v8967 = vpop.f32.mrf.mxu0
        %v8968 = vadd.f32 %v8949, %v8967
        %8969 = vdwg.mxu0
        %8970 = vmatpush.bf16.msra.mxu0 %v6433
        %8971 = vmatpush.bf16.msra.mxu0 %v6431
        %8972 = vmatpush.bf16.msra.mxu0 %v6429
        %8973 = vmatpush.bf16.msra.mxu0 %v6427
        %8974 = vmatpush.bf16.msra.mxu0 %v6425
        %8975 = vmatpush.bf16.msra.mxu0 %v6423
        %8976 = vmatpush.bf16.msra.mxu0 %v6421
        %8977 = vmatpush.bf16.msra.mxu0 %v6419
        %8978 = vmatmul.bf16.gmra.mxu0 %v607
        %v8979 = vpop.f32.mrf.mxu0
        %v8980 = vadd.f32 %v8961, %v8979
        %v8981 = vpop.f32.mrf.mxu0
        %v8982 = vadd.f32 %v8963, %v8981
        %8983 = vmatmul.bf16.gmra.mxu0 %v681
        %v8984 = vpop.f32.mrf.mxu0
        %v8985 = vadd.f32 %v8966, %v8984
        %v8986 = vpop.f32.mrf.mxu0
        %v8987 = vadd.f32 %v8968, %v8986
        %8988 = vdwg.mxu0
        %8989 = vmatpush.bf16.msra.mxu0 %v6449
        %8990 = vmatpush.bf16.msra.mxu0 %v6447
        %8991 = vmatpush.bf16.msra.mxu0 %v6445
        %8992 = vmatpush.bf16.msra.mxu0 %v6443
        %8993 = vmatpush.bf16.msra.mxu0 %v6441
        %8994 = vmatpush.bf16.msra.mxu0 %v6439
        %8995 = vmatpush.bf16.msra.mxu0 %v6437
        %8996 = vmatpush.bf16.msra.mxu0 %v6435
        %8997 = vmatmul.bf16.gmra.mxu0 %v608
        %v8998 = vpop.f32.mrf.mxu0
        %v8999 = vadd.f32 %v8980, %v8998
        %v9000 = vpop.f32.mrf.mxu0
        %v9001 = vadd.f32 %v8982, %v9000
        %9002 = vmatmul.bf16.gmra.mxu0 %v682
        %v9003 = vpop.f32.mrf.mxu0
        %v9004 = vadd.f32 %v8985, %v9003
        %v9005 = vpop.f32.mrf.mxu0
        %v9006 = vadd.f32 %v8987, %v9005
        %9007 = vdwg.mxu0
        %9008 = vmatpush.bf16.msra.mxu0 %v6465
        %9009 = vmatpush.bf16.msra.mxu0 %v6463
        %9010 = vmatpush.bf16.msra.mxu0 %v6461
        %9011 = vmatpush.bf16.msra.mxu0 %v6459
        %9012 = vmatpush.bf16.msra.mxu0 %v6457
        %9013 = vmatpush.bf16.msra.mxu0 %v6455
        %9014 = vmatpush.bf16.msra.mxu0 %v6453
        %9015 = vmatpush.bf16.msra.mxu0 %v6451
        %9016 = vmatmul.bf16.gmra.mxu0 %v609
        %v9017 = vpop.f32.mrf.mxu0
        %v9018 = vadd.f32 %v8999, %v9017
        %v9019 = vpop.f32.mrf.mxu0
        %v9020 = vadd.f32 %v9001, %v9019
        %9021 = vmatmul.bf16.gmra.mxu0 %v683
        %v9022 = vpop.f32.mrf.mxu0
        %v9023 = vadd.f32 %v9004, %v9022
        %v9024 = vpop.f32.mrf.mxu0
        %v9025 = vadd.f32 %v9006, %v9024
        %9026 = vdwg.mxu0
        %9027 = vmatpush.bf16.msra.mxu0 %v6481
        %9028 = vmatpush.bf16.msra.mxu0 %v6479
        %9029 = vmatpush.bf16.msra.mxu0 %v6477
        %9030 = vmatpush.bf16.msra.mxu0 %v6475
        %9031 = vmatpush.bf16.msra.mxu0 %v6473
        %9032 = vmatpush.bf16.msra.mxu0 %v6471
        %9033 = vmatpush.bf16.msra.mxu0 %v6469
        %9034 = vmatpush.bf16.msra.mxu0 %v6467
        %9035 = vmatmul.bf16.gmra.mxu0 %v610
        %v9036 = vpop.f32.mrf.mxu0
        %v9037 = vadd.f32 %v9018, %v9036
        %v9038 = vpop.f32.mrf.mxu0
        %v9039 = vadd.f32 %v9020, %v9038
        %9040 = vmatmul.bf16.gmra.mxu0 %v684
        %v9041 = vpop.f32.mrf.mxu0
        %v9042 = vadd.f32 %v9023, %v9041
        %v9043 = vpop.f32.mrf.mxu0
        %v9044 = vadd.f32 %v9025, %v9043
        %9045 = vdwg.mxu0
        %9046 = vmatpush.bf16.msra.mxu0 %v6497
        %9047 = vmatpush.bf16.msra.mxu0 %v6495
        %9048 = vmatpush.bf16.msra.mxu0 %v6493
        %9049 = vmatpush.bf16.msra.mxu0 %v6491
        %9050 = vmatpush.bf16.msra.mxu0 %v6489
        %9051 = vmatpush.bf16.msra.mxu0 %v6487
        %9052 = vmatpush.bf16.msra.mxu0 %v6485
        %9053 = vmatpush.bf16.msra.mxu0 %v6483
        %9054 = vmatmul.bf16.gmra.mxu0 %v611
        %v9055 = vpop.f32.mrf.mxu0
        %v9056 = vadd.f32 %v9037, %v9055
        %v9057 = vpop.f32.mrf.mxu0
        %v9058 = vadd.f32 %v9039, %v9057
        %9059 = vmatmul.bf16.gmra.mxu0 %v685
        %v9060 = vpop.f32.mrf.mxu0
        %v9061 = vadd.f32 %v9042, %v9060
        %v9062 = vpop.f32.mrf.mxu0
        %v9063 = vadd.f32 %v9044, %v9062
        %9064 = vdwg.mxu0
        %9065 = vmatpush.bf16.msra.mxu0 %v6513
        %9066 = vmatpush.bf16.msra.mxu0 %v6511
        %9067 = vmatpush.bf16.msra.mxu0 %v6509
        %9068 = vmatpush.bf16.msra.mxu0 %v6507
        %9069 = vmatpush.bf16.msra.mxu0 %v6505
        %9070 = vmatpush.bf16.msra.mxu0 %v6503
        %9071 = vmatpush.bf16.msra.mxu0 %v6501
        %9072 = vmatpush.bf16.msra.mxu0 %v6499
        %9073 = vmatmul.bf16.gmra.mxu0 %v612
        %v9074 = vpop.f32.mrf.mxu0
        %v9075 = vadd.f32 %v9056, %v9074
        %v9076 = vpop.f32.mrf.mxu0
        %v9077 = vadd.f32 %v9058, %v9076
        %9078 = vmatmul.bf16.gmra.mxu0 %v686
        %v9079 = vpop.f32.mrf.mxu0
        %v9080 = vadd.f32 %v9061, %v9079
        %v9081 = vpop.f32.mrf.mxu0
        %v9082 = vadd.f32 %v9063, %v9081
        %9083 = vdwg.mxu0
        %9084 = vmatpush.bf16.msra.mxu0 %v6529
        %9085 = vmatpush.bf16.msra.mxu0 %v6527
        %9086 = vmatpush.bf16.msra.mxu0 %v6525
        %9087 = vmatpush.bf16.msra.mxu0 %v6523
        %9088 = vmatpush.bf16.msra.mxu0 %v6521
        %9089 = vmatpush.bf16.msra.mxu0 %v6519
        %9090 = vmatpush.bf16.msra.mxu0 %v6517
        %9091 = vmatpush.bf16.msra.mxu0 %v6515
        %9092 = vmatmul.bf16.gmra.mxu0 %v613
        %v9093 = vpop.f32.mrf.mxu0
        %v9094 = vadd.f32 %v9075, %v9093
        %v9095 = vpop.f32.mrf.mxu0
        %v9096 = vadd.f32 %v9077, %v9095
        %9097 = vmatmul.bf16.gmra.mxu0 %v687
        %v9098 = vpop.f32.mrf.mxu0
        %v9099 = vadd.f32 %v9080, %v9098
        %v9100 = vpop.f32.mrf.mxu0
        %v9101 = vadd.f32 %v9082, %v9100
        %9102 = vdwg.mxu0
        %9103 = vmatpush.bf16.msra.mxu0 %v6545
        %9104 = vmatpush.bf16.msra.mxu0 %v6543
        %9105 = vmatpush.bf16.msra.mxu0 %v6541
        %9106 = vmatpush.bf16.msra.mxu0 %v6539
        %9107 = vmatpush.bf16.msra.mxu0 %v6537
        %9108 = vmatpush.bf16.msra.mxu0 %v6535
        %9109 = vmatpush.bf16.msra.mxu0 %v6533
        %9110 = vmatpush.bf16.msra.mxu0 %v6531
        %9111 = vmatmul.bf16.gmra.mxu0 %v614
        %v9112 = vpop.f32.mrf.mxu0
        %v9113 = vadd.f32 %v9094, %v9112
        %v9114 = vpop.f32.mrf.mxu0
        %v9115 = vadd.f32 %v9096, %v9114
        %9116 = vmatmul.bf16.gmra.mxu0 %v688
        %v9117 = vpop.f32.mrf.mxu0
        %v9118 = vadd.f32 %v9099, %v9117
        %v9119 = vpop.f32.mrf.mxu0
        %v9120 = vadd.f32 %v9101, %v9119
        %9121 = vdwg.mxu0
        %9122 = vmatpush.bf16.msra.mxu0 %v6561
        %9123 = vmatpush.bf16.msra.mxu0 %v6559
        %9124 = vmatpush.bf16.msra.mxu0 %v6557
        %9125 = vmatpush.bf16.msra.mxu0 %v6555
        %9126 = vmatpush.bf16.msra.mxu0 %v6553
        %9127 = vmatpush.bf16.msra.mxu0 %v6551
        %9128 = vmatpush.bf16.msra.mxu0 %v6549
        %9129 = vmatpush.bf16.msra.mxu0 %v6547
        %9130 = vmatmul.bf16.gmra.mxu0 %v615
        %v9131 = vpop.f32.mrf.mxu0
        %v9132 = vadd.f32 %v9113, %v9131
        %v9133 = vpop.f32.mrf.mxu0
        %v9134 = vadd.f32 %v9115, %v9133
        %9135 = vmatmul.bf16.gmra.mxu0 %v689
        %v9136 = vpop.f32.mrf.mxu0
        %v9137 = vadd.f32 %v9118, %v9136
        %v9138 = vpop.f32.mrf.mxu0
        %v9139 = vadd.f32 %v9120, %v9138
        %9140 = vdwg.mxu0
        %9141 = vmatpush.bf16.msra.mxu0 0
        %9142 = vmatpush.bf16.msra.mxu0 0
        %9143 = vmatpush.bf16.msra.mxu0 0
        %9144 = vmatpush.bf16.msra.mxu0 0
        %9145 = vmatpush.bf16.msra.mxu0 %v6569
        %9146 = vmatpush.bf16.msra.mxu0 %v6567
        %9147 = vmatpush.bf16.msra.mxu0 %v6565
        %9148 = vmatpush.bf16.msra.mxu0 %v6563
        %9149 = vmatmul.bf16.gmra.mxu0 %v7749
        %v9150 = vpop.f32.mrf.mxu0
        %v9151 = vadd.f32 %v9132, %v9150
        %v9152 = vpop.f32.mrf.mxu0
        %v9153 = vadd.f32 %v9134, %v9152
        %9154 = vmatmul.bf16.gmra.mxu0 %v7752
        %v9155 = vpop.f32.mrf.mxu0
        %v9156 = vadd.f32 %v9137, %v9155
        %v9157 = vpop.f32.mrf.mxu0
        %v9158 = vadd.f32 %v9139, %v9157
        %9159 = vdwg.mxu0
        %9160 = vmatpush.bf16.msra.mxu0 %v5410
        %9161 = vmatpush.bf16.msra.mxu0 %v5408
        %9162 = vmatpush.bf16.msra.mxu0 %v5406
        %9163 = vmatpush.bf16.msra.mxu0 %v5404
        %9164 = vmatpush.bf16.msra.mxu0 %v5402
        %9165 = vmatpush.bf16.msra.mxu0 %v5400
        %9166 = vmatpush.bf16.msra.mxu0 %v5398
        %9167 = vmatpush.bf16.msra.mxu0 %v5396
        %9168 = vmatmul.bf16.gmra.mxu0 %v543
        %v9169 = vpop.f32.mrf.mxu0
        %v9170 = vadd.f32 0.0, %v9169
        %v9171 = vpop.f32.mrf.mxu0
        %v9172 = vadd.f32 0.0, %v9171
        %9173 = vmatmul.bf16.gmra.mxu0 %v617
        %v9174 = vpop.f32.mrf.mxu0
        %v9175 = vadd.f32 0.0, %v9174
        %v9176 = vpop.f32.mrf.mxu0
        %v9177 = vadd.f32 0.0, %v9176
        %9178 = vdwg.mxu0
        %9179 = vmatpush.bf16.msra.mxu0 %v5426
        %9180 = vmatpush.bf16.msra.mxu0 %v5424
        %9181 = vmatpush.bf16.msra.mxu0 %v5422
        %9182 = vmatpush.bf16.msra.mxu0 %v5420
        %9183 = vmatpush.bf16.msra.mxu0 %v5418
        %9184 = vmatpush.bf16.msra.mxu0 %v5416
        %9185 = vmatpush.bf16.msra.mxu0 %v5414
        %9186 = vmatpush.bf16.msra.mxu0 %v5412
        %9187 = vmatmul.bf16.gmra.mxu0 %v544
        %v9188 = vpop.f32.mrf.mxu0
        %v9189 = vadd.f32 %v9170, %v9188
        %v9190 = vpop.f32.mrf.mxu0
        %v9191 = vadd.f32 %v9172, %v9190
        %9192 = vmatmul.bf16.gmra.mxu0 %v618
        %v9193 = vpop.f32.mrf.mxu0
        %v9194 = vadd.f32 %v9175, %v9193
        %v9195 = vpop.f32.mrf.mxu0
        %v9196 = vadd.f32 %v9177, %v9195
        %9197 = vdwg.mxu0
        %9198 = vmatpush.bf16.msra.mxu0 %v5442
        %9199 = vmatpush.bf16.msra.mxu0 %v5440
        %9200 = vmatpush.bf16.msra.mxu0 %v5438
        %9201 = vmatpush.bf16.msra.mxu0 %v5436
        %9202 = vmatpush.bf16.msra.mxu0 %v5434
        %9203 = vmatpush.bf16.msra.mxu0 %v5432
        %9204 = vmatpush.bf16.msra.mxu0 %v5430
        %9205 = vmatpush.bf16.msra.mxu0 %v5428
        %9206 = vmatmul.bf16.gmra.mxu0 %v545
        %v9207 = vpop.f32.mrf.mxu0
        %v9208 = vadd.f32 %v9189, %v9207
        %v9209 = vpop.f32.mrf.mxu0
        %v9210 = vadd.f32 %v9191, %v9209
        %9211 = vmatmul.bf16.gmra.mxu0 %v619
        %v9212 = vpop.f32.mrf.mxu0
        %v9213 = vadd.f32 %v9194, %v9212
        %v9214 = vpop.f32.mrf.mxu0
        %v9215 = vadd.f32 %v9196, %v9214
        %9216 = vdwg.mxu0
        %9217 = vmatpush.bf16.msra.mxu0 %v5458
        %9218 = vmatpush.bf16.msra.mxu0 %v5456
        %9219 = vmatpush.bf16.msra.mxu0 %v5454
        %9220 = vmatpush.bf16.msra.mxu0 %v5452
        %9221 = vmatpush.bf16.msra.mxu0 %v5450
        %9222 = vmatpush.bf16.msra.mxu0 %v5448
        %9223 = vmatpush.bf16.msra.mxu0 %v5446
        %9224 = vmatpush.bf16.msra.mxu0 %v5444
        %9225 = vmatmul.bf16.gmra.mxu0 %v546
        %v9226 = vpop.f32.mrf.mxu0
        %v9227 = vadd.f32 %v9208, %v9226
        %v9228 = vpop.f32.mrf.mxu0
        %v9229 = vadd.f32 %v9210, %v9228
        %9230 = vmatmul.bf16.gmra.mxu0 %v620
        %v9231 = vpop.f32.mrf.mxu0
        %v9232 = vadd.f32 %v9213, %v9231
        %v9233 = vpop.f32.mrf.mxu0
        %v9234 = vadd.f32 %v9215, %v9233
        %9235 = vdwg.mxu0
        %9236 = vmatpush.bf16.msra.mxu0 %v5474
        %9237 = vmatpush.bf16.msra.mxu0 %v5472
        %9238 = vmatpush.bf16.msra.mxu0 %v5470
        %9239 = vmatpush.bf16.msra.mxu0 %v5468
        %9240 = vmatpush.bf16.msra.mxu0 %v5466
        %9241 = vmatpush.bf16.msra.mxu0 %v5464
        %9242 = vmatpush.bf16.msra.mxu0 %v5462
        %9243 = vmatpush.bf16.msra.mxu0 %v5460
        %9244 = vmatmul.bf16.gmra.mxu0 %v547
        %v9245 = vpop.f32.mrf.mxu0
        %v9246 = vadd.f32 %v9227, %v9245
        %v9247 = vpop.f32.mrf.mxu0
        %v9248 = vadd.f32 %v9229, %v9247
        %9249 = vmatmul.bf16.gmra.mxu0 %v621
        %v9250 = vpop.f32.mrf.mxu0
        %v9251 = vadd.f32 %v9232, %v9250
        %v9252 = vpop.f32.mrf.mxu0
        %v9253 = vadd.f32 %v9234, %v9252
        %9254 = vdwg.mxu0
        %9255 = vmatpush.bf16.msra.mxu0 %v5490
        %9256 = vmatpush.bf16.msra.mxu0 %v5488
        %9257 = vmatpush.bf16.msra.mxu0 %v5486
        %9258 = vmatpush.bf16.msra.mxu0 %v5484
        %9259 = vmatpush.bf16.msra.mxu0 %v5482
        %9260 = vmatpush.bf16.msra.mxu0 %v5480
        %9261 = vmatpush.bf16.msra.mxu0 %v5478
        %9262 = vmatpush.bf16.msra.mxu0 %v5476
        %9263 = vmatmul.bf16.gmra.mxu0 %v548
        %v9264 = vpop.f32.mrf.mxu0
        %v9265 = vadd.f32 %v9246, %v9264
        %v9266 = vpop.f32.mrf.mxu0
        %v9267 = vadd.f32 %v9248, %v9266
        %9268 = vmatmul.bf16.gmra.mxu0 %v622
        %v9269 = vpop.f32.mrf.mxu0
        %v9270 = vadd.f32 %v9251, %v9269
        %v9271 = vpop.f32.mrf.mxu0
        %v9272 = vadd.f32 %v9253, %v9271
        %9273 = vdwg.mxu0
        %9274 = vmatpush.bf16.msra.mxu0 %v5506
        %9275 = vmatpush.bf16.msra.mxu0 %v5504
        %9276 = vmatpush.bf16.msra.mxu0 %v5502
        %9277 = vmatpush.bf16.msra.mxu0 %v5500
        %9278 = vmatpush.bf16.msra.mxu0 %v5498
        %9279 = vmatpush.bf16.msra.mxu0 %v5496
        %9280 = vmatpush.bf16.msra.mxu0 %v5494
        %9281 = vmatpush.bf16.msra.mxu0 %v5492
        %9282 = vmatmul.bf16.gmra.mxu0 %v549
        %v9283 = vpop.f32.mrf.mxu0
        %v9284 = vadd.f32 %v9265, %v9283
        %v9285 = vpop.f32.mrf.mxu0
        %v9286 = vadd.f32 %v9267, %v9285
        %9287 = vmatmul.bf16.gmra.mxu0 %v623
        %v9288 = vpop.f32.mrf.mxu0
        %v9289 = vadd.f32 %v9270, %v9288
        %v9290 = vpop.f32.mrf.mxu0
        %v9291 = vadd.f32 %v9272, %v9290
        %9292 = vdwg.mxu0
        %9293 = vmatpush.bf16.msra.mxu0 %v5522
        %9294 = vmatpush.bf16.msra.mxu0 %v5520
        %9295 = vmatpush.bf16.msra.mxu0 %v5518
        %9296 = vmatpush.bf16.msra.mxu0 %v5516
        %9297 = vmatpush.bf16.msra.mxu0 %v5514
        %9298 = vmatpush.bf16.msra.mxu0 %v5512
        %9299 = vmatpush.bf16.msra.mxu0 %v5510
        %9300 = vmatpush.bf16.msra.mxu0 %v5508
        %9301 = vmatmul.bf16.gmra.mxu0 %v550
        %v9302 = vpop.f32.mrf.mxu0
        %v9303 = vadd.f32 %v9284, %v9302
        %v9304 = vpop.f32.mrf.mxu0
        %v9305 = vadd.f32 %v9286, %v9304
        %9306 = vmatmul.bf16.gmra.mxu0 %v624
        %v9307 = vpop.f32.mrf.mxu0
        %v9308 = vadd.f32 %v9289, %v9307
        %v9309 = vpop.f32.mrf.mxu0
        %v9310 = vadd.f32 %v9291, %v9309
        %9311 = vdwg.mxu0
        %9312 = vmatpush.bf16.msra.mxu0 %v5538
        %9313 = vmatpush.bf16.msra.mxu0 %v5536
        %9314 = vmatpush.bf16.msra.mxu0 %v5534
        %9315 = vmatpush.bf16.msra.mxu0 %v5532
        %9316 = vmatpush.bf16.msra.mxu0 %v5530
        %9317 = vmatpush.bf16.msra.mxu0 %v5528
        %9318 = vmatpush.bf16.msra.mxu0 %v5526
        %9319 = vmatpush.bf16.msra.mxu0 %v5524
        %9320 = vmatmul.bf16.gmra.mxu0 %v551
        %v9321 = vpop.f32.mrf.mxu0
        %v9322 = vadd.f32 %v9303, %v9321
        %v9323 = vpop.f32.mrf.mxu0
        %v9324 = vadd.f32 %v9305, %v9323
        %9325 = vmatmul.bf16.gmra.mxu0 %v625
        %v9326 = vpop.f32.mrf.mxu0
        %v9327 = vadd.f32 %v9308, %v9326
        %v9328 = vpop.f32.mrf.mxu0
        %v9329 = vadd.f32 %v9310, %v9328
        %9330 = vdwg.mxu0
        %9331 = vmatpush.bf16.msra.mxu0 %v5554
        %9332 = vmatpush.bf16.msra.mxu0 %v5552
        %9333 = vmatpush.bf16.msra.mxu0 %v5550
        %9334 = vmatpush.bf16.msra.mxu0 %v5548
        %9335 = vmatpush.bf16.msra.mxu0 %v5546
        %9336 = vmatpush.bf16.msra.mxu0 %v5544
        %9337 = vmatpush.bf16.msra.mxu0 %v5542
        %9338 = vmatpush.bf16.msra.mxu0 %v5540
        %9339 = vmatmul.bf16.gmra.mxu0 %v552
        %v9340 = vpop.f32.mrf.mxu0
        %v9341 = vadd.f32 %v9322, %v9340
        %v9342 = vpop.f32.mrf.mxu0
        %v9343 = vadd.f32 %v9324, %v9342
        %9344 = vmatmul.bf16.gmra.mxu0 %v626
        %v9345 = vpop.f32.mrf.mxu0
        %v9346 = vadd.f32 %v9327, %v9345
        %v9347 = vpop.f32.mrf.mxu0
        %v9348 = vadd.f32 %v9329, %v9347
        %9349 = vdwg.mxu0
        %9350 = vmatpush.bf16.msra.mxu0 %v5570
        %9351 = vmatpush.bf16.msra.mxu0 %v5568
        %9352 = vmatpush.bf16.msra.mxu0 %v5566
        %9353 = vmatpush.bf16.msra.mxu0 %v5564
        %9354 = vmatpush.bf16.msra.mxu0 %v5562
        %9355 = vmatpush.bf16.msra.mxu0 %v5560
        %9356 = vmatpush.bf16.msra.mxu0 %v5558
        %9357 = vmatpush.bf16.msra.mxu0 %v5556
        %9358 = vmatmul.bf16.gmra.mxu0 %v553
        %v9359 = vpop.f32.mrf.mxu0
        %v9360 = vadd.f32 %v9341, %v9359
        %v9361 = vpop.f32.mrf.mxu0
        %v9362 = vadd.f32 %v9343, %v9361
        %9363 = vmatmul.bf16.gmra.mxu0 %v627
        %v9364 = vpop.f32.mrf.mxu0
        %v9365 = vadd.f32 %v9346, %v9364
        %v9366 = vpop.f32.mrf.mxu0
        %v9367 = vadd.f32 %v9348, %v9366
        %9368 = vdwg.mxu0
        %9369 = vmatpush.bf16.msra.mxu0 %v5586
        %9370 = vmatpush.bf16.msra.mxu0 %v5584
        %9371 = vmatpush.bf16.msra.mxu0 %v5582
        %9372 = vmatpush.bf16.msra.mxu0 %v5580
        %9373 = vmatpush.bf16.msra.mxu0 %v5578
        %9374 = vmatpush.bf16.msra.mxu0 %v5576
        %9375 = vmatpush.bf16.msra.mxu0 %v5574
        %9376 = vmatpush.bf16.msra.mxu0 %v5572
        %9377 = vmatmul.bf16.gmra.mxu0 %v554
        %v9378 = vpop.f32.mrf.mxu0
        %v9379 = vadd.f32 %v9360, %v9378
        %v9380 = vpop.f32.mrf.mxu0
        %v9381 = vadd.f32 %v9362, %v9380
        %9382 = vmatmul.bf16.gmra.mxu0 %v628
        %v9383 = vpop.f32.mrf.mxu0
        %v9384 = vadd.f32 %v9365, %v9383
        %v9385 = vpop.f32.mrf.mxu0
        %v9386 = vadd.f32 %v9367, %v9385
        %9387 = vdwg.mxu0
        %9388 = vmatpush.bf16.msra.mxu0 %v5602
        %9389 = vmatpush.bf16.msra.mxu0 %v5600
        %9390 = vmatpush.bf16.msra.mxu0 %v5598
        %9391 = vmatpush.bf16.msra.mxu0 %v5596
        %9392 = vmatpush.bf16.msra.mxu0 %v5594
        %9393 = vmatpush.bf16.msra.mxu0 %v5592
        %9394 = vmatpush.bf16.msra.mxu0 %v5590
        %9395 = vmatpush.bf16.msra.mxu0 %v5588
        %9396 = vmatmul.bf16.gmra.mxu0 %v555
        %v9397 = vpop.f32.mrf.mxu0
        %v9398 = vadd.f32 %v9379, %v9397
        %v9399 = vpop.f32.mrf.mxu0
        %v9400 = vadd.f32 %v9381, %v9399
        %9401 = vmatmul.bf16.gmra.mxu0 %v629
        %v9402 = vpop.f32.mrf.mxu0
        %v9403 = vadd.f32 %v9384, %v9402
        %v9404 = vpop.f32.mrf.mxu0
        %v9405 = vadd.f32 %v9386, %v9404
        %9406 = vdwg.mxu0
        %9407 = vmatpush.bf16.msra.mxu0 %v5618
        %9408 = vmatpush.bf16.msra.mxu0 %v5616
        %9409 = vmatpush.bf16.msra.mxu0 %v5614
        %9410 = vmatpush.bf16.msra.mxu0 %v5612
        %9411 = vmatpush.bf16.msra.mxu0 %v5610
        %9412 = vmatpush.bf16.msra.mxu0 %v5608
        %9413 = vmatpush.bf16.msra.mxu0 %v5606
        %9414 = vmatpush.bf16.msra.mxu0 %v5604
        %9415 = vmatmul.bf16.gmra.mxu0 %v556
        %v9416 = vpop.f32.mrf.mxu0
        %v9417 = vadd.f32 %v9398, %v9416
        %v9418 = vpop.f32.mrf.mxu0
        %v9419 = vadd.f32 %v9400, %v9418
        %9420 = vmatmul.bf16.gmra.mxu0 %v630
        %v9421 = vpop.f32.mrf.mxu0
        %v9422 = vadd.f32 %v9403, %v9421
        %v9423 = vpop.f32.mrf.mxu0
        %v9424 = vadd.f32 %v9405, %v9423
        %9425 = vdwg.mxu0
        %9426 = vmatpush.bf16.msra.mxu0 %v5634
        %9427 = vmatpush.bf16.msra.mxu0 %v5632
        %9428 = vmatpush.bf16.msra.mxu0 %v5630
        %9429 = vmatpush.bf16.msra.mxu0 %v5628
        %9430 = vmatpush.bf16.msra.mxu0 %v5626
        %9431 = vmatpush.bf16.msra.mxu0 %v5624
        %9432 = vmatpush.bf16.msra.mxu0 %v5622
        %9433 = vmatpush.bf16.msra.mxu0 %v5620
        %9434 = vmatmul.bf16.gmra.mxu0 %v557
        %v9435 = vpop.f32.mrf.mxu0
        %v9436 = vadd.f32 %v9417, %v9435
        %v9437 = vpop.f32.mrf.mxu0
        %v9438 = vadd.f32 %v9419, %v9437
        %9439 = vmatmul.bf16.gmra.mxu0 %v631
        %v9440 = vpop.f32.mrf.mxu0
        %v9441 = vadd.f32 %v9422, %v9440
        %v9442 = vpop.f32.mrf.mxu0
        %v9443 = vadd.f32 %v9424, %v9442
        %9444 = vdwg.mxu0
        %9445 = vmatpush.bf16.msra.mxu0 %v5650
        %9446 = vmatpush.bf16.msra.mxu0 %v5648
        %9447 = vmatpush.bf16.msra.mxu0 %v5646
        %9448 = vmatpush.bf16.msra.mxu0 %v5644
        %9449 = vmatpush.bf16.msra.mxu0 %v5642
        %9450 = vmatpush.bf16.msra.mxu0 %v5640
        %9451 = vmatpush.bf16.msra.mxu0 %v5638
        %9452 = vmatpush.bf16.msra.mxu0 %v5636
        %9453 = vmatmul.bf16.gmra.mxu0 %v558
        %v9454 = vpop.f32.mrf.mxu0
        %v9455 = vadd.f32 %v9436, %v9454
        %v9456 = vpop.f32.mrf.mxu0
        %v9457 = vadd.f32 %v9438, %v9456
        %9458 = vmatmul.bf16.gmra.mxu0 %v632
        %v9459 = vpop.f32.mrf.mxu0
        %v9460 = vadd.f32 %v9441, %v9459
        %v9461 = vpop.f32.mrf.mxu0
        %v9462 = vadd.f32 %v9443, %v9461
        %9463 = vdwg.mxu0
        %9464 = vmatpush.bf16.msra.mxu0 %v5666
        %9465 = vmatpush.bf16.msra.mxu0 %v5664
        %9466 = vmatpush.bf16.msra.mxu0 %v5662
        %9467 = vmatpush.bf16.msra.mxu0 %v5660
        %9468 = vmatpush.bf16.msra.mxu0 %v5658
        %9469 = vmatpush.bf16.msra.mxu0 %v5656
        %9470 = vmatpush.bf16.msra.mxu0 %v5654
        %9471 = vmatpush.bf16.msra.mxu0 %v5652
        %9472 = vmatmul.bf16.gmra.mxu0 %v559
        %v9473 = vpop.f32.mrf.mxu0
        %v9474 = vadd.f32 %v9455, %v9473
        %v9475 = vpop.f32.mrf.mxu0
        %v9476 = vadd.f32 %v9457, %v9475
        %9477 = vmatmul.bf16.gmra.mxu0 %v633
        %v9478 = vpop.f32.mrf.mxu0
        %v9479 = vadd.f32 %v9460, %v9478
        %v9480 = vpop.f32.mrf.mxu0
        %v9481 = vadd.f32 %v9462, %v9480
        %9482 = vdwg.mxu0
        %9483 = vmatpush.bf16.msra.mxu0 %v5682
        %9484 = vmatpush.bf16.msra.mxu0 %v5680
        %9485 = vmatpush.bf16.msra.mxu0 %v5678
        %9486 = vmatpush.bf16.msra.mxu0 %v5676
        %9487 = vmatpush.bf16.msra.mxu0 %v5674
        %9488 = vmatpush.bf16.msra.mxu0 %v5672
        %9489 = vmatpush.bf16.msra.mxu0 %v5670
        %9490 = vmatpush.bf16.msra.mxu0 %v5668
        %9491 = vmatmul.bf16.gmra.mxu0 %v560
        %v9492 = vpop.f32.mrf.mxu0
        %v9493 = vadd.f32 %v9474, %v9492
        %v9494 = vpop.f32.mrf.mxu0
        %v9495 = vadd.f32 %v9476, %v9494
        %9496 = vmatmul.bf16.gmra.mxu0 %v634
        %v9497 = vpop.f32.mrf.mxu0
        %v9498 = vadd.f32 %v9479, %v9497
        %v9499 = vpop.f32.mrf.mxu0
        %v9500 = vadd.f32 %v9481, %v9499
        %9501 = vdwg.mxu0
        %9502 = vmatpush.bf16.msra.mxu0 %v5698
        %9503 = vmatpush.bf16.msra.mxu0 %v5696
        %9504 = vmatpush.bf16.msra.mxu0 %v5694
        %9505 = vmatpush.bf16.msra.mxu0 %v5692
        %9506 = vmatpush.bf16.msra.mxu0 %v5690
        %9507 = vmatpush.bf16.msra.mxu0 %v5688
        %9508 = vmatpush.bf16.msra.mxu0 %v5686
        %9509 = vmatpush.bf16.msra.mxu0 %v5684
        %9510 = vmatmul.bf16.gmra.mxu0 %v561
        %v9511 = vpop.f32.mrf.mxu0
        %v9512 = vadd.f32 %v9493, %v9511
        %v9513 = vpop.f32.mrf.mxu0
        %v9514 = vadd.f32 %v9495, %v9513
        %9515 = vmatmul.bf16.gmra.mxu0 %v635
        %v9516 = vpop.f32.mrf.mxu0
        %v9517 = vadd.f32 %v9498, %v9516
        %v9518 = vpop.f32.mrf.mxu0
        %v9519 = vadd.f32 %v9500, %v9518
        %9520 = vdwg.mxu0
        %9521 = vmatpush.bf16.msra.mxu0 %v5714
        %9522 = vmatpush.bf16.msra.mxu0 %v5712
        %9523 = vmatpush.bf16.msra.mxu0 %v5710
        %9524 = vmatpush.bf16.msra.mxu0 %v5708
        %9525 = vmatpush.bf16.msra.mxu0 %v5706
        %9526 = vmatpush.bf16.msra.mxu0 %v5704
        %9527 = vmatpush.bf16.msra.mxu0 %v5702
        %9528 = vmatpush.bf16.msra.mxu0 %v5700
        %9529 = vmatmul.bf16.gmra.mxu0 %v562
        %v9530 = vpop.f32.mrf.mxu0
        %v9531 = vadd.f32 %v9512, %v9530
        %v9532 = vpop.f32.mrf.mxu0
        %v9533 = vadd.f32 %v9514, %v9532
        %9534 = vmatmul.bf16.gmra.mxu0 %v636
        %v9535 = vpop.f32.mrf.mxu0
        %v9536 = vadd.f32 %v9517, %v9535
        %v9537 = vpop.f32.mrf.mxu0
        %v9538 = vadd.f32 %v9519, %v9537
        %9539 = vdwg.mxu0
        %9540 = vmatpush.bf16.msra.mxu0 %v5730
        %9541 = vmatpush.bf16.msra.mxu0 %v5728
        %9542 = vmatpush.bf16.msra.mxu0 %v5726
        %9543 = vmatpush.bf16.msra.mxu0 %v5724
        %9544 = vmatpush.bf16.msra.mxu0 %v5722
        %9545 = vmatpush.bf16.msra.mxu0 %v5720
        %9546 = vmatpush.bf16.msra.mxu0 %v5718
        %9547 = vmatpush.bf16.msra.mxu0 %v5716
        %9548 = vmatmul.bf16.gmra.mxu0 %v563
        %v9549 = vpop.f32.mrf.mxu0
        %v9550 = vadd.f32 %v9531, %v9549
        %v9551 = vpop.f32.mrf.mxu0
        %v9552 = vadd.f32 %v9533, %v9551
        %9553 = vmatmul.bf16.gmra.mxu0 %v637
        %v9554 = vpop.f32.mrf.mxu0
        %v9555 = vadd.f32 %v9536, %v9554
        %v9556 = vpop.f32.mrf.mxu0
        %v9557 = vadd.f32 %v9538, %v9556
        %9558 = vdwg.mxu0
        %9559 = vmatpush.bf16.msra.mxu0 %v5746
        %9560 = vmatpush.bf16.msra.mxu0 %v5744
        %9561 = vmatpush.bf16.msra.mxu0 %v5742
        %9562 = vmatpush.bf16.msra.mxu0 %v5740
        %9563 = vmatpush.bf16.msra.mxu0 %v5738
        %9564 = vmatpush.bf16.msra.mxu0 %v5736
        %9565 = vmatpush.bf16.msra.mxu0 %v5734
        %9566 = vmatpush.bf16.msra.mxu0 %v5732
        %9567 = vmatmul.bf16.gmra.mxu0 %v564
        %v9568 = vpop.f32.mrf.mxu0
        %v9569 = vadd.f32 %v9550, %v9568
        %v9570 = vpop.f32.mrf.mxu0
        %v9571 = vadd.f32 %v9552, %v9570
        %9572 = vmatmul.bf16.gmra.mxu0 %v638
        %v9573 = vpop.f32.mrf.mxu0
        %v9574 = vadd.f32 %v9555, %v9573
        %v9575 = vpop.f32.mrf.mxu0
        %v9576 = vadd.f32 %v9557, %v9575
        %9577 = vdwg.mxu0
        %9578 = vmatpush.bf16.msra.mxu0 %v5762
        %9579 = vmatpush.bf16.msra.mxu0 %v5760
        %9580 = vmatpush.bf16.msra.mxu0 %v5758
        %9581 = vmatpush.bf16.msra.mxu0 %v5756
        %9582 = vmatpush.bf16.msra.mxu0 %v5754
        %9583 = vmatpush.bf16.msra.mxu0 %v5752
        %9584 = vmatpush.bf16.msra.mxu0 %v5750
        %9585 = vmatpush.bf16.msra.mxu0 %v5748
        %9586 = vmatmul.bf16.gmra.mxu0 %v565
        %v9587 = vpop.f32.mrf.mxu0
        %v9588 = vadd.f32 %v9569, %v9587
        %v9589 = vpop.f32.mrf.mxu0
        %v9590 = vadd.f32 %v9571, %v9589
        %9591 = vmatmul.bf16.gmra.mxu0 %v639
        %v9592 = vpop.f32.mrf.mxu0
        %v9593 = vadd.f32 %v9574, %v9592
        %v9594 = vpop.f32.mrf.mxu0
        %v9595 = vadd.f32 %v9576, %v9594
        %9596 = vdwg.mxu0
        %9597 = vmatpush.bf16.msra.mxu0 %v5778
        %9598 = vmatpush.bf16.msra.mxu0 %v5776
        %9599 = vmatpush.bf16.msra.mxu0 %v5774
        %9600 = vmatpush.bf16.msra.mxu0 %v5772
        %9601 = vmatpush.bf16.msra.mxu0 %v5770
        %9602 = vmatpush.bf16.msra.mxu0 %v5768
        %9603 = vmatpush.bf16.msra.mxu0 %v5766
        %9604 = vmatpush.bf16.msra.mxu0 %v5764
        %9605 = vmatmul.bf16.gmra.mxu0 %v566
        %v9606 = vpop.f32.mrf.mxu0
        %v9607 = vadd.f32 %v9588, %v9606
        %v9608 = vpop.f32.mrf.mxu0
        %v9609 = vadd.f32 %v9590, %v9608
        %9610 = vmatmul.bf16.gmra.mxu0 %v640
        %v9611 = vpop.f32.mrf.mxu0
        %v9612 = vadd.f32 %v9593, %v9611
        %v9613 = vpop.f32.mrf.mxu0
        %v9614 = vadd.f32 %v9595, %v9613
        %9615 = vdwg.mxu0
        %9616 = vmatpush.bf16.msra.mxu0 %v5794
        %9617 = vmatpush.bf16.msra.mxu0 %v5792
        %9618 = vmatpush.bf16.msra.mxu0 %v5790
        %9619 = vmatpush.bf16.msra.mxu0 %v5788
        %9620 = vmatpush.bf16.msra.mxu0 %v5786
        %9621 = vmatpush.bf16.msra.mxu0 %v5784
        %9622 = vmatpush.bf16.msra.mxu0 %v5782
        %9623 = vmatpush.bf16.msra.mxu0 %v5780
        %9624 = vmatmul.bf16.gmra.mxu0 %v567
        %v9625 = vpop.f32.mrf.mxu0
        %v9626 = vadd.f32 %v9607, %v9625
        %v9627 = vpop.f32.mrf.mxu0
        %v9628 = vadd.f32 %v9609, %v9627
        %9629 = vmatmul.bf16.gmra.mxu0 %v641
        %v9630 = vpop.f32.mrf.mxu0
        %v9631 = vadd.f32 %v9612, %v9630
        %v9632 = vpop.f32.mrf.mxu0
        %v9633 = vadd.f32 %v9614, %v9632
        %9634 = vdwg.mxu0
        %9635 = vmatpush.bf16.msra.mxu0 %v5810
        %9636 = vmatpush.bf16.msra.mxu0 %v5808
        %9637 = vmatpush.bf16.msra.mxu0 %v5806
        %9638 = vmatpush.bf16.msra.mxu0 %v5804
        %9639 = vmatpush.bf16.msra.mxu0 %v5802
        %9640 = vmatpush.bf16.msra.mxu0 %v5800
        %9641 = vmatpush.bf16.msra.mxu0 %v5798
        %9642 = vmatpush.bf16.msra.mxu0 %v5796
        %9643 = vmatmul.bf16.gmra.mxu0 %v568
        %v9644 = vpop.f32.mrf.mxu0
        %v9645 = vadd.f32 %v9626, %v9644
        %v9646 = vpop.f32.mrf.mxu0
        %v9647 = vadd.f32 %v9628, %v9646
        %9648 = vmatmul.bf16.gmra.mxu0 %v642
        %v9649 = vpop.f32.mrf.mxu0
        %v9650 = vadd.f32 %v9631, %v9649
        %v9651 = vpop.f32.mrf.mxu0
        %v9652 = vadd.f32 %v9633, %v9651
        %9653 = vdwg.mxu0
        %9654 = vmatpush.bf16.msra.mxu0 %v5826
        %9655 = vmatpush.bf16.msra.mxu0 %v5824
        %9656 = vmatpush.bf16.msra.mxu0 %v5822
        %9657 = vmatpush.bf16.msra.mxu0 %v5820
        %9658 = vmatpush.bf16.msra.mxu0 %v5818
        %9659 = vmatpush.bf16.msra.mxu0 %v5816
        %9660 = vmatpush.bf16.msra.mxu0 %v5814
        %9661 = vmatpush.bf16.msra.mxu0 %v5812
        %9662 = vmatmul.bf16.gmra.mxu0 %v569
        %v9663 = vpop.f32.mrf.mxu0
        %v9664 = vadd.f32 %v9645, %v9663
        %v9665 = vpop.f32.mrf.mxu0
        %v9666 = vadd.f32 %v9647, %v9665
        %9667 = vmatmul.bf16.gmra.mxu0 %v643
        %v9668 = vpop.f32.mrf.mxu0
        %v9669 = vadd.f32 %v9650, %v9668
        %v9670 = vpop.f32.mrf.mxu0
        %v9671 = vadd.f32 %v9652, %v9670
        %9672 = vdwg.mxu0
        %9673 = vmatpush.bf16.msra.mxu0 %v5842
        %9674 = vmatpush.bf16.msra.mxu0 %v5840
        %9675 = vmatpush.bf16.msra.mxu0 %v5838
        %9676 = vmatpush.bf16.msra.mxu0 %v5836
        %9677 = vmatpush.bf16.msra.mxu0 %v5834
        %9678 = vmatpush.bf16.msra.mxu0 %v5832
        %9679 = vmatpush.bf16.msra.mxu0 %v5830
        %9680 = vmatpush.bf16.msra.mxu0 %v5828
        %9681 = vmatmul.bf16.gmra.mxu0 %v570
        %v9682 = vpop.f32.mrf.mxu0
        %v9683 = vadd.f32 %v9664, %v9682
        %v9684 = vpop.f32.mrf.mxu0
        %v9685 = vadd.f32 %v9666, %v9684
        %9686 = vmatmul.bf16.gmra.mxu0 %v644
        %v9687 = vpop.f32.mrf.mxu0
        %v9688 = vadd.f32 %v9669, %v9687
        %v9689 = vpop.f32.mrf.mxu0
        %v9690 = vadd.f32 %v9671, %v9689
        %9691 = vdwg.mxu0
        %9692 = vmatpush.bf16.msra.mxu0 %v5858
        %9693 = vmatpush.bf16.msra.mxu0 %v5856
        %9694 = vmatpush.bf16.msra.mxu0 %v5854
        %9695 = vmatpush.bf16.msra.mxu0 %v5852
        %9696 = vmatpush.bf16.msra.mxu0 %v5850
        %9697 = vmatpush.bf16.msra.mxu0 %v5848
        %9698 = vmatpush.bf16.msra.mxu0 %v5846
        %9699 = vmatpush.bf16.msra.mxu0 %v5844
        %9700 = vmatmul.bf16.gmra.mxu0 %v571
        %v9701 = vpop.f32.mrf.mxu0
        %v9702 = vadd.f32 %v9683, %v9701
        %v9703 = vpop.f32.mrf.mxu0
        %v9704 = vadd.f32 %v9685, %v9703
        %9705 = vmatmul.bf16.gmra.mxu0 %v645
        %v9706 = vpop.f32.mrf.mxu0
        %v9707 = vadd.f32 %v9688, %v9706
        %v9708 = vpop.f32.mrf.mxu0
        %v9709 = vadd.f32 %v9690, %v9708
        %9710 = vdwg.mxu0
        %9711 = vmatpush.bf16.msra.mxu0 %v5874
        %9712 = vmatpush.bf16.msra.mxu0 %v5872
        %9713 = vmatpush.bf16.msra.mxu0 %v5870
        %9714 = vmatpush.bf16.msra.mxu0 %v5868
        %9715 = vmatpush.bf16.msra.mxu0 %v5866
        %9716 = vmatpush.bf16.msra.mxu0 %v5864
        %9717 = vmatpush.bf16.msra.mxu0 %v5862
        %9718 = vmatpush.bf16.msra.mxu0 %v5860
        %9719 = vmatmul.bf16.gmra.mxu0 %v572
        %v9720 = vpop.f32.mrf.mxu0
        %v9721 = vadd.f32 %v9702, %v9720
        %v9722 = vpop.f32.mrf.mxu0
        %v9723 = vadd.f32 %v9704, %v9722
        %9724 = vmatmul.bf16.gmra.mxu0 %v646
        %v9725 = vpop.f32.mrf.mxu0
        %v9726 = vadd.f32 %v9707, %v9725
        %v9727 = vpop.f32.mrf.mxu0
        %v9728 = vadd.f32 %v9709, %v9727
        %9729 = vdwg.mxu0
        %9730 = vmatpush.bf16.msra.mxu0 %v5890
        %9731 = vmatpush.bf16.msra.mxu0 %v5888
        %9732 = vmatpush.bf16.msra.mxu0 %v5886
        %9733 = vmatpush.bf16.msra.mxu0 %v5884
        %9734 = vmatpush.bf16.msra.mxu0 %v5882
        %9735 = vmatpush.bf16.msra.mxu0 %v5880
        %9736 = vmatpush.bf16.msra.mxu0 %v5878
        %9737 = vmatpush.bf16.msra.mxu0 %v5876
        %9738 = vmatmul.bf16.gmra.mxu0 %v573
        %v9739 = vpop.f32.mrf.mxu0
        %v9740 = vadd.f32 %v9721, %v9739
        %v9741 = vpop.f32.mrf.mxu0
        %v9742 = vadd.f32 %v9723, %v9741
        %9743 = vmatmul.bf16.gmra.mxu0 %v647
        %v9744 = vpop.f32.mrf.mxu0
        %v9745 = vadd.f32 %v9726, %v9744
        %v9746 = vpop.f32.mrf.mxu0
        %v9747 = vadd.f32 %v9728, %v9746
        %9748 = vdwg.mxu0
        %9749 = vmatpush.bf16.msra.mxu0 %v5906
        %9750 = vmatpush.bf16.msra.mxu0 %v5904
        %9751 = vmatpush.bf16.msra.mxu0 %v5902
        %9752 = vmatpush.bf16.msra.mxu0 %v5900
        %9753 = vmatpush.bf16.msra.mxu0 %v5898
        %9754 = vmatpush.bf16.msra.mxu0 %v5896
        %9755 = vmatpush.bf16.msra.mxu0 %v5894
        %9756 = vmatpush.bf16.msra.mxu0 %v5892
        %9757 = vmatmul.bf16.gmra.mxu0 %v574
        %v9758 = vpop.f32.mrf.mxu0
        %v9759 = vadd.f32 %v9740, %v9758
        %v9760 = vpop.f32.mrf.mxu0
        %v9761 = vadd.f32 %v9742, %v9760
        %9762 = vmatmul.bf16.gmra.mxu0 %v648
        %v9763 = vpop.f32.mrf.mxu0
        %v9764 = vadd.f32 %v9745, %v9763
        %v9765 = vpop.f32.mrf.mxu0
        %v9766 = vadd.f32 %v9747, %v9765
        %9767 = vdwg.mxu0
        %9768 = vmatpush.bf16.msra.mxu0 %v5922
        %9769 = vmatpush.bf16.msra.mxu0 %v5920
        %9770 = vmatpush.bf16.msra.mxu0 %v5918
        %9771 = vmatpush.bf16.msra.mxu0 %v5916
        %9772 = vmatpush.bf16.msra.mxu0 %v5914
        %9773 = vmatpush.bf16.msra.mxu0 %v5912
        %9774 = vmatpush.bf16.msra.mxu0 %v5910
        %9775 = vmatpush.bf16.msra.mxu0 %v5908
        %9776 = vmatmul.bf16.gmra.mxu0 %v575
        %v9777 = vpop.f32.mrf.mxu0
        %v9778 = vadd.f32 %v9759, %v9777
        %v9779 = vpop.f32.mrf.mxu0
        %v9780 = vadd.f32 %v9761, %v9779
        %9781 = vmatmul.bf16.gmra.mxu0 %v649
        %v9782 = vpop.f32.mrf.mxu0
        %v9783 = vadd.f32 %v9764, %v9782
        %v9784 = vpop.f32.mrf.mxu0
        %v9785 = vadd.f32 %v9766, %v9784
        %9786 = vdwg.mxu0
        %9787 = vmatpush.bf16.msra.mxu0 %v5938
        %9788 = vmatpush.bf16.msra.mxu0 %v5936
        %9789 = vmatpush.bf16.msra.mxu0 %v5934
        %9790 = vmatpush.bf16.msra.mxu0 %v5932
        %9791 = vmatpush.bf16.msra.mxu0 %v5930
        %9792 = vmatpush.bf16.msra.mxu0 %v5928
        %9793 = vmatpush.bf16.msra.mxu0 %v5926
        %9794 = vmatpush.bf16.msra.mxu0 %v5924
        %9795 = vmatmul.bf16.gmra.mxu0 %v576
        %v9796 = vpop.f32.mrf.mxu0
        %v9797 = vadd.f32 %v9778, %v9796
        %v9798 = vpop.f32.mrf.mxu0
        %v9799 = vadd.f32 %v9780, %v9798
        %9800 = vmatmul.bf16.gmra.mxu0 %v650
        %v9801 = vpop.f32.mrf.mxu0
        %v9802 = vadd.f32 %v9783, %v9801
        %v9803 = vpop.f32.mrf.mxu0
        %v9804 = vadd.f32 %v9785, %v9803
        %9805 = vdwg.mxu0
        %9806 = vmatpush.bf16.msra.mxu0 %v5954
        %9807 = vmatpush.bf16.msra.mxu0 %v5952
        %9808 = vmatpush.bf16.msra.mxu0 %v5950
        %9809 = vmatpush.bf16.msra.mxu0 %v5948
        %9810 = vmatpush.bf16.msra.mxu0 %v5946
        %9811 = vmatpush.bf16.msra.mxu0 %v5944
        %9812 = vmatpush.bf16.msra.mxu0 %v5942
        %9813 = vmatpush.bf16.msra.mxu0 %v5940
        %9814 = vmatmul.bf16.gmra.mxu0 %v577
        %v9815 = vpop.f32.mrf.mxu0
        %v9816 = vadd.f32 %v9797, %v9815
        %v9817 = vpop.f32.mrf.mxu0
        %v9818 = vadd.f32 %v9799, %v9817
        %9819 = vmatmul.bf16.gmra.mxu0 %v651
        %v9820 = vpop.f32.mrf.mxu0
        %v9821 = vadd.f32 %v9802, %v9820
        %v9822 = vpop.f32.mrf.mxu0
        %v9823 = vadd.f32 %v9804, %v9822
        %9824 = vdwg.mxu0
        %9825 = vmatpush.bf16.msra.mxu0 %v5970
        %9826 = vmatpush.bf16.msra.mxu0 %v5968
        %9827 = vmatpush.bf16.msra.mxu0 %v5966
        %9828 = vmatpush.bf16.msra.mxu0 %v5964
        %9829 = vmatpush.bf16.msra.mxu0 %v5962
        %9830 = vmatpush.bf16.msra.mxu0 %v5960
        %9831 = vmatpush.bf16.msra.mxu0 %v5958
        %9832 = vmatpush.bf16.msra.mxu0 %v5956
        %9833 = vmatmul.bf16.gmra.mxu0 %v578
        %v9834 = vpop.f32.mrf.mxu0
        %v9835 = vadd.f32 %v9816, %v9834
        %v9836 = vpop.f32.mrf.mxu0
        %v9837 = vadd.f32 %v9818, %v9836
        %9838 = vmatmul.bf16.gmra.mxu0 %v652
        %v9839 = vpop.f32.mrf.mxu0
        %v9840 = vadd.f32 %v9821, %v9839
        %v9841 = vpop.f32.mrf.mxu0
        %v9842 = vadd.f32 %v9823, %v9841
        %9843 = vdwg.mxu0
        %9844 = vmatpush.bf16.msra.mxu0 %v5986
        %9845 = vmatpush.bf16.msra.mxu0 %v5984
        %9846 = vmatpush.bf16.msra.mxu0 %v5982
        %9847 = vmatpush.bf16.msra.mxu0 %v5980
        %9848 = vmatpush.bf16.msra.mxu0 %v5978
        %9849 = vmatpush.bf16.msra.mxu0 %v5976
        %9850 = vmatpush.bf16.msra.mxu0 %v5974
        %9851 = vmatpush.bf16.msra.mxu0 %v5972
        %9852 = vmatmul.bf16.gmra.mxu0 %v579
        %v9853 = vpop.f32.mrf.mxu0
        %v9854 = vadd.f32 %v9835, %v9853
        %v9855 = vpop.f32.mrf.mxu0
        %v9856 = vadd.f32 %v9837, %v9855
        %9857 = vmatmul.bf16.gmra.mxu0 %v653
        %v9858 = vpop.f32.mrf.mxu0
        %v9859 = vadd.f32 %v9840, %v9858
        %v9860 = vpop.f32.mrf.mxu0
        %v9861 = vadd.f32 %v9842, %v9860
        %9862 = vdwg.mxu0
        %9863 = vmatpush.bf16.msra.mxu0 %v6002
        %9864 = vmatpush.bf16.msra.mxu0 %v6000
        %9865 = vmatpush.bf16.msra.mxu0 %v5998
        %9866 = vmatpush.bf16.msra.mxu0 %v5996
        %9867 = vmatpush.bf16.msra.mxu0 %v5994
        %9868 = vmatpush.bf16.msra.mxu0 %v5992
        %9869 = vmatpush.bf16.msra.mxu0 %v5990
        %9870 = vmatpush.bf16.msra.mxu0 %v5988
        %9871 = vmatmul.bf16.gmra.mxu0 %v580
        %v9872 = vpop.f32.mrf.mxu0
        %v9873 = vadd.f32 %v9854, %v9872
        %v9874 = vpop.f32.mrf.mxu0
        %v9875 = vadd.f32 %v9856, %v9874
        %9876 = vmatmul.bf16.gmra.mxu0 %v654
        %v9877 = vpop.f32.mrf.mxu0
        %v9878 = vadd.f32 %v9859, %v9877
        %v9879 = vpop.f32.mrf.mxu0
        %v9880 = vadd.f32 %v9861, %v9879
        %9881 = vdwg.mxu0
        %9882 = vmatpush.bf16.msra.mxu0 %v6018
        %9883 = vmatpush.bf16.msra.mxu0 %v6016
        %9884 = vmatpush.bf16.msra.mxu0 %v6014
        %9885 = vmatpush.bf16.msra.mxu0 %v6012
        %9886 = vmatpush.bf16.msra.mxu0 %v6010
        %9887 = vmatpush.bf16.msra.mxu0 %v6008
        %9888 = vmatpush.bf16.msra.mxu0 %v6006
        %9889 = vmatpush.bf16.msra.mxu0 %v6004
        %9890 = vmatmul.bf16.gmra.mxu0 %v581
        %v9891 = vpop.f32.mrf.mxu0
        %v9892 = vadd.f32 %v9873, %v9891
        %v9893 = vpop.f32.mrf.mxu0
        %v9894 = vadd.f32 %v9875, %v9893
        %9895 = vmatmul.bf16.gmra.mxu0 %v655
        %v9896 = vpop.f32.mrf.mxu0
        %v9897 = vadd.f32 %v9878, %v9896
        %v9898 = vpop.f32.mrf.mxu0
        %v9899 = vadd.f32 %v9880, %v9898
        %9900 = vdwg.mxu0
        %9901 = vmatpush.bf16.msra.mxu0 %v6034
        %9902 = vmatpush.bf16.msra.mxu0 %v6032
        %9903 = vmatpush.bf16.msra.mxu0 %v6030
        %9904 = vmatpush.bf16.msra.mxu0 %v6028
        %9905 = vmatpush.bf16.msra.mxu0 %v6026
        %9906 = vmatpush.bf16.msra.mxu0 %v6024
        %9907 = vmatpush.bf16.msra.mxu0 %v6022
        %9908 = vmatpush.bf16.msra.mxu0 %v6020
        %9909 = vmatmul.bf16.gmra.mxu0 %v582
        %v9910 = vpop.f32.mrf.mxu0
        %v9911 = vadd.f32 %v9892, %v9910
        %v9912 = vpop.f32.mrf.mxu0
        %v9913 = vadd.f32 %v9894, %v9912
        %9914 = vmatmul.bf16.gmra.mxu0 %v656
        %v9915 = vpop.f32.mrf.mxu0
        %v9916 = vadd.f32 %v9897, %v9915
        %v9917 = vpop.f32.mrf.mxu0
        %v9918 = vadd.f32 %v9899, %v9917
        %9919 = vdwg.mxu0
        %9920 = vmatpush.bf16.msra.mxu0 %v6050
        %9921 = vmatpush.bf16.msra.mxu0 %v6048
        %9922 = vmatpush.bf16.msra.mxu0 %v6046
        %9923 = vmatpush.bf16.msra.mxu0 %v6044
        %9924 = vmatpush.bf16.msra.mxu0 %v6042
        %9925 = vmatpush.bf16.msra.mxu0 %v6040
        %9926 = vmatpush.bf16.msra.mxu0 %v6038
        %9927 = vmatpush.bf16.msra.mxu0 %v6036
        %9928 = vmatmul.bf16.gmra.mxu0 %v583
        %v9929 = vpop.f32.mrf.mxu0
        %v9930 = vadd.f32 %v9911, %v9929
        %v9931 = vpop.f32.mrf.mxu0
        %v9932 = vadd.f32 %v9913, %v9931
        %9933 = vmatmul.bf16.gmra.mxu0 %v657
        %v9934 = vpop.f32.mrf.mxu0
        %v9935 = vadd.f32 %v9916, %v9934
        %v9936 = vpop.f32.mrf.mxu0
        %v9937 = vadd.f32 %v9918, %v9936
        %9938 = vdwg.mxu0
        %9939 = vmatpush.bf16.msra.mxu0 %v6066
        %9940 = vmatpush.bf16.msra.mxu0 %v6064
        %9941 = vmatpush.bf16.msra.mxu0 %v6062
        %9942 = vmatpush.bf16.msra.mxu0 %v6060
        %9943 = vmatpush.bf16.msra.mxu0 %v6058
        %9944 = vmatpush.bf16.msra.mxu0 %v6056
        %9945 = vmatpush.bf16.msra.mxu0 %v6054
        %9946 = vmatpush.bf16.msra.mxu0 %v6052
        %9947 = vmatmul.bf16.gmra.mxu0 %v584
        %v9948 = vpop.f32.mrf.mxu0
        %v9949 = vadd.f32 %v9930, %v9948
        %v9950 = vpop.f32.mrf.mxu0
        %v9951 = vadd.f32 %v9932, %v9950
        %9952 = vmatmul.bf16.gmra.mxu0 %v658
        %v9953 = vpop.f32.mrf.mxu0
        %v9954 = vadd.f32 %v9935, %v9953
        %v9955 = vpop.f32.mrf.mxu0
        %v9956 = vadd.f32 %v9937, %v9955
        %9957 = vdwg.mxu0
        %9958 = vmatpush.bf16.msra.mxu0 %v6082
        %9959 = vmatpush.bf16.msra.mxu0 %v6080
        %9960 = vmatpush.bf16.msra.mxu0 %v6078
        %9961 = vmatpush.bf16.msra.mxu0 %v6076
        %9962 = vmatpush.bf16.msra.mxu0 %v6074
        %9963 = vmatpush.bf16.msra.mxu0 %v6072
        %9964 = vmatpush.bf16.msra.mxu0 %v6070
        %9965 = vmatpush.bf16.msra.mxu0 %v6068
        %9966 = vmatmul.bf16.gmra.mxu0 %v585
        %v9967 = vpop.f32.mrf.mxu0
        %v9968 = vadd.f32 %v9949, %v9967
        %v9969 = vpop.f32.mrf.mxu0
        %v9970 = vadd.f32 %v9951, %v9969
        %9971 = vmatmul.bf16.gmra.mxu0 %v659
        %v9972 = vpop.f32.mrf.mxu0
        %v9973 = vadd.f32 %v9954, %v9972
        %v9974 = vpop.f32.mrf.mxu0
        %v9975 = vadd.f32 %v9956, %v9974
        %9976 = vdwg.mxu0
        %9977 = vmatpush.bf16.msra.mxu0 %v6098
        %9978 = vmatpush.bf16.msra.mxu0 %v6096
        %9979 = vmatpush.bf16.msra.mxu0 %v6094
        %9980 = vmatpush.bf16.msra.mxu0 %v6092
        %9981 = vmatpush.bf16.msra.mxu0 %v6090
        %9982 = vmatpush.bf16.msra.mxu0 %v6088
        %9983 = vmatpush.bf16.msra.mxu0 %v6086
        %9984 = vmatpush.bf16.msra.mxu0 %v6084
        %9985 = vmatmul.bf16.gmra.mxu0 %v586
        %v9986 = vpop.f32.mrf.mxu0
        %v9987 = vadd.f32 %v9968, %v9986
        %v9988 = vpop.f32.mrf.mxu0
        %v9989 = vadd.f32 %v9970, %v9988
        %9990 = vmatmul.bf16.gmra.mxu0 %v660
        %v9991 = vpop.f32.mrf.mxu0
        %v9992 = vadd.f32 %v9973, %v9991
        %v9993 = vpop.f32.mrf.mxu0
        %v9994 = vadd.f32 %v9975, %v9993
        %9995 = vdwg.mxu0
        %9996 = vmatpush.bf16.msra.mxu0 %v6114
        %9997 = vmatpush.bf16.msra.mxu0 %v6112
        %9998 = vmatpush.bf16.msra.mxu0 %v6110
        %9999 = vmatpush.bf16.msra.mxu0 %v6108
        %10000 = vmatpush.bf16.msra.mxu0 %v6106
        %10001 = vmatpush.bf16.msra.mxu0 %v6104
        %10002 = vmatpush.bf16.msra.mxu0 %v6102
        %10003 = vmatpush.bf16.msra.mxu0 %v6100
        %10004 = vmatmul.bf16.gmra.mxu0 %v587
        %v10005 = vpop.f32.mrf.mxu0
        %v10006 = vadd.f32 %v9987, %v10005
        %v10007 = vpop.f32.mrf.mxu0
        %v10008 = vadd.f32 %v9989, %v10007
        %10009 = vmatmul.bf16.gmra.mxu0 %v661
        %v10010 = vpop.f32.mrf.mxu0
        %v10011 = vadd.f32 %v9992, %v10010
        %v10012 = vpop.f32.mrf.mxu0
        %v10013 = vadd.f32 %v9994, %v10012
        %10014 = vdwg.mxu0
        %10015 = vmatpush.bf16.msra.mxu0 %v6130
        %10016 = vmatpush.bf16.msra.mxu0 %v6128
        %10017 = vmatpush.bf16.msra.mxu0 %v6126
        %10018 = vmatpush.bf16.msra.mxu0 %v6124
        %10019 = vmatpush.bf16.msra.mxu0 %v6122
        %10020 = vmatpush.bf16.msra.mxu0 %v6120
        %10021 = vmatpush.bf16.msra.mxu0 %v6118
        %10022 = vmatpush.bf16.msra.mxu0 %v6116
        %10023 = vmatmul.bf16.gmra.mxu0 %v588
        %v10024 = vpop.f32.mrf.mxu0
        %v10025 = vadd.f32 %v10006, %v10024
        %v10026 = vpop.f32.mrf.mxu0
        %v10027 = vadd.f32 %v10008, %v10026
        %10028 = vmatmul.bf16.gmra.mxu0 %v662
        %v10029 = vpop.f32.mrf.mxu0
        %v10030 = vadd.f32 %v10011, %v10029
        %v10031 = vpop.f32.mrf.mxu0
        %v10032 = vadd.f32 %v10013, %v10031
        %10033 = vdwg.mxu0
        %10034 = vmatpush.bf16.msra.mxu0 %v6146
        %10035 = vmatpush.bf16.msra.mxu0 %v6144
        %10036 = vmatpush.bf16.msra.mxu0 %v6142
        %10037 = vmatpush.bf16.msra.mxu0 %v6140
        %10038 = vmatpush.bf16.msra.mxu0 %v6138
        %10039 = vmatpush.bf16.msra.mxu0 %v6136
        %10040 = vmatpush.bf16.msra.mxu0 %v6134
        %10041 = vmatpush.bf16.msra.mxu0 %v6132
        %10042 = vmatmul.bf16.gmra.mxu0 %v589
        %v10043 = vpop.f32.mrf.mxu0
        %v10044 = vadd.f32 %v10025, %v10043
        %v10045 = vpop.f32.mrf.mxu0
        %v10046 = vadd.f32 %v10027, %v10045
        %10047 = vmatmul.bf16.gmra.mxu0 %v663
        %v10048 = vpop.f32.mrf.mxu0
        %v10049 = vadd.f32 %v10030, %v10048
        %v10050 = vpop.f32.mrf.mxu0
        %v10051 = vadd.f32 %v10032, %v10050
        %10052 = vdwg.mxu0
        %10053 = vmatpush.bf16.msra.mxu0 %v6162
        %10054 = vmatpush.bf16.msra.mxu0 %v6160
        %10055 = vmatpush.bf16.msra.mxu0 %v6158
        %10056 = vmatpush.bf16.msra.mxu0 %v6156
        %10057 = vmatpush.bf16.msra.mxu0 %v6154
        %10058 = vmatpush.bf16.msra.mxu0 %v6152
        %10059 = vmatpush.bf16.msra.mxu0 %v6150
        %10060 = vmatpush.bf16.msra.mxu0 %v6148
        %10061 = vmatmul.bf16.gmra.mxu0 %v590
        %v10062 = vpop.f32.mrf.mxu0
        %v10063 = vadd.f32 %v10044, %v10062
        %v10064 = vpop.f32.mrf.mxu0
        %v10065 = vadd.f32 %v10046, %v10064
        %10066 = vmatmul.bf16.gmra.mxu0 %v664
        %v10067 = vpop.f32.mrf.mxu0
        %v10068 = vadd.f32 %v10049, %v10067
        %v10069 = vpop.f32.mrf.mxu0
        %v10070 = vadd.f32 %v10051, %v10069
        %10071 = vdwg.mxu0
        %10072 = vmatpush.bf16.msra.mxu0 %v6178
        %10073 = vmatpush.bf16.msra.mxu0 %v6176
        %10074 = vmatpush.bf16.msra.mxu0 %v6174
        %10075 = vmatpush.bf16.msra.mxu0 %v6172
        %10076 = vmatpush.bf16.msra.mxu0 %v6170
        %10077 = vmatpush.bf16.msra.mxu0 %v6168
        %10078 = vmatpush.bf16.msra.mxu0 %v6166
        %10079 = vmatpush.bf16.msra.mxu0 %v6164
        %10080 = vmatmul.bf16.gmra.mxu0 %v591
        %v10081 = vpop.f32.mrf.mxu0
        %v10082 = vadd.f32 %v10063, %v10081
        %v10083 = vpop.f32.mrf.mxu0
        %v10084 = vadd.f32 %v10065, %v10083
        %10085 = vmatmul.bf16.gmra.mxu0 %v665
        %v10086 = vpop.f32.mrf.mxu0
        %v10087 = vadd.f32 %v10068, %v10086
        %v10088 = vpop.f32.mrf.mxu0
        %v10089 = vadd.f32 %v10070, %v10088
        %10090 = vdwg.mxu0
        %10091 = vmatpush.bf16.msra.mxu0 %v6194
        %10092 = vmatpush.bf16.msra.mxu0 %v6192
        %10093 = vmatpush.bf16.msra.mxu0 %v6190
        %10094 = vmatpush.bf16.msra.mxu0 %v6188
        %10095 = vmatpush.bf16.msra.mxu0 %v6186
        %10096 = vmatpush.bf16.msra.mxu0 %v6184
        %10097 = vmatpush.bf16.msra.mxu0 %v6182
        %10098 = vmatpush.bf16.msra.mxu0 %v6180
        %10099 = vmatmul.bf16.gmra.mxu0 %v592
        %v10100 = vpop.f32.mrf.mxu0
        %v10101 = vadd.f32 %v10082, %v10100
        %v10102 = vpop.f32.mrf.mxu0
        %v10103 = vadd.f32 %v10084, %v10102
        %10104 = vmatmul.bf16.gmra.mxu0 %v666
        %v10105 = vpop.f32.mrf.mxu0
        %v10106 = vadd.f32 %v10087, %v10105
        %v10107 = vpop.f32.mrf.mxu0
        %v10108 = vadd.f32 %v10089, %v10107
        %10109 = vdwg.mxu0
        %10110 = vmatpush.bf16.msra.mxu0 %v6210
        %10111 = vmatpush.bf16.msra.mxu0 %v6208
        %10112 = vmatpush.bf16.msra.mxu0 %v6206
        %10113 = vmatpush.bf16.msra.mxu0 %v6204
        %10114 = vmatpush.bf16.msra.mxu0 %v6202
        %10115 = vmatpush.bf16.msra.mxu0 %v6200
        %10116 = vmatpush.bf16.msra.mxu0 %v6198
        %10117 = vmatpush.bf16.msra.mxu0 %v6196
        %10118 = vmatmul.bf16.gmra.mxu0 %v593
        %v10119 = vpop.f32.mrf.mxu0
        %v10120 = vadd.f32 %v10101, %v10119
        %v10121 = vpop.f32.mrf.mxu0
        %v10122 = vadd.f32 %v10103, %v10121
        %10123 = vmatmul.bf16.gmra.mxu0 %v667
        %v10124 = vpop.f32.mrf.mxu0
        %v10125 = vadd.f32 %v10106, %v10124
        %v10126 = vpop.f32.mrf.mxu0
        %v10127 = vadd.f32 %v10108, %v10126
        %10128 = vdwg.mxu0
        %10129 = vmatpush.bf16.msra.mxu0 %v6226
        %10130 = vmatpush.bf16.msra.mxu0 %v6224
        %10131 = vmatpush.bf16.msra.mxu0 %v6222
        %10132 = vmatpush.bf16.msra.mxu0 %v6220
        %10133 = vmatpush.bf16.msra.mxu0 %v6218
        %10134 = vmatpush.bf16.msra.mxu0 %v6216
        %10135 = vmatpush.bf16.msra.mxu0 %v6214
        %10136 = vmatpush.bf16.msra.mxu0 %v6212
        %10137 = vmatmul.bf16.gmra.mxu0 %v594
        %v10138 = vpop.f32.mrf.mxu0
        %v10139 = vadd.f32 %v10120, %v10138
        %v10140 = vpop.f32.mrf.mxu0
        %v10141 = vadd.f32 %v10122, %v10140
        %10142 = vmatmul.bf16.gmra.mxu0 %v668
        %v10143 = vpop.f32.mrf.mxu0
        %v10144 = vadd.f32 %v10125, %v10143
        %v10145 = vpop.f32.mrf.mxu0
        %v10146 = vadd.f32 %v10127, %v10145
        %10147 = vdwg.mxu0
        %10148 = vmatpush.bf16.msra.mxu0 %v6242
        %10149 = vmatpush.bf16.msra.mxu0 %v6240
        %10150 = vmatpush.bf16.msra.mxu0 %v6238
        %10151 = vmatpush.bf16.msra.mxu0 %v6236
        %10152 = vmatpush.bf16.msra.mxu0 %v6234
        %10153 = vmatpush.bf16.msra.mxu0 %v6232
        %10154 = vmatpush.bf16.msra.mxu0 %v6230
        %10155 = vmatpush.bf16.msra.mxu0 %v6228
        %10156 = vmatmul.bf16.gmra.mxu0 %v595
        %v10157 = vpop.f32.mrf.mxu0
        %v10158 = vadd.f32 %v10139, %v10157
        %v10159 = vpop.f32.mrf.mxu0
        %v10160 = vadd.f32 %v10141, %v10159
        %10161 = vmatmul.bf16.gmra.mxu0 %v669
        %v10162 = vpop.f32.mrf.mxu0
        %v10163 = vadd.f32 %v10144, %v10162
        %v10164 = vpop.f32.mrf.mxu0
        %v10165 = vadd.f32 %v10146, %v10164
        %10166 = vdwg.mxu0
        %10167 = vmatpush.bf16.msra.mxu0 %v6258
        %10168 = vmatpush.bf16.msra.mxu0 %v6256
        %10169 = vmatpush.bf16.msra.mxu0 %v6254
        %10170 = vmatpush.bf16.msra.mxu0 %v6252
        %10171 = vmatpush.bf16.msra.mxu0 %v6250
        %10172 = vmatpush.bf16.msra.mxu0 %v6248
        %10173 = vmatpush.bf16.msra.mxu0 %v6246
        %10174 = vmatpush.bf16.msra.mxu0 %v6244
        %10175 = vmatmul.bf16.gmra.mxu0 %v596
        %v10176 = vpop.f32.mrf.mxu0
        %v10177 = vadd.f32 %v10158, %v10176
        %v10178 = vpop.f32.mrf.mxu0
        %v10179 = vadd.f32 %v10160, %v10178
        %10180 = vmatmul.bf16.gmra.mxu0 %v670
        %v10181 = vpop.f32.mrf.mxu0
        %v10182 = vadd.f32 %v10163, %v10181
        %v10183 = vpop.f32.mrf.mxu0
        %v10184 = vadd.f32 %v10165, %v10183
        %10185 = vdwg.mxu0
        %10186 = vmatpush.bf16.msra.mxu0 %v6274
        %10187 = vmatpush.bf16.msra.mxu0 %v6272
        %10188 = vmatpush.bf16.msra.mxu0 %v6270
        %10189 = vmatpush.bf16.msra.mxu0 %v6268
        %10190 = vmatpush.bf16.msra.mxu0 %v6266
        %10191 = vmatpush.bf16.msra.mxu0 %v6264
        %10192 = vmatpush.bf16.msra.mxu0 %v6262
        %10193 = vmatpush.bf16.msra.mxu0 %v6260
        %10194 = vmatmul.bf16.gmra.mxu0 %v597
        %v10195 = vpop.f32.mrf.mxu0
        %v10196 = vadd.f32 %v10177, %v10195
        %v10197 = vpop.f32.mrf.mxu0
        %v10198 = vadd.f32 %v10179, %v10197
        %10199 = vmatmul.bf16.gmra.mxu0 %v671
        %v10200 = vpop.f32.mrf.mxu0
        %v10201 = vadd.f32 %v10182, %v10200
        %v10202 = vpop.f32.mrf.mxu0
        %v10203 = vadd.f32 %v10184, %v10202
        %10204 = vdwg.mxu0
        %10205 = vmatpush.bf16.msra.mxu0 %v6290
        %10206 = vmatpush.bf16.msra.mxu0 %v6288
        %10207 = vmatpush.bf16.msra.mxu0 %v6286
        %10208 = vmatpush.bf16.msra.mxu0 %v6284
        %10209 = vmatpush.bf16.msra.mxu0 %v6282
        %10210 = vmatpush.bf16.msra.mxu0 %v6280
        %10211 = vmatpush.bf16.msra.mxu0 %v6278
        %10212 = vmatpush.bf16.msra.mxu0 %v6276
        %10213 = vmatmul.bf16.gmra.mxu0 %v598
        %v10214 = vpop.f32.mrf.mxu0
        %v10215 = vadd.f32 %v10196, %v10214
        %v10216 = vpop.f32.mrf.mxu0
        %v10217 = vadd.f32 %v10198, %v10216
        %10218 = vmatmul.bf16.gmra.mxu0 %v672
        %v10219 = vpop.f32.mrf.mxu0
        %v10220 = vadd.f32 %v10201, %v10219
        %v10221 = vpop.f32.mrf.mxu0
        %v10222 = vadd.f32 %v10203, %v10221
        %10223 = vdwg.mxu0
        %10224 = vmatpush.bf16.msra.mxu0 %v6306
        %10225 = vmatpush.bf16.msra.mxu0 %v6304
        %10226 = vmatpush.bf16.msra.mxu0 %v6302
        %10227 = vmatpush.bf16.msra.mxu0 %v6300
        %10228 = vmatpush.bf16.msra.mxu0 %v6298
        %10229 = vmatpush.bf16.msra.mxu0 %v6296
        %10230 = vmatpush.bf16.msra.mxu0 %v6294
        %10231 = vmatpush.bf16.msra.mxu0 %v6292
        %10232 = vmatmul.bf16.gmra.mxu0 %v599
        %v10233 = vpop.f32.mrf.mxu0
        %v10234 = vadd.f32 %v10215, %v10233
        %v10235 = vpop.f32.mrf.mxu0
        %v10236 = vadd.f32 %v10217, %v10235
        %10237 = vmatmul.bf16.gmra.mxu0 %v673
        %v10238 = vpop.f32.mrf.mxu0
        %v10239 = vadd.f32 %v10220, %v10238
        %v10240 = vpop.f32.mrf.mxu0
        %v10241 = vadd.f32 %v10222, %v10240
        %10242 = vdwg.mxu0
        %10243 = vmatpush.bf16.msra.mxu0 %v6322
        %10244 = vmatpush.bf16.msra.mxu0 %v6320
        %10245 = vmatpush.bf16.msra.mxu0 %v6318
        %10246 = vmatpush.bf16.msra.mxu0 %v6316
        %10247 = vmatpush.bf16.msra.mxu0 %v6314
        %10248 = vmatpush.bf16.msra.mxu0 %v6312
        %10249 = vmatpush.bf16.msra.mxu0 %v6310
        %10250 = vmatpush.bf16.msra.mxu0 %v6308
        %10251 = vmatmul.bf16.gmra.mxu0 %v600
        %v10252 = vpop.f32.mrf.mxu0
        %v10253 = vadd.f32 %v10234, %v10252
        %v10254 = vpop.f32.mrf.mxu0
        %v10255 = vadd.f32 %v10236, %v10254
        %10256 = vmatmul.bf16.gmra.mxu0 %v674
        %v10257 = vpop.f32.mrf.mxu0
        %v10258 = vadd.f32 %v10239, %v10257
        %v10259 = vpop.f32.mrf.mxu0
        %v10260 = vadd.f32 %v10241, %v10259
        %10261 = vdwg.mxu0
        %10262 = vmatpush.bf16.msra.mxu0 %v6338
        %10263 = vmatpush.bf16.msra.mxu0 %v6336
        %10264 = vmatpush.bf16.msra.mxu0 %v6334
        %10265 = vmatpush.bf16.msra.mxu0 %v6332
        %10266 = vmatpush.bf16.msra.mxu0 %v6330
        %10267 = vmatpush.bf16.msra.mxu0 %v6328
        %10268 = vmatpush.bf16.msra.mxu0 %v6326
        %10269 = vmatpush.bf16.msra.mxu0 %v6324
        %10270 = vmatmul.bf16.gmra.mxu0 %v601
        %v10271 = vpop.f32.mrf.mxu0
        %v10272 = vadd.f32 %v10253, %v10271
        %v10273 = vpop.f32.mrf.mxu0
        %v10274 = vadd.f32 %v10255, %v10273
        %10275 = vmatmul.bf16.gmra.mxu0 %v675
        %v10276 = vpop.f32.mrf.mxu0
        %v10277 = vadd.f32 %v10258, %v10276
        %v10278 = vpop.f32.mrf.mxu0
        %v10279 = vadd.f32 %v10260, %v10278
        %10280 = vdwg.mxu0
        %10281 = vmatpush.bf16.msra.mxu0 %v6354
        %10282 = vmatpush.bf16.msra.mxu0 %v6352
        %10283 = vmatpush.bf16.msra.mxu0 %v6350
        %10284 = vmatpush.bf16.msra.mxu0 %v6348
        %10285 = vmatpush.bf16.msra.mxu0 %v6346
        %10286 = vmatpush.bf16.msra.mxu0 %v6344
        %10287 = vmatpush.bf16.msra.mxu0 %v6342
        %10288 = vmatpush.bf16.msra.mxu0 %v6340
        %10289 = vmatmul.bf16.gmra.mxu0 %v602
        %v10290 = vpop.f32.mrf.mxu0
        %v10291 = vadd.f32 %v10272, %v10290
        %v10292 = vpop.f32.mrf.mxu0
        %v10293 = vadd.f32 %v10274, %v10292
        %10294 = vmatmul.bf16.gmra.mxu0 %v676
        %v10295 = vpop.f32.mrf.mxu0
        %v10296 = vadd.f32 %v10277, %v10295
        %v10297 = vpop.f32.mrf.mxu0
        %v10298 = vadd.f32 %v10279, %v10297
        %10299 = vdwg.mxu0
        %10300 = vmatpush.bf16.msra.mxu0 %v6370
        %10301 = vmatpush.bf16.msra.mxu0 %v6368
        %10302 = vmatpush.bf16.msra.mxu0 %v6366
        %10303 = vmatpush.bf16.msra.mxu0 %v6364
        %10304 = vmatpush.bf16.msra.mxu0 %v6362
        %10305 = vmatpush.bf16.msra.mxu0 %v6360
        %10306 = vmatpush.bf16.msra.mxu0 %v6358
        %10307 = vmatpush.bf16.msra.mxu0 %v6356
        %10308 = vmatmul.bf16.gmra.mxu0 %v603
        %v10309 = vpop.f32.mrf.mxu0
        %v10310 = vadd.f32 %v10291, %v10309
        %v10311 = vpop.f32.mrf.mxu0
        %v10312 = vadd.f32 %v10293, %v10311
        %10313 = vmatmul.bf16.gmra.mxu0 %v677
        %v10314 = vpop.f32.mrf.mxu0
        %v10315 = vadd.f32 %v10296, %v10314
        %v10316 = vpop.f32.mrf.mxu0
        %v10317 = vadd.f32 %v10298, %v10316
        %10318 = vdwg.mxu0
        %10319 = vmatpush.bf16.msra.mxu0 %v6386
        %10320 = vmatpush.bf16.msra.mxu0 %v6384
        %10321 = vmatpush.bf16.msra.mxu0 %v6382
        %10322 = vmatpush.bf16.msra.mxu0 %v6380
        %10323 = vmatpush.bf16.msra.mxu0 %v6378
        %10324 = vmatpush.bf16.msra.mxu0 %v6376
        %10325 = vmatpush.bf16.msra.mxu0 %v6374
        %10326 = vmatpush.bf16.msra.mxu0 %v6372
        %10327 = vmatmul.bf16.gmra.mxu0 %v604
        %v10328 = vpop.f32.mrf.mxu0
        %v10329 = vadd.f32 %v10310, %v10328
        %v10330 = vpop.f32.mrf.mxu0
        %v10331 = vadd.f32 %v10312, %v10330
        %10332 = vmatmul.bf16.gmra.mxu0 %v678
        %v10333 = vpop.f32.mrf.mxu0
        %v10334 = vadd.f32 %v10315, %v10333
        %v10335 = vpop.f32.mrf.mxu0
        %v10336 = vadd.f32 %v10317, %v10335
        %10337 = vdwg.mxu0
        %10338 = vmatpush.bf16.msra.mxu0 %v6402
        %10339 = vmatpush.bf16.msra.mxu0 %v6400
        %10340 = vmatpush.bf16.msra.mxu0 %v6398
        %10341 = vmatpush.bf16.msra.mxu0 %v6396
        %10342 = vmatpush.bf16.msra.mxu0 %v6394
        %10343 = vmatpush.bf16.msra.mxu0 %v6392
        %10344 = vmatpush.bf16.msra.mxu0 %v6390
        %10345 = vmatpush.bf16.msra.mxu0 %v6388
        %10346 = vmatmul.bf16.gmra.mxu0 %v605
        %v10347 = vpop.f32.mrf.mxu0
        %v10348 = vadd.f32 %v10329, %v10347
        %v10349 = vpop.f32.mrf.mxu0
        %v10350 = vadd.f32 %v10331, %v10349
        %10351 = vmatmul.bf16.gmra.mxu0 %v679
        %v10352 = vpop.f32.mrf.mxu0
        %v10353 = vadd.f32 %v10334, %v10352
        %v10354 = vpop.f32.mrf.mxu0
        %v10355 = vadd.f32 %v10336, %v10354
        %10356 = vdwg.mxu0
        %10357 = vmatpush.bf16.msra.mxu0 %v6418
        %10358 = vmatpush.bf16.msra.mxu0 %v6416
        %10359 = vmatpush.bf16.msra.mxu0 %v6414
        %10360 = vmatpush.bf16.msra.mxu0 %v6412
        %10361 = vmatpush.bf16.msra.mxu0 %v6410
        %10362 = vmatpush.bf16.msra.mxu0 %v6408
        %10363 = vmatpush.bf16.msra.mxu0 %v6406
        %10364 = vmatpush.bf16.msra.mxu0 %v6404
        %10365 = vmatmul.bf16.gmra.mxu0 %v606
        %v10366 = vpop.f32.mrf.mxu0
        %v10367 = vadd.f32 %v10348, %v10366
        %v10368 = vpop.f32.mrf.mxu0
        %v10369 = vadd.f32 %v10350, %v10368
        %10370 = vmatmul.bf16.gmra.mxu0 %v680
        %v10371 = vpop.f32.mrf.mxu0
        %v10372 = vadd.f32 %v10353, %v10371
        %v10373 = vpop.f32.mrf.mxu0
        %v10374 = vadd.f32 %v10355, %v10373
        %10375 = vdwg.mxu0
        %10376 = vmatpush.bf16.msra.mxu0 %v6434
        %10377 = vmatpush.bf16.msra.mxu0 %v6432
        %10378 = vmatpush.bf16.msra.mxu0 %v6430
        %10379 = vmatpush.bf16.msra.mxu0 %v6428
        %10380 = vmatpush.bf16.msra.mxu0 %v6426
        %10381 = vmatpush.bf16.msra.mxu0 %v6424
        %10382 = vmatpush.bf16.msra.mxu0 %v6422
        %10383 = vmatpush.bf16.msra.mxu0 %v6420
        %10384 = vmatmul.bf16.gmra.mxu0 %v607
        %v10385 = vpop.f32.mrf.mxu0
        %v10386 = vadd.f32 %v10367, %v10385
        %v10387 = vpop.f32.mrf.mxu0
        %v10388 = vadd.f32 %v10369, %v10387
        %10389 = vmatmul.bf16.gmra.mxu0 %v681
        %v10390 = vpop.f32.mrf.mxu0
        %v10391 = vadd.f32 %v10372, %v10390
        %v10392 = vpop.f32.mrf.mxu0
        %v10393 = vadd.f32 %v10374, %v10392
        %10394 = vdwg.mxu0
        %10395 = vmatpush.bf16.msra.mxu0 %v6450
        %10396 = vmatpush.bf16.msra.mxu0 %v6448
        %10397 = vmatpush.bf16.msra.mxu0 %v6446
        %10398 = vmatpush.bf16.msra.mxu0 %v6444
        %10399 = vmatpush.bf16.msra.mxu0 %v6442
        %10400 = vmatpush.bf16.msra.mxu0 %v6440
        %10401 = vmatpush.bf16.msra.mxu0 %v6438
        %10402 = vmatpush.bf16.msra.mxu0 %v6436
        %10403 = vmatmul.bf16.gmra.mxu0 %v608
        %v10404 = vpop.f32.mrf.mxu0
        %v10405 = vadd.f32 %v10386, %v10404
        %v10406 = vpop.f32.mrf.mxu0
        %v10407 = vadd.f32 %v10388, %v10406
        %10408 = vmatmul.bf16.gmra.mxu0 %v682
        %v10409 = vpop.f32.mrf.mxu0
        %v10410 = vadd.f32 %v10391, %v10409
        %v10411 = vpop.f32.mrf.mxu0
        %v10412 = vadd.f32 %v10393, %v10411
        %10413 = vdwg.mxu0
        %10414 = vmatpush.bf16.msra.mxu0 %v6466
        %10415 = vmatpush.bf16.msra.mxu0 %v6464
        %10416 = vmatpush.bf16.msra.mxu0 %v6462
        %10417 = vmatpush.bf16.msra.mxu0 %v6460
        %10418 = vmatpush.bf16.msra.mxu0 %v6458
        %10419 = vmatpush.bf16.msra.mxu0 %v6456
        %10420 = vmatpush.bf16.msra.mxu0 %v6454
        %10421 = vmatpush.bf16.msra.mxu0 %v6452
        %10422 = vmatmul.bf16.gmra.mxu0 %v609
        %v10423 = vpop.f32.mrf.mxu0
        %v10424 = vadd.f32 %v10405, %v10423
        %v10425 = vpop.f32.mrf.mxu0
        %v10426 = vadd.f32 %v10407, %v10425
        %10427 = vmatmul.bf16.gmra.mxu0 %v683
        %v10428 = vpop.f32.mrf.mxu0
        %v10429 = vadd.f32 %v10410, %v10428
        %v10430 = vpop.f32.mrf.mxu0
        %v10431 = vadd.f32 %v10412, %v10430
        %10432 = vdwg.mxu0
        %10433 = vmatpush.bf16.msra.mxu0 %v6482
        %10434 = vmatpush.bf16.msra.mxu0 %v6480
        %10435 = vmatpush.bf16.msra.mxu0 %v6478
        %10436 = vmatpush.bf16.msra.mxu0 %v6476
        %10437 = vmatpush.bf16.msra.mxu0 %v6474
        %10438 = vmatpush.bf16.msra.mxu0 %v6472
        %10439 = vmatpush.bf16.msra.mxu0 %v6470
        %10440 = vmatpush.bf16.msra.mxu0 %v6468
        %10441 = vmatmul.bf16.gmra.mxu0 %v610
        %v10442 = vpop.f32.mrf.mxu0
        %v10443 = vadd.f32 %v10424, %v10442
        %v10444 = vpop.f32.mrf.mxu0
        %v10445 = vadd.f32 %v10426, %v10444
        %10446 = vmatmul.bf16.gmra.mxu0 %v684
        %v10447 = vpop.f32.mrf.mxu0
        %v10448 = vadd.f32 %v10429, %v10447
        %v10449 = vpop.f32.mrf.mxu0
        %v10450 = vadd.f32 %v10431, %v10449
        %10451 = vdwg.mxu0
        %10452 = vmatpush.bf16.msra.mxu0 %v6498
        %10453 = vmatpush.bf16.msra.mxu0 %v6496
        %10454 = vmatpush.bf16.msra.mxu0 %v6494
        %10455 = vmatpush.bf16.msra.mxu0 %v6492
        %10456 = vmatpush.bf16.msra.mxu0 %v6490
        %10457 = vmatpush.bf16.msra.mxu0 %v6488
        %10458 = vmatpush.bf16.msra.mxu0 %v6486
        %10459 = vmatpush.bf16.msra.mxu0 %v6484
        %10460 = vmatmul.bf16.gmra.mxu0 %v611
        %v10461 = vpop.f32.mrf.mxu0
        %v10462 = vadd.f32 %v10443, %v10461
        %v10463 = vpop.f32.mrf.mxu0
        %v10464 = vadd.f32 %v10445, %v10463
        %10465 = vmatmul.bf16.gmra.mxu0 %v685
        %v10466 = vpop.f32.mrf.mxu0
        %v10467 = vadd.f32 %v10448, %v10466
        %v10468 = vpop.f32.mrf.mxu0
        %v10469 = vadd.f32 %v10450, %v10468
        %10470 = vdwg.mxu0
        %10471 = vmatpush.bf16.msra.mxu0 %v6514
        %10472 = vmatpush.bf16.msra.mxu0 %v6512
        %10473 = vmatpush.bf16.msra.mxu0 %v6510
        %10474 = vmatpush.bf16.msra.mxu0 %v6508
        %10475 = vmatpush.bf16.msra.mxu0 %v6506
        %10476 = vmatpush.bf16.msra.mxu0 %v6504
        %10477 = vmatpush.bf16.msra.mxu0 %v6502
        %10478 = vmatpush.bf16.msra.mxu0 %v6500
        %10479 = vmatmul.bf16.gmra.mxu0 %v612
        %v10480 = vpop.f32.mrf.mxu0
        %v10481 = vadd.f32 %v10462, %v10480
        %v10482 = vpop.f32.mrf.mxu0
        %v10483 = vadd.f32 %v10464, %v10482
        %10484 = vmatmul.bf16.gmra.mxu0 %v686
        %v10485 = vpop.f32.mrf.mxu0
        %v10486 = vadd.f32 %v10467, %v10485
        %v10487 = vpop.f32.mrf.mxu0
        %v10488 = vadd.f32 %v10469, %v10487
        %10489 = vdwg.mxu0
        %10490 = vmatpush.bf16.msra.mxu0 %v6530
        %10491 = vmatpush.bf16.msra.mxu0 %v6528
        %10492 = vmatpush.bf16.msra.mxu0 %v6526
        %10493 = vmatpush.bf16.msra.mxu0 %v6524
        %10494 = vmatpush.bf16.msra.mxu0 %v6522
        %10495 = vmatpush.bf16.msra.mxu0 %v6520
        %10496 = vmatpush.bf16.msra.mxu0 %v6518
        %10497 = vmatpush.bf16.msra.mxu0 %v6516
        %10498 = vmatmul.bf16.gmra.mxu0 %v613
        %v10499 = vpop.f32.mrf.mxu0
        %v10500 = vadd.f32 %v10481, %v10499
        %v10501 = vpop.f32.mrf.mxu0
        %v10502 = vadd.f32 %v10483, %v10501
        %10503 = vmatmul.bf16.gmra.mxu0 %v687
        %v10504 = vpop.f32.mrf.mxu0
        %v10505 = vadd.f32 %v10486, %v10504
        %v10506 = vpop.f32.mrf.mxu0
        %v10507 = vadd.f32 %v10488, %v10506
        %10508 = vdwg.mxu0
        %10509 = vmatpush.bf16.msra.mxu0 %v6546
        %10510 = vmatpush.bf16.msra.mxu0 %v6544
        %10511 = vmatpush.bf16.msra.mxu0 %v6542
        %10512 = vmatpush.bf16.msra.mxu0 %v6540
        %10513 = vmatpush.bf16.msra.mxu0 %v6538
        %10514 = vmatpush.bf16.msra.mxu0 %v6536
        %10515 = vmatpush.bf16.msra.mxu0 %v6534
        %10516 = vmatpush.bf16.msra.mxu0 %v6532
        %10517 = vmatmul.bf16.gmra.mxu0 %v614
        %v10518 = vpop.f32.mrf.mxu0
        %v10519 = vadd.f32 %v10500, %v10518
        %v10520 = vpop.f32.mrf.mxu0
        %v10521 = vadd.f32 %v10502, %v10520
        %10522 = vmatmul.bf16.gmra.mxu0 %v688
        %v10523 = vpop.f32.mrf.mxu0
        %v10524 = vadd.f32 %v10505, %v10523
        %v10525 = vpop.f32.mrf.mxu0
        %v10526 = vadd.f32 %v10507, %v10525
        %10527 = vdwg.mxu0
        %10528 = vmatpush.bf16.msra.mxu0 %v6562
        %10529 = vmatpush.bf16.msra.mxu0 %v6560
        %10530 = vmatpush.bf16.msra.mxu0 %v6558
        %10531 = vmatpush.bf16.msra.mxu0 %v6556
        %10532 = vmatpush.bf16.msra.mxu0 %v6554
        %10533 = vmatpush.bf16.msra.mxu0 %v6552
        %10534 = vmatpush.bf16.msra.mxu0 %v6550
        %10535 = vmatpush.bf16.msra.mxu0 %v6548
        %10536 = vmatmul.bf16.gmra.mxu0 %v615
        %v10537 = vpop.f32.mrf.mxu0
        %v10538 = vadd.f32 %v10519, %v10537
        %v10539 = vpop.f32.mrf.mxu0
        %v10540 = vadd.f32 %v10521, %v10539
        %10541 = vmatmul.bf16.gmra.mxu0 %v689
        %v10542 = vpop.f32.mrf.mxu0
        %v10543 = vadd.f32 %v10524, %v10542
        %v10544 = vpop.f32.mrf.mxu0
        %v10545 = vadd.f32 %v10526, %v10544
        %10546 = vdwg.mxu0
        %10547 = vmatpush.bf16.msra.mxu0 0
        %10548 = vmatpush.bf16.msra.mxu0 0
        %10549 = vmatpush.bf16.msra.mxu0 0
        %10550 = vmatpush.bf16.msra.mxu0 0
        %10551 = vmatpush.bf16.msra.mxu0 %v6570
        %10552 = vmatpush.bf16.msra.mxu0 %v6568
        %10553 = vmatpush.bf16.msra.mxu0 %v6566
        %10554 = vmatpush.bf16.msra.mxu0 %v6564
        %10555 = vmatmul.bf16.gmra.mxu0 %v7749
        %v10556 = vpop.f32.mrf.mxu0
        %v10557 = vadd.f32 %v10538, %v10556
        %v10558 = vpop.f32.mrf.mxu0
        %v10559 = vadd.f32 %v10540, %v10558
        %10560 = vmatmul.bf16.gmra.mxu0 %v7752
        %v10561 = vpop.f32.mrf.mxu0
        %v10562 = vadd.f32 %v10543, %v10561
        %v10563 = vpop.f32.mrf.mxu0
        %v10564 = vadd.f32 %v10545, %v10563
        %10565 = vdwg.mxu0
        %v10566 = vadd.f32 %v239, %v9151
        %v10567 = vadd.f32 %v240, %v10557
        %v10568 = vadd.f32 %v241, %v9153
        %v10569 = vadd.f32 %v242, %v10559
        %v10570 = vadd.f32 %v243, %v9156
        %v10571 = vadd.f32 %v244, %v10562
        %v10572 = vadd.f32 %v245, %v9158
        %v10573 = vadd.f32 %v246, %v10564
        %10574 = vst [vmem:[#allocation2] sm:$0xff] %v10566
        %10575 = vst [vmem:[#allocation2 + $0x8] sm:$0xff] %v10567
        %10576 = vst [vmem:[#allocation2 + $0x10] sm:$0xff] %v10568
        %10577 = vst [vmem:[#allocation2 + $0x18] sm:$0xff] %v10569
        %10578 = vst [vmem:[#allocation2 + $0x20] sm:$0xff] %v10570
        %10579 = vst [vmem:[#allocation2 + $0x28] sm:$0xff] %v10571
        %10580 = vst [vmem:[#allocation2 + $0x30] sm:$0xff] %v10572
        %10581 = vst [vmem:[#allocation2 + $0x38] sm:$0xff] %v10573
        // Predicated region
        $region41: #{tpu_custom_call.1} parent=27 // pred_check
          %p10582 = pneg %p227
        $region42: #{tpu_custom_call.1} parent=27 // pred_check_branch
          %10584 = sbr.rel (%p10582) target = $region44
        $region43: #{tpu_custom_call.1} parent=27 // pred_region
          %v10585 = vld [vmem:[#allocation2] sm:$0xff]
          %v10586 = vld [vmem:[#allocation2 + $0x8] sm:$0xff]
          %v10587 = vld [vmem:[#allocation2 + $0x10] sm:$0xff]
          %v10588 = vld [vmem:[#allocation2 + $0x18] sm:$0xff]
          %v10589 = vld [vmem:[#allocation2 + $0x20] sm:$0xff]
          %v10590 = vld [vmem:[#allocation2 + $0x28] sm:$0xff]
          %v10591 = vld [vmem:[#allocation2 + $0x30] sm:$0xff]
          %v10592 = vld [vmem:[#allocation2 + $0x38] sm:$0xff]
          %10593 = vst [vmem:[%s219] sm:$0xff] %v10585
          %10594 = vst [vmem:[%s219 + $0x8] sm:$0xff] %v10586
          %10595 = vst [vmem:[%s219 + $0x10] sm:$0xff] %v10587
          %10596 = vst [vmem:[%s219 + $0x18] sm:$0xff] %v10588
          %10597 = vst [vmem:[%s219 + $0x20] sm:$0xff] %v10589
          %10598 = vst [vmem:[%s219 + $0x28] sm:$0xff] %v10590
          %10599 = vst [vmem:[%s219 + $0x30] sm:$0xff] %v10591
          %10600 = vst [vmem:[%s219 + $0x38] sm:$0xff] %v10592
        $region44: #{tpu_custom_call.1} parent=27 // pred_fallthru
          _
        %s10601 = sand.u32 %s105, 1
        %s10602 = scalar_lea.sflag [#allocation5], %s10601
        %s10603 = sand.u32 %s105, 1
        %s10604 = smul.addr %s10603, 64
        %s10605 = scalar_lea.vmem [#allocation8], %s10604
        // Predicated region
        $region45: #{tpu_custom_call.1} parent=27 // pred_check
          %p10606 = pneg %p115
        $region46: #{tpu_custom_call.1} parent=27 // pred_check_branch
          %10608 = sbr.rel (%p10606) target = $region48
        $region47: #{tpu_custom_call.1} parent=27 // pred_region
          %s10609 = smul.u32 4, %s25
          %s10610 = smul.u32 2, %s26
          %10612 = vsyncadd %s10602, 0
          %s10613 = smul.addr %s10609, 74
          %s10614 = sadd.s32 %s10610, %s10613
          %s10615 = smul.addr %s10614, 8
          %s10616 = scalar_lea.hbm %s2, %s10615
          %s10617 = sshll.u32 %s10605, 4
          %s10618 = int_to_ptr.vmem [resolvable:$true] %s10617
          %s10619 = sshll.u32 %s10616, 4
          %s10620 = int_to_ptr.hbm [resolvable:$true] %s10619
          %10625 = dma.vmem_to_hbm [thread:$0]  %s10618, 1024, %s10620, %s10602, 256, 9472, 16
        $region48: #{tpu_custom_call.1} parent=27 // pred_fallthru
          _
      $region28: #{tpu_custom_call.1} parent=5 // pred_fallthru
        _
      %p10626 = scmp.le.s32.totalorder 2, %s15
      // Predicated region
      $region49: #{tpu_custom_call.1} parent=5 // pred_check
        %p10627 = pneg %p10626
      $region50: #{tpu_custom_call.1} parent=5 // pred_check_branch
        %10629 = sbr.rel (%p10627) target = $region52
      $region51: #{tpu_custom_call.1} parent=5 // pred_region
        %s10630 = ssub.s32 %s15, 2
        // Predicated region
        $region53: #{tpu_custom_call.1} parent=51 // pred_check
          %p10631 = pneg %p121
        $region54: #{tpu_custom_call.1} parent=51 // pred_check_branch
          %10633 = sbr.rel (%p10631) target = $region56
        $region55: #{tpu_custom_call.1} parent=51 // pred_region
          %s10634 = sand.u32 %s106, 1
          %s10635 = scalar_lea.sflag [#allocation5], %s10634
          %s10636 = sand.u32 %s106, 1
          %s10637 = smul.addr %s10636, 64
          %s10638 = scalar_lea.vmem [#allocation8], %s10637
          %10640 = dma.done %s10635, 1024
        $region56: #{tpu_custom_call.1} parent=51 // pred_fallthru
          _
      $region52: #{tpu_custom_call.1} parent=5 // pred_fallthru
        _
    $region6: #{tpu_custom_call.1} parent=1 // loop_footer
      %s19 = sadd.s32 1, %s15
    $region7: #{tpu_custom_call.1} parent=1 // loop_footer_branch
      %14 = sbr.rel target = $region3
    $region8: #{tpu_custom_call.1} parent=1 // loop_exit
      _
    %10641 = vsyncpa [#allocation4], 1
    %s10642 = scalar_lea.sflag [#allocation4], 1
    %10643 = vsyncpa %s10642, 1
    %10644 = vsyncpa [#allocation7], 1
    %s10645 = scalar_lea.sflag [#allocation7], 1
    %10646 = vsyncpa %s10645, 1
    %10647 = vsyncpa [#allocation5], 1
    %s10648 = scalar_lea.sflag [#allocation5], 1
    %10649 = vsyncpa %s10648, 1

</llo_original>
